<compile_context>
chip_gen: v6e
topology: v6e:2x2x1
jax: 0.10.0
libtpu: 0.0.40
codegen_flags: <defaults>
</compile_context>

<pallas_src>
from functools import partial

import jax
import jax.numpy as jnp
from jax.experimental import pallas as pl
from jax.experimental.pallas import tpu as pltpu

EPS = 1e-8


# ------------------------------------------------------------------ in-kernel helpers
def _gln_packed(y, gamma, beta, T, S):
    """Global layer norm (GroupNorm(1, C)) applied independently to each of the S
    T-wide lane segments (one segment == one packed batch sample).

    Perf: the y / y*y reductions are fused into a single stacked [y; y*y] cross-lane
    reduce per segment, and the affine is folded so the full-tile apply is only
    `y * scale + shift` (2 VPU passes/element).  Stats stay >= 2-D for Mosaic.
    NOTE: single-pass E[x^2]-E[x]^2 variance (clamped at 0); close to but not
    bit-identical with PyTorch GroupNorm's two-pass computation.
    """
    C = y.shape[0]
    inv_n = 1.0 / (C * T)
    parts = []
    for s in range(S):
        ys = y[:, s * T:(s + 1) * T]
        stacked = jnp.concatenate([ys, ys * ys], axis=0)            # (2C, T)
        lane_sums = jnp.sum(stacked, axis=1, keepdims=True)         # one lane reduce
        mean = jnp.sum(lane_sums[:C], axis=0, keepdims=True) * inv_n   # (1, 1)
        ex2 = jnp.sum(lane_sums[C:], axis=0, keepdims=True) * inv_n    # (1, 1)
        var = jnp.maximum(ex2 - mean * mean, 0.0)
        scale = gamma * jax.lax.rsqrt(var + EPS)                    # (C, 1)
        shift = beta - mean * scale                                 # (C, 1)
        parts.append(ys * scale + shift)
    return parts[0] if S == 1 else jnp.concatenate(parts, axis=1)


def _shift_packed(h, d, T, S, left):
    """Zero-padded shift by +/- d within each T-wide lane segment (packed sample).

    Replaces pltpu.roll + edge-mask select: the per-segment slice+concat inserts the
    conv 'same' zero padding directly AND never leaks data across sample boundaries,
    so no per-dilation masks are needed at all.
    """
    C = h.shape[0]
    zpad = jnp.zeros((C, d), h.dtype)
    pieces = []
    for s in range(S):
        seg = h[:, s * T:(s + 1) * T]
        if left:            # value at t is h[t - d]
            pieces += [zpad, seg[:, :T - d]]
        else:               # value at t is h[t + d]
            pieces += [seg[:, d:], zpad]
    return jnp.concatenate(pieces, axis=1)


# ------------------------------------------------------------------ fused kernel
def make_fused_kernel(T, S, F, dilations):
    """One grid step == S batch samples packed along the lane axis (C, S*T)."""
    SW = S * T

    def kernel(enc_ref, ln_p_ref, bn_w_ref, bn_b_ref,
               blk_w1_ref, blk_p1_ref, blk_wrs_ref, blk_brs_ref,
               out_w_ref, out_b_ref, out_a_ref, dec_wT_ref,
               out_ref):
        enc = enc_ref[0]                                               # (C, S*T) f32

        # ---- gLN on encoder output + 1x1 bottleneck (C -> F) ----
        x = _gln_packed(enc, ln_p_ref[:, 0:1], ln_p_ref[:, 1:2], T, S)
        x = jnp.dot(bn_w_ref[...], x.astype(jnp.bfloat16),
                    preferred_element_type=jnp.float32) + bn_b_ref[...]   # (F, S*T)

        skip = jnp.zeros_like(x)

        # ---- stacked dilated TCN blocks (unrolled; dilations are static) ----
        for i, d in enumerate(dilations):
            p = blk_p1_ref[i]                                          # (H, 11) f32
            # 1x1 (F -> H) + PReLU + gLN
            h = jnp.dot(blk_w1_ref[i], x.astype(jnp.bfloat16),
                        preferred_element_type=jnp.float32) + p[:, 0:1]
            h = jnp.where(h > 0, h, p[:, 9:10] * h)                    # PReLU
            h = _gln_packed(h, p[:, 1:2], p[:, 2:3], T, S)
            # depthwise dilated conv, kernel=3, 'same' zero padding per sample segment
            left = _shift_packed(h, d, T, S, left=True)                # h[t-d]
            right = _shift_packed(h, d, T, S, left=False)              # h[t+d]
            y = h * p[:, 4:5] + p[:, 6:7]
            y = y + left * p[:, 3:4]
            y = y + right * p[:, 5:6]
            y = jnp.where(y > 0, y, p[:, 10:11] * y)                   # PReLU
            y = _gln_packed(y, p[:, 7:8], p[:, 8:9], T, S)
            # fused residual + skip 1x1: one (2F, H) dot, f32 accumulators in VMEM values
            rs = jnp.dot(blk_wrs_ref[i], y.astype(jnp.bfloat16),
                         preferred_element_type=jnp.float32) + blk_brs_ref[i]  # (2F, S*T)
            x = x + rs[:F]
            skip = skip + rs[F:]

        # ---- output PReLU + 1x1 (F -> C*num_spk) -> sigmoid mask ----
        o = jnp.where(skip > 0, skip, out_a_ref[...] * skip)
        tcn_out = jnp.dot(out_w_ref[...], o.astype(jnp.bfloat16),
                          preferred_element_type=jnp.float32) + out_b_ref[...]  # (C, S*T)
        mask = jax.nn.sigmoid(tcn_out)

        # ---- ConvTranspose1d(enc_dim, 1, win=2, stride=1) decoder ----
        # Two small dots instead of a (C, 2*S*T) concat; enc*(1-mask) is never
        # materialized: z2 = dec(enc) - dec(enc*mask).
        w = dec_wT_ref[...]                                            # (2, C) bf16
        m1 = enc * mask
        z1 = jnp.dot(w, m1.astype(jnp.bfloat16), preferred_element_type=jnp.float32)
        ze = jnp.dot(w, enc.astype(jnp.bfloat16), preferred_element_type=jnp.float32)
        z2 = ze - z1                                                   # (2, S*T)
        # trimmed conv-transpose: out[t] = z[0, t+1] + z[1, t], valid for t in [0, T-2]
        # within each sample segment; lane t = T-1 of every segment is garbage (end of
        # the trimmed output) and is sliced off in the wrapper, so the kernel store
        # stays lane-dense (2, S*T).
        zpad1 = jnp.zeros((1, 1), jnp.float32)
        r1 = jnp.concatenate([z1[0:1, 1:], zpad1], axis=1) + z1[1:2, :]
        r2 = jnp.concatenate([z2[0:1, 1:], zpad1], axis=1) + z2[1:2, :]
        out_ref[0] = jnp.concatenate([r1, r2], axis=0)                 # (2, S*T)

    return kernel


# ------------------------------------------------------------------ wrapper
def tasnet_forward(params, enc_output, voiceP=None, *, layer, stack,
                   samples_per_step=2):
    """enc_output: (B, enc_dim, T) float32. Returns (output, e0, e1, e2, e3)."""
    B, C, T = enc_output.shape
    F = params["bn_b"].shape[0]
    dilations = tuple(2 ** l for _ in range(stack) for l in range(layer))

    # Pack S batch samples along the lane (time) axis: (B, C, T) -> (G, C, S*T).
    # Feeds every dot a >=256-lane N on v6e/v7x and halves grid-step overhead; the
    # layout plumbing is done here in the wrapper (cheap XLA transpose), never in-kernel.
    S = samples_per_step
    Bp = -(-B // S) * S
    x = enc_output
    if Bp != B:
        x = jnp.concatenate([x, jnp.zeros((Bp - B, C, T), x.dtype)], axis=0)
    G = Bp // S
    SW = S * T
    x_packed = x.reshape(G, S, C, T).transpose(0, 2, 1, 3).reshape(G, C, SW)

    def full(a):
        # Constant-index weight blocks.  TODO(synk): at production weight sizes add
        # pipeline_mode=pl.Buffered(1) here (single-buffer the invariant weights).
        return pl.BlockSpec(a.shape, lambda g, _n=a.ndim: (0,) * _n)

    out_full = pl.pallas_call(
        make_fused_kernel(T, S, F, dilations),
        out_shape=jax.ShapeDtypeStruct((G, 2, SW), jnp.float32),
        grid=(G,),
        in_specs=[
            pl.BlockSpec((1, C, SW), lambda g: (g, 0, 0)),   # packed encoder output
            full(params["ln_p"]),
            full(params["bn_w"]),
            full(params["bn_b"]),
            full(params["blk_w1"]),
            full(params["blk_p1"]),
            full(params["blk_wrs"]),
            full(params["blk_brs"]),
            full(params["out_w"]),
            full(params["out_b"]),
            full(params["out_a"]),
            full(params["dec_wT"]),
        ],
        out_specs=pl.BlockSpec((1, 2, SW), lambda g: (g, 0, 0)),
        compiler_params=pltpu.CompilerParams(
            dimension_semantics=("parallel",),
            # Demo working set is <1 MiB.  At production T/H raise this per generation:
            # ~100 MiB on v5e/v6e (128 MiB physical), cap ~56-60 MiB on v7x (64 MiB).
            vmem_limit_bytes=32 * 1024 * 1024,
        ),
    )(x_packed, params["ln_p"], params["bn_w"], params["bn_b"],
      params["blk_w1"], params["blk_p1"], params["blk_wrs"], params["blk_brs"],
      params["out_w"], params["out_b"], params["out_a"], params["dec_wT"])

    # Unpack (G, 2, S*T) -> (B, 2, T) and apply the [stride:-stride] ConvTranspose trim
    # (drops the per-sample lane T-1, which the kernel deliberately left invalid).
    out = out_full.reshape(G, 2, S, T).transpose(0, 2, 1, 3).reshape(Bp, 2, T)
    output = out[:B, :, : T - 1]

    # TODO(synk): onset/offset endpoint heads + voiceprint-cue conditioning live in the
    # unavailable models/tcn.py; zero placeholders keep the reference 5-tuple arity.
    endpoint = jnp.zeros((B,), jnp.float32)
    return output, endpoint, endpoint, endpoint, endpoint


# ------------------------------------------------------------------ params
def init_params(key, enc_dim, feature_dim, hidden_dim, layer, stack, num_spk):
    C, F, H = enc_dim, feature_dim, hidden_dim
    NB = layer * stack
    keys = iter(jax.random.split(key, 5 + 3 * NB))

    def nrm(shape, scale=0.1):
        return (scale * jax.random.normal(next(keys), shape)).astype(jnp.float32)

    blk_w1, blk_p1, blk_wrs, blk_brs = [], [], [], []
    for _ in range(NB):
        blk_w1.append(nrm((H, F)).astype(jnp.bfloat16))
        wd = nrm((H, 3))  # depthwise 3-tap weights
        # packed per-channel params: [b1, g1, be1, wd0, wd1, wd2, bd, g2, be2, a1, a2]
        blk_p1.append(jnp.concatenate([
            jnp.zeros((H, 1), jnp.float32),        # 0: 1x1 (F->H) bias
            jnp.ones((H, 1), jnp.float32),         # 1: gLN-1 gamma
            jnp.zeros((H, 1), jnp.float32),        # 2: gLN-1 beta
            wd,                                    # 3-5: depthwise taps (t-d, t, t+d)
            jnp.zeros((H, 1), jnp.float32),        # 6: depthwise bias
            jnp.ones((H, 1), jnp.float32),         # 7: gLN-2 gamma
            jnp.zeros((H, 1), jnp.float32),        # 8: gLN-2 beta
            jnp.full((H, 1), 0.25, jnp.float32),   # 9: PReLU-1 alpha (broadcast column)
            jnp.full((H, 1), 0.25, jnp.float32),   # 10: PReLU-2 alpha
        ], axis=1))
        blk_wrs.append(nrm((2 * F, H)).astype(jnp.bfloat16))  # [w_res; w_skip]
        blk_brs.append(jnp.zeros((2 * F, 1), jnp.float32))

    return {
        "ln_p": jnp.concatenate(
            [jnp.ones((C, 1), jnp.float32), jnp.zeros((C, 1), jnp.float32)], axis=1),
        "bn_w": nrm((F, C)).astype(jnp.bfloat16),
        "bn_b": jnp.zeros((F, 1), jnp.float32),
        "blk_w1": jnp.stack(blk_w1),
        "blk_p1": jnp.stack(blk_p1),
        "blk_wrs": jnp.stack(blk_wrs),
        "blk_brs": jnp.stack(blk_brs),
        "out_w": nrm((C * num_spk, F)).astype(jnp.bfloat16),
        "out_b": jnp.zeros((C * num_spk, 1), jnp.float32),
        "out_a": jnp.full((F, 1), 0.25, jnp.float32),   # output-layer PReLU alpha
        # ConvTranspose1d(enc_dim, 1, win=2) weight, squeezed & pre-transposed -> (2, C)
        "dec_wT": nrm((2, C)).astype(jnp.bfloat16),
    }


# ------------------------------------------------------------------ main
if __name__ == "__main__":
    B = 2
    enc_dim = 32
    feature_dim = 16
    hidden_dim = feature_dim * 4
    layer, stack = 2, 2
    num_spk = 1          # fused decoder assumes num_spk == 1 (TasNet default)
    T = 128

    key = jax.random.PRNGKey(0)
    kp, kx, kv = jax.random.split(key, 3)
    params = init_params(kp, enc_dim, feature_dim, hidden_dim, layer, stack, num_spk)
    enc_output = jax.random.normal(kx, (B, enc_dim, T), dtype=jnp.float32)
    voiceP = jax.random.normal(kv, (B, enc_dim), dtype=jnp.float32)  # cue (unused, see TODO)

    fwd = jax.jit(partial(tasnet_forward, layer=layer, stack=stack))
    out = fwd(params, enc_output, voiceP)
    jax.block_until_ready(out)
    assert out[0].shape == (B, 2, T - 1)
    print("KERNEL_OK")
</pallas_src>

<mosaic_0001>
module attributes {stable_mosaic.version = 11 : i64} {
  func.func @kernel(%arg0: i32, %arg1: memref<1x32x256xf32, #tpu.memory_space<vmem>>, %arg2: memref<32x2xf32, #tpu.memory_space<vmem>>, %arg3: memref<16x32xbf16, #tpu.memory_space<vmem>>, %arg4: memref<16x1xf32, #tpu.memory_space<vmem>>, %arg5: memref<4x64x16xbf16, #tpu.memory_space<vmem>>, %arg6: memref<4x64x11xf32, #tpu.memory_space<vmem>>, %arg7: memref<4x32x64xbf16, #tpu.memory_space<vmem>>, %arg8: memref<4x32x1xf32, #tpu.memory_space<vmem>>, %arg9: memref<32x16xbf16, #tpu.memory_space<vmem>>, %arg10: memref<32x1xf32, #tpu.memory_space<vmem>>, %arg11: memref<16x1xf32, #tpu.memory_space<vmem>>, %arg12: memref<2x32xbf16, #tpu.memory_space<vmem>>, %arg13: memref<1x2x256xf32, #tpu.memory_space<vmem>>) attributes {dimension_semantics = [#tpu.dimension_semantics<parallel>], iteration_bounds = array<i64: 1>, scalar_prefetch = 0 : i64, scratch_operands = 0 : i64, tpu.core_type = #tpu.core_type<tc>, window_params = [{transform_indices = @transform_0, window_bounds = array<i64: 1, 32, 256>}, {pipeline_mode = #tpu.pipeline_mode<synchronous>, transform_indices = @transform_1, window_bounds = array<i64: 32, 2>}, {pipeline_mode = #tpu.pipeline_mode<synchronous>, transform_indices = @transform_2, window_bounds = array<i64: 16, 32>}, {pipeline_mode = #tpu.pipeline_mode<synchronous>, transform_indices = @transform_3, window_bounds = array<i64: 16, 1>}, {pipeline_mode = #tpu.pipeline_mode<synchronous>, transform_indices = @transform_4, window_bounds = array<i64: 4, 64, 16>}, {pipeline_mode = #tpu.pipeline_mode<synchronous>, transform_indices = @transform_5, window_bounds = array<i64: 4, 64, 11>}, {pipeline_mode = #tpu.pipeline_mode<synchronous>, transform_indices = @transform_6, window_bounds = array<i64: 4, 32, 64>}, {pipeline_mode = #tpu.pipeline_mode<synchronous>, transform_indices = @transform_7, window_bounds = array<i64: 4, 32, 1>}, {pipeline_mode = #tpu.pipeline_mode<synchronous>, transform_indices = @transform_8, window_bounds = array<i64: 32, 16>}, {pipeline_mode = #tpu.pipeline_mode<synchronous>, transform_indices = @transform_9, window_bounds = array<i64: 32, 1>}, {pipeline_mode = #tpu.pipeline_mode<synchronous>, transform_indices = @transform_10, window_bounds = array<i64: 16, 1>}, {pipeline_mode = #tpu.pipeline_mode<synchronous>, transform_indices = @transform_11, window_bounds = array<i64: 2, 32>}, {transform_indices = @transform_12, window_bounds = array<i64: 1, 2, 256>}]} {
    %c0 = arith.constant 0 : index
    %c0_0 = arith.constant 0 : index
    %c0_1 = arith.constant 0 : index
    %0 = vector.load %arg1[%c0, %c0_0, %c0_1] : memref<1x32x256xf32, #tpu.memory_space<vmem>>, vector<1x32x256xf32>
    %1 = vector.shape_cast %0 : vector<1x32x256xf32> to vector<32x256xf32>
    %c0_2 = arith.constant 0 : index
    %c0_3 = arith.constant 0 : index
    %2 = vector.load %arg2[%c0_2, %c0_3] : memref<32x2xf32, #tpu.memory_space<vmem>>, vector<32x1xf32>
    %c0_4 = arith.constant 0 : index
    %c1 = arith.constant 1 : index
    %3 = vector.load %arg2[%c0_4, %c1] : memref<32x2xf32, #tpu.memory_space<vmem>>, vector<32x1xf32>
    %4 = vector.extract_strided_slice %1 {offsets = [0, 0], sizes = [32, 128], strides = [1, 1]} : vector<32x256xf32> to vector<32x128xf32>
    %5 = arith.mulf %4, %4 : vector<32x128xf32>
    %6 = tpu.concatenate %4, %5 in 0 : vector<32x128xf32>, vector<32x128xf32> -> vector<64x128xf32>
    %cst = arith.constant dense<0.000000e+00> : vector<64xf32>
    %7 = vector.multi_reduction <add>, %6, %cst [1] : vector<64x128xf32> to vector<64xf32>
    %8 = vector.shape_cast %7 : vector<64xf32> to vector<64x1xf32>
    %9 = vector.extract_strided_slice %8 {offsets = [0, 0], sizes = [32, 1], strides = [1, 1]} : vector<64x1xf32> to vector<32x1xf32>
    %cst_5 = arith.constant dense<0.000000e+00> : vector<1xf32>
    %10 = vector.multi_reduction <add>, %9, %cst_5 [0] : vector<32x1xf32> to vector<1xf32>
    %11 = vector.shape_cast %10 : vector<1xf32> to vector<1x1xf32>
    %cst_6 = arith.constant 2.44140625E-4 : f32
    %12 = vector.broadcast %cst_6 : f32 to vector<1x1xf32>
    %13 = arith.mulf %11, %12 : vector<1x1xf32>
    %14 = vector.extract_strided_slice %8 {offsets = [32, 0], sizes = [32, 1], strides = [1, 1]} : vector<64x1xf32> to vector<32x1xf32>
    %cst_7 = arith.constant dense<0.000000e+00> : vector<1xf32>
    %15 = vector.multi_reduction <add>, %14, %cst_7 [0] : vector<32x1xf32> to vector<1xf32>
    %16 = vector.shape_cast %15 : vector<1xf32> to vector<1x1xf32>
    %cst_8 = arith.constant 2.44140625E-4 : f32
    %17 = vector.broadcast %cst_8 : f32 to vector<1x1xf32>
    %18 = arith.mulf %16, %17 : vector<1x1xf32>
    %19 = arith.mulf %13, %13 : vector<1x1xf32>
    %20 = arith.subf %18, %19 : vector<1x1xf32>
    %cst_9 = arith.constant 0.000000e+00 : f32
    %21 = vector.broadcast %cst_9 : f32 to vector<1x1xf32>
    %22 = arith.maximumf %20, %21 : vector<1x1xf32>
    %cst_10 = arith.constant 9.99999993E-9 : f32
    %23 = vector.broadcast %cst_10 : f32 to vector<1x1xf32>
    %24 = arith.addf %22, %23 : vector<1x1xf32>
    %25 = math.rsqrt %24 : vector<1x1xf32>
    %26 = vector.broadcast %25 : vector<1x1xf32> to vector<32x1xf32>
    %27 = arith.mulf %2, %26 : vector<32x1xf32>
    %28 = vector.broadcast %13 : vector<1x1xf32> to vector<32x1xf32>
    %29 = arith.mulf %28, %27 : vector<32x1xf32>
    %30 = arith.subf %3, %29 : vector<32x1xf32>
    %31 = vector.broadcast %27 : vector<32x1xf32> to vector<32x128xf32>
    %32 = arith.mulf %4, %31 : vector<32x128xf32>
    %33 = vector.broadcast %30 : vector<32x1xf32> to vector<32x128xf32>
    %34 = arith.addf %32, %33 : vector<32x128xf32>
    %35 = vector.extract_strided_slice %1 {offsets = [0, 128], sizes = [32, 128], strides = [1, 1]} : vector<32x256xf32> to vector<32x128xf32>
    %36 = arith.mulf %35, %35 : vector<32x128xf32>
    %37 = tpu.concatenate %35, %36 in 0 : vector<32x128xf32>, vector<32x128xf32> -> vector<64x128xf32>
    %cst_11 = arith.constant dense<0.000000e+00> : vector<64xf32>
    %38 = vector.multi_reduction <add>, %37, %cst_11 [1] : vector<64x128xf32> to vector<64xf32>
    %39 = vector.shape_cast %38 : vector<64xf32> to vector<64x1xf32>
    %40 = vector.extract_strided_slice %39 {offsets = [0, 0], sizes = [32, 1], strides = [1, 1]} : vector<64x1xf32> to vector<32x1xf32>
    %cst_12 = arith.constant dense<0.000000e+00> : vector<1xf32>
    %41 = vector.multi_reduction <add>, %40, %cst_12 [0] : vector<32x1xf32> to vector<1xf32>
    %42 = vector.shape_cast %41 : vector<1xf32> to vector<1x1xf32>
    %cst_13 = arith.constant 2.44140625E-4 : f32
    %43 = vector.broadcast %cst_13 : f32 to vector<1x1xf32>
    %44 = arith.mulf %42, %43 : vector<1x1xf32>
    %45 = vector.extract_strided_slice %39 {offsets = [32, 0], sizes = [32, 1], strides = [1, 1]} : vector<64x1xf32> to vector<32x1xf32>
    %cst_14 = arith.constant dense<0.000000e+00> : vector<1xf32>
    %46 = vector.multi_reduction <add>, %45, %cst_14 [0] : vector<32x1xf32> to vector<1xf32>
    %47 = vector.shape_cast %46 : vector<1xf32> to vector<1x1xf32>
    %cst_15 = arith.constant 2.44140625E-4 : f32
    %48 = vector.broadcast %cst_15 : f32 to vector<1x1xf32>
    %49 = arith.mulf %47, %48 : vector<1x1xf32>
    %50 = arith.mulf %44, %44 : vector<1x1xf32>
    %51 = arith.subf %49, %50 : vector<1x1xf32>
    %cst_16 = arith.constant 0.000000e+00 : f32
    %52 = vector.broadcast %cst_16 : f32 to vector<1x1xf32>
    %53 = arith.maximumf %51, %52 : vector<1x1xf32>
    %cst_17 = arith.constant 9.99999993E-9 : f32
    %54 = vector.broadcast %cst_17 : f32 to vector<1x1xf32>
    %55 = arith.addf %53, %54 : vector<1x1xf32>
    %56 = math.rsqrt %55 : vector<1x1xf32>
    %57 = vector.broadcast %56 : vector<1x1xf32> to vector<32x1xf32>
    %58 = arith.mulf %2, %57 : vector<32x1xf32>
    %59 = vector.broadcast %44 : vector<1x1xf32> to vector<32x1xf32>
    %60 = arith.mulf %59, %58 : vector<32x1xf32>
    %61 = arith.subf %3, %60 : vector<32x1xf32>
    %62 = vector.broadcast %58 : vector<32x1xf32> to vector<32x128xf32>
    %63 = arith.mulf %35, %62 : vector<32x128xf32>
    %64 = vector.broadcast %61 : vector<32x1xf32> to vector<32x128xf32>
    %65 = arith.addf %63, %64 : vector<32x128xf32>
    %66 = tpu.concatenate %34, %65 in 1 : vector<32x128xf32>, vector<32x128xf32> -> vector<32x256xf32>
    %c0_18 = arith.constant 0 : index
    %c0_19 = arith.constant 0 : index
    %67 = vector.load %arg3[%c0_18, %c0_19] : memref<16x32xbf16, #tpu.memory_space<vmem>>, vector<16x32xbf16>
    %68 = arith.truncf %66 : vector<32x256xf32> to vector<32x256xbf16>
    %cst_20 = arith.constant dense<0.000000e+00> : vector<16x256xf32>
    %69 = tpu.matmul %67, %68, %cst_20 {dimension_numbers = #tpu.dot_dimension_numbers<[1], [0], [0], [1], [0, 0, 1, 1], [], []>} : vector<16x32xbf16>, vector<32x256xbf16>, vector<16x256xf32> -> vector<16x256xf32>
    %c0_21 = arith.constant 0 : index
    %c0_22 = arith.constant 0 : index
    %70 = vector.load %arg4[%c0_21, %c0_22] : memref<16x1xf32, #tpu.memory_space<vmem>>, vector<16x1xf32>
    %71 = vector.broadcast %70 : vector<16x1xf32> to vector<16x256xf32>
    %72 = arith.addf %69, %71 : vector<16x256xf32>
    %cst_23 = arith.constant 0.000000e+00 : f32
    %73 = vector.broadcast %cst_23 : f32 to vector<16x256xf32>
    %c0_24 = arith.constant 0 : index
    %c0_25 = arith.constant 0 : index
    %c0_26 = arith.constant 0 : index
    %74 = vector.load %arg6[%c0_24, %c0_25, %c0_26] : memref<4x64x11xf32, #tpu.memory_space<vmem>>, vector<1x64x11xf32>
    %75 = vector.shape_cast %74 : vector<1x64x11xf32> to vector<64x11xf32>
    %c0_27 = arith.constant 0 : index
    %c0_28 = arith.constant 0 : index
    %c0_29 = arith.constant 0 : index
    %76 = vector.load %arg5[%c0_27, %c0_28, %c0_29] : memref<4x64x16xbf16, #tpu.memory_space<vmem>>, vector<1x64x16xbf16>
    %77 = vector.shape_cast %76 : vector<1x64x16xbf16> to vector<64x16xbf16>
    %78 = arith.truncf %72 : vector<16x256xf32> to vector<16x256xbf16>
    %cst_30 = arith.constant dense<0.000000e+00> : vector<64x256xf32>
    %79 = tpu.matmul %77, %78, %cst_30 {dimension_numbers = #tpu.dot_dimension_numbers<[1], [0], [0], [1], [0, 0, 1, 1], [], []>} : vector<64x16xbf16>, vector<16x256xbf16>, vector<64x256xf32> -> vector<64x256xf32>
    %80 = vector.extract_strided_slice %75 {offsets = [0, 0], sizes = [64, 1], strides = [1, 1]} : vector<64x11xf32> to vector<64x1xf32>
    %81 = vector.broadcast %80 : vector<64x1xf32> to vector<64x256xf32>
    %82 = arith.addf %79, %81 : vector<64x256xf32>
    %cst_31 = arith.constant 0.000000e+00 : f32
    %83 = vector.broadcast %cst_31 : f32 to vector<64x256xf32>
    %84 = arith.cmpf ogt, %82, %83 : vector<64x256xf32>
    %85 = vector.extract_strided_slice %75 {offsets = [0, 9], sizes = [64, 1], strides = [1, 1]} : vector<64x11xf32> to vector<64x1xf32>
    %86 = vector.broadcast %85 : vector<64x1xf32> to vector<64x256xf32>
    %87 = arith.mulf %86, %82 : vector<64x256xf32>
    %88 = arith.select %84, %82, %87 : vector<64x256xi1>, vector<64x256xf32>
    %89 = vector.extract_strided_slice %75 {offsets = [0, 1], sizes = [64, 1], strides = [1, 1]} : vector<64x11xf32> to vector<64x1xf32>
    %90 = vector.extract_strided_slice %75 {offsets = [0, 2], sizes = [64, 1], strides = [1, 1]} : vector<64x11xf32> to vector<64x1xf32>
    %91 = vector.extract_strided_slice %88 {offsets = [0, 0], sizes = [64, 128], strides = [1, 1]} : vector<64x256xf32> to vector<64x128xf32>
    %92 = arith.mulf %91, %91 : vector<64x128xf32>
    %93 = tpu.concatenate %91, %92 in 0 : vector<64x128xf32>, vector<64x128xf32> -> vector<128x128xf32>
    %cst_32 = arith.constant dense<0.000000e+00> : vector<128xf32>
    %94 = vector.multi_reduction <add>, %93, %cst_32 [1] : vector<128x128xf32> to vector<128xf32>
    %95 = vector.shape_cast %94 : vector<128xf32> to vector<128x1xf32>
    %96 = vector.extract_strided_slice %95 {offsets = [0, 0], sizes = [64, 1], strides = [1, 1]} : vector<128x1xf32> to vector<64x1xf32>
    %cst_33 = arith.constant dense<0.000000e+00> : vector<1xf32>
    %97 = vector.multi_reduction <add>, %96, %cst_33 [0] : vector<64x1xf32> to vector<1xf32>
    %98 = vector.shape_cast %97 : vector<1xf32> to vector<1x1xf32>
    %cst_34 = arith.constant 1.22070313E-4 : f32
    %99 = vector.broadcast %cst_34 : f32 to vector<1x1xf32>
    %100 = arith.mulf %98, %99 : vector<1x1xf32>
    %101 = vector.extract_strided_slice %95 {offsets = [64, 0], sizes = [64, 1], strides = [1, 1]} : vector<128x1xf32> to vector<64x1xf32>
    %cst_35 = arith.constant dense<0.000000e+00> : vector<1xf32>
    %102 = vector.multi_reduction <add>, %101, %cst_35 [0] : vector<64x1xf32> to vector<1xf32>
    %103 = vector.shape_cast %102 : vector<1xf32> to vector<1x1xf32>
    %cst_36 = arith.constant 1.22070313E-4 : f32
    %104 = vector.broadcast %cst_36 : f32 to vector<1x1xf32>
    %105 = arith.mulf %103, %104 : vector<1x1xf32>
    %106 = arith.mulf %100, %100 : vector<1x1xf32>
    %107 = arith.subf %105, %106 : vector<1x1xf32>
    %cst_37 = arith.constant 0.000000e+00 : f32
    %108 = vector.broadcast %cst_37 : f32 to vector<1x1xf32>
    %109 = arith.maximumf %107, %108 : vector<1x1xf32>
    %cst_38 = arith.constant 9.99999993E-9 : f32
    %110 = vector.broadcast %cst_38 : f32 to vector<1x1xf32>
    %111 = arith.addf %109, %110 : vector<1x1xf32>
    %112 = math.rsqrt %111 : vector<1x1xf32>
    %113 = vector.broadcast %112 : vector<1x1xf32> to vector<64x1xf32>
    %114 = arith.mulf %89, %113 : vector<64x1xf32>
    %115 = vector.broadcast %100 : vector<1x1xf32> to vector<64x1xf32>
    %116 = arith.mulf %115, %114 : vector<64x1xf32>
    %117 = arith.subf %90, %116 : vector<64x1xf32>
    %118 = vector.broadcast %114 : vector<64x1xf32> to vector<64x128xf32>
    %119 = arith.mulf %91, %118 : vector<64x128xf32>
    %120 = vector.broadcast %117 : vector<64x1xf32> to vector<64x128xf32>
    %121 = arith.addf %119, %120 : vector<64x128xf32>
    %122 = vector.extract_strided_slice %88 {offsets = [0, 128], sizes = [64, 128], strides = [1, 1]} : vector<64x256xf32> to vector<64x128xf32>
    %123 = arith.mulf %122, %122 : vector<64x128xf32>
    %124 = tpu.concatenate %122, %123 in 0 : vector<64x128xf32>, vector<64x128xf32> -> vector<128x128xf32>
    %cst_39 = arith.constant dense<0.000000e+00> : vector<128xf32>
    %125 = vector.multi_reduction <add>, %124, %cst_39 [1] : vector<128x128xf32> to vector<128xf32>
    %126 = vector.shape_cast %125 : vector<128xf32> to vector<128x1xf32>
    %127 = vector.extract_strided_slice %126 {offsets = [0, 0], sizes = [64, 1], strides = [1, 1]} : vector<128x1xf32> to vector<64x1xf32>
    %cst_40 = arith.constant dense<0.000000e+00> : vector<1xf32>
    %128 = vector.multi_reduction <add>, %127, %cst_40 [0] : vector<64x1xf32> to vector<1xf32>
    %129 = vector.shape_cast %128 : vector<1xf32> to vector<1x1xf32>
    %cst_41 = arith.constant 1.22070313E-4 : f32
    %130 = vector.broadcast %cst_41 : f32 to vector<1x1xf32>
    %131 = arith.mulf %129, %130 : vector<1x1xf32>
    %132 = vector.extract_strided_slice %126 {offsets = [64, 0], sizes = [64, 1], strides = [1, 1]} : vector<128x1xf32> to vector<64x1xf32>
    %cst_42 = arith.constant dense<0.000000e+00> : vector<1xf32>
    %133 = vector.multi_reduction <add>, %132, %cst_42 [0] : vector<64x1xf32> to vector<1xf32>
    %134 = vector.shape_cast %133 : vector<1xf32> to vector<1x1xf32>
    %cst_43 = arith.constant 1.22070313E-4 : f32
    %135 = vector.broadcast %cst_43 : f32 to vector<1x1xf32>
    %136 = arith.mulf %134, %135 : vector<1x1xf32>
    %137 = arith.mulf %131, %131 : vector<1x1xf32>
    %138 = arith.subf %136, %137 : vector<1x1xf32>
    %cst_44 = arith.constant 0.000000e+00 : f32
    %139 = vector.broadcast %cst_44 : f32 to vector<1x1xf32>
    %140 = arith.maximumf %138, %139 : vector<1x1xf32>
    %cst_45 = arith.constant 9.99999993E-9 : f32
    %141 = vector.broadcast %cst_45 : f32 to vector<1x1xf32>
    %142 = arith.addf %140, %141 : vector<1x1xf32>
    %143 = math.rsqrt %142 : vector<1x1xf32>
    %144 = vector.broadcast %143 : vector<1x1xf32> to vector<64x1xf32>
    %145 = arith.mulf %89, %144 : vector<64x1xf32>
    %146 = vector.broadcast %131 : vector<1x1xf32> to vector<64x1xf32>
    %147 = arith.mulf %146, %145 : vector<64x1xf32>
    %148 = arith.subf %90, %147 : vector<64x1xf32>
    %149 = vector.broadcast %145 : vector<64x1xf32> to vector<64x128xf32>
    %150 = arith.mulf %122, %149 : vector<64x128xf32>
    %151 = vector.broadcast %148 : vector<64x1xf32> to vector<64x128xf32>
    %152 = arith.addf %150, %151 : vector<64x128xf32>
    %153 = tpu.concatenate %121, %152 in 1 : vector<64x128xf32>, vector<64x128xf32> -> vector<64x256xf32>
    %cst_46 = arith.constant 0.000000e+00 : f32
    %154 = vector.broadcast %cst_46 : f32 to vector<64x1xf32>
    %155 = vector.extract_strided_slice %153 {offsets = [0, 0], sizes = [64, 128], strides = [1, 1]} : vector<64x256xf32> to vector<64x128xf32>
    %156 = vector.extract_strided_slice %155 {offsets = [0, 0], sizes = [64, 127], strides = [1, 1]} : vector<64x128xf32> to vector<64x127xf32>
    %157 = vector.extract_strided_slice %153 {offsets = [0, 128], sizes = [64, 128], strides = [1, 1]} : vector<64x256xf32> to vector<64x128xf32>
    %158 = vector.extract_strided_slice %157 {offsets = [0, 0], sizes = [64, 127], strides = [1, 1]} : vector<64x128xf32> to vector<64x127xf32>
    %159 = tpu.concatenate %154, %156, %154, %158 in 1 : vector<64x1xf32>, vector<64x127xf32>, vector<64x1xf32>, vector<64x127xf32> -> vector<64x256xf32>
    %cst_47 = arith.constant 0.000000e+00 : f32
    %160 = vector.broadcast %cst_47 : f32 to vector<64x1xf32>
    %161 = vector.extract_strided_slice %153 {offsets = [0, 0], sizes = [64, 128], strides = [1, 1]} : vector<64x256xf32> to vector<64x128xf32>
    %162 = vector.extract_strided_slice %161 {offsets = [0, 1], sizes = [64, 127], strides = [1, 1]} : vector<64x128xf32> to vector<64x127xf32>
    %163 = vector.extract_strided_slice %153 {offsets = [0, 128], sizes = [64, 128], strides = [1, 1]} : vector<64x256xf32> to vector<64x128xf32>
    %164 = vector.extract_strided_slice %163 {offsets = [0, 1], sizes = [64, 127], strides = [1, 1]} : vector<64x128xf32> to vector<64x127xf32>
    %165 = tpu.concatenate %162, %160, %164, %160 in 1 : vector<64x127xf32>, vector<64x1xf32>, vector<64x127xf32>, vector<64x1xf32> -> vector<64x256xf32>
    %166 = vector.extract_strided_slice %75 {offsets = [0, 4], sizes = [64, 1], strides = [1, 1]} : vector<64x11xf32> to vector<64x1xf32>
    %167 = vector.broadcast %166 : vector<64x1xf32> to vector<64x256xf32>
    %168 = arith.mulf %153, %167 : vector<64x256xf32>
    %169 = vector.extract_strided_slice %75 {offsets = [0, 6], sizes = [64, 1], strides = [1, 1]} : vector<64x11xf32> to vector<64x1xf32>
    %170 = vector.broadcast %169 : vector<64x1xf32> to vector<64x256xf32>
    %171 = arith.addf %168, %170 : vector<64x256xf32>
    %172 = vector.extract_strided_slice %75 {offsets = [0, 3], sizes = [64, 1], strides = [1, 1]} : vector<64x11xf32> to vector<64x1xf32>
    %173 = vector.broadcast %172 : vector<64x1xf32> to vector<64x256xf32>
    %174 = arith.mulf %159, %173 : vector<64x256xf32>
    %175 = arith.addf %171, %174 : vector<64x256xf32>
    %176 = vector.extract_strided_slice %75 {offsets = [0, 5], sizes = [64, 1], strides = [1, 1]} : vector<64x11xf32> to vector<64x1xf32>
    %177 = vector.broadcast %176 : vector<64x1xf32> to vector<64x256xf32>
    %178 = arith.mulf %165, %177 : vector<64x256xf32>
    %179 = arith.addf %175, %178 : vector<64x256xf32>
    %cst_48 = arith.constant 0.000000e+00 : f32
    %180 = vector.broadcast %cst_48 : f32 to vector<64x256xf32>
    %181 = arith.cmpf ogt, %179, %180 : vector<64x256xf32>
    %182 = vector.extract_strided_slice %75 {offsets = [0, 10], sizes = [64, 1], strides = [1, 1]} : vector<64x11xf32> to vector<64x1xf32>
    %183 = vector.broadcast %182 : vector<64x1xf32> to vector<64x256xf32>
    %184 = arith.mulf %183, %179 : vector<64x256xf32>
    %185 = arith.select %181, %179, %184 : vector<64x256xi1>, vector<64x256xf32>
    %186 = vector.extract_strided_slice %75 {offsets = [0, 7], sizes = [64, 1], strides = [1, 1]} : vector<64x11xf32> to vector<64x1xf32>
    %187 = vector.extract_strided_slice %75 {offsets = [0, 8], sizes = [64, 1], strides = [1, 1]} : vector<64x11xf32> to vector<64x1xf32>
    %188 = vector.extract_strided_slice %185 {offsets = [0, 0], sizes = [64, 128], strides = [1, 1]} : vector<64x256xf32> to vector<64x128xf32>
    %189 = arith.mulf %188, %188 : vector<64x128xf32>
    %190 = tpu.concatenate %188, %189 in 0 : vector<64x128xf32>, vector<64x128xf32> -> vector<128x128xf32>
    %cst_49 = arith.constant dense<0.000000e+00> : vector<128xf32>
    %191 = vector.multi_reduction <add>, %190, %cst_49 [1] : vector<128x128xf32> to vector<128xf32>
    %192 = vector.shape_cast %191 : vector<128xf32> to vector<128x1xf32>
    %193 = vector.extract_strided_slice %192 {offsets = [0, 0], sizes = [64, 1], strides = [1, 1]} : vector<128x1xf32> to vector<64x1xf32>
    %cst_50 = arith.constant dense<0.000000e+00> : vector<1xf32>
    %194 = vector.multi_reduction <add>, %193, %cst_50 [0] : vector<64x1xf32> to vector<1xf32>
    %195 = vector.shape_cast %194 : vector<1xf32> to vector<1x1xf32>
    %cst_51 = arith.constant 1.22070313E-4 : f32
    %196 = vector.broadcast %cst_51 : f32 to vector<1x1xf32>
    %197 = arith.mulf %195, %196 : vector<1x1xf32>
    %198 = vector.extract_strided_slice %192 {offsets = [64, 0], sizes = [64, 1], strides = [1, 1]} : vector<128x1xf32> to vector<64x1xf32>
    %cst_52 = arith.constant dense<0.000000e+00> : vector<1xf32>
    %199 = vector.multi_reduction <add>, %198, %cst_52 [0] : vector<64x1xf32> to vector<1xf32>
    %200 = vector.shape_cast %199 : vector<1xf32> to vector<1x1xf32>
    %cst_53 = arith.constant 1.22070313E-4 : f32
    %201 = vector.broadcast %cst_53 : f32 to vector<1x1xf32>
    %202 = arith.mulf %200, %201 : vector<1x1xf32>
    %203 = arith.mulf %197, %197 : vector<1x1xf32>
    %204 = arith.subf %202, %203 : vector<1x1xf32>
    %cst_54 = arith.constant 0.000000e+00 : f32
    %205 = vector.broadcast %cst_54 : f32 to vector<1x1xf32>
    %206 = arith.maximumf %204, %205 : vector<1x1xf32>
    %cst_55 = arith.constant 9.99999993E-9 : f32
    %207 = vector.broadcast %cst_55 : f32 to vector<1x1xf32>
    %208 = arith.addf %206, %207 : vector<1x1xf32>
    %209 = math.rsqrt %208 : vector<1x1xf32>
    %210 = vector.broadcast %209 : vector<1x1xf32> to vector<64x1xf32>
    %211 = arith.mulf %186, %210 : vector<64x1xf32>
    %212 = vector.broadcast %197 : vector<1x1xf32> to vector<64x1xf32>
    %213 = arith.mulf %212, %211 : vector<64x1xf32>
    %214 = arith.subf %187, %213 : vector<64x1xf32>
    %215 = vector.broadcast %211 : vector<64x1xf32> to vector<64x128xf32>
    %216 = arith.mulf %188, %215 : vector<64x128xf32>
    %217 = vector.broadcast %214 : vector<64x1xf32> to vector<64x128xf32>
    %218 = arith.addf %216, %217 : vector<64x128xf32>
    %219 = vector.extract_strided_slice %185 {offsets = [0, 128], sizes = [64, 128], strides = [1, 1]} : vector<64x256xf32> to vector<64x128xf32>
    %220 = arith.mulf %219, %219 : vector<64x128xf32>
    %221 = tpu.concatenate %219, %220 in 0 : vector<64x128xf32>, vector<64x128xf32> -> vector<128x128xf32>
    %cst_56 = arith.constant dense<0.000000e+00> : vector<128xf32>
    %222 = vector.multi_reduction <add>, %221, %cst_56 [1] : vector<128x128xf32> to vector<128xf32>
    %223 = vector.shape_cast %222 : vector<128xf32> to vector<128x1xf32>
    %224 = vector.extract_strided_slice %223 {offsets = [0, 0], sizes = [64, 1], strides = [1, 1]} : vector<128x1xf32> to vector<64x1xf32>
    %cst_57 = arith.constant dense<0.000000e+00> : vector<1xf32>
    %225 = vector.multi_reduction <add>, %224, %cst_57 [0] : vector<64x1xf32> to vector<1xf32>
    %226 = vector.shape_cast %225 : vector<1xf32> to vector<1x1xf32>
    %cst_58 = arith.constant 1.22070313E-4 : f32
    %227 = vector.broadcast %cst_58 : f32 to vector<1x1xf32>
    %228 = arith.mulf %226, %227 : vector<1x1xf32>
    %229 = vector.extract_strided_slice %223 {offsets = [64, 0], sizes = [64, 1], strides = [1, 1]} : vector<128x1xf32> to vector<64x1xf32>
    %cst_59 = arith.constant dense<0.000000e+00> : vector<1xf32>
    %230 = vector.multi_reduction <add>, %229, %cst_59 [0] : vector<64x1xf32> to vector<1xf32>
    %231 = vector.shape_cast %230 : vector<1xf32> to vector<1x1xf32>
    %cst_60 = arith.constant 1.22070313E-4 : f32
    %232 = vector.broadcast %cst_60 : f32 to vector<1x1xf32>
    %233 = arith.mulf %231, %232 : vector<1x1xf32>
    %234 = arith.mulf %228, %228 : vector<1x1xf32>
    %235 = arith.subf %233, %234 : vector<1x1xf32>
    %cst_61 = arith.constant 0.000000e+00 : f32
    %236 = vector.broadcast %cst_61 : f32 to vector<1x1xf32>
    %237 = arith.maximumf %235, %236 : vector<1x1xf32>
    %cst_62 = arith.constant 9.99999993E-9 : f32
    %238 = vector.broadcast %cst_62 : f32 to vector<1x1xf32>
    %239 = arith.addf %237, %238 : vector<1x1xf32>
    %240 = math.rsqrt %239 : vector<1x1xf32>
    %241 = vector.broadcast %240 : vector<1x1xf32> to vector<64x1xf32>
    %242 = arith.mulf %186, %241 : vector<64x1xf32>
    %243 = vector.broadcast %228 : vector<1x1xf32> to vector<64x1xf32>
    %244 = arith.mulf %243, %242 : vector<64x1xf32>
    %245 = arith.subf %187, %244 : vector<64x1xf32>
    %246 = vector.broadcast %242 : vector<64x1xf32> to vector<64x128xf32>
    %247 = arith.mulf %219, %246 : vector<64x128xf32>
    %248 = vector.broadcast %245 : vector<64x1xf32> to vector<64x128xf32>
    %249 = arith.addf %247, %248 : vector<64x128xf32>
    %250 = tpu.concatenate %218, %249 in 1 : vector<64x128xf32>, vector<64x128xf32> -> vector<64x256xf32>
    %c0_63 = arith.constant 0 : index
    %c0_64 = arith.constant 0 : index
    %c0_65 = arith.constant 0 : index
    %251 = vector.load %arg7[%c0_63, %c0_64, %c0_65] : memref<4x32x64xbf16, #tpu.memory_space<vmem>>, vector<1x32x64xbf16>
    %252 = vector.shape_cast %251 : vector<1x32x64xbf16> to vector<32x64xbf16>
    %253 = arith.truncf %250 : vector<64x256xf32> to vector<64x256xbf16>
    %cst_66 = arith.constant dense<0.000000e+00> : vector<32x256xf32>
    %254 = tpu.matmul %252, %253, %cst_66 {dimension_numbers = #tpu.dot_dimension_numbers<[1], [0], [0], [1], [0, 0, 1, 1], [], []>} : vector<32x64xbf16>, vector<64x256xbf16>, vector<32x256xf32> -> vector<32x256xf32>
    %c0_67 = arith.constant 0 : index
    %c0_68 = arith.constant 0 : index
    %c0_69 = arith.constant 0 : index
    %255 = vector.load %arg8[%c0_67, %c0_68, %c0_69] : memref<4x32x1xf32, #tpu.memory_space<vmem>>, vector<1x32x1xf32>
    %256 = vector.shape_cast %255 : vector<1x32x1xf32> to vector<32x1xf32>
    %257 = vector.broadcast %256 : vector<32x1xf32> to vector<32x256xf32>
    %258 = arith.addf %254, %257 : vector<32x256xf32>
    %259 = vector.extract_strided_slice %258 {offsets = [0, 0], sizes = [16, 256], strides = [1, 1]} : vector<32x256xf32> to vector<16x256xf32>
    %260 = arith.addf %72, %259 : vector<16x256xf32>
    %261 = vector.extract_strided_slice %258 {offsets = [16, 0], sizes = [16, 256], strides = [1, 1]} : vector<32x256xf32> to vector<16x256xf32>
    %262 = arith.addf %73, %261 : vector<16x256xf32>
    %c1_70 = arith.constant 1 : index
    %c0_71 = arith.constant 0 : index
    %c0_72 = arith.constant 0 : index
    %263 = vector.load %arg6[%c1_70, %c0_71, %c0_72] : memref<4x64x11xf32, #tpu.memory_space<vmem>>, vector<1x64x11xf32>
    %264 = vector.shape_cast %263 : vector<1x64x11xf32> to vector<64x11xf32>
    %c1_73 = arith.constant 1 : index
    %c0_74 = arith.constant 0 : index
    %c0_75 = arith.constant 0 : index
    %265 = vector.load %arg5[%c1_73, %c0_74, %c0_75] : memref<4x64x16xbf16, #tpu.memory_space<vmem>>, vector<1x64x16xbf16>
    %266 = vector.shape_cast %265 : vector<1x64x16xbf16> to vector<64x16xbf16>
    %267 = arith.truncf %260 : vector<16x256xf32> to vector<16x256xbf16>
    %cst_76 = arith.constant dense<0.000000e+00> : vector<64x256xf32>
    %268 = tpu.matmul %266, %267, %cst_76 {dimension_numbers = #tpu.dot_dimension_numbers<[1], [0], [0], [1], [0, 0, 1, 1], [], []>} : vector<64x16xbf16>, vector<16x256xbf16>, vector<64x256xf32> -> vector<64x256xf32>
    %269 = vector.extract_strided_slice %264 {offsets = [0, 0], sizes = [64, 1], strides = [1, 1]} : vector<64x11xf32> to vector<64x1xf32>
    %270 = vector.broadcast %269 : vector<64x1xf32> to vector<64x256xf32>
    %271 = arith.addf %268, %270 : vector<64x256xf32>
    %cst_77 = arith.constant 0.000000e+00 : f32
    %272 = vector.broadcast %cst_77 : f32 to vector<64x256xf32>
    %273 = arith.cmpf ogt, %271, %272 : vector<64x256xf32>
    %274 = vector.extract_strided_slice %264 {offsets = [0, 9], sizes = [64, 1], strides = [1, 1]} : vector<64x11xf32> to vector<64x1xf32>
    %275 = vector.broadcast %274 : vector<64x1xf32> to vector<64x256xf32>
    %276 = arith.mulf %275, %271 : vector<64x256xf32>
    %277 = arith.select %273, %271, %276 : vector<64x256xi1>, vector<64x256xf32>
    %278 = vector.extract_strided_slice %264 {offsets = [0, 1], sizes = [64, 1], strides = [1, 1]} : vector<64x11xf32> to vector<64x1xf32>
    %279 = vector.extract_strided_slice %264 {offsets = [0, 2], sizes = [64, 1], strides = [1, 1]} : vector<64x11xf32> to vector<64x1xf32>
    %280 = vector.extract_strided_slice %277 {offsets = [0, 0], sizes = [64, 128], strides = [1, 1]} : vector<64x256xf32> to vector<64x128xf32>
    %281 = arith.mulf %280, %280 : vector<64x128xf32>
    %282 = tpu.concatenate %280, %281 in 0 : vector<64x128xf32>, vector<64x128xf32> -> vector<128x128xf32>
    %cst_78 = arith.constant dense<0.000000e+00> : vector<128xf32>
    %283 = vector.multi_reduction <add>, %282, %cst_78 [1] : vector<128x128xf32> to vector<128xf32>
    %284 = vector.shape_cast %283 : vector<128xf32> to vector<128x1xf32>
    %285 = vector.extract_strided_slice %284 {offsets = [0, 0], sizes = [64, 1], strides = [1, 1]} : vector<128x1xf32> to vector<64x1xf32>
    %cst_79 = arith.constant dense<0.000000e+00> : vector<1xf32>
    %286 = vector.multi_reduction <add>, %285, %cst_79 [0] : vector<64x1xf32> to vector<1xf32>
    %287 = vector.shape_cast %286 : vector<1xf32> to vector<1x1xf32>
    %cst_80 = arith.constant 1.22070313E-4 : f32
    %288 = vector.broadcast %cst_80 : f32 to vector<1x1xf32>
    %289 = arith.mulf %287, %288 : vector<1x1xf32>
    %290 = vector.extract_strided_slice %284 {offsets = [64, 0], sizes = [64, 1], strides = [1, 1]} : vector<128x1xf32> to vector<64x1xf32>
    %cst_81 = arith.constant dense<0.000000e+00> : vector<1xf32>
    %291 = vector.multi_reduction <add>, %290, %cst_81 [0] : vector<64x1xf32> to vector<1xf32>
    %292 = vector.shape_cast %291 : vector<1xf32> to vector<1x1xf32>
    %cst_82 = arith.constant 1.22070313E-4 : f32
    %293 = vector.broadcast %cst_82 : f32 to vector<1x1xf32>
    %294 = arith.mulf %292, %293 : vector<1x1xf32>
    %295 = arith.mulf %289, %289 : vector<1x1xf32>
    %296 = arith.subf %294, %295 : vector<1x1xf32>
    %cst_83 = arith.constant 0.000000e+00 : f32
    %297 = vector.broadcast %cst_83 : f32 to vector<1x1xf32>
    %298 = arith.maximumf %296, %297 : vector<1x1xf32>
    %cst_84 = arith.constant 9.99999993E-9 : f32
    %299 = vector.broadcast %cst_84 : f32 to vector<1x1xf32>
    %300 = arith.addf %298, %299 : vector<1x1xf32>
    %301 = math.rsqrt %300 : vector<1x1xf32>
    %302 = vector.broadcast %301 : vector<1x1xf32> to vector<64x1xf32>
    %303 = arith.mulf %278, %302 : vector<64x1xf32>
    %304 = vector.broadcast %289 : vector<1x1xf32> to vector<64x1xf32>
    %305 = arith.mulf %304, %303 : vector<64x1xf32>
    %306 = arith.subf %279, %305 : vector<64x1xf32>
    %307 = vector.broadcast %303 : vector<64x1xf32> to vector<64x128xf32>
    %308 = arith.mulf %280, %307 : vector<64x128xf32>
    %309 = vector.broadcast %306 : vector<64x1xf32> to vector<64x128xf32>
    %310 = arith.addf %308, %309 : vector<64x128xf32>
    %311 = vector.extract_strided_slice %277 {offsets = [0, 128], sizes = [64, 128], strides = [1, 1]} : vector<64x256xf32> to vector<64x128xf32>
    %312 = arith.mulf %311, %311 : vector<64x128xf32>
    %313 = tpu.concatenate %311, %312 in 0 : vector<64x128xf32>, vector<64x128xf32> -> vector<128x128xf32>
    %cst_85 = arith.constant dense<0.000000e+00> : vector<128xf32>
    %314 = vector.multi_reduction <add>, %313, %cst_85 [1] : vector<128x128xf32> to vector<128xf32>
    %315 = vector.shape_cast %314 : vector<128xf32> to vector<128x1xf32>
    %316 = vector.extract_strided_slice %315 {offsets = [0, 0], sizes = [64, 1], strides = [1, 1]} : vector<128x1xf32> to vector<64x1xf32>
    %cst_86 = arith.constant dense<0.000000e+00> : vector<1xf32>
    %317 = vector.multi_reduction <add>, %316, %cst_86 [0] : vector<64x1xf32> to vector<1xf32>
    %318 = vector.shape_cast %317 : vector<1xf32> to vector<1x1xf32>
    %cst_87 = arith.constant 1.22070313E-4 : f32
    %319 = vector.broadcast %cst_87 : f32 to vector<1x1xf32>
    %320 = arith.mulf %318, %319 : vector<1x1xf32>
    %321 = vector.extract_strided_slice %315 {offsets = [64, 0], sizes = [64, 1], strides = [1, 1]} : vector<128x1xf32> to vector<64x1xf32>
    %cst_88 = arith.constant dense<0.000000e+00> : vector<1xf32>
    %322 = vector.multi_reduction <add>, %321, %cst_88 [0] : vector<64x1xf32> to vector<1xf32>
    %323 = vector.shape_cast %322 : vector<1xf32> to vector<1x1xf32>
    %cst_89 = arith.constant 1.22070313E-4 : f32
    %324 = vector.broadcast %cst_89 : f32 to vector<1x1xf32>
    %325 = arith.mulf %323, %324 : vector<1x1xf32>
    %326 = arith.mulf %320, %320 : vector<1x1xf32>
    %327 = arith.subf %325, %326 : vector<1x1xf32>
    %cst_90 = arith.constant 0.000000e+00 : f32
    %328 = vector.broadcast %cst_90 : f32 to vector<1x1xf32>
    %329 = arith.maximumf %327, %328 : vector<1x1xf32>
    %cst_91 = arith.constant 9.99999993E-9 : f32
    %330 = vector.broadcast %cst_91 : f32 to vector<1x1xf32>
    %331 = arith.addf %329, %330 : vector<1x1xf32>
    %332 = math.rsqrt %331 : vector<1x1xf32>
    %333 = vector.broadcast %332 : vector<1x1xf32> to vector<64x1xf32>
    %334 = arith.mulf %278, %333 : vector<64x1xf32>
    %335 = vector.broadcast %320 : vector<1x1xf32> to vector<64x1xf32>
    %336 = arith.mulf %335, %334 : vector<64x1xf32>
    %337 = arith.subf %279, %336 : vector<64x1xf32>
    %338 = vector.broadcast %334 : vector<64x1xf32> to vector<64x128xf32>
    %339 = arith.mulf %311, %338 : vector<64x128xf32>
    %340 = vector.broadcast %337 : vector<64x1xf32> to vector<64x128xf32>
    %341 = arith.addf %339, %340 : vector<64x128xf32>
    %342 = tpu.concatenate %310, %341 in 1 : vector<64x128xf32>, vector<64x128xf32> -> vector<64x256xf32>
    %cst_92 = arith.constant 0.000000e+00 : f32
    %343 = vector.broadcast %cst_92 : f32 to vector<64x2xf32>
    %344 = vector.extract_strided_slice %342 {offsets = [0, 0], sizes = [64, 128], strides = [1, 1]} : vector<64x256xf32> to vector<64x128xf32>
    %345 = vector.extract_strided_slice %344 {offsets = [0, 0], sizes = [64, 126], strides = [1, 1]} : vector<64x128xf32> to vector<64x126xf32>
    %346 = vector.extract_strided_slice %342 {offsets = [0, 128], sizes = [64, 128], strides = [1, 1]} : vector<64x256xf32> to vector<64x128xf32>
    %347 = vector.extract_strided_slice %346 {offsets = [0, 0], sizes = [64, 126], strides = [1, 1]} : vector<64x128xf32> to vector<64x126xf32>
    %348 = tpu.concatenate %343, %345, %343, %347 in 1 : vector<64x2xf32>, vector<64x126xf32>, vector<64x2xf32>, vector<64x126xf32> -> vector<64x256xf32>
    %cst_93 = arith.constant 0.000000e+00 : f32
    %349 = vector.broadcast %cst_93 : f32 to vector<64x2xf32>
    %350 = vector.extract_strided_slice %342 {offsets = [0, 0], sizes = [64, 128], strides = [1, 1]} : vector<64x256xf32> to vector<64x128xf32>
    %351 = vector.extract_strided_slice %350 {offsets = [0, 2], sizes = [64, 126], strides = [1, 1]} : vector<64x128xf32> to vector<64x126xf32>
    %352 = vector.extract_strided_slice %342 {offsets = [0, 128], sizes = [64, 128], strides = [1, 1]} : vector<64x256xf32> to vector<64x128xf32>
    %353 = vector.extract_strided_slice %352 {offsets = [0, 2], sizes = [64, 126], strides = [1, 1]} : vector<64x128xf32> to vector<64x126xf32>
    %354 = tpu.concatenate %351, %349, %353, %349 in 1 : vector<64x126xf32>, vector<64x2xf32>, vector<64x126xf32>, vector<64x2xf32> -> vector<64x256xf32>
    %355 = vector.extract_strided_slice %264 {offsets = [0, 4], sizes = [64, 1], strides = [1, 1]} : vector<64x11xf32> to vector<64x1xf32>
    %356 = vector.broadcast %355 : vector<64x1xf32> to vector<64x256xf32>
    %357 = arith.mulf %342, %356 : vector<64x256xf32>
    %358 = vector.extract_strided_slice %264 {offsets = [0, 6], sizes = [64, 1], strides = [1, 1]} : vector<64x11xf32> to vector<64x1xf32>
    %359 = vector.broadcast %358 : vector<64x1xf32> to vector<64x256xf32>
    %360 = arith.addf %357, %359 : vector<64x256xf32>
    %361 = vector.extract_strided_slice %264 {offsets = [0, 3], sizes = [64, 1], strides = [1, 1]} : vector<64x11xf32> to vector<64x1xf32>
    %362 = vector.broadcast %361 : vector<64x1xf32> to vector<64x256xf32>
    %363 = arith.mulf %348, %362 : vector<64x256xf32>
    %364 = arith.addf %360, %363 : vector<64x256xf32>
    %365 = vector.extract_strided_slice %264 {offsets = [0, 5], sizes = [64, 1], strides = [1, 1]} : vector<64x11xf32> to vector<64x1xf32>
    %366 = vector.broadcast %365 : vector<64x1xf32> to vector<64x256xf32>
    %367 = arith.mulf %354, %366 : vector<64x256xf32>
    %368 = arith.addf %364, %367 : vector<64x256xf32>
    %cst_94 = arith.constant 0.000000e+00 : f32
    %369 = vector.broadcast %cst_94 : f32 to vector<64x256xf32>
    %370 = arith.cmpf ogt, %368, %369 : vector<64x256xf32>
    %371 = vector.extract_strided_slice %264 {offsets = [0, 10], sizes = [64, 1], strides = [1, 1]} : vector<64x11xf32> to vector<64x1xf32>
    %372 = vector.broadcast %371 : vector<64x1xf32> to vector<64x256xf32>
    %373 = arith.mulf %372, %368 : vector<64x256xf32>
    %374 = arith.select %370, %368, %373 : vector<64x256xi1>, vector<64x256xf32>
    %375 = vector.extract_strided_slice %264 {offsets = [0, 7], sizes = [64, 1], strides = [1, 1]} : vector<64x11xf32> to vector<64x1xf32>
    %376 = vector.extract_strided_slice %264 {offsets = [0, 8], sizes = [64, 1], strides = [1, 1]} : vector<64x11xf32> to vector<64x1xf32>
    %377 = vector.extract_strided_slice %374 {offsets = [0, 0], sizes = [64, 128], strides = [1, 1]} : vector<64x256xf32> to vector<64x128xf32>
    %378 = arith.mulf %377, %377 : vector<64x128xf32>
    %379 = tpu.concatenate %377, %378 in 0 : vector<64x128xf32>, vector<64x128xf32> -> vector<128x128xf32>
    %cst_95 = arith.constant dense<0.000000e+00> : vector<128xf32>
    %380 = vector.multi_reduction <add>, %379, %cst_95 [1] : vector<128x128xf32> to vector<128xf32>
    %381 = vector.shape_cast %380 : vector<128xf32> to vector<128x1xf32>
    %382 = vector.extract_strided_slice %381 {offsets = [0, 0], sizes = [64, 1], strides = [1, 1]} : vector<128x1xf32> to vector<64x1xf32>
    %cst_96 = arith.constant dense<0.000000e+00> : vector<1xf32>
    %383 = vector.multi_reduction <add>, %382, %cst_96 [0] : vector<64x1xf32> to vector<1xf32>
    %384 = vector.shape_cast %383 : vector<1xf32> to vector<1x1xf32>
    %cst_97 = arith.constant 1.22070313E-4 : f32
    %385 = vector.broadcast %cst_97 : f32 to vector<1x1xf32>
    %386 = arith.mulf %384, %385 : vector<1x1xf32>
    %387 = vector.extract_strided_slice %381 {offsets = [64, 0], sizes = [64, 1], strides = [1, 1]} : vector<128x1xf32> to vector<64x1xf32>
    %cst_98 = arith.constant dense<0.000000e+00> : vector<1xf32>
    %388 = vector.multi_reduction <add>, %387, %cst_98 [0] : vector<64x1xf32> to vector<1xf32>
    %389 = vector.shape_cast %388 : vector<1xf32> to vector<1x1xf32>
    %cst_99 = arith.constant 1.22070313E-4 : f32
    %390 = vector.broadcast %cst_99 : f32 to vector<1x1xf32>
    %391 = arith.mulf %389, %390 : vector<1x1xf32>
    %392 = arith.mulf %386, %386 : vector<1x1xf32>
    %393 = arith.subf %391, %392 : vector<1x1xf32>
    %cst_100 = arith.constant 0.000000e+00 : f32
    %394 = vector.broadcast %cst_100 : f32 to vector<1x1xf32>
    %395 = arith.maximumf %393, %394 : vector<1x1xf32>
    %cst_101 = arith.constant 9.99999993E-9 : f32
    %396 = vector.broadcast %cst_101 : f32 to vector<1x1xf32>
    %397 = arith.addf %395, %396 : vector<1x1xf32>
    %398 = math.rsqrt %397 : vector<1x1xf32>
    %399 = vector.broadcast %398 : vector<1x1xf32> to vector<64x1xf32>
    %400 = arith.mulf %375, %399 : vector<64x1xf32>
    %401 = vector.broadcast %386 : vector<1x1xf32> to vector<64x1xf32>
    %402 = arith.mulf %401, %400 : vector<64x1xf32>
    %403 = arith.subf %376, %402 : vector<64x1xf32>
    %404 = vector.broadcast %400 : vector<64x1xf32> to vector<64x128xf32>
    %405 = arith.mulf %377, %404 : vector<64x128xf32>
    %406 = vector.broadcast %403 : vector<64x1xf32> to vector<64x128xf32>
    %407 = arith.addf %405, %406 : vector<64x128xf32>
    %408 = vector.extract_strided_slice %374 {offsets = [0, 128], sizes = [64, 128], strides = [1, 1]} : vector<64x256xf32> to vector<64x128xf32>
    %409 = arith.mulf %408, %408 : vector<64x128xf32>
    %410 = tpu.concatenate %408, %409 in 0 : vector<64x128xf32>, vector<64x128xf32> -> vector<128x128xf32>
    %cst_102 = arith.constant dense<0.000000e+00> : vector<128xf32>
    %411 = vector.multi_reduction <add>, %410, %cst_102 [1] : vector<128x128xf32> to vector<128xf32>
    %412 = vector.shape_cast %411 : vector<128xf32> to vector<128x1xf32>
    %413 = vector.extract_strided_slice %412 {offsets = [0, 0], sizes = [64, 1], strides = [1, 1]} : vector<128x1xf32> to vector<64x1xf32>
    %cst_103 = arith.constant dense<0.000000e+00> : vector<1xf32>
    %414 = vector.multi_reduction <add>, %413, %cst_103 [0] : vector<64x1xf32> to vector<1xf32>
    %415 = vector.shape_cast %414 : vector<1xf32> to vector<1x1xf32>
    %cst_104 = arith.constant 1.22070313E-4 : f32
    %416 = vector.broadcast %cst_104 : f32 to vector<1x1xf32>
    %417 = arith.mulf %415, %416 : vector<1x1xf32>
    %418 = vector.extract_strided_slice %412 {offsets = [64, 0], sizes = [64, 1], strides = [1, 1]} : vector<128x1xf32> to vector<64x1xf32>
    %cst_105 = arith.constant dense<0.000000e+00> : vector<1xf32>
    %419 = vector.multi_reduction <add>, %418, %cst_105 [0] : vector<64x1xf32> to vector<1xf32>
    %420 = vector.shape_cast %419 : vector<1xf32> to vector<1x1xf32>
    %cst_106 = arith.constant 1.22070313E-4 : f32
    %421 = vector.broadcast %cst_106 : f32 to vector<1x1xf32>
    %422 = arith.mulf %420, %421 : vector<1x1xf32>
    %423 = arith.mulf %417, %417 : vector<1x1xf32>
    %424 = arith.subf %422, %423 : vector<1x1xf32>
    %cst_107 = arith.constant 0.000000e+00 : f32
    %425 = vector.broadcast %cst_107 : f32 to vector<1x1xf32>
    %426 = arith.maximumf %424, %425 : vector<1x1xf32>
    %cst_108 = arith.constant 9.99999993E-9 : f32
    %427 = vector.broadcast %cst_108 : f32 to vector<1x1xf32>
    %428 = arith.addf %426, %427 : vector<1x1xf32>
    %429 = math.rsqrt %428 : vector<1x1xf32>
    %430 = vector.broadcast %429 : vector<1x1xf32> to vector<64x1xf32>
    %431 = arith.mulf %375, %430 : vector<64x1xf32>
    %432 = vector.broadcast %417 : vector<1x1xf32> to vector<64x1xf32>
    %433 = arith.mulf %432, %431 : vector<64x1xf32>
    %434 = arith.subf %376, %433 : vector<64x1xf32>
    %435 = vector.broadcast %431 : vector<64x1xf32> to vector<64x128xf32>
    %436 = arith.mulf %408, %435 : vector<64x128xf32>
    %437 = vector.broadcast %434 : vector<64x1xf32> to vector<64x128xf32>
    %438 = arith.addf %436, %437 : vector<64x128xf32>
    %439 = tpu.concatenate %407, %438 in 1 : vector<64x128xf32>, vector<64x128xf32> -> vector<64x256xf32>
    %c1_109 = arith.constant 1 : index
    %c0_110 = arith.constant 0 : index
    %c0_111 = arith.constant 0 : index
    %440 = vector.load %arg7[%c1_109, %c0_110, %c0_111] : memref<4x32x64xbf16, #tpu.memory_space<vmem>>, vector<1x32x64xbf16>
    %441 = vector.shape_cast %440 : vector<1x32x64xbf16> to vector<32x64xbf16>
    %442 = arith.truncf %439 : vector<64x256xf32> to vector<64x256xbf16>
    %cst_112 = arith.constant dense<0.000000e+00> : vector<32x256xf32>
    %443 = tpu.matmul %441, %442, %cst_112 {dimension_numbers = #tpu.dot_dimension_numbers<[1], [0], [0], [1], [0, 0, 1, 1], [], []>} : vector<32x64xbf16>, vector<64x256xbf16>, vector<32x256xf32> -> vector<32x256xf32>
    %c1_113 = arith.constant 1 : index
    %c0_114 = arith.constant 0 : index
    %c0_115 = arith.constant 0 : index
    %444 = vector.load %arg8[%c1_113, %c0_114, %c0_115] : memref<4x32x1xf32, #tpu.memory_space<vmem>>, vector<1x32x1xf32>
    %445 = vector.shape_cast %444 : vector<1x32x1xf32> to vector<32x1xf32>
    %446 = vector.broadcast %445 : vector<32x1xf32> to vector<32x256xf32>
    %447 = arith.addf %443, %446 : vector<32x256xf32>
    %448 = vector.extract_strided_slice %447 {offsets = [0, 0], sizes = [16, 256], strides = [1, 1]} : vector<32x256xf32> to vector<16x256xf32>
    %449 = arith.addf %260, %448 : vector<16x256xf32>
    %450 = vector.extract_strided_slice %447 {offsets = [16, 0], sizes = [16, 256], strides = [1, 1]} : vector<32x256xf32> to vector<16x256xf32>
    %451 = arith.addf %262, %450 : vector<16x256xf32>
    %c2 = arith.constant 2 : index
    %c0_116 = arith.constant 0 : index
    %c0_117 = arith.constant 0 : index
    %452 = vector.load %arg6[%c2, %c0_116, %c0_117] : memref<4x64x11xf32, #tpu.memory_space<vmem>>, vector<1x64x11xf32>
    %453 = vector.shape_cast %452 : vector<1x64x11xf32> to vector<64x11xf32>
    %c2_118 = arith.constant 2 : index
    %c0_119 = arith.constant 0 : index
    %c0_120 = arith.constant 0 : index
    %454 = vector.load %arg5[%c2_118, %c0_119, %c0_120] : memref<4x64x16xbf16, #tpu.memory_space<vmem>>, vector<1x64x16xbf16>
    %455 = vector.shape_cast %454 : vector<1x64x16xbf16> to vector<64x16xbf16>
    %456 = arith.truncf %449 : vector<16x256xf32> to vector<16x256xbf16>
    %cst_121 = arith.constant dense<0.000000e+00> : vector<64x256xf32>
    %457 = tpu.matmul %455, %456, %cst_121 {dimension_numbers = #tpu.dot_dimension_numbers<[1], [0], [0], [1], [0, 0, 1, 1], [], []>} : vector<64x16xbf16>, vector<16x256xbf16>, vector<64x256xf32> -> vector<64x256xf32>
    %458 = vector.extract_strided_slice %453 {offsets = [0, 0], sizes = [64, 1], strides = [1, 1]} : vector<64x11xf32> to vector<64x1xf32>
    %459 = vector.broadcast %458 : vector<64x1xf32> to vector<64x256xf32>
    %460 = arith.addf %457, %459 : vector<64x256xf32>
    %cst_122 = arith.constant 0.000000e+00 : f32
    %461 = vector.broadcast %cst_122 : f32 to vector<64x256xf32>
    %462 = arith.cmpf ogt, %460, %461 : vector<64x256xf32>
    %463 = vector.extract_strided_slice %453 {offsets = [0, 9], sizes = [64, 1], strides = [1, 1]} : vector<64x11xf32> to vector<64x1xf32>
    %464 = vector.broadcast %463 : vector<64x1xf32> to vector<64x256xf32>
    %465 = arith.mulf %464, %460 : vector<64x256xf32>
    %466 = arith.select %462, %460, %465 : vector<64x256xi1>, vector<64x256xf32>
    %467 = vector.extract_strided_slice %453 {offsets = [0, 1], sizes = [64, 1], strides = [1, 1]} : vector<64x11xf32> to vector<64x1xf32>
    %468 = vector.extract_strided_slice %453 {offsets = [0, 2], sizes = [64, 1], strides = [1, 1]} : vector<64x11xf32> to vector<64x1xf32>
    %469 = vector.extract_strided_slice %466 {offsets = [0, 0], sizes = [64, 128], strides = [1, 1]} : vector<64x256xf32> to vector<64x128xf32>
    %470 = arith.mulf %469, %469 : vector<64x128xf32>
    %471 = tpu.concatenate %469, %470 in 0 : vector<64x128xf32>, vector<64x128xf32> -> vector<128x128xf32>
    %cst_123 = arith.constant dense<0.000000e+00> : vector<128xf32>
    %472 = vector.multi_reduction <add>, %471, %cst_123 [1] : vector<128x128xf32> to vector<128xf32>
    %473 = vector.shape_cast %472 : vector<128xf32> to vector<128x1xf32>
    %474 = vector.extract_strided_slice %473 {offsets = [0, 0], sizes = [64, 1], strides = [1, 1]} : vector<128x1xf32> to vector<64x1xf32>
    %cst_124 = arith.constant dense<0.000000e+00> : vector<1xf32>
    %475 = vector.multi_reduction <add>, %474, %cst_124 [0] : vector<64x1xf32> to vector<1xf32>
    %476 = vector.shape_cast %475 : vector<1xf32> to vector<1x1xf32>
    %cst_125 = arith.constant 1.22070313E-4 : f32
    %477 = vector.broadcast %cst_125 : f32 to vector<1x1xf32>
    %478 = arith.mulf %476, %477 : vector<1x1xf32>
    %479 = vector.extract_strided_slice %473 {offsets = [64, 0], sizes = [64, 1], strides = [1, 1]} : vector<128x1xf32> to vector<64x1xf32>
    %cst_126 = arith.constant dense<0.000000e+00> : vector<1xf32>
    %480 = vector.multi_reduction <add>, %479, %cst_126 [0] : vector<64x1xf32> to vector<1xf32>
    %481 = vector.shape_cast %480 : vector<1xf32> to vector<1x1xf32>
    %cst_127 = arith.constant 1.22070313E-4 : f32
    %482 = vector.broadcast %cst_127 : f32 to vector<1x1xf32>
    %483 = arith.mulf %481, %482 : vector<1x1xf32>
    %484 = arith.mulf %478, %478 : vector<1x1xf32>
    %485 = arith.subf %483, %484 : vector<1x1xf32>
    %cst_128 = arith.constant 0.000000e+00 : f32
    %486 = vector.broadcast %cst_128 : f32 to vector<1x1xf32>
    %487 = arith.maximumf %485, %486 : vector<1x1xf32>
    %cst_129 = arith.constant 9.99999993E-9 : f32
    %488 = vector.broadcast %cst_129 : f32 to vector<1x1xf32>
    %489 = arith.addf %487, %488 : vector<1x1xf32>
    %490 = math.rsqrt %489 : vector<1x1xf32>
    %491 = vector.broadcast %490 : vector<1x1xf32> to vector<64x1xf32>
    %492 = arith.mulf %467, %491 : vector<64x1xf32>
    %493 = vector.broadcast %478 : vector<1x1xf32> to vector<64x1xf32>
    %494 = arith.mulf %493, %492 : vector<64x1xf32>
    %495 = arith.subf %468, %494 : vector<64x1xf32>
    %496 = vector.broadcast %492 : vector<64x1xf32> to vector<64x128xf32>
    %497 = arith.mulf %469, %496 : vector<64x128xf32>
    %498 = vector.broadcast %495 : vector<64x1xf32> to vector<64x128xf32>
    %499 = arith.addf %497, %498 : vector<64x128xf32>
    %500 = vector.extract_strided_slice %466 {offsets = [0, 128], sizes = [64, 128], strides = [1, 1]} : vector<64x256xf32> to vector<64x128xf32>
    %501 = arith.mulf %500, %500 : vector<64x128xf32>
    %502 = tpu.concatenate %500, %501 in 0 : vector<64x128xf32>, vector<64x128xf32> -> vector<128x128xf32>
    %cst_130 = arith.constant dense<0.000000e+00> : vector<128xf32>
    %503 = vector.multi_reduction <add>, %502, %cst_130 [1] : vector<128x128xf32> to vector<128xf32>
    %504 = vector.shape_cast %503 : vector<128xf32> to vector<128x1xf32>
    %505 = vector.extract_strided_slice %504 {offsets = [0, 0], sizes = [64, 1], strides = [1, 1]} : vector<128x1xf32> to vector<64x1xf32>
    %cst_131 = arith.constant dense<0.000000e+00> : vector<1xf32>
    %506 = vector.multi_reduction <add>, %505, %cst_131 [0] : vector<64x1xf32> to vector<1xf32>
    %507 = vector.shape_cast %506 : vector<1xf32> to vector<1x1xf32>
    %cst_132 = arith.constant 1.22070313E-4 : f32
    %508 = vector.broadcast %cst_132 : f32 to vector<1x1xf32>
    %509 = arith.mulf %507, %508 : vector<1x1xf32>
    %510 = vector.extract_strided_slice %504 {offsets = [64, 0], sizes = [64, 1], strides = [1, 1]} : vector<128x1xf32> to vector<64x1xf32>
    %cst_133 = arith.constant dense<0.000000e+00> : vector<1xf32>
    %511 = vector.multi_reduction <add>, %510, %cst_133 [0] : vector<64x1xf32> to vector<1xf32>
    %512 = vector.shape_cast %511 : vector<1xf32> to vector<1x1xf32>
    %cst_134 = arith.constant 1.22070313E-4 : f32
    %513 = vector.broadcast %cst_134 : f32 to vector<1x1xf32>
    %514 = arith.mulf %512, %513 : vector<1x1xf32>
    %515 = arith.mulf %509, %509 : vector<1x1xf32>
    %516 = arith.subf %514, %515 : vector<1x1xf32>
    %cst_135 = arith.constant 0.000000e+00 : f32
    %517 = vector.broadcast %cst_135 : f32 to vector<1x1xf32>
    %518 = arith.maximumf %516, %517 : vector<1x1xf32>
    %cst_136 = arith.constant 9.99999993E-9 : f32
    %519 = vector.broadcast %cst_136 : f32 to vector<1x1xf32>
    %520 = arith.addf %518, %519 : vector<1x1xf32>
    %521 = math.rsqrt %520 : vector<1x1xf32>
    %522 = vector.broadcast %521 : vector<1x1xf32> to vector<64x1xf32>
    %523 = arith.mulf %467, %522 : vector<64x1xf32>
    %524 = vector.broadcast %509 : vector<1x1xf32> to vector<64x1xf32>
    %525 = arith.mulf %524, %523 : vector<64x1xf32>
    %526 = arith.subf %468, %525 : vector<64x1xf32>
    %527 = vector.broadcast %523 : vector<64x1xf32> to vector<64x128xf32>
    %528 = arith.mulf %500, %527 : vector<64x128xf32>
    %529 = vector.broadcast %526 : vector<64x1xf32> to vector<64x128xf32>
    %530 = arith.addf %528, %529 : vector<64x128xf32>
    %531 = tpu.concatenate %499, %530 in 1 : vector<64x128xf32>, vector<64x128xf32> -> vector<64x256xf32>
    %cst_137 = arith.constant 0.000000e+00 : f32
    %532 = vector.broadcast %cst_137 : f32 to vector<64x1xf32>
    %533 = vector.extract_strided_slice %531 {offsets = [0, 0], sizes = [64, 128], strides = [1, 1]} : vector<64x256xf32> to vector<64x128xf32>
    %534 = vector.extract_strided_slice %533 {offsets = [0, 0], sizes = [64, 127], strides = [1, 1]} : vector<64x128xf32> to vector<64x127xf32>
    %535 = vector.extract_strided_slice %531 {offsets = [0, 128], sizes = [64, 128], strides = [1, 1]} : vector<64x256xf32> to vector<64x128xf32>
    %536 = vector.extract_strided_slice %535 {offsets = [0, 0], sizes = [64, 127], strides = [1, 1]} : vector<64x128xf32> to vector<64x127xf32>
    %537 = tpu.concatenate %532, %534, %532, %536 in 1 : vector<64x1xf32>, vector<64x127xf32>, vector<64x1xf32>, vector<64x127xf32> -> vector<64x256xf32>
    %cst_138 = arith.constant 0.000000e+00 : f32
    %538 = vector.broadcast %cst_138 : f32 to vector<64x1xf32>
    %539 = vector.extract_strided_slice %531 {offsets = [0, 0], sizes = [64, 128], strides = [1, 1]} : vector<64x256xf32> to vector<64x128xf32>
    %540 = vector.extract_strided_slice %539 {offsets = [0, 1], sizes = [64, 127], strides = [1, 1]} : vector<64x128xf32> to vector<64x127xf32>
    %541 = vector.extract_strided_slice %531 {offsets = [0, 128], sizes = [64, 128], strides = [1, 1]} : vector<64x256xf32> to vector<64x128xf32>
    %542 = vector.extract_strided_slice %541 {offsets = [0, 1], sizes = [64, 127], strides = [1, 1]} : vector<64x128xf32> to vector<64x127xf32>
    %543 = tpu.concatenate %540, %538, %542, %538 in 1 : vector<64x127xf32>, vector<64x1xf32>, vector<64x127xf32>, vector<64x1xf32> -> vector<64x256xf32>
    %544 = vector.extract_strided_slice %453 {offsets = [0, 4], sizes = [64, 1], strides = [1, 1]} : vector<64x11xf32> to vector<64x1xf32>
    %545 = vector.broadcast %544 : vector<64x1xf32> to vector<64x256xf32>
    %546 = arith.mulf %531, %545 : vector<64x256xf32>
    %547 = vector.extract_strided_slice %453 {offsets = [0, 6], sizes = [64, 1], strides = [1, 1]} : vector<64x11xf32> to vector<64x1xf32>
    %548 = vector.broadcast %547 : vector<64x1xf32> to vector<64x256xf32>
    %549 = arith.addf %546, %548 : vector<64x256xf32>
    %550 = vector.extract_strided_slice %453 {offsets = [0, 3], sizes = [64, 1], strides = [1, 1]} : vector<64x11xf32> to vector<64x1xf32>
    %551 = vector.broadcast %550 : vector<64x1xf32> to vector<64x256xf32>
    %552 = arith.mulf %537, %551 : vector<64x256xf32>
    %553 = arith.addf %549, %552 : vector<64x256xf32>
    %554 = vector.extract_strided_slice %453 {offsets = [0, 5], sizes = [64, 1], strides = [1, 1]} : vector<64x11xf32> to vector<64x1xf32>
    %555 = vector.broadcast %554 : vector<64x1xf32> to vector<64x256xf32>
    %556 = arith.mulf %543, %555 : vector<64x256xf32>
    %557 = arith.addf %553, %556 : vector<64x256xf32>
    %cst_139 = arith.constant 0.000000e+00 : f32
    %558 = vector.broadcast %cst_139 : f32 to vector<64x256xf32>
    %559 = arith.cmpf ogt, %557, %558 : vector<64x256xf32>
    %560 = vector.extract_strided_slice %453 {offsets = [0, 10], sizes = [64, 1], strides = [1, 1]} : vector<64x11xf32> to vector<64x1xf32>
    %561 = vector.broadcast %560 : vector<64x1xf32> to vector<64x256xf32>
    %562 = arith.mulf %561, %557 : vector<64x256xf32>
    %563 = arith.select %559, %557, %562 : vector<64x256xi1>, vector<64x256xf32>
    %564 = vector.extract_strided_slice %453 {offsets = [0, 7], sizes = [64, 1], strides = [1, 1]} : vector<64x11xf32> to vector<64x1xf32>
    %565 = vector.extract_strided_slice %453 {offsets = [0, 8], sizes = [64, 1], strides = [1, 1]} : vector<64x11xf32> to vector<64x1xf32>
    %566 = vector.extract_strided_slice %563 {offsets = [0, 0], sizes = [64, 128], strides = [1, 1]} : vector<64x256xf32> to vector<64x128xf32>
    %567 = arith.mulf %566, %566 : vector<64x128xf32>
    %568 = tpu.concatenate %566, %567 in 0 : vector<64x128xf32>, vector<64x128xf32> -> vector<128x128xf32>
    %cst_140 = arith.constant dense<0.000000e+00> : vector<128xf32>
    %569 = vector.multi_reduction <add>, %568, %cst_140 [1] : vector<128x128xf32> to vector<128xf32>
    %570 = vector.shape_cast %569 : vector<128xf32> to vector<128x1xf32>
    %571 = vector.extract_strided_slice %570 {offsets = [0, 0], sizes = [64, 1], strides = [1, 1]} : vector<128x1xf32> to vector<64x1xf32>
    %cst_141 = arith.constant dense<0.000000e+00> : vector<1xf32>
    %572 = vector.multi_reduction <add>, %571, %cst_141 [0] : vector<64x1xf32> to vector<1xf32>
    %573 = vector.shape_cast %572 : vector<1xf32> to vector<1x1xf32>
    %cst_142 = arith.constant 1.22070313E-4 : f32
    %574 = vector.broadcast %cst_142 : f32 to vector<1x1xf32>
    %575 = arith.mulf %573, %574 : vector<1x1xf32>
    %576 = vector.extract_strided_slice %570 {offsets = [64, 0], sizes = [64, 1], strides = [1, 1]} : vector<128x1xf32> to vector<64x1xf32>
    %cst_143 = arith.constant dense<0.000000e+00> : vector<1xf32>
    %577 = vector.multi_reduction <add>, %576, %cst_143 [0] : vector<64x1xf32> to vector<1xf32>
    %578 = vector.shape_cast %577 : vector<1xf32> to vector<1x1xf32>
    %cst_144 = arith.constant 1.22070313E-4 : f32
    %579 = vector.broadcast %cst_144 : f32 to vector<1x1xf32>
    %580 = arith.mulf %578, %579 : vector<1x1xf32>
    %581 = arith.mulf %575, %575 : vector<1x1xf32>
    %582 = arith.subf %580, %581 : vector<1x1xf32>
    %cst_145 = arith.constant 0.000000e+00 : f32
    %583 = vector.broadcast %cst_145 : f32 to vector<1x1xf32>
    %584 = arith.maximumf %582, %583 : vector<1x1xf32>
    %cst_146 = arith.constant 9.99999993E-9 : f32
    %585 = vector.broadcast %cst_146 : f32 to vector<1x1xf32>
    %586 = arith.addf %584, %585 : vector<1x1xf32>
    %587 = math.rsqrt %586 : vector<1x1xf32>
    %588 = vector.broadcast %587 : vector<1x1xf32> to vector<64x1xf32>
    %589 = arith.mulf %564, %588 : vector<64x1xf32>
    %590 = vector.broadcast %575 : vector<1x1xf32> to vector<64x1xf32>
    %591 = arith.mulf %590, %589 : vector<64x1xf32>
    %592 = arith.subf %565, %591 : vector<64x1xf32>
    %593 = vector.broadcast %589 : vector<64x1xf32> to vector<64x128xf32>
    %594 = arith.mulf %566, %593 : vector<64x128xf32>
    %595 = vector.broadcast %592 : vector<64x1xf32> to vector<64x128xf32>
    %596 = arith.addf %594, %595 : vector<64x128xf32>
    %597 = vector.extract_strided_slice %563 {offsets = [0, 128], sizes = [64, 128], strides = [1, 1]} : vector<64x256xf32> to vector<64x128xf32>
    %598 = arith.mulf %597, %597 : vector<64x128xf32>
    %599 = tpu.concatenate %597, %598 in 0 : vector<64x128xf32>, vector<64x128xf32> -> vector<128x128xf32>
    %cst_147 = arith.constant dense<0.000000e+00> : vector<128xf32>
    %600 = vector.multi_reduction <add>, %599, %cst_147 [1] : vector<128x128xf32> to vector<128xf32>
    %601 = vector.shape_cast %600 : vector<128xf32> to vector<128x1xf32>
    %602 = vector.extract_strided_slice %601 {offsets = [0, 0], sizes = [64, 1], strides = [1, 1]} : vector<128x1xf32> to vector<64x1xf32>
    %cst_148 = arith.constant dense<0.000000e+00> : vector<1xf32>
    %603 = vector.multi_reduction <add>, %602, %cst_148 [0] : vector<64x1xf32> to vector<1xf32>
    %604 = vector.shape_cast %603 : vector<1xf32> to vector<1x1xf32>
    %cst_149 = arith.constant 1.22070313E-4 : f32
    %605 = vector.broadcast %cst_149 : f32 to vector<1x1xf32>
    %606 = arith.mulf %604, %605 : vector<1x1xf32>
    %607 = vector.extract_strided_slice %601 {offsets = [64, 0], sizes = [64, 1], strides = [1, 1]} : vector<128x1xf32> to vector<64x1xf32>
    %cst_150 = arith.constant dense<0.000000e+00> : vector<1xf32>
    %608 = vector.multi_reduction <add>, %607, %cst_150 [0] : vector<64x1xf32> to vector<1xf32>
    %609 = vector.shape_cast %608 : vector<1xf32> to vector<1x1xf32>
    %cst_151 = arith.constant 1.22070313E-4 : f32
    %610 = vector.broadcast %cst_151 : f32 to vector<1x1xf32>
    %611 = arith.mulf %609, %610 : vector<1x1xf32>
    %612 = arith.mulf %606, %606 : vector<1x1xf32>
    %613 = arith.subf %611, %612 : vector<1x1xf32>
    %cst_152 = arith.constant 0.000000e+00 : f32
    %614 = vector.broadcast %cst_152 : f32 to vector<1x1xf32>
    %615 = arith.maximumf %613, %614 : vector<1x1xf32>
    %cst_153 = arith.constant 9.99999993E-9 : f32
    %616 = vector.broadcast %cst_153 : f32 to vector<1x1xf32>
    %617 = arith.addf %615, %616 : vector<1x1xf32>
    %618 = math.rsqrt %617 : vector<1x1xf32>
    %619 = vector.broadcast %618 : vector<1x1xf32> to vector<64x1xf32>
    %620 = arith.mulf %564, %619 : vector<64x1xf32>
    %621 = vector.broadcast %606 : vector<1x1xf32> to vector<64x1xf32>
    %622 = arith.mulf %621, %620 : vector<64x1xf32>
    %623 = arith.subf %565, %622 : vector<64x1xf32>
    %624 = vector.broadcast %620 : vector<64x1xf32> to vector<64x128xf32>
    %625 = arith.mulf %597, %624 : vector<64x128xf32>
    %626 = vector.broadcast %623 : vector<64x1xf32> to vector<64x128xf32>
    %627 = arith.addf %625, %626 : vector<64x128xf32>
    %628 = tpu.concatenate %596, %627 in 1 : vector<64x128xf32>, vector<64x128xf32> -> vector<64x256xf32>
    %c2_154 = arith.constant 2 : index
    %c0_155 = arith.constant 0 : index
    %c0_156 = arith.constant 0 : index
    %629 = vector.load %arg7[%c2_154, %c0_155, %c0_156] : memref<4x32x64xbf16, #tpu.memory_space<vmem>>, vector<1x32x64xbf16>
    %630 = vector.shape_cast %629 : vector<1x32x64xbf16> to vector<32x64xbf16>
    %631 = arith.truncf %628 : vector<64x256xf32> to vector<64x256xbf16>
    %cst_157 = arith.constant dense<0.000000e+00> : vector<32x256xf32>
    %632 = tpu.matmul %630, %631, %cst_157 {dimension_numbers = #tpu.dot_dimension_numbers<[1], [0], [0], [1], [0, 0, 1, 1], [], []>} : vector<32x64xbf16>, vector<64x256xbf16>, vector<32x256xf32> -> vector<32x256xf32>
    %c2_158 = arith.constant 2 : index
    %c0_159 = arith.constant 0 : index
    %c0_160 = arith.constant 0 : index
    %633 = vector.load %arg8[%c2_158, %c0_159, %c0_160] : memref<4x32x1xf32, #tpu.memory_space<vmem>>, vector<1x32x1xf32>
    %634 = vector.shape_cast %633 : vector<1x32x1xf32> to vector<32x1xf32>
    %635 = vector.broadcast %634 : vector<32x1xf32> to vector<32x256xf32>
    %636 = arith.addf %632, %635 : vector<32x256xf32>
    %637 = vector.extract_strided_slice %636 {offsets = [0, 0], sizes = [16, 256], strides = [1, 1]} : vector<32x256xf32> to vector<16x256xf32>
    %638 = arith.addf %449, %637 : vector<16x256xf32>
    %639 = vector.extract_strided_slice %636 {offsets = [16, 0], sizes = [16, 256], strides = [1, 1]} : vector<32x256xf32> to vector<16x256xf32>
    %640 = arith.addf %451, %639 : vector<16x256xf32>
    %c3 = arith.constant 3 : index
    %c0_161 = arith.constant 0 : index
    %c0_162 = arith.constant 0 : index
    %641 = vector.load %arg6[%c3, %c0_161, %c0_162] : memref<4x64x11xf32, #tpu.memory_space<vmem>>, vector<1x64x11xf32>
    %642 = vector.shape_cast %641 : vector<1x64x11xf32> to vector<64x11xf32>
    %c3_163 = arith.constant 3 : index
    %c0_164 = arith.constant 0 : index
    %c0_165 = arith.constant 0 : index
    %643 = vector.load %arg5[%c3_163, %c0_164, %c0_165] : memref<4x64x16xbf16, #tpu.memory_space<vmem>>, vector<1x64x16xbf16>
    %644 = vector.shape_cast %643 : vector<1x64x16xbf16> to vector<64x16xbf16>
    %645 = arith.truncf %638 : vector<16x256xf32> to vector<16x256xbf16>
    %cst_166 = arith.constant dense<0.000000e+00> : vector<64x256xf32>
    %646 = tpu.matmul %644, %645, %cst_166 {dimension_numbers = #tpu.dot_dimension_numbers<[1], [0], [0], [1], [0, 0, 1, 1], [], []>} : vector<64x16xbf16>, vector<16x256xbf16>, vector<64x256xf32> -> vector<64x256xf32>
    %647 = vector.extract_strided_slice %642 {offsets = [0, 0], sizes = [64, 1], strides = [1, 1]} : vector<64x11xf32> to vector<64x1xf32>
    %648 = vector.broadcast %647 : vector<64x1xf32> to vector<64x256xf32>
    %649 = arith.addf %646, %648 : vector<64x256xf32>
    %cst_167 = arith.constant 0.000000e+00 : f32
    %650 = vector.broadcast %cst_167 : f32 to vector<64x256xf32>
    %651 = arith.cmpf ogt, %649, %650 : vector<64x256xf32>
    %652 = vector.extract_strided_slice %642 {offsets = [0, 9], sizes = [64, 1], strides = [1, 1]} : vector<64x11xf32> to vector<64x1xf32>
    %653 = vector.broadcast %652 : vector<64x1xf32> to vector<64x256xf32>
    %654 = arith.mulf %653, %649 : vector<64x256xf32>
    %655 = arith.select %651, %649, %654 : vector<64x256xi1>, vector<64x256xf32>
    %656 = vector.extract_strided_slice %642 {offsets = [0, 1], sizes = [64, 1], strides = [1, 1]} : vector<64x11xf32> to vector<64x1xf32>
    %657 = vector.extract_strided_slice %642 {offsets = [0, 2], sizes = [64, 1], strides = [1, 1]} : vector<64x11xf32> to vector<64x1xf32>
    %658 = vector.extract_strided_slice %655 {offsets = [0, 0], sizes = [64, 128], strides = [1, 1]} : vector<64x256xf32> to vector<64x128xf32>
    %659 = arith.mulf %658, %658 : vector<64x128xf32>
    %660 = tpu.concatenate %658, %659 in 0 : vector<64x128xf32>, vector<64x128xf32> -> vector<128x128xf32>
    %cst_168 = arith.constant dense<0.000000e+00> : vector<128xf32>
    %661 = vector.multi_reduction <add>, %660, %cst_168 [1] : vector<128x128xf32> to vector<128xf32>
    %662 = vector.shape_cast %661 : vector<128xf32> to vector<128x1xf32>
    %663 = vector.extract_strided_slice %662 {offsets = [0, 0], sizes = [64, 1], strides = [1, 1]} : vector<128x1xf32> to vector<64x1xf32>
    %cst_169 = arith.constant dense<0.000000e+00> : vector<1xf32>
    %664 = vector.multi_reduction <add>, %663, %cst_169 [0] : vector<64x1xf32> to vector<1xf32>
    %665 = vector.shape_cast %664 : vector<1xf32> to vector<1x1xf32>
    %cst_170 = arith.constant 1.22070313E-4 : f32
    %666 = vector.broadcast %cst_170 : f32 to vector<1x1xf32>
    %667 = arith.mulf %665, %666 : vector<1x1xf32>
    %668 = vector.extract_strided_slice %662 {offsets = [64, 0], sizes = [64, 1], strides = [1, 1]} : vector<128x1xf32> to vector<64x1xf32>
    %cst_171 = arith.constant dense<0.000000e+00> : vector<1xf32>
    %669 = vector.multi_reduction <add>, %668, %cst_171 [0] : vector<64x1xf32> to vector<1xf32>
    %670 = vector.shape_cast %669 : vector<1xf32> to vector<1x1xf32>
    %cst_172 = arith.constant 1.22070313E-4 : f32
    %671 = vector.broadcast %cst_172 : f32 to vector<1x1xf32>
    %672 = arith.mulf %670, %671 : vector<1x1xf32>
    %673 = arith.mulf %667, %667 : vector<1x1xf32>
    %674 = arith.subf %672, %673 : vector<1x1xf32>
    %cst_173 = arith.constant 0.000000e+00 : f32
    %675 = vector.broadcast %cst_173 : f32 to vector<1x1xf32>
    %676 = arith.maximumf %674, %675 : vector<1x1xf32>
    %cst_174 = arith.constant 9.99999993E-9 : f32
    %677 = vector.broadcast %cst_174 : f32 to vector<1x1xf32>
    %678 = arith.addf %676, %677 : vector<1x1xf32>
    %679 = math.rsqrt %678 : vector<1x1xf32>
    %680 = vector.broadcast %679 : vector<1x1xf32> to vector<64x1xf32>
    %681 = arith.mulf %656, %680 : vector<64x1xf32>
    %682 = vector.broadcast %667 : vector<1x1xf32> to vector<64x1xf32>
    %683 = arith.mulf %682, %681 : vector<64x1xf32>
    %684 = arith.subf %657, %683 : vector<64x1xf32>
    %685 = vector.broadcast %681 : vector<64x1xf32> to vector<64x128xf32>
    %686 = arith.mulf %658, %685 : vector<64x128xf32>
    %687 = vector.broadcast %684 : vector<64x1xf32> to vector<64x128xf32>
    %688 = arith.addf %686, %687 : vector<64x128xf32>
    %689 = vector.extract_strided_slice %655 {offsets = [0, 128], sizes = [64, 128], strides = [1, 1]} : vector<64x256xf32> to vector<64x128xf32>
    %690 = arith.mulf %689, %689 : vector<64x128xf32>
    %691 = tpu.concatenate %689, %690 in 0 : vector<64x128xf32>, vector<64x128xf32> -> vector<128x128xf32>
    %cst_175 = arith.constant dense<0.000000e+00> : vector<128xf32>
    %692 = vector.multi_reduction <add>, %691, %cst_175 [1] : vector<128x128xf32> to vector<128xf32>
    %693 = vector.shape_cast %692 : vector<128xf32> to vector<128x1xf32>
    %694 = vector.extract_strided_slice %693 {offsets = [0, 0], sizes = [64, 1], strides = [1, 1]} : vector<128x1xf32> to vector<64x1xf32>
    %cst_176 = arith.constant dense<0.000000e+00> : vector<1xf32>
    %695 = vector.multi_reduction <add>, %694, %cst_176 [0] : vector<64x1xf32> to vector<1xf32>
    %696 = vector.shape_cast %695 : vector<1xf32> to vector<1x1xf32>
    %cst_177 = arith.constant 1.22070313E-4 : f32
    %697 = vector.broadcast %cst_177 : f32 to vector<1x1xf32>
    %698 = arith.mulf %696, %697 : vector<1x1xf32>
    %699 = vector.extract_strided_slice %693 {offsets = [64, 0], sizes = [64, 1], strides = [1, 1]} : vector<128x1xf32> to vector<64x1xf32>
    %cst_178 = arith.constant dense<0.000000e+00> : vector<1xf32>
    %700 = vector.multi_reduction <add>, %699, %cst_178 [0] : vector<64x1xf32> to vector<1xf32>
    %701 = vector.shape_cast %700 : vector<1xf32> to vector<1x1xf32>
    %cst_179 = arith.constant 1.22070313E-4 : f32
    %702 = vector.broadcast %cst_179 : f32 to vector<1x1xf32>
    %703 = arith.mulf %701, %702 : vector<1x1xf32>
    %704 = arith.mulf %698, %698 : vector<1x1xf32>
    %705 = arith.subf %703, %704 : vector<1x1xf32>
    %cst_180 = arith.constant 0.000000e+00 : f32
    %706 = vector.broadcast %cst_180 : f32 to vector<1x1xf32>
    %707 = arith.maximumf %705, %706 : vector<1x1xf32>
    %cst_181 = arith.constant 9.99999993E-9 : f32
    %708 = vector.broadcast %cst_181 : f32 to vector<1x1xf32>
    %709 = arith.addf %707, %708 : vector<1x1xf32>
    %710 = math.rsqrt %709 : vector<1x1xf32>
    %711 = vector.broadcast %710 : vector<1x1xf32> to vector<64x1xf32>
    %712 = arith.mulf %656, %711 : vector<64x1xf32>
    %713 = vector.broadcast %698 : vector<1x1xf32> to vector<64x1xf32>
    %714 = arith.mulf %713, %712 : vector<64x1xf32>
    %715 = arith.subf %657, %714 : vector<64x1xf32>
    %716 = vector.broadcast %712 : vector<64x1xf32> to vector<64x128xf32>
    %717 = arith.mulf %689, %716 : vector<64x128xf32>
    %718 = vector.broadcast %715 : vector<64x1xf32> to vector<64x128xf32>
    %719 = arith.addf %717, %718 : vector<64x128xf32>
    %720 = tpu.concatenate %688, %719 in 1 : vector<64x128xf32>, vector<64x128xf32> -> vector<64x256xf32>
    %cst_182 = arith.constant 0.000000e+00 : f32
    %721 = vector.broadcast %cst_182 : f32 to vector<64x2xf32>
    %722 = vector.extract_strided_slice %720 {offsets = [0, 0], sizes = [64, 128], strides = [1, 1]} : vector<64x256xf32> to vector<64x128xf32>
    %723 = vector.extract_strided_slice %722 {offsets = [0, 0], sizes = [64, 126], strides = [1, 1]} : vector<64x128xf32> to vector<64x126xf32>
    %724 = vector.extract_strided_slice %720 {offsets = [0, 128], sizes = [64, 128], strides = [1, 1]} : vector<64x256xf32> to vector<64x128xf32>
    %725 = vector.extract_strided_slice %724 {offsets = [0, 0], sizes = [64, 126], strides = [1, 1]} : vector<64x128xf32> to vector<64x126xf32>
    %726 = tpu.concatenate %721, %723, %721, %725 in 1 : vector<64x2xf32>, vector<64x126xf32>, vector<64x2xf32>, vector<64x126xf32> -> vector<64x256xf32>
    %cst_183 = arith.constant 0.000000e+00 : f32
    %727 = vector.broadcast %cst_183 : f32 to vector<64x2xf32>
    %728 = vector.extract_strided_slice %720 {offsets = [0, 0], sizes = [64, 128], strides = [1, 1]} : vector<64x256xf32> to vector<64x128xf32>
    %729 = vector.extract_strided_slice %728 {offsets = [0, 2], sizes = [64, 126], strides = [1, 1]} : vector<64x128xf32> to vector<64x126xf32>
    %730 = vector.extract_strided_slice %720 {offsets = [0, 128], sizes = [64, 128], strides = [1, 1]} : vector<64x256xf32> to vector<64x128xf32>
    %731 = vector.extract_strided_slice %730 {offsets = [0, 2], sizes = [64, 126], strides = [1, 1]} : vector<64x128xf32> to vector<64x126xf32>
    %732 = tpu.concatenate %729, %727, %731, %727 in 1 : vector<64x126xf32>, vector<64x2xf32>, vector<64x126xf32>, vector<64x2xf32> -> vector<64x256xf32>
    %733 = vector.extract_strided_slice %642 {offsets = [0, 4], sizes = [64, 1], strides = [1, 1]} : vector<64x11xf32> to vector<64x1xf32>
    %734 = vector.broadcast %733 : vector<64x1xf32> to vector<64x256xf32>
    %735 = arith.mulf %720, %734 : vector<64x256xf32>
    %736 = vector.extract_strided_slice %642 {offsets = [0, 6], sizes = [64, 1], strides = [1, 1]} : vector<64x11xf32> to vector<64x1xf32>
    %737 = vector.broadcast %736 : vector<64x1xf32> to vector<64x256xf32>
    %738 = arith.addf %735, %737 : vector<64x256xf32>
    %739 = vector.extract_strided_slice %642 {offsets = [0, 3], sizes = [64, 1], strides = [1, 1]} : vector<64x11xf32> to vector<64x1xf32>
    %740 = vector.broadcast %739 : vector<64x1xf32> to vector<64x256xf32>
    %741 = arith.mulf %726, %740 : vector<64x256xf32>
    %742 = arith.addf %738, %741 : vector<64x256xf32>
    %743 = vector.extract_strided_slice %642 {offsets = [0, 5], sizes = [64, 1], strides = [1, 1]} : vector<64x11xf32> to vector<64x1xf32>
    %744 = vector.broadcast %743 : vector<64x1xf32> to vector<64x256xf32>
    %745 = arith.mulf %732, %744 : vector<64x256xf32>
    %746 = arith.addf %742, %745 : vector<64x256xf32>
    %cst_184 = arith.constant 0.000000e+00 : f32
    %747 = vector.broadcast %cst_184 : f32 to vector<64x256xf32>
    %748 = arith.cmpf ogt, %746, %747 : vector<64x256xf32>
    %749 = vector.extract_strided_slice %642 {offsets = [0, 10], sizes = [64, 1], strides = [1, 1]} : vector<64x11xf32> to vector<64x1xf32>
    %750 = vector.broadcast %749 : vector<64x1xf32> to vector<64x256xf32>
    %751 = arith.mulf %750, %746 : vector<64x256xf32>
    %752 = arith.select %748, %746, %751 : vector<64x256xi1>, vector<64x256xf32>
    %753 = vector.extract_strided_slice %642 {offsets = [0, 7], sizes = [64, 1], strides = [1, 1]} : vector<64x11xf32> to vector<64x1xf32>
    %754 = vector.extract_strided_slice %642 {offsets = [0, 8], sizes = [64, 1], strides = [1, 1]} : vector<64x11xf32> to vector<64x1xf32>
    %755 = vector.extract_strided_slice %752 {offsets = [0, 0], sizes = [64, 128], strides = [1, 1]} : vector<64x256xf32> to vector<64x128xf32>
    %756 = arith.mulf %755, %755 : vector<64x128xf32>
    %757 = tpu.concatenate %755, %756 in 0 : vector<64x128xf32>, vector<64x128xf32> -> vector<128x128xf32>
    %cst_185 = arith.constant dense<0.000000e+00> : vector<128xf32>
    %758 = vector.multi_reduction <add>, %757, %cst_185 [1] : vector<128x128xf32> to vector<128xf32>
    %759 = vector.shape_cast %758 : vector<128xf32> to vector<128x1xf32>
    %760 = vector.extract_strided_slice %759 {offsets = [0, 0], sizes = [64, 1], strides = [1, 1]} : vector<128x1xf32> to vector<64x1xf32>
    %cst_186 = arith.constant dense<0.000000e+00> : vector<1xf32>
    %761 = vector.multi_reduction <add>, %760, %cst_186 [0] : vector<64x1xf32> to vector<1xf32>
    %762 = vector.shape_cast %761 : vector<1xf32> to vector<1x1xf32>
    %cst_187 = arith.constant 1.22070313E-4 : f32
    %763 = vector.broadcast %cst_187 : f32 to vector<1x1xf32>
    %764 = arith.mulf %762, %763 : vector<1x1xf32>
    %765 = vector.extract_strided_slice %759 {offsets = [64, 0], sizes = [64, 1], strides = [1, 1]} : vector<128x1xf32> to vector<64x1xf32>
    %cst_188 = arith.constant dense<0.000000e+00> : vector<1xf32>
    %766 = vector.multi_reduction <add>, %765, %cst_188 [0] : vector<64x1xf32> to vector<1xf32>
    %767 = vector.shape_cast %766 : vector<1xf32> to vector<1x1xf32>
    %cst_189 = arith.constant 1.22070313E-4 : f32
    %768 = vector.broadcast %cst_189 : f32 to vector<1x1xf32>
    %769 = arith.mulf %767, %768 : vector<1x1xf32>
    %770 = arith.mulf %764, %764 : vector<1x1xf32>
    %771 = arith.subf %769, %770 : vector<1x1xf32>
    %cst_190 = arith.constant 0.000000e+00 : f32
    %772 = vector.broadcast %cst_190 : f32 to vector<1x1xf32>
    %773 = arith.maximumf %771, %772 : vector<1x1xf32>
    %cst_191 = arith.constant 9.99999993E-9 : f32
    %774 = vector.broadcast %cst_191 : f32 to vector<1x1xf32>
    %775 = arith.addf %773, %774 : vector<1x1xf32>
    %776 = math.rsqrt %775 : vector<1x1xf32>
    %777 = vector.broadcast %776 : vector<1x1xf32> to vector<64x1xf32>
    %778 = arith.mulf %753, %777 : vector<64x1xf32>
    %779 = vector.broadcast %764 : vector<1x1xf32> to vector<64x1xf32>
    %780 = arith.mulf %779, %778 : vector<64x1xf32>
    %781 = arith.subf %754, %780 : vector<64x1xf32>
    %782 = vector.broadcast %778 : vector<64x1xf32> to vector<64x128xf32>
    %783 = arith.mulf %755, %782 : vector<64x128xf32>
    %784 = vector.broadcast %781 : vector<64x1xf32> to vector<64x128xf32>
    %785 = arith.addf %783, %784 : vector<64x128xf32>
    %786 = vector.extract_strided_slice %752 {offsets = [0, 128], sizes = [64, 128], strides = [1, 1]} : vector<64x256xf32> to vector<64x128xf32>
    %787 = arith.mulf %786, %786 : vector<64x128xf32>
    %788 = tpu.concatenate %786, %787 in 0 : vector<64x128xf32>, vector<64x128xf32> -> vector<128x128xf32>
    %cst_192 = arith.constant dense<0.000000e+00> : vector<128xf32>
    %789 = vector.multi_reduction <add>, %788, %cst_192 [1] : vector<128x128xf32> to vector<128xf32>
    %790 = vector.shape_cast %789 : vector<128xf32> to vector<128x1xf32>
    %791 = vector.extract_strided_slice %790 {offsets = [0, 0], sizes = [64, 1], strides = [1, 1]} : vector<128x1xf32> to vector<64x1xf32>
    %cst_193 = arith.constant dense<0.000000e+00> : vector<1xf32>
    %792 = vector.multi_reduction <add>, %791, %cst_193 [0] : vector<64x1xf32> to vector<1xf32>
    %793 = vector.shape_cast %792 : vector<1xf32> to vector<1x1xf32>
    %cst_194 = arith.constant 1.22070313E-4 : f32
    %794 = vector.broadcast %cst_194 : f32 to vector<1x1xf32>
    %795 = arith.mulf %793, %794 : vector<1x1xf32>
    %796 = vector.extract_strided_slice %790 {offsets = [64, 0], sizes = [64, 1], strides = [1, 1]} : vector<128x1xf32> to vector<64x1xf32>
    %cst_195 = arith.constant dense<0.000000e+00> : vector<1xf32>
    %797 = vector.multi_reduction <add>, %796, %cst_195 [0] : vector<64x1xf32> to vector<1xf32>
    %798 = vector.shape_cast %797 : vector<1xf32> to vector<1x1xf32>
    %cst_196 = arith.constant 1.22070313E-4 : f32
    %799 = vector.broadcast %cst_196 : f32 to vector<1x1xf32>
    %800 = arith.mulf %798, %799 : vector<1x1xf32>
    %801 = arith.mulf %795, %795 : vector<1x1xf32>
    %802 = arith.subf %800, %801 : vector<1x1xf32>
    %cst_197 = arith.constant 0.000000e+00 : f32
    %803 = vector.broadcast %cst_197 : f32 to vector<1x1xf32>
    %804 = arith.maximumf %802, %803 : vector<1x1xf32>
    %cst_198 = arith.constant 9.99999993E-9 : f32
    %805 = vector.broadcast %cst_198 : f32 to vector<1x1xf32>
    %806 = arith.addf %804, %805 : vector<1x1xf32>
    %807 = math.rsqrt %806 : vector<1x1xf32>
    %808 = vector.broadcast %807 : vector<1x1xf32> to vector<64x1xf32>
    %809 = arith.mulf %753, %808 : vector<64x1xf32>
    %810 = vector.broadcast %795 : vector<1x1xf32> to vector<64x1xf32>
    %811 = arith.mulf %810, %809 : vector<64x1xf32>
    %812 = arith.subf %754, %811 : vector<64x1xf32>
    %813 = vector.broadcast %809 : vector<64x1xf32> to vector<64x128xf32>
    %814 = arith.mulf %786, %813 : vector<64x128xf32>
    %815 = vector.broadcast %812 : vector<64x1xf32> to vector<64x128xf32>
    %816 = arith.addf %814, %815 : vector<64x128xf32>
    %817 = tpu.concatenate %785, %816 in 1 : vector<64x128xf32>, vector<64x128xf32> -> vector<64x256xf32>
    %c3_199 = arith.constant 3 : index
    %c0_200 = arith.constant 0 : index
    %c0_201 = arith.constant 0 : index
    %818 = vector.load %arg7[%c3_199, %c0_200, %c0_201] : memref<4x32x64xbf16, #tpu.memory_space<vmem>>, vector<1x32x64xbf16>
    %819 = vector.shape_cast %818 : vector<1x32x64xbf16> to vector<32x64xbf16>
    %820 = arith.truncf %817 : vector<64x256xf32> to vector<64x256xbf16>
    %cst_202 = arith.constant dense<0.000000e+00> : vector<32x256xf32>
    %821 = tpu.matmul %819, %820, %cst_202 {dimension_numbers = #tpu.dot_dimension_numbers<[1], [0], [0], [1], [0, 0, 1, 1], [], []>} : vector<32x64xbf16>, vector<64x256xbf16>, vector<32x256xf32> -> vector<32x256xf32>
    %c3_203 = arith.constant 3 : index
    %c0_204 = arith.constant 0 : index
    %c0_205 = arith.constant 0 : index
    %822 = vector.load %arg8[%c3_203, %c0_204, %c0_205] : memref<4x32x1xf32, #tpu.memory_space<vmem>>, vector<1x32x1xf32>
    %823 = vector.shape_cast %822 : vector<1x32x1xf32> to vector<32x1xf32>
    %824 = vector.broadcast %823 : vector<32x1xf32> to vector<32x256xf32>
    %825 = arith.addf %821, %824 : vector<32x256xf32>
    %826 = vector.extract_strided_slice %825 {offsets = [16, 0], sizes = [16, 256], strides = [1, 1]} : vector<32x256xf32> to vector<16x256xf32>
    %827 = arith.addf %640, %826 : vector<16x256xf32>
    %cst_206 = arith.constant 0.000000e+00 : f32
    %828 = vector.broadcast %cst_206 : f32 to vector<16x256xf32>
    %829 = arith.cmpf ogt, %827, %828 : vector<16x256xf32>
    %c0_207 = arith.constant 0 : index
    %c0_208 = arith.constant 0 : index
    %830 = vector.load %arg11[%c0_207, %c0_208] : memref<16x1xf32, #tpu.memory_space<vmem>>, vector<16x1xf32>
    %831 = vector.broadcast %830 : vector<16x1xf32> to vector<16x256xf32>
    %832 = arith.mulf %831, %827 : vector<16x256xf32>
    %833 = arith.select %829, %827, %832 : vector<16x256xi1>, vector<16x256xf32>
    %c0_209 = arith.constant 0 : index
    %c0_210 = arith.constant 0 : index
    %834 = vector.load %arg9[%c0_209, %c0_210] : memref<32x16xbf16, #tpu.memory_space<vmem>>, vector<32x16xbf16>
    %835 = arith.truncf %833 : vector<16x256xf32> to vector<16x256xbf16>
    %cst_211 = arith.constant dense<0.000000e+00> : vector<32x256xf32>
    %836 = tpu.matmul %834, %835, %cst_211 {dimension_numbers = #tpu.dot_dimension_numbers<[1], [0], [0], [1], [0, 0, 1, 1], [], []>} : vector<32x16xbf16>, vector<16x256xbf16>, vector<32x256xf32> -> vector<32x256xf32>
    %c0_212 = arith.constant 0 : index
    %c0_213 = arith.constant 0 : index
    %837 = vector.load %arg10[%c0_212, %c0_213] : memref<32x1xf32, #tpu.memory_space<vmem>>, vector<32x1xf32>
    %838 = vector.broadcast %837 : vector<32x1xf32> to vector<32x256xf32>
    %839 = arith.addf %836, %838 : vector<32x256xf32>
    %840 = arith.negf %839 : vector<32x256xf32>
    %841 = math.exp %840 : vector<32x256xf32>
    %cst_214 = arith.constant 1.000000e+00 : f32
    %842 = vector.broadcast %cst_214 : f32 to vector<32x256xf32>
    %843 = arith.addf %842, %841 : vector<32x256xf32>
    %844 = arith.divf %842, %843 : vector<32x256xf32>
    %c0_215 = arith.constant 0 : index
    %c0_216 = arith.constant 0 : index
    %845 = vector.load %arg12[%c0_215, %c0_216] : memref<2x32xbf16, #tpu.memory_space<vmem>>, vector<2x32xbf16>
    %846 = arith.mulf %1, %844 : vector<32x256xf32>
    %847 = arith.truncf %846 : vector<32x256xf32> to vector<32x256xbf16>
    %cst_217 = arith.constant dense<0.000000e+00> : vector<2x256xf32>
    %848 = tpu.matmul %845, %847, %cst_217 {dimension_numbers = #tpu.dot_dimension_numbers<[1], [0], [0], [1], [0, 0, 1, 1], [], []>} : vector<2x32xbf16>, vector<32x256xbf16>, vector<2x256xf32> -> vector<2x256xf32>
    %849 = arith.truncf %1 : vector<32x256xf32> to vector<32x256xbf16>
    %cst_218 = arith.constant dense<0.000000e+00> : vector<2x256xf32>
    %850 = tpu.matmul %845, %849, %cst_218 {dimension_numbers = #tpu.dot_dimension_numbers<[1], [0], [0], [1], [0, 0, 1, 1], [], []>} : vector<2x32xbf16>, vector<32x256xbf16>, vector<2x256xf32> -> vector<2x256xf32>
    %851 = arith.subf %850, %848 : vector<2x256xf32>
    %cst_219 = arith.constant 0.000000e+00 : f32
    %852 = vector.broadcast %cst_219 : f32 to vector<1x1xf32>
    %853 = vector.extract_strided_slice %848 {offsets = [0, 1], sizes = [1, 255], strides = [1, 1]} : vector<2x256xf32> to vector<1x255xf32>
    %854 = tpu.concatenate %853, %852 in 1 : vector<1x255xf32>, vector<1x1xf32> -> vector<1x256xf32>
    %855 = vector.extract_strided_slice %848 {offsets = [1, 0], sizes = [1, 256], strides = [1, 1]} : vector<2x256xf32> to vector<1x256xf32>
    %856 = arith.addf %854, %855 : vector<1x256xf32>
    %857 = vector.extract_strided_slice %851 {offsets = [0, 1], sizes = [1, 255], strides = [1, 1]} : vector<2x256xf32> to vector<1x255xf32>
    %858 = tpu.concatenate %857, %852 in 1 : vector<1x255xf32>, vector<1x1xf32> -> vector<1x256xf32>
    %859 = vector.extract_strided_slice %851 {offsets = [1, 0], sizes = [1, 256], strides = [1, 1]} : vector<2x256xf32> to vector<1x256xf32>
    %860 = arith.addf %858, %859 : vector<1x256xf32>
    %861 = tpu.concatenate %856, %860 in 0 : vector<1x256xf32>, vector<1x256xf32> -> vector<2x256xf32>
    %c0_220 = arith.constant 0 : index
    %c0_221 = arith.constant 0 : index
    %c0_222 = arith.constant 0 : index
    %862 = vector.load %arg13[%c0_220, %c0_221, %c0_222] : memref<1x2x256xf32, #tpu.memory_space<vmem>>, vector<1x2x256xf32>
    %863 = vector.shape_cast %862 : vector<1x2x256xf32> to vector<2x256xf32>
    %864 = vector.shape_cast %861 : vector<2x256xf32> to vector<1x2x256xf32>
    tpu.vector_store %arg13[%c0_220, %c0_221, %c0_222], %864 {strides = array<i32>} : memref<1x2x256xf32, #tpu.memory_space<vmem>>, vector<1x2x256xf32>,
    return
  }
  func.func @transform_0(%arg0: i32) -> (i32, i32, i32) {
    %c0_i32 = arith.constant 0 : i32
    %c0_i32_0 = arith.constant 0 : i32
    %c0_i32_1 = arith.constant 0 : i32
    return %arg0, %c0_i32, %c0_i32_0 : i32, i32, i32
  }
  func.func @transform_1(%arg0: i32) -> (i32, i32) {
    %c0_i32 = arith.constant 0 : i32
    %c0_i32_0 = arith.constant 0 : i32
    %c0_i32_1 = arith.constant 0 : i32
    return %c0_i32, %c0_i32_0 : i32, i32
  }
  func.func @transform_2(%arg0: i32) -> (i32, i32) {
    %c0_i32 = arith.constant 0 : i32
    %c0_i32_0 = arith.constant 0 : i32
    %c0_i32_1 = arith.constant 0 : i32
    return %c0_i32, %c0_i32_0 : i32, i32
  }
  func.func @transform_3(%arg0: i32) -> (i32, i32) {
    %c0_i32 = arith.constant 0 : i32
    %c0_i32_0 = arith.constant 0 : i32
    %c0_i32_1 = arith.constant 0 : i32
    return %c0_i32, %c0_i32_0 : i32, i32
  }
  func.func @transform_4(%arg0: i32) -> (i32, i32, i32) {
    %c0_i32 = arith.constant 0 : i32
    %c0_i32_0 = arith.constant 0 : i32
    %c0_i32_1 = arith.constant 0 : i32
    %c0_i32_2 = arith.constant 0 : i32
    return %c0_i32, %c0_i32_0, %c0_i32_1 : i32, i32, i32
  }
  func.func @transform_5(%arg0: i32) -> (i32, i32, i32) {
    %c0_i32 = arith.constant 0 : i32
    %c0_i32_0 = arith.constant 0 : i32
    %c0_i32_1 = arith.constant 0 : i32
    %c0_i32_2 = arith.constant 0 : i32
    return %c0_i32, %c0_i32_0, %c0_i32_1 : i32, i32, i32
  }
  func.func @transform_6(%arg0: i32) -> (i32, i32, i32) {
    %c0_i32 = arith.constant 0 : i32
    %c0_i32_0 = arith.constant 0 : i32
    %c0_i32_1 = arith.constant 0 : i32
    %c0_i32_2 = arith.constant 0 : i32
    return %c0_i32, %c0_i32_0, %c0_i32_1 : i32, i32, i32
  }
  func.func @transform_7(%arg0: i32) -> (i32, i32, i32) {
    %c0_i32 = arith.constant 0 : i32
    %c0_i32_0 = arith.constant 0 : i32
    %c0_i32_1 = arith.constant 0 : i32
    %c0_i32_2 = arith.constant 0 : i32
    return %c0_i32, %c0_i32_0, %c0_i32_1 : i32, i32, i32
  }
  func.func @transform_8(%arg0: i32) -> (i32, i32) {
    %c0_i32 = arith.constant 0 : i32
    %c0_i32_0 = arith.constant 0 : i32
    %c0_i32_1 = arith.constant 0 : i32
    return %c0_i32, %c0_i32_0 : i32, i32
  }
  func.func @transform_9(%arg0: i32) -> (i32, i32) {
    %c0_i32 = arith.constant 0 : i32
    %c0_i32_0 = arith.constant 0 : i32
    %c0_i32_1 = arith.constant 0 : i32
    return %c0_i32, %c0_i32_0 : i32, i32
  }
  func.func @transform_10(%arg0: i32) -> (i32, i32) {
    %c0_i32 = arith.constant 0 : i32
    %c0_i32_0 = arith.constant 0 : i32
    %c0_i32_1 = arith.constant 0 : i32
    return %c0_i32, %c0_i32_0 : i32, i32
  }
  func.func @transform_11(%arg0: i32) -> (i32, i32) {
    %c0_i32 = arith.constant 0 : i32
    %c0_i32_0 = arith.constant 0 : i32
    %c0_i32_1 = arith.constant 0 : i32
    return %c0_i32, %c0_i32_0 : i32, i32
  }
  func.func @transform_12(%arg0: i32) -> (i32, i32, i32) {
    %c0_i32 = arith.constant 0 : i32
    %c0_i32_0 = arith.constant 0 : i32
    %c0_i32_1 = arith.constant 0 : i32
    return %arg0, %c0_i32, %c0_i32_0 : i32, i32, i32
  }
}

</mosaic_0001>

<llo_original>
// kernel: tasnet_forward.1
$region0: #{tasnet_forward.1}
  #allocation0 [shape = 'u32[]', space=smem, size = 0x4, offset = 0x4, fixed_abs, tag = 'smem constant byte address 0x4 - core index']
  #allocation1 [shape = 'u32[144,128]{1,0:T(1,128)}', space=vmem, size = 0x12000, scoped, tag = 'internal scratch']
  %s0 = inlined_call_operand.vmem [shape: f32[1,32,256], index: 0, kind: input, shape index: {}]
  %s1 = inlined_call_operand.vmem [shape: f32[32,2], index: 1, kind: input, shape index: {}]
  %s2 = inlined_call_operand.vmem [shape: bf16[16,32], index: 2, kind: input, shape index: {}]
  %s3 = inlined_call_operand.vmem [shape: f32[16,1], index: 3, kind: input, shape index: {}]
  %s4 = inlined_call_operand.vmem [shape: bf16[4,64,16], index: 4, kind: input, shape index: {}]
  %s5 = inlined_call_operand.vmem [shape: f32[4,64,11], index: 5, kind: input, shape index: {}]
  %s6 = inlined_call_operand.vmem [shape: bf16[4,32,64], index: 6, kind: input, shape index: {}]
  %s7 = inlined_call_operand.vmem [shape: f32[4,32,1], index: 7, kind: input, shape index: {}]
  %s8 = inlined_call_operand.vmem [shape: bf16[32,16], index: 8, kind: input, shape index: {}]
  %s9 = inlined_call_operand.vmem [shape: f32[32,1], index: 9, kind: input, shape index: {}]
  %s10 = inlined_call_operand.vmem [shape: f32[16,1], index: 10, kind: input, shape index: {}]
  %s11 = inlined_call_operand.vmem [shape: bf16[2,32], index: 11, kind: input, shape index: {}]
  %s12 = inlined_call_operand.vmem [shape: f32[1,2,256], index: 12, kind: output, shape index: {}]
  %s13 = sld [smem:[#allocation0]]
  $region58: #{tasnet_forward.1} parent=0
    _
  %s15 = ssub.s32 1, %s13
  %s16 = scalar_select 0, %s15, %s13
  // Predicated region
  $region2: #{tasnet_forward.1} parent=0 // pred_check
    _
  $region3: #{tasnet_forward.1} parent=0 // pred_check_branch
    %18 = sbr.rel (0) target = $region5
  $region4: #{tasnet_forward.1} parent=0 // pred_region
    _
  $region5: #{tasnet_forward.1} parent=0 // pred_fallthru
    _
  // Predicated region
  $region6: #{tasnet_forward.1} parent=0 // pred_check
    _
  $region7: #{tasnet_forward.1} parent=0 // pred_check_branch
    %20 = sbr.rel (0) target = $region9
  $region8: #{tasnet_forward.1} parent=0 // pred_region
    _
  $region9: #{tasnet_forward.1} parent=0 // pred_fallthru
    _
  // Predicated region
  $region10: #{tasnet_forward.1} parent=0 // pred_check
    _
  $region11: #{tasnet_forward.1} parent=0 // pred_check_branch
    %22 = sbr.rel (0) target = $region13
  $region12: #{tasnet_forward.1} parent=0 // pred_region
    _
  $region13: #{tasnet_forward.1} parent=0 // pred_fallthru
    _
  // Predicated region
  $region14: #{tasnet_forward.1} parent=0 // pred_check
    _
  $region15: #{tasnet_forward.1} parent=0 // pred_check_branch
    %24 = sbr.rel (0) target = $region17
  $region16: #{tasnet_forward.1} parent=0 // pred_region
    _
  $region17: #{tasnet_forward.1} parent=0 // pred_fallthru
    _
  // Predicated region
  $region18: #{tasnet_forward.1} parent=0 // pred_check
    _
  $region19: #{tasnet_forward.1} parent=0 // pred_check_branch
    %26 = sbr.rel (0) target = $region21
  $region20: #{tasnet_forward.1} parent=0 // pred_region
    _
  $region21: #{tasnet_forward.1} parent=0 // pred_fallthru
    _
  // Predicated region
  $region22: #{tasnet_forward.1} parent=0 // pred_check
    _
  $region23: #{tasnet_forward.1} parent=0 // pred_check_branch
    %28 = sbr.rel (0) target = $region25
  $region24: #{tasnet_forward.1} parent=0 // pred_region
    _
  $region25: #{tasnet_forward.1} parent=0 // pred_fallthru
    _
  // Predicated region
  $region26: #{tasnet_forward.1} parent=0 // pred_check
    _
  $region27: #{tasnet_forward.1} parent=0 // pred_check_branch
    %30 = sbr.rel (0) target = $region29
  $region28: #{tasnet_forward.1} parent=0 // pred_region
    _
  $region29: #{tasnet_forward.1} parent=0 // pred_fallthru
    _
  // Predicated region
  $region30: #{tasnet_forward.1} parent=0 // pred_check
    _
  $region31: #{tasnet_forward.1} parent=0 // pred_check_branch
    %32 = sbr.rel (0) target = $region33
  $region32: #{tasnet_forward.1} parent=0 // pred_region
    _
  $region33: #{tasnet_forward.1} parent=0 // pred_fallthru
    _
  // Predicated region
  $region34: #{tasnet_forward.1} parent=0 // pred_check
    _
  $region35: #{tasnet_forward.1} parent=0 // pred_check_branch
    %34 = sbr.rel (0) target = $region37
  $region36: #{tasnet_forward.1} parent=0 // pred_region
    _
  $region37: #{tasnet_forward.1} parent=0 // pred_fallthru
    _
  // Predicated region
  $region38: #{tasnet_forward.1} parent=0 // pred_check
    _
  $region39: #{tasnet_forward.1} parent=0 // pred_check_branch
    %36 = sbr.rel (0) target = $region41
  $region40: #{tasnet_forward.1} parent=0 // pred_region
    _
  $region41: #{tasnet_forward.1} parent=0 // pred_fallthru
    _
  // Predicated region
  $region42: #{tasnet_forward.1} parent=0 // pred_check
    _
  $region43: #{tasnet_forward.1} parent=0 // pred_check_branch
    %38 = sbr.rel (0) target = $region45
  $region44: #{tasnet_forward.1} parent=0 // pred_region
    _
  $region45: #{tasnet_forward.1} parent=0 // pred_fallthru
    _
  // Predicated region
  $region46: #{tasnet_forward.1} parent=0 // pred_check
    _
  $region47: #{tasnet_forward.1} parent=0 // pred_check_branch
    %40 = sbr.rel (0) target = $region49
  $region48: #{tasnet_forward.1} parent=0 // pred_region
    _
  $region49: #{tasnet_forward.1} parent=0 // pred_fallthru
    _
  %v42 = vld [vmem:[%s0] sm:$0xff]
  %v43 = vld [vmem:[%s0 + $0x8] sm:$0xff]
  %v44 = vld [vmem:[%s0 + $0x10] sm:$0xff]
  %v45 = vld [vmem:[%s0 + $0x18] sm:$0xff]
  %v46 = vld [vmem:[%s0 + $0x20] sm:$0xff]
  %v47 = vld [vmem:[%s0 + $0x28] sm:$0xff]
  %v48 = vld [vmem:[%s0 + $0x30] sm:$0xff]
  %v49 = vld [vmem:[%s0 + $0x38] sm:$0xff]
  %v50 = vld [vmem:[%s1] sm:$0xff]
  %v51 = vld [vmem:[%s1 + $0x8] sm:$0xff]
  %v52 = vld [vmem:[%s1 + $0x10] sm:$0xff]
  %v53 = vld [vmem:[%s1 + $0x18] sm:$0xff]
  %v54 = vmul.f32 %v42, %v42
  %v55 = vmul.f32 %v44, %v44
  %v56 = vmul.f32 %v46, %v46
  %v57 = vmul.f32 %v48, %v48
  %58 = vadd.xlane.f32.xlu0 %v42
  %v59 = vpop.xlane.xlu0 %58
  %60 = vadd.xlane.f32.xlu0 %v44
  %v61 = vpop.xlane.xlu0 %60
  %62 = vadd.xlane.f32.xlu0 %v46
  %v63 = vpop.xlane.xlu0 %62
  %64 = vadd.xlane.f32.xlu0 %v48
  %v65 = vpop.xlane.xlu0 %64
  %66 = vadd.xlane.f32.xlu0 %v54
  %v67 = vpop.xlane.xlu0 %66
  %68 = vadd.xlane.f32.xlu0 %v55
  %v69 = vpop.xlane.xlu0 %68
  %70 = vadd.xlane.f32.xlu0 %v56
  %v71 = vpop.xlane.xlu0 %70
  %72 = vadd.xlane.f32.xlu0 %v57
  %v73 = vpop.xlane.xlu0 %72
  %v74 = vadd.f32 %v59, %v61
  %v75 = vadd.f32 %v74, %v63
  %v76 = vadd.f32 %v75, %v65
  %v77 = vrot.slane %v76, 4
  %v78 = vadd.f32 %v76, %v77
  %v79 = vrot.slane %v78, 2
  %v80 = vadd.f32 %v78, %v79
  %v81 = vrot.slane %v80, 1
  %v82 = vadd.f32 %v80, %v81
  %v83 = vmul.f32 %v82, 0.00024414063
  %v84 = vadd.f32 %v67, %v69
  %v85 = vadd.f32 %v84, %v71
  %v86 = vadd.f32 %v85, %v73
  %v87 = vrot.slane %v86, 4
  %v88 = vadd.f32 %v86, %v87
  %v89 = vrot.slane %v88, 2
  %v90 = vadd.f32 %v88, %v89
  %v91 = vrot.slane %v90, 1
  %v92 = vadd.f32 %v90, %v91
  %v93 = vmul.f32 %v92, 0.00024414063
  %v94 = vmul.f32 %v83, %v83
  %v95 = vsub.f32 %v93, %v94
  %v96 = vmax.f32 %v95, 0.0
  %v97 = vadd.f32 %v96, 1e-08
  %v98 = vrsqrt.pop %v97
  %v99 = vmul.f32 %v50, %v98
  %v100 = vmul.f32 %v51, %v98
  %v101 = vmul.f32 %v52, %v98
  %v102 = vmul.f32 %v53, %v98
  %v103 = vmul.f32 %v83, %v99
  %v104 = vmul.f32 %v83, %v100
  %v105 = vmul.f32 %v83, %v101
  %v106 = vmul.f32 %v83, %v102
  %111 = vrot.lane.b32.xlu0 %v103, 1
  %v112 = vpop.permute.xlu0 %111
  %113 = vrot.lane.b32.xlu0 %v104, 1
  %v114 = vpop.permute.xlu0 %113
  %115 = vrot.lane.b32.xlu0 %v105, 1
  %v116 = vpop.permute.xlu0 %115
  %117 = vrot.lane.b32.xlu0 %v106, 1
  %v118 = vpop.permute.xlu0 %117
  %v123 = vsub.f32 %v50, %v112
  %v124 = vsub.f32 %v51, %v114
  %v125 = vsub.f32 %v52, %v116
  %v126 = vsub.f32 %v53, %v118
  %128 = vset.pattern.permute.xlu0 0
  %129 = vperm.xlu0 %128, %v99
  %v130 = vpop.permute.xlu0 %129
  %133 = vset.pattern.permute.xlu0 0
  %134 = vperm.xlu0 %133, %v100
  %v135 = vpop.permute.xlu0 %134
  %138 = vset.pattern.permute.xlu0 0
  %139 = vperm.xlu0 %138, %v101
  %v140 = vpop.permute.xlu0 %139
  %143 = vset.pattern.permute.xlu0 0
  %144 = vperm.xlu0 %143, %v102
  %v145 = vpop.permute.xlu0 %144
  %v147 = vmul.f32 %v42, %v130
  %v148 = vmul.f32 %v44, %v135
  %v149 = vmul.f32 %v46, %v140
  %v150 = vmul.f32 %v48, %v145
  %152 = vset.pattern.permute.xlu0 1
  %153 = vperm.xlu0 %152, %v123
  %v154 = vpop.permute.xlu0 %153
  %157 = vset.pattern.permute.xlu0 1
  %158 = vperm.xlu0 %157, %v124
  %v159 = vpop.permute.xlu0 %158
  %162 = vset.pattern.permute.xlu0 1
  %163 = vperm.xlu0 %162, %v125
  %v164 = vpop.permute.xlu0 %163
  %167 = vset.pattern.permute.xlu0 1
  %168 = vperm.xlu0 %167, %v126
  %v169 = vpop.permute.xlu0 %168
  %v171 = vadd.f32 %v147, %v154
  %v172 = vadd.f32 %v148, %v159
  %v173 = vadd.f32 %v149, %v164
  %v174 = vadd.f32 %v150, %v169
  %v175 = vmul.f32 %v43, %v43
  %v176 = vmul.f32 %v45, %v45
  %v177 = vmul.f32 %v47, %v47
  %v178 = vmul.f32 %v49, %v49
  %179 = vadd.xlane.f32.xlu0 %v43
  %v180 = vpop.xlane.xlu0 %179
  %181 = vadd.xlane.f32.xlu0 %v45
  %v182 = vpop.xlane.xlu0 %181
  %183 = vadd.xlane.f32.xlu0 %v47
  %v184 = vpop.xlane.xlu0 %183
  %185 = vadd.xlane.f32.xlu0 %v49
  %v186 = vpop.xlane.xlu0 %185
  %187 = vadd.xlane.f32.xlu0 %v175
  %v188 = vpop.xlane.xlu0 %187
  %189 = vadd.xlane.f32.xlu0 %v176
  %v190 = vpop.xlane.xlu0 %189
  %191 = vadd.xlane.f32.xlu0 %v177
  %v192 = vpop.xlane.xlu0 %191
  %193 = vadd.xlane.f32.xlu0 %v178
  %v194 = vpop.xlane.xlu0 %193
  %v195 = vadd.f32 %v180, %v182
  %v196 = vadd.f32 %v195, %v184
  %v197 = vadd.f32 %v196, %v186
  %v198 = vrot.slane %v197, 4
  %v199 = vadd.f32 %v197, %v198
  %v200 = vrot.slane %v199, 2
  %v201 = vadd.f32 %v199, %v200
  %v202 = vrot.slane %v201, 1
  %v203 = vadd.f32 %v201, %v202
  %v204 = vmul.f32 %v203, 0.00024414063
  %v205 = vadd.f32 %v188, %v190
  %v206 = vadd.f32 %v205, %v192
  %v207 = vadd.f32 %v206, %v194
  %v208 = vrot.slane %v207, 4
  %v209 = vadd.f32 %v207, %v208
  %v210 = vrot.slane %v209, 2
  %v211 = vadd.f32 %v209, %v210
  %v212 = vrot.slane %v211, 1
  %v213 = vadd.f32 %v211, %v212
  %v214 = vmul.f32 %v213, 0.00024414063
  %v215 = vmul.f32 %v204, %v204
  %v216 = vsub.f32 %v214, %v215
  %v217 = vmax.f32 %v216, 0.0
  %v218 = vadd.f32 %v217, 1e-08
  %v219 = vrsqrt.pop %v218
  %v220 = vmul.f32 %v50, %v219
  %v221 = vmul.f32 %v51, %v219
  %v222 = vmul.f32 %v52, %v219
  %v223 = vmul.f32 %v53, %v219
  %v224 = vmul.f32 %v204, %v220
  %v225 = vmul.f32 %v204, %v221
  %v226 = vmul.f32 %v204, %v222
  %v227 = vmul.f32 %v204, %v223
  %232 = vrot.lane.b32.xlu0 %v224, 1
  %v233 = vpop.permute.xlu0 %232
  %234 = vrot.lane.b32.xlu0 %v225, 1
  %v235 = vpop.permute.xlu0 %234
  %236 = vrot.lane.b32.xlu0 %v226, 1
  %v237 = vpop.permute.xlu0 %236
  %238 = vrot.lane.b32.xlu0 %v227, 1
  %v239 = vpop.permute.xlu0 %238
  %v244 = vsub.f32 %v50, %v233
  %v245 = vsub.f32 %v51, %v235
  %v246 = vsub.f32 %v52, %v237
  %v247 = vsub.f32 %v53, %v239
  %249 = vset.pattern.permute.xlu0 0
  %250 = vperm.xlu0 %249, %v220
  %v251 = vpop.permute.xlu0 %250
  %254 = vset.pattern.permute.xlu0 0
  %255 = vperm.xlu0 %254, %v221
  %v256 = vpop.permute.xlu0 %255
  %259 = vset.pattern.permute.xlu0 0
  %260 = vperm.xlu0 %259, %v222
  %v261 = vpop.permute.xlu0 %260
  %264 = vset.pattern.permute.xlu0 0
  %265 = vperm.xlu0 %264, %v223
  %v266 = vpop.permute.xlu0 %265
  %v268 = vmul.f32 %v43, %v251
  %v269 = vmul.f32 %v45, %v256
  %v270 = vmul.f32 %v47, %v261
  %v271 = vmul.f32 %v49, %v266
  %273 = vset.pattern.permute.xlu0 1
  %274 = vperm.xlu0 %273, %v244
  %v275 = vpop.permute.xlu0 %274
  %278 = vset.pattern.permute.xlu0 1
  %279 = vperm.xlu0 %278, %v245
  %v280 = vpop.permute.xlu0 %279
  %283 = vset.pattern.permute.xlu0 1
  %284 = vperm.xlu0 %283, %v246
  %v285 = vpop.permute.xlu0 %284
  %288 = vset.pattern.permute.xlu0 1
  %289 = vperm.xlu0 %288, %v247
  %v290 = vpop.permute.xlu0 %289
  %v292 = vadd.f32 %v268, %v275
  %v293 = vadd.f32 %v269, %v280
  %v294 = vadd.f32 %v270, %v285
  %v295 = vadd.f32 %v271, %v290
  %v296 = vld [vmem:[%s2] sm:$0xf]
  %v297 = vld [vmem:[%s2 + $0x4] sm:$0xf]
  %v298 = vpack.c.bf16 %v172, %v171
  %v299 = vpack.c.bf16 %v293, %v292
  %v300 = vpack.c.bf16 %v174, %v173
  %v301 = vpack.c.bf16 %v295, %v294
  %v302 = vld [vmem:[%s3] sm:$0xff]
  %v303 = vld [vmem:[%s3 + $0x8] sm:$0xff]
  %305 = vset.pattern.permute.xlu0 0
  %306 = vperm.xlu0 %305, %v302
  %v307 = vpop.permute.xlu0 %306
  %310 = vset.pattern.permute.xlu0 0
  %311 = vperm.xlu0 %310, %v303
  %v312 = vpop.permute.xlu0 %311
  %v316 = vunpack.c.l.b16 %v296
  %v317 = vunpack.c.l.b16 %v297
  %v318 = vpack.c.b16 %v317, %v316
  %vm319 = vcmask 261120
  %v321 = vsel %vm319, %v318, 0
  %323 = vmatprep.subr.bf16.mxu0 0
  %324 = vmatpush1.bf16.msra.mxu0 0
  %325 = vmatprep.subr.bf16.mxu0 0
  %326 = vmatpush1.bf16.msra.mxu0 0
  %327 = vmatprep.subr.bf16.mxu0 0
  %328 = vmatpush1.bf16.msra.mxu0 0
  %329 = vmatprep.subr.bf16.mxu0 0
  %330 = vmatpush1.bf16.msra.mxu0 0
  %331 = vmatprep.subr.bf16.mxu0 0
  %332 = vmatpush1.bf16.msra.mxu0 0
  %333 = vmatprep.subr.bf16.mxu0 0
  %334 = vmatpush1.bf16.msra.mxu0 0
  %335 = vmatprep.subr.bf16.mxu0 %v301
  %336 = vmatpush1.bf16.msra.mxu0 %v300
  %337 = vmatprep.subr.bf16.mxu0 %v299
  %338 = vmatpush1.bf16.msra.mxu0 %v298
  %339 = vmatprep.subr.bf16.mxu0 0
  %340 = vmatpush2.bf16.msra.mxu0 0
  %341 = vmatprep.subr.bf16.mxu0 0
  %342 = vmatpush2.bf16.msra.mxu0 0
  %343 = vmatprep.subr.bf16.mxu0 0
  %344 = vmatpush2.bf16.msra.mxu0 0
  %345 = vmatprep.subr.bf16.mxu0 0
  %346 = vmatpush2.bf16.msra.mxu0 0
  %347 = vmatprep.subr.bf16.mxu0 0
  %348 = vmatpush2.bf16.msra.mxu0 0
  %349 = vmatprep.subr.bf16.mxu0 0
  %350 = vmatpush2.bf16.msra.mxu0 0
  %351 = vmatprep.subr.bf16.mxu0 0
  %352 = vmatpush2.bf16.msra.mxu0 0
  %353 = vmatprep.subr.bf16.mxu0 0
  %354 = vmatpush2.bf16.msra.mxu0 0
  %355 = vmatprep.mubr.bf16.mxu0 0
  %356 = vmatmul.mubr.bf16.gmra.mxu0 %v321
  %v357 = vpop.f32.mrf.mxu0
  %v358 = vadd.f32 %v307, %v357
  %v359 = vpop.f32.mrf.mxu0
  %v360 = vadd.f32 %v307, %v359
  %v361 = vpop.f32.mrf.mxu0
  %v362 = vadd.f32 %v312, %v361
  %v363 = vpop.f32.mrf.mxu0
  %v364 = vadd.f32 %v312, %v363
  %365 = vdwg.mxu0
  %v366 = vld [vmem:[%s5] sm:$0xff]
  %v367 = vld [vmem:[%s5 + $0x8] sm:$0xff]
  %v368 = vld [vmem:[%s5 + $0x10] sm:$0xff]
  %v369 = vld [vmem:[%s5 + $0x18] sm:$0xff]
  %v370 = vld [vmem:[%s5 + $0x20] sm:$0xff]
  %v371 = vld [vmem:[%s5 + $0x28] sm:$0xff]
  %v372 = vld [vmem:[%s5 + $0x30] sm:$0xff]
  %v373 = vld [vmem:[%s5 + $0x38] sm:$0xff]
  %v374 = vld [vmem:[%s4] sm:$0xf]
  %v375 = vld [vmem:[%s4 + $0x4] sm:$0xf]
  %v376 = vld [vmem:[%s4 + $0x8] sm:$0xf]
  %v377 = vld [vmem:[%s4 + $0xc] sm:$0xf]
  %v378 = vld [vmem:[%s4 + $0x10] sm:$0xf]
  %v379 = vld [vmem:[%s4 + $0x14] sm:$0xf]
  %v380 = vld [vmem:[%s4 + $0x18] sm:$0xf]
  %v381 = vld [vmem:[%s4 + $0x1c] sm:$0xf]
  %v382 = vpack.c.bf16 %v362, %v358
  %v383 = vpack.c.bf16 %v364, %v360
  %385 = vset.pattern.permute.xlu0 0
  %386 = vperm.xlu0 %385, %v366
  %v387 = vpop.permute.xlu0 %386
  %390 = vset.pattern.permute.xlu0 0
  %391 = vperm.xlu0 %390, %v367
  %v392 = vpop.permute.xlu0 %391
  %395 = vset.pattern.permute.xlu0 0
  %396 = vperm.xlu0 %395, %v368
  %v397 = vpop.permute.xlu0 %396
  %400 = vset.pattern.permute.xlu0 0
  %401 = vperm.xlu0 %400, %v369
  %v402 = vpop.permute.xlu0 %401
  %405 = vset.pattern.permute.xlu0 0
  %406 = vperm.xlu0 %405, %v370
  %v407 = vpop.permute.xlu0 %406
  %410 = vset.pattern.permute.xlu0 0
  %411 = vperm.xlu0 %410, %v371
  %v412 = vpop.permute.xlu0 %411
  %415 = vset.pattern.permute.xlu0 0
  %416 = vperm.xlu0 %415, %v372
  %v417 = vpop.permute.xlu0 %416
  %420 = vset.pattern.permute.xlu0 0
  %421 = vperm.xlu0 %420, %v373
  %v422 = vpop.permute.xlu0 %421
  %v432 = vunpack.c.l.b16 %v374
  %v433 = vunpack.c.l.b16 %v375
  %v434 = vunpack.c.l.b16 %v376
  %v435 = vunpack.c.l.b16 %v377
  %v436 = vunpack.c.l.b16 %v378
  %v437 = vunpack.c.l.b16 %v379
  %v438 = vunpack.c.l.b16 %v380
  %v439 = vunpack.c.l.b16 %v381
  %v440 = vpack.c.b16 %v433, %v432
  %v441 = vpack.c.b16 %v435, %v434
  %v442 = vpack.c.b16 %v437, %v436
  %v443 = vpack.c.b16 %v439, %v438
  %vm444 = vcmask 130048
  %v446 = vsel %vm444, %v440, 0
  %v449 = vsel %vm444, %v441, 0
  %v452 = vsel %vm444, %v442, 0
  %v455 = vsel %vm444, %v443, 0
  %457 = vmatprep.subr.bf16.mxu0 0
  %458 = vmatpush1.bf16.msra.mxu0 0
  %459 = vmatprep.subr.bf16.mxu0 0
  %460 = vmatpush1.bf16.msra.mxu0 0
  %461 = vmatprep.subr.bf16.mxu0 0
  %462 = vmatpush1.bf16.msra.mxu0 0
  %463 = vmatprep.subr.bf16.mxu0 0
  %464 = vmatpush1.bf16.msra.mxu0 0
  %465 = vmatprep.subr.bf16.mxu0 0
  %466 = vmatpush1.bf16.msra.mxu0 0
  %467 = vmatprep.subr.bf16.mxu0 0
  %468 = vmatpush1.bf16.msra.mxu0 0
  %469 = vmatprep.subr.bf16.mxu0 0
  %470 = vmatpush1.bf16.msra.mxu0 0
  %471 = vmatprep.subr.bf16.mxu0 %v383
  %472 = vmatpush1.bf16.msra.mxu0 %v382
  %473 = vmatprep.subr.bf16.mxu0 0
  %474 = vmatpush2.bf16.msra.mxu0 0
  %475 = vmatprep.subr.bf16.mxu0 0
  %476 = vmatpush2.bf16.msra.mxu0 0
  %477 = vmatprep.subr.bf16.mxu0 0
  %478 = vmatpush2.bf16.msra.mxu0 0
  %479 = vmatprep.subr.bf16.mxu0 0
  %480 = vmatpush2.bf16.msra.mxu0 0
  %481 = vmatprep.subr.bf16.mxu0 0
  %482 = vmatpush2.bf16.msra.mxu0 0
  %483 = vmatprep.subr.bf16.mxu0 0
  %484 = vmatpush2.bf16.msra.mxu0 0
  %485 = vmatprep.subr.bf16.mxu0 0
  %486 = vmatpush2.bf16.msra.mxu0 0
  %487 = vmatprep.subr.bf16.mxu0 0
  %488 = vmatpush2.bf16.msra.mxu0 0
  %489 = vmatprep.mubr.bf16.mxu0 0
  %490 = vmatmul.mubr.bf16.gmra.mxu0 %v446
  %v491 = vpop.f32.mrf.mxu0
  %v492 = vadd.f32 %v387, %v491
  %v493 = vpop.f32.mrf.mxu0
  %v494 = vadd.f32 %v387, %v493
  %v495 = vpop.f32.mrf.mxu0
  %v496 = vadd.f32 %v392, %v495
  %v497 = vpop.f32.mrf.mxu0
  %v498 = vadd.f32 %v392, %v497
  %499 = vmatprep.mubr.bf16.mxu0 0
  %500 = vmatmul.mubr.bf16.gmra.mxu0 %v449
  %v501 = vpop.f32.mrf.mxu0
  %v502 = vadd.f32 %v397, %v501
  %v503 = vpop.f32.mrf.mxu0
  %v504 = vadd.f32 %v397, %v503
  %v505 = vpop.f32.mrf.mxu0
  %v506 = vadd.f32 %v402, %v505
  %v507 = vpop.f32.mrf.mxu0
  %v508 = vadd.f32 %v402, %v507
  %509 = vmatprep.mubr.bf16.mxu0 0
  %510 = vmatmul.mubr.bf16.gmra.mxu0 %v452
  %v511 = vpop.f32.mrf.mxu0
  %v512 = vadd.f32 %v407, %v511
  %v513 = vpop.f32.mrf.mxu0
  %v514 = vadd.f32 %v407, %v513
  %v515 = vpop.f32.mrf.mxu0
  %v516 = vadd.f32 %v412, %v515
  %v517 = vpop.f32.mrf.mxu0
  %v518 = vadd.f32 %v412, %v517
  %519 = vmatprep.mubr.bf16.mxu0 0
  %520 = vmatmul.mubr.bf16.gmra.mxu0 %v455
  %v521 = vpop.f32.mrf.mxu0
  %v522 = vadd.f32 %v417, %v521
  %v523 = vpop.f32.mrf.mxu0
  %v524 = vadd.f32 %v417, %v523
  %v525 = vpop.f32.mrf.mxu0
  %v526 = vadd.f32 %v422, %v525
  %v527 = vpop.f32.mrf.mxu0
  %v528 = vadd.f32 %v422, %v527
  %529 = vdwg.mxu0
  %vm530 = vcmp.gt.f32.partialorder %v492, 0.0
  %vm531 = vcmp.gt.f32.partialorder %v494, 0.0
  %vm532 = vcmp.gt.f32.partialorder %v496, 0.0
  %vm533 = vcmp.gt.f32.partialorder %v498, 0.0
  %vm534 = vcmp.gt.f32.partialorder %v502, 0.0
  %vm535 = vcmp.gt.f32.partialorder %v504, 0.0
  %vm536 = vcmp.gt.f32.partialorder %v506, 0.0
  %vm537 = vcmp.gt.f32.partialorder %v508, 0.0
  %vm538 = vcmp.gt.f32.partialorder %v512, 0.0
  %vm539 = vcmp.gt.f32.partialorder %v514, 0.0
  %vm540 = vcmp.gt.f32.partialorder %v516, 0.0
  %vm541 = vcmp.gt.f32.partialorder %v518, 0.0
  %vm542 = vcmp.gt.f32.partialorder %v522, 0.0
  %vm543 = vcmp.gt.f32.partialorder %v524, 0.0
  %vm544 = vcmp.gt.f32.partialorder %v526, 0.0
  %vm545 = vcmp.gt.f32.partialorder %v528, 0.0
  %546 = vset.pattern.permute.xlu0 9
  %547 = vperm.xlu0 %546, %v366
  %v548 = vpop.permute.xlu0 %547
  %550 = vset.pattern.permute.xlu0 9
  %551 = vperm.xlu0 %550, %v367
  %v552 = vpop.permute.xlu0 %551
  %554 = vset.pattern.permute.xlu0 9
  %555 = vperm.xlu0 %554, %v368
  %v556 = vpop.permute.xlu0 %555
  %558 = vset.pattern.permute.xlu0 9
  %559 = vperm.xlu0 %558, %v369
  %v560 = vpop.permute.xlu0 %559
  %562 = vset.pattern.permute.xlu0 9
  %563 = vperm.xlu0 %562, %v370
  %v564 = vpop.permute.xlu0 %563
  %566 = vset.pattern.permute.xlu0 9
  %567 = vperm.xlu0 %566, %v371
  %v568 = vpop.permute.xlu0 %567
  %570 = vset.pattern.permute.xlu0 9
  %571 = vperm.xlu0 %570, %v372
  %v572 = vpop.permute.xlu0 %571
  %574 = vset.pattern.permute.xlu0 9
  %575 = vperm.xlu0 %574, %v373
  %v576 = vpop.permute.xlu0 %575
  %v578 = vmul.f32 %v548, %v492
  %v579 = vmul.f32 %v548, %v494
  %v580 = vmul.f32 %v552, %v496
  %v581 = vmul.f32 %v552, %v498
  %v582 = vmul.f32 %v556, %v502
  %v583 = vmul.f32 %v556, %v504
  %v584 = vmul.f32 %v560, %v506
  %v585 = vmul.f32 %v560, %v508
  %v586 = vmul.f32 %v564, %v512
  %v587 = vmul.f32 %v564, %v514
  %v588 = vmul.f32 %v568, %v516
  %v589 = vmul.f32 %v568, %v518
  %v590 = vmul.f32 %v572, %v522
  %v591 = vmul.f32 %v572, %v524
  %v592 = vmul.f32 %v576, %v526
  %v593 = vmul.f32 %v576, %v528
  %v594 = vsel %vm530, %v492, %v578
  %v595 = vsel %vm531, %v494, %v579
  %v596 = vsel %vm532, %v496, %v580
  %v597 = vsel %vm533, %v498, %v581
  %v598 = vsel %vm534, %v502, %v582
  %v599 = vsel %vm535, %v504, %v583
  %v600 = vsel %vm536, %v506, %v584
  %v601 = vsel %vm537, %v508, %v585
  %v602 = vsel %vm538, %v512, %v586
  %v603 = vsel %vm539, %v514, %v587
  %v604 = vsel %vm540, %v516, %v588
  %v605 = vsel %vm541, %v518, %v589
  %v606 = vsel %vm542, %v522, %v590
  %v607 = vsel %vm543, %v524, %v591
  %v608 = vsel %vm544, %v526, %v592
  %v609 = vsel %vm545, %v528, %v593
  %v610 = vmul.f32 %v594, %v594
  %v611 = vmul.f32 %v596, %v596
  %v612 = vmul.f32 %v598, %v598
  %v613 = vmul.f32 %v600, %v600
  %v614 = vmul.f32 %v602, %v602
  %v615 = vmul.f32 %v604, %v604
  %v616 = vmul.f32 %v606, %v606
  %v617 = vmul.f32 %v608, %v608
  %618 = vadd.xlane.f32.xlu0 %v594
  %v619 = vpop.xlane.xlu0 %618
  %620 = vadd.xlane.f32.xlu0 %v596
  %v621 = vpop.xlane.xlu0 %620
  %622 = vadd.xlane.f32.xlu0 %v598
  %v623 = vpop.xlane.xlu0 %622
  %624 = vadd.xlane.f32.xlu0 %v600
  %v625 = vpop.xlane.xlu0 %624
  %626 = vadd.xlane.f32.xlu0 %v602
  %v627 = vpop.xlane.xlu0 %626
  %628 = vadd.xlane.f32.xlu0 %v604
  %v629 = vpop.xlane.xlu0 %628
  %630 = vadd.xlane.f32.xlu0 %v606
  %v631 = vpop.xlane.xlu0 %630
  %632 = vadd.xlane.f32.xlu0 %v608
  %v633 = vpop.xlane.xlu0 %632
  %634 = vadd.xlane.f32.xlu0 %v610
  %v635 = vpop.xlane.xlu0 %634
  %636 = vadd.xlane.f32.xlu0 %v611
  %v637 = vpop.xlane.xlu0 %636
  %638 = vadd.xlane.f32.xlu0 %v612
  %v639 = vpop.xlane.xlu0 %638
  %640 = vadd.xlane.f32.xlu0 %v613
  %v641 = vpop.xlane.xlu0 %640
  %642 = vadd.xlane.f32.xlu0 %v614
  %v643 = vpop.xlane.xlu0 %642
  %644 = vadd.xlane.f32.xlu0 %v615
  %v645 = vpop.xlane.xlu0 %644
  %646 = vadd.xlane.f32.xlu0 %v616
  %v647 = vpop.xlane.xlu0 %646
  %648 = vadd.xlane.f32.xlu0 %v617
  %v649 = vpop.xlane.xlu0 %648
  %v650 = vadd.f32 %v619, %v621
  %v651 = vadd.f32 %v650, %v623
  %v652 = vadd.f32 %v651, %v625
  %v653 = vadd.f32 %v652, %v627
  %v654 = vadd.f32 %v653, %v629
  %v655 = vadd.f32 %v654, %v631
  %v656 = vadd.f32 %v655, %v633
  %v657 = vrot.slane %v656, 4
  %v658 = vadd.f32 %v656, %v657
  %v659 = vrot.slane %v658, 2
  %v660 = vadd.f32 %v658, %v659
  %v661 = vrot.slane %v660, 1
  %v662 = vadd.f32 %v660, %v661
  %v663 = vmul.f32 %v662, 0.00012207031
  %v664 = vadd.f32 %v635, %v637
  %v665 = vadd.f32 %v664, %v639
  %v666 = vadd.f32 %v665, %v641
  %v667 = vadd.f32 %v666, %v643
  %v668 = vadd.f32 %v667, %v645
  %v669 = vadd.f32 %v668, %v647
  %v670 = vadd.f32 %v669, %v649
  %v671 = vrot.slane %v670, 4
  %v672 = vadd.f32 %v670, %v671
  %v673 = vrot.slane %v672, 2
  %v674 = vadd.f32 %v672, %v673
  %v675 = vrot.slane %v674, 1
  %v676 = vadd.f32 %v674, %v675
  %v677 = vmul.f32 %v676, 0.00012207031
  %v678 = vmul.f32 %v663, %v663
  %v679 = vsub.f32 %v677, %v678
  %v680 = vmax.f32 %v679, 0.0
  %v681 = vadd.f32 %v680, 1e-08
  %v682 = vrsqrt.pop %v681
  %v683 = vmul.f32 %v366, %v682
  %v684 = vmul.f32 %v367, %v682
  %v685 = vmul.f32 %v368, %v682
  %v686 = vmul.f32 %v369, %v682
  %v687 = vmul.f32 %v370, %v682
  %v688 = vmul.f32 %v371, %v682
  %v689 = vmul.f32 %v372, %v682
  %v690 = vmul.f32 %v373, %v682
  %v691 = vmul.f32 %v663, %v683
  %v692 = vmul.f32 %v663, %v684
  %v693 = vmul.f32 %v663, %v685
  %v694 = vmul.f32 %v663, %v686
  %v695 = vmul.f32 %v663, %v687
  %v696 = vmul.f32 %v663, %v688
  %v697 = vmul.f32 %v663, %v689
  %v698 = vmul.f32 %v663, %v690
  %707 = vrot.lane.b32.xlu0 %v691, 1
  %v708 = vpop.permute.xlu0 %707
  %709 = vrot.lane.b32.xlu0 %v692, 1
  %v710 = vpop.permute.xlu0 %709
  %711 = vrot.lane.b32.xlu0 %v693, 1
  %v712 = vpop.permute.xlu0 %711
  %713 = vrot.lane.b32.xlu0 %v694, 1
  %v714 = vpop.permute.xlu0 %713
  %715 = vrot.lane.b32.xlu0 %v695, 1
  %v716 = vpop.permute.xlu0 %715
  %717 = vrot.lane.b32.xlu0 %v696, 1
  %v718 = vpop.permute.xlu0 %717
  %719 = vrot.lane.b32.xlu0 %v697, 1
  %v720 = vpop.permute.xlu0 %719
  %721 = vrot.lane.b32.xlu0 %v698, 1
  %v722 = vpop.permute.xlu0 %721
  %v731 = vsub.f32 %v366, %v708
  %v732 = vsub.f32 %v367, %v710
  %v733 = vsub.f32 %v368, %v712
  %v734 = vsub.f32 %v369, %v714
  %v735 = vsub.f32 %v370, %v716
  %v736 = vsub.f32 %v371, %v718
  %v737 = vsub.f32 %v372, %v720
  %v738 = vsub.f32 %v373, %v722
  %740 = vset.pattern.permute.xlu0 1
  %741 = vperm.xlu0 %740, %v683
  %v742 = vpop.permute.xlu0 %741
  %745 = vset.pattern.permute.xlu0 1
  %746 = vperm.xlu0 %745, %v684
  %v747 = vpop.permute.xlu0 %746
  %750 = vset.pattern.permute.xlu0 1
  %751 = vperm.xlu0 %750, %v685
  %v752 = vpop.permute.xlu0 %751
  %755 = vset.pattern.permute.xlu0 1
  %756 = vperm.xlu0 %755, %v686
  %v757 = vpop.permute.xlu0 %756
  %760 = vset.pattern.permute.xlu0 1
  %761 = vperm.xlu0 %760, %v687
  %v762 = vpop.permute.xlu0 %761
  %765 = vset.pattern.permute.xlu0 1
  %766 = vperm.xlu0 %765, %v688
  %v767 = vpop.permute.xlu0 %766
  %770 = vset.pattern.permute.xlu0 1
  %771 = vperm.xlu0 %770, %v689
  %v772 = vpop.permute.xlu0 %771
  %775 = vset.pattern.permute.xlu0 1
  %776 = vperm.xlu0 %775, %v690
  %v777 = vpop.permute.xlu0 %776
  %v779 = vmul.f32 %v594, %v742
  %v780 = vmul.f32 %v596, %v747
  %v781 = vmul.f32 %v598, %v752
  %v782 = vmul.f32 %v600, %v757
  %v783 = vmul.f32 %v602, %v762
  %v784 = vmul.f32 %v604, %v767
  %v785 = vmul.f32 %v606, %v772
  %v786 = vmul.f32 %v608, %v777
  %788 = vset.pattern.permute.xlu0 2
  %789 = vperm.xlu0 %788, %v731
  %v790 = vpop.permute.xlu0 %789
  %793 = vset.pattern.permute.xlu0 2
  %794 = vperm.xlu0 %793, %v732
  %v795 = vpop.permute.xlu0 %794
  %798 = vset.pattern.permute.xlu0 2
  %799 = vperm.xlu0 %798, %v733
  %v800 = vpop.permute.xlu0 %799
  %803 = vset.pattern.permute.xlu0 2
  %804 = vperm.xlu0 %803, %v734
  %v805 = vpop.permute.xlu0 %804
  %808 = vset.pattern.permute.xlu0 2
  %809 = vperm.xlu0 %808, %v735
  %v810 = vpop.permute.xlu0 %809
  %813 = vset.pattern.permute.xlu0 2
  %814 = vperm.xlu0 %813, %v736
  %v815 = vpop.permute.xlu0 %814
  %818 = vset.pattern.permute.xlu0 2
  %819 = vperm.xlu0 %818, %v737
  %v820 = vpop.permute.xlu0 %819
  %823 = vset.pattern.permute.xlu0 2
  %824 = vperm.xlu0 %823, %v738
  %v825 = vpop.permute.xlu0 %824
  %v827 = vadd.f32 %v779, %v790
  %v828 = vadd.f32 %v780, %v795
  %v829 = vadd.f32 %v781, %v800
  %v830 = vadd.f32 %v782, %v805
  %v831 = vadd.f32 %v783, %v810
  %v832 = vadd.f32 %v784, %v815
  %v833 = vadd.f32 %v785, %v820
  %v834 = vadd.f32 %v786, %v825
  %v835 = vmul.f32 %v595, %v595
  %v836 = vmul.f32 %v597, %v597
  %v837 = vmul.f32 %v599, %v599
  %v838 = vmul.f32 %v601, %v601
  %v839 = vmul.f32 %v603, %v603
  %v840 = vmul.f32 %v605, %v605
  %v841 = vmul.f32 %v607, %v607
  %v842 = vmul.f32 %v609, %v609
  %843 = vadd.xlane.f32.xlu0 %v595
  %v844 = vpop.xlane.xlu0 %843
  %845 = vadd.xlane.f32.xlu0 %v597
  %v846 = vpop.xlane.xlu0 %845
  %847 = vadd.xlane.f32.xlu0 %v599
  %v848 = vpop.xlane.xlu0 %847
  %849 = vadd.xlane.f32.xlu0 %v601
  %v850 = vpop.xlane.xlu0 %849
  %851 = vadd.xlane.f32.xlu0 %v603
  %v852 = vpop.xlane.xlu0 %851
  %853 = vadd.xlane.f32.xlu0 %v605
  %v854 = vpop.xlane.xlu0 %853
  %855 = vadd.xlane.f32.xlu0 %v607
  %v856 = vpop.xlane.xlu0 %855
  %857 = vadd.xlane.f32.xlu0 %v609
  %v858 = vpop.xlane.xlu0 %857
  %859 = vadd.xlane.f32.xlu0 %v835
  %v860 = vpop.xlane.xlu0 %859
  %861 = vadd.xlane.f32.xlu0 %v836
  %v862 = vpop.xlane.xlu0 %861
  %863 = vadd.xlane.f32.xlu0 %v837
  %v864 = vpop.xlane.xlu0 %863
  %865 = vadd.xlane.f32.xlu0 %v838
  %v866 = vpop.xlane.xlu0 %865
  %867 = vadd.xlane.f32.xlu0 %v839
  %v868 = vpop.xlane.xlu0 %867
  %869 = vadd.xlane.f32.xlu0 %v840
  %v870 = vpop.xlane.xlu0 %869
  %871 = vadd.xlane.f32.xlu0 %v841
  %v872 = vpop.xlane.xlu0 %871
  %873 = vadd.xlane.f32.xlu0 %v842
  %v874 = vpop.xlane.xlu0 %873
  %v875 = vadd.f32 %v844, %v846
  %v876 = vadd.f32 %v875, %v848
  %v877 = vadd.f32 %v876, %v850
  %v878 = vadd.f32 %v877, %v852
  %v879 = vadd.f32 %v878, %v854
  %v880 = vadd.f32 %v879, %v856
  %v881 = vadd.f32 %v880, %v858
  %v882 = vrot.slane %v881, 4
  %v883 = vadd.f32 %v881, %v882
  %v884 = vrot.slane %v883, 2
  %v885 = vadd.f32 %v883, %v884
  %v886 = vrot.slane %v885, 1
  %v887 = vadd.f32 %v885, %v886
  %v888 = vmul.f32 %v887, 0.00012207031
  %v889 = vadd.f32 %v860, %v862
  %v890 = vadd.f32 %v889, %v864
  %v891 = vadd.f32 %v890, %v866
  %v892 = vadd.f32 %v891, %v868
  %v893 = vadd.f32 %v892, %v870
  %v894 = vadd.f32 %v893, %v872
  %v895 = vadd.f32 %v894, %v874
  %v896 = vrot.slane %v895, 4
  %v897 = vadd.f32 %v895, %v896
  %v898 = vrot.slane %v897, 2
  %v899 = vadd.f32 %v897, %v898
  %v900 = vrot.slane %v899, 1
  %v901 = vadd.f32 %v899, %v900
  %v902 = vmul.f32 %v901, 0.00012207031
  %v903 = vmul.f32 %v888, %v888
  %v904 = vsub.f32 %v902, %v903
  %v905 = vmax.f32 %v904, 0.0
  %v906 = vadd.f32 %v905, 1e-08
  %v907 = vrsqrt.pop %v906
  %v908 = vmul.f32 %v366, %v907
  %v909 = vmul.f32 %v367, %v907
  %v910 = vmul.f32 %v368, %v907
  %v911 = vmul.f32 %v369, %v907
  %v912 = vmul.f32 %v370, %v907
  %v913 = vmul.f32 %v371, %v907
  %v914 = vmul.f32 %v372, %v907
  %v915 = vmul.f32 %v373, %v907
  %v916 = vmul.f32 %v888, %v908
  %v917 = vmul.f32 %v888, %v909
  %v918 = vmul.f32 %v888, %v910
  %v919 = vmul.f32 %v888, %v911
  %v920 = vmul.f32 %v888, %v912
  %v921 = vmul.f32 %v888, %v913
  %v922 = vmul.f32 %v888, %v914
  %v923 = vmul.f32 %v888, %v915
  %932 = vrot.lane.b32.xlu0 %v916, 1
  %v933 = vpop.permute.xlu0 %932
  %934 = vrot.lane.b32.xlu0 %v917, 1
  %v935 = vpop.permute.xlu0 %934
  %936 = vrot.lane.b32.xlu0 %v918, 1
  %v937 = vpop.permute.xlu0 %936
  %938 = vrot.lane.b32.xlu0 %v919, 1
  %v939 = vpop.permute.xlu0 %938
  %940 = vrot.lane.b32.xlu0 %v920, 1
  %v941 = vpop.permute.xlu0 %940
  %942 = vrot.lane.b32.xlu0 %v921, 1
  %v943 = vpop.permute.xlu0 %942
  %944 = vrot.lane.b32.xlu0 %v922, 1
  %v945 = vpop.permute.xlu0 %944
  %946 = vrot.lane.b32.xlu0 %v923, 1
  %v947 = vpop.permute.xlu0 %946
  %v956 = vsub.f32 %v366, %v933
  %v957 = vsub.f32 %v367, %v935
  %v958 = vsub.f32 %v368, %v937
  %v959 = vsub.f32 %v369, %v939
  %v960 = vsub.f32 %v370, %v941
  %v961 = vsub.f32 %v371, %v943
  %v962 = vsub.f32 %v372, %v945
  %v963 = vsub.f32 %v373, %v947
  %965 = vset.pattern.permute.xlu0 1
  %966 = vperm.xlu0 %965, %v908
  %v967 = vpop.permute.xlu0 %966
  %970 = vset.pattern.permute.xlu0 1
  %971 = vperm.xlu0 %970, %v909
  %v972 = vpop.permute.xlu0 %971
  %975 = vset.pattern.permute.xlu0 1
  %976 = vperm.xlu0 %975, %v910
  %v977 = vpop.permute.xlu0 %976
  %980 = vset.pattern.permute.xlu0 1
  %981 = vperm.xlu0 %980, %v911
  %v982 = vpop.permute.xlu0 %981
  %985 = vset.pattern.permute.xlu0 1
  %986 = vperm.xlu0 %985, %v912
  %v987 = vpop.permute.xlu0 %986
  %990 = vset.pattern.permute.xlu0 1
  %991 = vperm.xlu0 %990, %v913
  %v992 = vpop.permute.xlu0 %991
  %995 = vset.pattern.permute.xlu0 1
  %996 = vperm.xlu0 %995, %v914
  %v997 = vpop.permute.xlu0 %996
  %1000 = vset.pattern.permute.xlu0 1
  %1001 = vperm.xlu0 %1000, %v915
  %v1002 = vpop.permute.xlu0 %1001
  %v1004 = vmul.f32 %v595, %v967
  %v1005 = vmul.f32 %v597, %v972
  %v1006 = vmul.f32 %v599, %v977
  %v1007 = vmul.f32 %v601, %v982
  %v1008 = vmul.f32 %v603, %v987
  %v1009 = vmul.f32 %v605, %v992
  %v1010 = vmul.f32 %v607, %v997
  %v1011 = vmul.f32 %v609, %v1002
  %1013 = vset.pattern.permute.xlu0 2
  %1014 = vperm.xlu0 %1013, %v956
  %v1015 = vpop.permute.xlu0 %1014
  %1018 = vset.pattern.permute.xlu0 2
  %1019 = vperm.xlu0 %1018, %v957
  %v1020 = vpop.permute.xlu0 %1019
  %1023 = vset.pattern.permute.xlu0 2
  %1024 = vperm.xlu0 %1023, %v958
  %v1025 = vpop.permute.xlu0 %1024
  %1028 = vset.pattern.permute.xlu0 2
  %1029 = vperm.xlu0 %1028, %v959
  %v1030 = vpop.permute.xlu0 %1029
  %1033 = vset.pattern.permute.xlu0 2
  %1034 = vperm.xlu0 %1033, %v960
  %v1035 = vpop.permute.xlu0 %1034
  %1038 = vset.pattern.permute.xlu0 2
  %1039 = vperm.xlu0 %1038, %v961
  %v1040 = vpop.permute.xlu0 %1039
  %1043 = vset.pattern.permute.xlu0 2
  %1044 = vperm.xlu0 %1043, %v962
  %v1045 = vpop.permute.xlu0 %1044
  %1048 = vset.pattern.permute.xlu0 2
  %1049 = vperm.xlu0 %1048, %v963
  %v1050 = vpop.permute.xlu0 %1049
  %v1052 = vadd.f32 %v1004, %v1015
  %v1053 = vadd.f32 %v1005, %v1020
  %v1054 = vadd.f32 %v1006, %v1025
  %v1055 = vadd.f32 %v1007, %v1030
  %v1056 = vadd.f32 %v1008, %v1035
  %v1057 = vadd.f32 %v1009, %v1040
  %v1058 = vadd.f32 %v1010, %v1045
  %v1059 = vadd.f32 %v1011, %v1050
  %1068 = vrot.lane.b32.xlu0 %v827, 1
  %v1069 = vpop.permute.xlu0 %1068
  %1070 = vrot.lane.b32.xlu0 %v828, 1
  %v1071 = vpop.permute.xlu0 %1070
  %1072 = vrot.lane.b32.xlu0 %v829, 1
  %v1073 = vpop.permute.xlu0 %1072
  %1074 = vrot.lane.b32.xlu0 %v830, 1
  %v1075 = vpop.permute.xlu0 %1074
  %1076 = vrot.lane.b32.xlu0 %v831, 1
  %v1077 = vpop.permute.xlu0 %1076
  %1078 = vrot.lane.b32.xlu0 %v832, 1
  %v1079 = vpop.permute.xlu0 %1078
  %1080 = vrot.lane.b32.xlu0 %v833, 1
  %v1081 = vpop.permute.xlu0 %1080
  %1082 = vrot.lane.b32.xlu0 %v834, 1
  %v1083 = vpop.permute.xlu0 %1082
  %1100 = vrot.lane.b32.xlu0 %v1052, 1
  %v1101 = vpop.permute.xlu0 %1100
  %1102 = vrot.lane.b32.xlu0 %v1053, 1
  %v1103 = vpop.permute.xlu0 %1102
  %1104 = vrot.lane.b32.xlu0 %v1054, 1
  %v1105 = vpop.permute.xlu0 %1104
  %1106 = vrot.lane.b32.xlu0 %v1055, 1
  %v1107 = vpop.permute.xlu0 %1106
  %1108 = vrot.lane.b32.xlu0 %v1056, 1
  %v1109 = vpop.permute.xlu0 %1108
  %1110 = vrot.lane.b32.xlu0 %v1057, 1
  %v1111 = vpop.permute.xlu0 %1110
  %1112 = vrot.lane.b32.xlu0 %v1058, 1
  %v1113 = vpop.permute.xlu0 %1112
  %1114 = vrot.lane.b32.xlu0 %v1059, 1
  %v1115 = vpop.permute.xlu0 %1114
  %vm1124 = vcmask 7168
  %v1125 = vsel %vm1124, 0.0, %v1069
  %v1126 = vsel %vm1124, 0.0, %v1071
  %v1127 = vsel %vm1124, 0.0, %v1073
  %v1128 = vsel %vm1124, 0.0, %v1075
  %v1129 = vsel %vm1124, 0.0, %v1077
  %v1130 = vsel %vm1124, 0.0, %v1079
  %v1131 = vsel %vm1124, 0.0, %v1081
  %v1132 = vsel %vm1124, 0.0, %v1083
  %v1133 = vsel %vm1124, 0.0, %v1101
  %v1134 = vsel %vm1124, 0.0, %v1103
  %v1135 = vsel %vm1124, 0.0, %v1105
  %v1136 = vsel %vm1124, 0.0, %v1107
  %v1137 = vsel %vm1124, 0.0, %v1109
  %v1138 = vsel %vm1124, 0.0, %v1111
  %v1139 = vsel %vm1124, 0.0, %v1113
  %v1140 = vsel %vm1124, 0.0, %v1115
  %1141 = vrot.lane.b32.xlu0 %v827, 127
  %v1142 = vpop.permute.xlu0 %1141
  %1143 = vrot.lane.b32.xlu0 %v828, 127
  %v1144 = vpop.permute.xlu0 %1143
  %1145 = vrot.lane.b32.xlu0 %v829, 127
  %v1146 = vpop.permute.xlu0 %1145
  %1147 = vrot.lane.b32.xlu0 %v830, 127
  %v1148 = vpop.permute.xlu0 %1147
  %1149 = vrot.lane.b32.xlu0 %v831, 127
  %v1150 = vpop.permute.xlu0 %1149
  %1151 = vrot.lane.b32.xlu0 %v832, 127
  %v1152 = vpop.permute.xlu0 %1151
  %1153 = vrot.lane.b32.xlu0 %v833, 127
  %v1154 = vpop.permute.xlu0 %1153
  %1155 = vrot.lane.b32.xlu0 %v834, 127
  %v1156 = vpop.permute.xlu0 %1155
  %1165 = vrot.lane.b32.xlu0 %v1052, 127
  %v1166 = vpop.permute.xlu0 %1165
  %1167 = vrot.lane.b32.xlu0 %v1053, 127
  %v1168 = vpop.permute.xlu0 %1167
  %1169 = vrot.lane.b32.xlu0 %v1054, 127
  %v1170 = vpop.permute.xlu0 %1169
  %1171 = vrot.lane.b32.xlu0 %v1055, 127
  %v1172 = vpop.permute.xlu0 %1171
  %1173 = vrot.lane.b32.xlu0 %v1056, 127
  %v1174 = vpop.permute.xlu0 %1173
  %1175 = vrot.lane.b32.xlu0 %v1057, 127
  %v1176 = vpop.permute.xlu0 %1175
  %1177 = vrot.lane.b32.xlu0 %v1058, 127
  %v1178 = vpop.permute.xlu0 %1177
  %1179 = vrot.lane.b32.xlu0 %v1059, 127
  %v1180 = vpop.permute.xlu0 %1179
  %vm1189 = vcmask 1039360
  %v1190 = vsel %vm1189, %v1142, 0.0
  %v1191 = vsel %vm1189, %v1144, 0.0
  %v1192 = vsel %vm1189, %v1146, 0.0
  %v1193 = vsel %vm1189, %v1148, 0.0
  %v1194 = vsel %vm1189, %v1150, 0.0
  %v1195 = vsel %vm1189, %v1152, 0.0
  %v1196 = vsel %vm1189, %v1154, 0.0
  %v1197 = vsel %vm1189, %v1156, 0.0
  %v1198 = vsel %vm1189, %v1166, 0.0
  %v1199 = vsel %vm1189, %v1168, 0.0
  %v1200 = vsel %vm1189, %v1170, 0.0
  %v1201 = vsel %vm1189, %v1172, 0.0
  %v1202 = vsel %vm1189, %v1174, 0.0
  %v1203 = vsel %vm1189, %v1176, 0.0
  %v1204 = vsel %vm1189, %v1178, 0.0
  %v1205 = vsel %vm1189, %v1180, 0.0
  %1206 = vset.pattern.permute.xlu0 4
  %1207 = vperm.xlu0 %1206, %v366
  %v1208 = vpop.permute.xlu0 %1207
  %1210 = vset.pattern.permute.xlu0 4
  %1211 = vperm.xlu0 %1210, %v367
  %v1212 = vpop.permute.xlu0 %1211
  %1214 = vset.pattern.permute.xlu0 4
  %1215 = vperm.xlu0 %1214, %v368
  %v1216 = vpop.permute.xlu0 %1215
  %1218 = vset.pattern.permute.xlu0 4
  %1219 = vperm.xlu0 %1218, %v369
  %v1220 = vpop.permute.xlu0 %1219
  %1222 = vset.pattern.permute.xlu0 4
  %1223 = vperm.xlu0 %1222, %v370
  %v1224 = vpop.permute.xlu0 %1223
  %1226 = vset.pattern.permute.xlu0 4
  %1227 = vperm.xlu0 %1226, %v371
  %v1228 = vpop.permute.xlu0 %1227
  %1230 = vset.pattern.permute.xlu0 4
  %1231 = vperm.xlu0 %1230, %v372
  %v1232 = vpop.permute.xlu0 %1231
  %1234 = vset.pattern.permute.xlu0 4
  %1235 = vperm.xlu0 %1234, %v373
  %v1236 = vpop.permute.xlu0 %1235
  %v1238 = vmul.f32 %v827, %v1208
  %v1239 = vmul.f32 %v1052, %v1208
  %v1240 = vmul.f32 %v828, %v1212
  %v1241 = vmul.f32 %v1053, %v1212
  %v1242 = vmul.f32 %v829, %v1216
  %v1243 = vmul.f32 %v1054, %v1216
  %v1244 = vmul.f32 %v830, %v1220
  %v1245 = vmul.f32 %v1055, %v1220
  %v1246 = vmul.f32 %v831, %v1224
  %v1247 = vmul.f32 %v1056, %v1224
  %v1248 = vmul.f32 %v832, %v1228
  %v1249 = vmul.f32 %v1057, %v1228
  %v1250 = vmul.f32 %v833, %v1232
  %v1251 = vmul.f32 %v1058, %v1232
  %v1252 = vmul.f32 %v834, %v1236
  %v1253 = vmul.f32 %v1059, %v1236
  %1254 = vset.pattern.permute.xlu0 6
  %1255 = vperm.xlu0 %1254, %v366
  %v1256 = vpop.permute.xlu0 %1255
  %1258 = vset.pattern.permute.xlu0 6
  %1259 = vperm.xlu0 %1258, %v367
  %v1260 = vpop.permute.xlu0 %1259
  %1262 = vset.pattern.permute.xlu0 6
  %1263 = vperm.xlu0 %1262, %v368
  %v1264 = vpop.permute.xlu0 %1263
  %1266 = vset.pattern.permute.xlu0 6
  %1267 = vperm.xlu0 %1266, %v369
  %v1268 = vpop.permute.xlu0 %1267
  %1270 = vset.pattern.permute.xlu0 6
  %1271 = vperm.xlu0 %1270, %v370
  %v1272 = vpop.permute.xlu0 %1271
  %1274 = vset.pattern.permute.xlu0 6
  %1275 = vperm.xlu0 %1274, %v371
  %v1276 = vpop.permute.xlu0 %1275
  %1278 = vset.pattern.permute.xlu0 6
  %1279 = vperm.xlu0 %1278, %v372
  %v1280 = vpop.permute.xlu0 %1279
  %1282 = vset.pattern.permute.xlu0 6
  %1283 = vperm.xlu0 %1282, %v373
  %v1284 = vpop.permute.xlu0 %1283
  %v1286 = vadd.f32 %v1238, %v1256
  %v1287 = vadd.f32 %v1239, %v1256
  %v1288 = vadd.f32 %v1240, %v1260
  %v1289 = vadd.f32 %v1241, %v1260
  %v1290 = vadd.f32 %v1242, %v1264
  %v1291 = vadd.f32 %v1243, %v1264
  %v1292 = vadd.f32 %v1244, %v1268
  %v1293 = vadd.f32 %v1245, %v1268
  %v1294 = vadd.f32 %v1246, %v1272
  %v1295 = vadd.f32 %v1247, %v1272
  %v1296 = vadd.f32 %v1248, %v1276
  %v1297 = vadd.f32 %v1249, %v1276
  %v1298 = vadd.f32 %v1250, %v1280
  %v1299 = vadd.f32 %v1251, %v1280
  %v1300 = vadd.f32 %v1252, %v1284
  %v1301 = vadd.f32 %v1253, %v1284
  %1302 = vset.pattern.permute.xlu0 3
  %1303 = vperm.xlu0 %1302, %v366
  %v1304 = vpop.permute.xlu0 %1303
  %1306 = vset.pattern.permute.xlu0 3
  %1307 = vperm.xlu0 %1306, %v367
  %v1308 = vpop.permute.xlu0 %1307
  %1310 = vset.pattern.permute.xlu0 3
  %1311 = vperm.xlu0 %1310, %v368
  %v1312 = vpop.permute.xlu0 %1311
  %1314 = vset.pattern.permute.xlu0 3
  %1315 = vperm.xlu0 %1314, %v369
  %v1316 = vpop.permute.xlu0 %1315
  %1318 = vset.pattern.permute.xlu0 3
  %1319 = vperm.xlu0 %1318, %v370
  %v1320 = vpop.permute.xlu0 %1319
  %1322 = vset.pattern.permute.xlu0 3
  %1323 = vperm.xlu0 %1322, %v371
  %v1324 = vpop.permute.xlu0 %1323
  %1326 = vset.pattern.permute.xlu0 3
  %1327 = vperm.xlu0 %1326, %v372
  %v1328 = vpop.permute.xlu0 %1327
  %1330 = vset.pattern.permute.xlu0 3
  %1331 = vperm.xlu0 %1330, %v373
  %v1332 = vpop.permute.xlu0 %1331
  %v1334 = vmul.f32 %v1125, %v1304
  %v1335 = vmul.f32 %v1133, %v1304
  %v1336 = vmul.f32 %v1126, %v1308
  %v1337 = vmul.f32 %v1134, %v1308
  %v1338 = vmul.f32 %v1127, %v1312
  %v1339 = vmul.f32 %v1135, %v1312
  %v1340 = vmul.f32 %v1128, %v1316
  %v1341 = vmul.f32 %v1136, %v1316
  %v1342 = vmul.f32 %v1129, %v1320
  %v1343 = vmul.f32 %v1137, %v1320
  %v1344 = vmul.f32 %v1130, %v1324
  %v1345 = vmul.f32 %v1138, %v1324
  %v1346 = vmul.f32 %v1131, %v1328
  %v1347 = vmul.f32 %v1139, %v1328
  %v1348 = vmul.f32 %v1132, %v1332
  %v1349 = vmul.f32 %v1140, %v1332
  %v1350 = vadd.f32 %v1286, %v1334
  %v1351 = vadd.f32 %v1287, %v1335
  %v1352 = vadd.f32 %v1288, %v1336
  %v1353 = vadd.f32 %v1289, %v1337
  %v1354 = vadd.f32 %v1290, %v1338
  %v1355 = vadd.f32 %v1291, %v1339
  %v1356 = vadd.f32 %v1292, %v1340
  %v1357 = vadd.f32 %v1293, %v1341
  %v1358 = vadd.f32 %v1294, %v1342
  %v1359 = vadd.f32 %v1295, %v1343
  %v1360 = vadd.f32 %v1296, %v1344
  %v1361 = vadd.f32 %v1297, %v1345
  %v1362 = vadd.f32 %v1298, %v1346
  %v1363 = vadd.f32 %v1299, %v1347
  %v1364 = vadd.f32 %v1300, %v1348
  %v1365 = vadd.f32 %v1301, %v1349
  %1366 = vset.pattern.permute.xlu0 5
  %1367 = vperm.xlu0 %1366, %v366
  %v1368 = vpop.permute.xlu0 %1367
  %1370 = vset.pattern.permute.xlu0 5
  %1371 = vperm.xlu0 %1370, %v367
  %v1372 = vpop.permute.xlu0 %1371
  %1374 = vset.pattern.permute.xlu0 5
  %1375 = vperm.xlu0 %1374, %v368
  %v1376 = vpop.permute.xlu0 %1375
  %1378 = vset.pattern.permute.xlu0 5
  %1379 = vperm.xlu0 %1378, %v369
  %v1380 = vpop.permute.xlu0 %1379
  %1382 = vset.pattern.permute.xlu0 5
  %1383 = vperm.xlu0 %1382, %v370
  %v1384 = vpop.permute.xlu0 %1383
  %1386 = vset.pattern.permute.xlu0 5
  %1387 = vperm.xlu0 %1386, %v371
  %v1388 = vpop.permute.xlu0 %1387
  %1390 = vset.pattern.permute.xlu0 5
  %1391 = vperm.xlu0 %1390, %v372
  %v1392 = vpop.permute.xlu0 %1391
  %1394 = vset.pattern.permute.xlu0 5
  %1395 = vperm.xlu0 %1394, %v373
  %v1396 = vpop.permute.xlu0 %1395
  %v1398 = vmul.f32 %v1190, %v1368
  %v1399 = vmul.f32 %v1198, %v1368
  %v1400 = vmul.f32 %v1191, %v1372
  %v1401 = vmul.f32 %v1199, %v1372
  %v1402 = vmul.f32 %v1192, %v1376
  %v1403 = vmul.f32 %v1200, %v1376
  %v1404 = vmul.f32 %v1193, %v1380
  %v1405 = vmul.f32 %v1201, %v1380
  %v1406 = vmul.f32 %v1194, %v1384
  %v1407 = vmul.f32 %v1202, %v1384
  %v1408 = vmul.f32 %v1195, %v1388
  %v1409 = vmul.f32 %v1203, %v1388
  %v1410 = vmul.f32 %v1196, %v1392
  %v1411 = vmul.f32 %v1204, %v1392
  %v1412 = vmul.f32 %v1197, %v1396
  %v1413 = vmul.f32 %v1205, %v1396
  %v1414 = vadd.f32 %v1350, %v1398
  %v1415 = vadd.f32 %v1351, %v1399
  %v1416 = vadd.f32 %v1352, %v1400
  %v1417 = vadd.f32 %v1353, %v1401
  %v1418 = vadd.f32 %v1354, %v1402
  %v1419 = vadd.f32 %v1355, %v1403
  %v1420 = vadd.f32 %v1356, %v1404
  %v1421 = vadd.f32 %v1357, %v1405
  %v1422 = vadd.f32 %v1358, %v1406
  %v1423 = vadd.f32 %v1359, %v1407
  %v1424 = vadd.f32 %v1360, %v1408
  %v1425 = vadd.f32 %v1361, %v1409
  %v1426 = vadd.f32 %v1362, %v1410
  %v1427 = vadd.f32 %v1363, %v1411
  %v1428 = vadd.f32 %v1364, %v1412
  %v1429 = vadd.f32 %v1365, %v1413
  %vm1430 = vcmp.gt.f32.partialorder %v1414, 0.0
  %vm1431 = vcmp.gt.f32.partialorder %v1415, 0.0
  %vm1432 = vcmp.gt.f32.partialorder %v1416, 0.0
  %vm1433 = vcmp.gt.f32.partialorder %v1417, 0.0
  %vm1434 = vcmp.gt.f32.partialorder %v1418, 0.0
  %vm1435 = vcmp.gt.f32.partialorder %v1419, 0.0
  %vm1436 = vcmp.gt.f32.partialorder %v1420, 0.0
  %vm1437 = vcmp.gt.f32.partialorder %v1421, 0.0
  %vm1438 = vcmp.gt.f32.partialorder %v1422, 0.0
  %vm1439 = vcmp.gt.f32.partialorder %v1423, 0.0
  %vm1440 = vcmp.gt.f32.partialorder %v1424, 0.0
  %vm1441 = vcmp.gt.f32.partialorder %v1425, 0.0
  %vm1442 = vcmp.gt.f32.partialorder %v1426, 0.0
  %vm1443 = vcmp.gt.f32.partialorder %v1427, 0.0
  %vm1444 = vcmp.gt.f32.partialorder %v1428, 0.0
  %vm1445 = vcmp.gt.f32.partialorder %v1429, 0.0
  %1446 = vset.pattern.permute.xlu0 10
  %1447 = vperm.xlu0 %1446, %v366
  %v1448 = vpop.permute.xlu0 %1447
  %1450 = vset.pattern.permute.xlu0 10
  %1451 = vperm.xlu0 %1450, %v367
  %v1452 = vpop.permute.xlu0 %1451
  %1454 = vset.pattern.permute.xlu0 10
  %1455 = vperm.xlu0 %1454, %v368
  %v1456 = vpop.permute.xlu0 %1455
  %1458 = vset.pattern.permute.xlu0 10
  %1459 = vperm.xlu0 %1458, %v369
  %v1460 = vpop.permute.xlu0 %1459
  %1462 = vset.pattern.permute.xlu0 10
  %1463 = vperm.xlu0 %1462, %v370
  %v1464 = vpop.permute.xlu0 %1463
  %1466 = vset.pattern.permute.xlu0 10
  %1467 = vperm.xlu0 %1466, %v371
  %v1468 = vpop.permute.xlu0 %1467
  %1470 = vset.pattern.permute.xlu0 10
  %1471 = vperm.xlu0 %1470, %v372
  %v1472 = vpop.permute.xlu0 %1471
  %1474 = vset.pattern.permute.xlu0 10
  %1475 = vperm.xlu0 %1474, %v373
  %v1476 = vpop.permute.xlu0 %1475
  %v1478 = vmul.f32 %v1448, %v1414
  %v1479 = vmul.f32 %v1448, %v1415
  %v1480 = vmul.f32 %v1452, %v1416
  %v1481 = vmul.f32 %v1452, %v1417
  %v1482 = vmul.f32 %v1456, %v1418
  %v1483 = vmul.f32 %v1456, %v1419
  %v1484 = vmul.f32 %v1460, %v1420
  %v1485 = vmul.f32 %v1460, %v1421
  %v1486 = vmul.f32 %v1464, %v1422
  %v1487 = vmul.f32 %v1464, %v1423
  %v1488 = vmul.f32 %v1468, %v1424
  %v1489 = vmul.f32 %v1468, %v1425
  %v1490 = vmul.f32 %v1472, %v1426
  %v1491 = vmul.f32 %v1472, %v1427
  %v1492 = vmul.f32 %v1476, %v1428
  %v1493 = vmul.f32 %v1476, %v1429
  %v1494 = vsel %vm1430, %v1414, %v1478
  %v1495 = vsel %vm1431, %v1415, %v1479
  %v1496 = vsel %vm1432, %v1416, %v1480
  %v1497 = vsel %vm1433, %v1417, %v1481
  %v1498 = vsel %vm1434, %v1418, %v1482
  %v1499 = vsel %vm1435, %v1419, %v1483
  %v1500 = vsel %vm1436, %v1420, %v1484
  %v1501 = vsel %vm1437, %v1421, %v1485
  %v1502 = vsel %vm1438, %v1422, %v1486
  %v1503 = vsel %vm1439, %v1423, %v1487
  %v1504 = vsel %vm1440, %v1424, %v1488
  %v1505 = vsel %vm1441, %v1425, %v1489
  %v1506 = vsel %vm1442, %v1426, %v1490
  %v1507 = vsel %vm1443, %v1427, %v1491
  %v1508 = vsel %vm1444, %v1428, %v1492
  %v1509 = vsel %vm1445, %v1429, %v1493
  %v1510 = vmul.f32 %v1494, %v1494
  %v1511 = vmul.f32 %v1496, %v1496
  %v1512 = vmul.f32 %v1498, %v1498
  %v1513 = vmul.f32 %v1500, %v1500
  %v1514 = vmul.f32 %v1502, %v1502
  %v1515 = vmul.f32 %v1504, %v1504
  %v1516 = vmul.f32 %v1506, %v1506
  %v1517 = vmul.f32 %v1508, %v1508
  %1518 = vadd.xlane.f32.xlu0 %v1494
  %v1519 = vpop.xlane.xlu0 %1518
  %1520 = vadd.xlane.f32.xlu0 %v1496
  %v1521 = vpop.xlane.xlu0 %1520
  %1522 = vadd.xlane.f32.xlu0 %v1498
  %v1523 = vpop.xlane.xlu0 %1522
  %1524 = vadd.xlane.f32.xlu0 %v1500
  %v1525 = vpop.xlane.xlu0 %1524
  %1526 = vadd.xlane.f32.xlu0 %v1502
  %v1527 = vpop.xlane.xlu0 %1526
  %1528 = vadd.xlane.f32.xlu0 %v1504
  %v1529 = vpop.xlane.xlu0 %1528
  %1530 = vadd.xlane.f32.xlu0 %v1506
  %v1531 = vpop.xlane.xlu0 %1530
  %1532 = vadd.xlane.f32.xlu0 %v1508
  %v1533 = vpop.xlane.xlu0 %1532
  %1534 = vadd.xlane.f32.xlu0 %v1510
  %v1535 = vpop.xlane.xlu0 %1534
  %1536 = vadd.xlane.f32.xlu0 %v1511
  %v1537 = vpop.xlane.xlu0 %1536
  %1538 = vadd.xlane.f32.xlu0 %v1512
  %v1539 = vpop.xlane.xlu0 %1538
  %1540 = vadd.xlane.f32.xlu0 %v1513
  %v1541 = vpop.xlane.xlu0 %1540
  %1542 = vadd.xlane.f32.xlu0 %v1514
  %v1543 = vpop.xlane.xlu0 %1542
  %1544 = vadd.xlane.f32.xlu0 %v1515
  %v1545 = vpop.xlane.xlu0 %1544
  %1546 = vadd.xlane.f32.xlu0 %v1516
  %v1547 = vpop.xlane.xlu0 %1546
  %1548 = vadd.xlane.f32.xlu0 %v1517
  %v1549 = vpop.xlane.xlu0 %1548
  %v1550 = vadd.f32 %v1519, %v1521
  %v1551 = vadd.f32 %v1550, %v1523
  %v1552 = vadd.f32 %v1551, %v1525
  %v1553 = vadd.f32 %v1552, %v1527
  %v1554 = vadd.f32 %v1553, %v1529
  %v1555 = vadd.f32 %v1554, %v1531
  %v1556 = vadd.f32 %v1555, %v1533
  %v1557 = vrot.slane %v1556, 4
  %v1558 = vadd.f32 %v1556, %v1557
  %v1559 = vrot.slane %v1558, 2
  %v1560 = vadd.f32 %v1558, %v1559
  %v1561 = vrot.slane %v1560, 1
  %v1562 = vadd.f32 %v1560, %v1561
  %v1563 = vmul.f32 %v1562, 0.00012207031
  %v1564 = vadd.f32 %v1535, %v1537
  %v1565 = vadd.f32 %v1564, %v1539
  %v1566 = vadd.f32 %v1565, %v1541
  %v1567 = vadd.f32 %v1566, %v1543
  %v1568 = vadd.f32 %v1567, %v1545
  %v1569 = vadd.f32 %v1568, %v1547
  %v1570 = vadd.f32 %v1569, %v1549
  %v1571 = vrot.slane %v1570, 4
  %v1572 = vadd.f32 %v1570, %v1571
  %v1573 = vrot.slane %v1572, 2
  %v1574 = vadd.f32 %v1572, %v1573
  %v1575 = vrot.slane %v1574, 1
  %v1576 = vadd.f32 %v1574, %v1575
  %v1577 = vmul.f32 %v1576, 0.00012207031
  %v1578 = vmul.f32 %v1563, %v1563
  %v1579 = vsub.f32 %v1577, %v1578
  %v1580 = vmax.f32 %v1579, 0.0
  %v1581 = vadd.f32 %v1580, 1e-08
  %v1582 = vrsqrt.pop %v1581
  %v1583 = vmul.f32 %v366, %v1582
  %v1584 = vmul.f32 %v367, %v1582
  %v1585 = vmul.f32 %v368, %v1582
  %v1586 = vmul.f32 %v369, %v1582
  %v1587 = vmul.f32 %v370, %v1582
  %v1588 = vmul.f32 %v371, %v1582
  %v1589 = vmul.f32 %v372, %v1582
  %v1590 = vmul.f32 %v373, %v1582
  %v1591 = vmul.f32 %v1563, %v1583
  %v1592 = vmul.f32 %v1563, %v1584
  %v1593 = vmul.f32 %v1563, %v1585
  %v1594 = vmul.f32 %v1563, %v1586
  %v1595 = vmul.f32 %v1563, %v1587
  %v1596 = vmul.f32 %v1563, %v1588
  %v1597 = vmul.f32 %v1563, %v1589
  %v1598 = vmul.f32 %v1563, %v1590
  %1607 = vrot.lane.b32.xlu0 %v1591, 1
  %v1608 = vpop.permute.xlu0 %1607
  %1609 = vrot.lane.b32.xlu0 %v1592, 1
  %v1610 = vpop.permute.xlu0 %1609
  %1611 = vrot.lane.b32.xlu0 %v1593, 1
  %v1612 = vpop.permute.xlu0 %1611
  %1613 = vrot.lane.b32.xlu0 %v1594, 1
  %v1614 = vpop.permute.xlu0 %1613
  %1615 = vrot.lane.b32.xlu0 %v1595, 1
  %v1616 = vpop.permute.xlu0 %1615
  %1617 = vrot.lane.b32.xlu0 %v1596, 1
  %v1618 = vpop.permute.xlu0 %1617
  %1619 = vrot.lane.b32.xlu0 %v1597, 1
  %v1620 = vpop.permute.xlu0 %1619
  %1621 = vrot.lane.b32.xlu0 %v1598, 1
  %v1622 = vpop.permute.xlu0 %1621
  %v1631 = vsub.f32 %v366, %v1608
  %v1632 = vsub.f32 %v367, %v1610
  %v1633 = vsub.f32 %v368, %v1612
  %v1634 = vsub.f32 %v369, %v1614
  %v1635 = vsub.f32 %v370, %v1616
  %v1636 = vsub.f32 %v371, %v1618
  %v1637 = vsub.f32 %v372, %v1620
  %v1638 = vsub.f32 %v373, %v1622
  %1640 = vset.pattern.permute.xlu0 7
  %1641 = vperm.xlu0 %1640, %v1583
  %v1642 = vpop.permute.xlu0 %1641
  %1645 = vset.pattern.permute.xlu0 7
  %1646 = vperm.xlu0 %1645, %v1584
  %v1647 = vpop.permute.xlu0 %1646
  %1650 = vset.pattern.permute.xlu0 7
  %1651 = vperm.xlu0 %1650, %v1585
  %v1652 = vpop.permute.xlu0 %1651
  %1655 = vset.pattern.permute.xlu0 7
  %1656 = vperm.xlu0 %1655, %v1586
  %v1657 = vpop.permute.xlu0 %1656
  %1660 = vset.pattern.permute.xlu0 7
  %1661 = vperm.xlu0 %1660, %v1587
  %v1662 = vpop.permute.xlu0 %1661
  %1665 = vset.pattern.permute.xlu0 7
  %1666 = vperm.xlu0 %1665, %v1588
  %v1667 = vpop.permute.xlu0 %1666
  %1670 = vset.pattern.permute.xlu0 7
  %1671 = vperm.xlu0 %1670, %v1589
  %v1672 = vpop.permute.xlu0 %1671
  %1675 = vset.pattern.permute.xlu0 7
  %1676 = vperm.xlu0 %1675, %v1590
  %v1677 = vpop.permute.xlu0 %1676
  %v1679 = vmul.f32 %v1494, %v1642
  %v1680 = vmul.f32 %v1496, %v1647
  %v1681 = vmul.f32 %v1498, %v1652
  %v1682 = vmul.f32 %v1500, %v1657
  %v1683 = vmul.f32 %v1502, %v1662
  %v1684 = vmul.f32 %v1504, %v1667
  %v1685 = vmul.f32 %v1506, %v1672
  %v1686 = vmul.f32 %v1508, %v1677
  %1688 = vset.pattern.permute.xlu0 8
  %1689 = vperm.xlu0 %1688, %v1631
  %v1690 = vpop.permute.xlu0 %1689
  %1693 = vset.pattern.permute.xlu0 8
  %1694 = vperm.xlu0 %1693, %v1632
  %v1695 = vpop.permute.xlu0 %1694
  %1698 = vset.pattern.permute.xlu0 8
  %1699 = vperm.xlu0 %1698, %v1633
  %v1700 = vpop.permute.xlu0 %1699
  %1703 = vset.pattern.permute.xlu0 8
  %1704 = vperm.xlu0 %1703, %v1634
  %v1705 = vpop.permute.xlu0 %1704
  %1708 = vset.pattern.permute.xlu0 8
  %1709 = vperm.xlu0 %1708, %v1635
  %v1710 = vpop.permute.xlu0 %1709
  %1713 = vset.pattern.permute.xlu0 8
  %1714 = vperm.xlu0 %1713, %v1636
  %v1715 = vpop.permute.xlu0 %1714
  %1718 = vset.pattern.permute.xlu0 8
  %1719 = vperm.xlu0 %1718, %v1637
  %v1720 = vpop.permute.xlu0 %1719
  %1723 = vset.pattern.permute.xlu0 8
  %1724 = vperm.xlu0 %1723, %v1638
  %v1725 = vpop.permute.xlu0 %1724
  %v1727 = vadd.f32 %v1679, %v1690
  %v1728 = vadd.f32 %v1680, %v1695
  %v1729 = vadd.f32 %v1681, %v1700
  %v1730 = vadd.f32 %v1682, %v1705
  %v1731 = vadd.f32 %v1683, %v1710
  %v1732 = vadd.f32 %v1684, %v1715
  %v1733 = vadd.f32 %v1685, %v1720
  %v1734 = vadd.f32 %v1686, %v1725
  %v1735 = vmul.f32 %v1495, %v1495
  %v1736 = vmul.f32 %v1497, %v1497
  %v1737 = vmul.f32 %v1499, %v1499
  %v1738 = vmul.f32 %v1501, %v1501
  %v1739 = vmul.f32 %v1503, %v1503
  %v1740 = vmul.f32 %v1505, %v1505
  %v1741 = vmul.f32 %v1507, %v1507
  %v1742 = vmul.f32 %v1509, %v1509
  %1743 = vadd.xlane.f32.xlu0 %v1495
  %v1744 = vpop.xlane.xlu0 %1743
  %1745 = vadd.xlane.f32.xlu0 %v1497
  %v1746 = vpop.xlane.xlu0 %1745
  %1747 = vadd.xlane.f32.xlu0 %v1499
  %v1748 = vpop.xlane.xlu0 %1747
  %1749 = vadd.xlane.f32.xlu0 %v1501
  %v1750 = vpop.xlane.xlu0 %1749
  %1751 = vadd.xlane.f32.xlu0 %v1503
  %v1752 = vpop.xlane.xlu0 %1751
  %1753 = vadd.xlane.f32.xlu0 %v1505
  %v1754 = vpop.xlane.xlu0 %1753
  %1755 = vadd.xlane.f32.xlu0 %v1507
  %v1756 = vpop.xlane.xlu0 %1755
  %1757 = vadd.xlane.f32.xlu0 %v1509
  %v1758 = vpop.xlane.xlu0 %1757
  %1759 = vadd.xlane.f32.xlu0 %v1735
  %v1760 = vpop.xlane.xlu0 %1759
  %1761 = vadd.xlane.f32.xlu0 %v1736
  %v1762 = vpop.xlane.xlu0 %1761
  %1763 = vadd.xlane.f32.xlu0 %v1737
  %v1764 = vpop.xlane.xlu0 %1763
  %1765 = vadd.xlane.f32.xlu0 %v1738
  %v1766 = vpop.xlane.xlu0 %1765
  %1767 = vadd.xlane.f32.xlu0 %v1739
  %v1768 = vpop.xlane.xlu0 %1767
  %1769 = vadd.xlane.f32.xlu0 %v1740
  %v1770 = vpop.xlane.xlu0 %1769
  %1771 = vadd.xlane.f32.xlu0 %v1741
  %v1772 = vpop.xlane.xlu0 %1771
  %1773 = vadd.xlane.f32.xlu0 %v1742
  %v1774 = vpop.xlane.xlu0 %1773
  %v1775 = vadd.f32 %v1744, %v1746
  %v1776 = vadd.f32 %v1775, %v1748
  %v1777 = vadd.f32 %v1776, %v1750
  %v1778 = vadd.f32 %v1777, %v1752
  %v1779 = vadd.f32 %v1778, %v1754
  %v1780 = vadd.f32 %v1779, %v1756
  %v1781 = vadd.f32 %v1780, %v1758
  %v1782 = vrot.slane %v1781, 4
  %v1783 = vadd.f32 %v1781, %v1782
  %v1784 = vrot.slane %v1783, 2
  %v1785 = vadd.f32 %v1783, %v1784
  %v1786 = vrot.slane %v1785, 1
  %v1787 = vadd.f32 %v1785, %v1786
  %v1788 = vmul.f32 %v1787, 0.00012207031
  %v1789 = vadd.f32 %v1760, %v1762
  %v1790 = vadd.f32 %v1789, %v1764
  %v1791 = vadd.f32 %v1790, %v1766
  %v1792 = vadd.f32 %v1791, %v1768
  %v1793 = vadd.f32 %v1792, %v1770
  %v1794 = vadd.f32 %v1793, %v1772
  %v1795 = vadd.f32 %v1794, %v1774
  %v1796 = vrot.slane %v1795, 4
  %v1797 = vadd.f32 %v1795, %v1796
  %v1798 = vrot.slane %v1797, 2
  %v1799 = vadd.f32 %v1797, %v1798
  %v1800 = vrot.slane %v1799, 1
  %v1801 = vadd.f32 %v1799, %v1800
  %v1802 = vmul.f32 %v1801, 0.00012207031
  %v1803 = vmul.f32 %v1788, %v1788
  %v1804 = vsub.f32 %v1802, %v1803
  %v1805 = vmax.f32 %v1804, 0.0
  %v1806 = vadd.f32 %v1805, 1e-08
  %v1807 = vrsqrt.pop %v1806
  %v1808 = vmul.f32 %v366, %v1807
  %v1809 = vmul.f32 %v367, %v1807
  %v1810 = vmul.f32 %v368, %v1807
  %v1811 = vmul.f32 %v369, %v1807
  %v1812 = vmul.f32 %v370, %v1807
  %v1813 = vmul.f32 %v371, %v1807
  %v1814 = vmul.f32 %v372, %v1807
  %v1815 = vmul.f32 %v373, %v1807
  %v1816 = vmul.f32 %v1788, %v1808
  %v1817 = vmul.f32 %v1788, %v1809
  %v1818 = vmul.f32 %v1788, %v1810
  %v1819 = vmul.f32 %v1788, %v1811
  %v1820 = vmul.f32 %v1788, %v1812
  %v1821 = vmul.f32 %v1788, %v1813
  %v1822 = vmul.f32 %v1788, %v1814
  %v1823 = vmul.f32 %v1788, %v1815
  %1832 = vrot.lane.b32.xlu0 %v1816, 1
  %v1833 = vpop.permute.xlu0 %1832
  %1834 = vrot.lane.b32.xlu0 %v1817, 1
  %v1835 = vpop.permute.xlu0 %1834
  %1836 = vrot.lane.b32.xlu0 %v1818, 1
  %v1837 = vpop.permute.xlu0 %1836
  %1838 = vrot.lane.b32.xlu0 %v1819, 1
  %v1839 = vpop.permute.xlu0 %1838
  %1840 = vrot.lane.b32.xlu0 %v1820, 1
  %v1841 = vpop.permute.xlu0 %1840
  %1842 = vrot.lane.b32.xlu0 %v1821, 1
  %v1843 = vpop.permute.xlu0 %1842
  %1844 = vrot.lane.b32.xlu0 %v1822, 1
  %v1845 = vpop.permute.xlu0 %1844
  %1846 = vrot.lane.b32.xlu0 %v1823, 1
  %v1847 = vpop.permute.xlu0 %1846
  %v1856 = vsub.f32 %v366, %v1833
  %v1857 = vsub.f32 %v367, %v1835
  %v1858 = vsub.f32 %v368, %v1837
  %v1859 = vsub.f32 %v369, %v1839
  %v1860 = vsub.f32 %v370, %v1841
  %v1861 = vsub.f32 %v371, %v1843
  %v1862 = vsub.f32 %v372, %v1845
  %v1863 = vsub.f32 %v373, %v1847
  %1865 = vset.pattern.permute.xlu0 7
  %1866 = vperm.xlu0 %1865, %v1808
  %v1867 = vpop.permute.xlu0 %1866
  %1870 = vset.pattern.permute.xlu0 7
  %1871 = vperm.xlu0 %1870, %v1809
  %v1872 = vpop.permute.xlu0 %1871
  %1875 = vset.pattern.permute.xlu0 7
  %1876 = vperm.xlu0 %1875, %v1810
  %v1877 = vpop.permute.xlu0 %1876
  %1880 = vset.pattern.permute.xlu0 7
  %1881 = vperm.xlu0 %1880, %v1811
  %v1882 = vpop.permute.xlu0 %1881
  %1885 = vset.pattern.permute.xlu0 7
  %1886 = vperm.xlu0 %1885, %v1812
  %v1887 = vpop.permute.xlu0 %1886
  %1890 = vset.pattern.permute.xlu0 7
  %1891 = vperm.xlu0 %1890, %v1813
  %v1892 = vpop.permute.xlu0 %1891
  %1895 = vset.pattern.permute.xlu0 7
  %1896 = vperm.xlu0 %1895, %v1814
  %v1897 = vpop.permute.xlu0 %1896
  %1900 = vset.pattern.permute.xlu0 7
  %1901 = vperm.xlu0 %1900, %v1815
  %v1902 = vpop.permute.xlu0 %1901
  %v1904 = vmul.f32 %v1495, %v1867
  %v1905 = vmul.f32 %v1497, %v1872
  %v1906 = vmul.f32 %v1499, %v1877
  %v1907 = vmul.f32 %v1501, %v1882
  %v1908 = vmul.f32 %v1503, %v1887
  %v1909 = vmul.f32 %v1505, %v1892
  %v1910 = vmul.f32 %v1507, %v1897
  %v1911 = vmul.f32 %v1509, %v1902
  %1913 = vset.pattern.permute.xlu0 8
  %1914 = vperm.xlu0 %1913, %v1856
  %v1915 = vpop.permute.xlu0 %1914
  %1918 = vset.pattern.permute.xlu0 8
  %1919 = vperm.xlu0 %1918, %v1857
  %v1920 = vpop.permute.xlu0 %1919
  %1923 = vset.pattern.permute.xlu0 8
  %1924 = vperm.xlu0 %1923, %v1858
  %v1925 = vpop.permute.xlu0 %1924
  %1928 = vset.pattern.permute.xlu0 8
  %1929 = vperm.xlu0 %1928, %v1859
  %v1930 = vpop.permute.xlu0 %1929
  %1933 = vset.pattern.permute.xlu0 8
  %1934 = vperm.xlu0 %1933, %v1860
  %v1935 = vpop.permute.xlu0 %1934
  %1938 = vset.pattern.permute.xlu0 8
  %1939 = vperm.xlu0 %1938, %v1861
  %v1940 = vpop.permute.xlu0 %1939
  %1943 = vset.pattern.permute.xlu0 8
  %1944 = vperm.xlu0 %1943, %v1862
  %v1945 = vpop.permute.xlu0 %1944
  %1948 = vset.pattern.permute.xlu0 8
  %1949 = vperm.xlu0 %1948, %v1863
  %v1950 = vpop.permute.xlu0 %1949
  %v1952 = vadd.f32 %v1904, %v1915
  %v1953 = vadd.f32 %v1905, %v1920
  %v1954 = vadd.f32 %v1906, %v1925
  %v1955 = vadd.f32 %v1907, %v1930
  %v1956 = vadd.f32 %v1908, %v1935
  %v1957 = vadd.f32 %v1909, %v1940
  %v1958 = vadd.f32 %v1910, %v1945
  %v1959 = vadd.f32 %v1911, %v1950
  %v1960 = vld [vmem:[%s6] sm:$0xf]
  %v1961 = vld [vmem:[%s6 + $0x4] sm:$0xf]
  %v1962 = vld [vmem:[%s6 + $0x8] sm:$0xf]
  %v1963 = vld [vmem:[%s6 + $0xc] sm:$0xf]
  %v1964 = vpack.c.bf16 %v1728, %v1727
  %v1965 = vpack.c.bf16 %v1953, %v1952
  %v1966 = vpack.c.bf16 %v1730, %v1729
  %v1967 = vpack.c.bf16 %v1955, %v1954
  %v1968 = vpack.c.bf16 %v1732, %v1731
  %v1969 = vpack.c.bf16 %v1957, %v1956
  %v1970 = vpack.c.bf16 %v1734, %v1733
  %v1971 = vpack.c.bf16 %v1959, %v1958
  %v1972 = vld [vmem:[%s7] sm:$0xff]
  %v1973 = vld [vmem:[%s7 + $0x8] sm:$0xff]
  %v1974 = vld [vmem:[%s7 + $0x10] sm:$0xff]
  %v1975 = vld [vmem:[%s7 + $0x18] sm:$0xff]
  %1977 = vset.pattern.permute.xlu0 0
  %1978 = vperm.xlu0 %1977, %v1972
  %v1979 = vpop.permute.xlu0 %1978
  %1982 = vset.pattern.permute.xlu0 0
  %1983 = vperm.xlu0 %1982, %v1973
  %v1984 = vpop.permute.xlu0 %1983
  %1987 = vset.pattern.permute.xlu0 0
  %1988 = vperm.xlu0 %1987, %v1974
  %v1989 = vpop.permute.xlu0 %1988
  %1992 = vset.pattern.permute.xlu0 0
  %1993 = vperm.xlu0 %1992, %v1975
  %v1994 = vpop.permute.xlu0 %1993
  %v2000 = vunpack.c.l.b16 %v1960
  %v2001 = vunpack.c.l.b16 %v1961
  %v2002 = vunpack.c.l.b16 %v1962
  %v2003 = vunpack.c.l.b16 %v1963
  %v2004 = vpack.c.b16 %v2001, %v2000
  %v2005 = vpack.c.b16 %v2003, %v2002
  %vm2006 = vcmask 523264
  %v2008 = vsel %vm2006, %v2004, 0
  %v2011 = vsel %vm2006, %v2005, 0
  %2013 = vmatprep.subr.bf16.mxu0 0
  %2014 = vmatpush1.bf16.msra.mxu0 0
  %2015 = vmatprep.subr.bf16.mxu0 0
  %2016 = vmatpush1.bf16.msra.mxu0 0
  %2017 = vmatprep.subr.bf16.mxu0 0
  %2018 = vmatpush1.bf16.msra.mxu0 0
  %2019 = vmatprep.subr.bf16.mxu0 0
  %2020 = vmatpush1.bf16.msra.mxu0 0
  %2021 = vmatprep.subr.bf16.mxu0 %v1971
  %2022 = vmatpush1.bf16.msra.mxu0 %v1970
  %2023 = vmatprep.subr.bf16.mxu0 %v1969
  %2024 = vmatpush1.bf16.msra.mxu0 %v1968
  %2025 = vmatprep.subr.bf16.mxu0 %v1967
  %2026 = vmatpush1.bf16.msra.mxu0 %v1966
  %2027 = vmatprep.subr.bf16.mxu0 %v1965
  %2028 = vmatpush1.bf16.msra.mxu0 %v1964
  %2029 = vmatprep.subr.bf16.mxu0 0
  %2030 = vmatpush2.bf16.msra.mxu0 0
  %2031 = vmatprep.subr.bf16.mxu0 0
  %2032 = vmatpush2.bf16.msra.mxu0 0
  %2033 = vmatprep.subr.bf16.mxu0 0
  %2034 = vmatpush2.bf16.msra.mxu0 0
  %2035 = vmatprep.subr.bf16.mxu0 0
  %2036 = vmatpush2.bf16.msra.mxu0 0
  %2037 = vmatprep.subr.bf16.mxu0 0
  %2038 = vmatpush2.bf16.msra.mxu0 0
  %2039 = vmatprep.subr.bf16.mxu0 0
  %2040 = vmatpush2.bf16.msra.mxu0 0
  %2041 = vmatprep.subr.bf16.mxu0 0
  %2042 = vmatpush2.bf16.msra.mxu0 0
  %2043 = vmatprep.subr.bf16.mxu0 0
  %2044 = vmatpush2.bf16.msra.mxu0 0
  %2045 = vmatprep.mubr.bf16.mxu0 0
  %2046 = vmatmul.mubr.bf16.gmra.mxu0 %v2008
  %v2047 = vpop.f32.mrf.mxu0
  %v2048 = vadd.f32 %v1979, %v2047
  %v2049 = vpop.f32.mrf.mxu0
  %v2050 = vadd.f32 %v1979, %v2049
  %v2051 = vpop.f32.mrf.mxu0
  %v2052 = vadd.f32 %v1984, %v2051
  %v2053 = vpop.f32.mrf.mxu0
  %v2054 = vadd.f32 %v1984, %v2053
  %2055 = vmatprep.mubr.bf16.mxu0 0
  %2056 = vmatmul.mubr.bf16.gmra.mxu0 %v2011
  %v2057 = vpop.f32.mrf.mxu0
  %v2058 = vadd.f32 %v1989, %v2057
  %v2059 = vpop.f32.mrf.mxu0
  %v2060 = vadd.f32 %v1989, %v2059
  %v2061 = vpop.f32.mrf.mxu0
  %v2062 = vadd.f32 %v1994, %v2061
  %v2063 = vpop.f32.mrf.mxu0
  %v2064 = vadd.f32 %v1994, %v2063
  %2065 = vdwg.mxu0
  %v2066 = vadd.f32 %v358, %v2048
  %v2067 = vadd.f32 %v360, %v2050
  %v2068 = vadd.f32 %v362, %v2052
  %v2069 = vadd.f32 %v364, %v2054
  %v2070 = vadd.f32 %v2058, 0.0
  %v2071 = vadd.f32 %v2060, 0.0
  %v2072 = vadd.f32 %v2062, 0.0
  %v2073 = vadd.f32 %v2064, 0.0
  %s2074 = scalar_lea.vmem %s5, 64
  %v2075 = vld [vmem:[%s2074] sm:$0xff]
  %v2076 = vld [vmem:[%s2074 + $0x8] sm:$0xff]
  %v2077 = vld [vmem:[%s2074 + $0x10] sm:$0xff]
  %v2078 = vld [vmem:[%s2074 + $0x18] sm:$0xff]
  %v2079 = vld [vmem:[%s2074 + $0x20] sm:$0xff]
  %v2080 = vld [vmem:[%s2074 + $0x28] sm:$0xff]
  %v2081 = vld [vmem:[%s2074 + $0x30] sm:$0xff]
  %v2082 = vld [vmem:[%s2074 + $0x38] sm:$0xff]
  %s2083 = scalar_lea.vmem %s4, 32
  %v2084 = vld [vmem:[%s2083] sm:$0xf]
  %v2085 = vld [vmem:[%s2083 + $0x4] sm:$0xf]
  %v2086 = vld [vmem:[%s2083 + $0x8] sm:$0xf]
  %v2087 = vld [vmem:[%s2083 + $0xc] sm:$0xf]
  %v2088 = vld [vmem:[%s2083 + $0x10] sm:$0xf]
  %v2089 = vld [vmem:[%s2083 + $0x14] sm:$0xf]
  %v2090 = vld [vmem:[%s2083 + $0x18] sm:$0xf]
  %v2091 = vld [vmem:[%s2083 + $0x1c] sm:$0xf]
  %v2092 = vpack.c.bf16 %v2068, %v2066
  %v2093 = vpack.c.bf16 %v2069, %v2067
  %2095 = vset.pattern.permute.xlu0 0
  %2096 = vperm.xlu0 %2095, %v2075
  %v2097 = vpop.permute.xlu0 %2096
  %2100 = vset.pattern.permute.xlu0 0
  %2101 = vperm.xlu0 %2100, %v2076
  %v2102 = vpop.permute.xlu0 %2101
  %2105 = vset.pattern.permute.xlu0 0
  %2106 = vperm.xlu0 %2105, %v2077
  %v2107 = vpop.permute.xlu0 %2106
  %2110 = vset.pattern.permute.xlu0 0
  %2111 = vperm.xlu0 %2110, %v2078
  %v2112 = vpop.permute.xlu0 %2111
  %2115 = vset.pattern.permute.xlu0 0
  %2116 = vperm.xlu0 %2115, %v2079
  %v2117 = vpop.permute.xlu0 %2116
  %2120 = vset.pattern.permute.xlu0 0
  %2121 = vperm.xlu0 %2120, %v2080
  %v2122 = vpop.permute.xlu0 %2121
  %2125 = vset.pattern.permute.xlu0 0
  %2126 = vperm.xlu0 %2125, %v2081
  %v2127 = vpop.permute.xlu0 %2126
  %2130 = vset.pattern.permute.xlu0 0
  %2131 = vperm.xlu0 %2130, %v2082
  %v2132 = vpop.permute.xlu0 %2131
  %v2142 = vunpack.c.l.b16 %v2084
  %v2143 = vunpack.c.l.b16 %v2085
  %v2144 = vunpack.c.l.b16 %v2086
  %v2145 = vunpack.c.l.b16 %v2087
  %v2146 = vunpack.c.l.b16 %v2088
  %v2147 = vunpack.c.l.b16 %v2089
  %v2148 = vunpack.c.l.b16 %v2090
  %v2149 = vunpack.c.l.b16 %v2091
  %v2150 = vpack.c.b16 %v2143, %v2142
  %v2151 = vpack.c.b16 %v2145, %v2144
  %v2152 = vpack.c.b16 %v2147, %v2146
  %v2153 = vpack.c.b16 %v2149, %v2148
  %v2155 = vsel %vm444, %v2150, 0
  %v2158 = vsel %vm444, %v2151, 0
  %v2161 = vsel %vm444, %v2152, 0
  %v2164 = vsel %vm444, %v2153, 0
  %2166 = vmatprep.subr.bf16.mxu0 0
  %2167 = vmatpush1.bf16.msra.mxu0 0
  %2168 = vmatprep.subr.bf16.mxu0 0
  %2169 = vmatpush1.bf16.msra.mxu0 0
  %2170 = vmatprep.subr.bf16.mxu0 0
  %2171 = vmatpush1.bf16.msra.mxu0 0
  %2172 = vmatprep.subr.bf16.mxu0 0
  %2173 = vmatpush1.bf16.msra.mxu0 0
  %2174 = vmatprep.subr.bf16.mxu0 0
  %2175 = vmatpush1.bf16.msra.mxu0 0
  %2176 = vmatprep.subr.bf16.mxu0 0
  %2177 = vmatpush1.bf16.msra.mxu0 0
  %2178 = vmatprep.subr.bf16.mxu0 0
  %2179 = vmatpush1.bf16.msra.mxu0 0
  %2180 = vmatprep.subr.bf16.mxu0 %v2093
  %2181 = vmatpush1.bf16.msra.mxu0 %v2092
  %2182 = vmatprep.subr.bf16.mxu0 0
  %2183 = vmatpush2.bf16.msra.mxu0 0
  %2184 = vmatprep.subr.bf16.mxu0 0
  %2185 = vmatpush2.bf16.msra.mxu0 0
  %2186 = vmatprep.subr.bf16.mxu0 0
  %2187 = vmatpush2.bf16.msra.mxu0 0
  %2188 = vmatprep.subr.bf16.mxu0 0
  %2189 = vmatpush2.bf16.msra.mxu0 0
  %2190 = vmatprep.subr.bf16.mxu0 0
  %2191 = vmatpush2.bf16.msra.mxu0 0
  %2192 = vmatprep.subr.bf16.mxu0 0
  %2193 = vmatpush2.bf16.msra.mxu0 0
  %2194 = vmatprep.subr.bf16.mxu0 0
  %2195 = vmatpush2.bf16.msra.mxu0 0
  %2196 = vmatprep.subr.bf16.mxu0 0
  %2197 = vmatpush2.bf16.msra.mxu0 0
  %2198 = vmatprep.mubr.bf16.mxu0 0
  %2199 = vmatmul.mubr.bf16.gmra.mxu0 %v2155
  %v2200 = vpop.f32.mrf.mxu0
  %v2201 = vadd.f32 %v2097, %v2200
  %v2202 = vpop.f32.mrf.mxu0
  %v2203 = vadd.f32 %v2097, %v2202
  %v2204 = vpop.f32.mrf.mxu0
  %v2205 = vadd.f32 %v2102, %v2204
  %v2206 = vpop.f32.mrf.mxu0
  %v2207 = vadd.f32 %v2102, %v2206
  %2208 = vmatprep.mubr.bf16.mxu0 0
  %2209 = vmatmul.mubr.bf16.gmra.mxu0 %v2158
  %v2210 = vpop.f32.mrf.mxu0
  %v2211 = vadd.f32 %v2107, %v2210
  %v2212 = vpop.f32.mrf.mxu0
  %v2213 = vadd.f32 %v2107, %v2212
  %v2214 = vpop.f32.mrf.mxu0
  %v2215 = vadd.f32 %v2112, %v2214
  %v2216 = vpop.f32.mrf.mxu0
  %v2217 = vadd.f32 %v2112, %v2216
  %2218 = vmatprep.mubr.bf16.mxu0 0
  %2219 = vmatmul.mubr.bf16.gmra.mxu0 %v2161
  %v2220 = vpop.f32.mrf.mxu0
  %v2221 = vadd.f32 %v2117, %v2220
  %v2222 = vpop.f32.mrf.mxu0
  %v2223 = vadd.f32 %v2117, %v2222
  %v2224 = vpop.f32.mrf.mxu0
  %v2225 = vadd.f32 %v2122, %v2224
  %v2226 = vpop.f32.mrf.mxu0
  %v2227 = vadd.f32 %v2122, %v2226
  %2228 = vmatprep.mubr.bf16.mxu0 0
  %2229 = vmatmul.mubr.bf16.gmra.mxu0 %v2164
  %v2230 = vpop.f32.mrf.mxu0
  %v2231 = vadd.f32 %v2127, %v2230
  %v2232 = vpop.f32.mrf.mxu0
  %v2233 = vadd.f32 %v2127, %v2232
  %v2234 = vpop.f32.mrf.mxu0
  %v2235 = vadd.f32 %v2132, %v2234
  %v2236 = vpop.f32.mrf.mxu0
  %v2237 = vadd.f32 %v2132, %v2236
  %2238 = vdwg.mxu0
  %vm2239 = vcmp.gt.f32.partialorder %v2201, 0.0
  %vm2240 = vcmp.gt.f32.partialorder %v2203, 0.0
  %vm2241 = vcmp.gt.f32.partialorder %v2205, 0.0
  %vm2242 = vcmp.gt.f32.partialorder %v2207, 0.0
  %vm2243 = vcmp.gt.f32.partialorder %v2211, 0.0
  %vm2244 = vcmp.gt.f32.partialorder %v2213, 0.0
  %vm2245 = vcmp.gt.f32.partialorder %v2215, 0.0
  %vm2246 = vcmp.gt.f32.partialorder %v2217, 0.0
  %vm2247 = vcmp.gt.f32.partialorder %v2221, 0.0
  %vm2248 = vcmp.gt.f32.partialorder %v2223, 0.0
  %vm2249 = vcmp.gt.f32.partialorder %v2225, 0.0
  %vm2250 = vcmp.gt.f32.partialorder %v2227, 0.0
  %vm2251 = vcmp.gt.f32.partialorder %v2231, 0.0
  %vm2252 = vcmp.gt.f32.partialorder %v2233, 0.0
  %vm2253 = vcmp.gt.f32.partialorder %v2235, 0.0
  %vm2254 = vcmp.gt.f32.partialorder %v2237, 0.0
  %2255 = vset.pattern.permute.xlu0 9
  %2256 = vperm.xlu0 %2255, %v2075
  %v2257 = vpop.permute.xlu0 %2256
  %2259 = vset.pattern.permute.xlu0 9
  %2260 = vperm.xlu0 %2259, %v2076
  %v2261 = vpop.permute.xlu0 %2260
  %2263 = vset.pattern.permute.xlu0 9
  %2264 = vperm.xlu0 %2263, %v2077
  %v2265 = vpop.permute.xlu0 %2264
  %2267 = vset.pattern.permute.xlu0 9
  %2268 = vperm.xlu0 %2267, %v2078
  %v2269 = vpop.permute.xlu0 %2268
  %2271 = vset.pattern.permute.xlu0 9
  %2272 = vperm.xlu0 %2271, %v2079
  %v2273 = vpop.permute.xlu0 %2272
  %2275 = vset.pattern.permute.xlu0 9
  %2276 = vperm.xlu0 %2275, %v2080
  %v2277 = vpop.permute.xlu0 %2276
  %2279 = vset.pattern.permute.xlu0 9
  %2280 = vperm.xlu0 %2279, %v2081
  %v2281 = vpop.permute.xlu0 %2280
  %2283 = vset.pattern.permute.xlu0 9
  %2284 = vperm.xlu0 %2283, %v2082
  %v2285 = vpop.permute.xlu0 %2284
  %v2287 = vmul.f32 %v2257, %v2201
  %v2288 = vmul.f32 %v2257, %v2203
  %v2289 = vmul.f32 %v2261, %v2205
  %v2290 = vmul.f32 %v2261, %v2207
  %v2291 = vmul.f32 %v2265, %v2211
  %v2292 = vmul.f32 %v2265, %v2213
  %v2293 = vmul.f32 %v2269, %v2215
  %v2294 = vmul.f32 %v2269, %v2217
  %v2295 = vmul.f32 %v2273, %v2221
  %v2296 = vmul.f32 %v2273, %v2223
  %v2297 = vmul.f32 %v2277, %v2225
  %v2298 = vmul.f32 %v2277, %v2227
  %v2299 = vmul.f32 %v2281, %v2231
  %v2300 = vmul.f32 %v2281, %v2233
  %v2301 = vmul.f32 %v2285, %v2235
  %v2302 = vmul.f32 %v2285, %v2237
  %v2303 = vsel %vm2239, %v2201, %v2287
  %v2304 = vsel %vm2240, %v2203, %v2288
  %v2305 = vsel %vm2241, %v2205, %v2289
  %v2306 = vsel %vm2242, %v2207, %v2290
  %v2307 = vsel %vm2243, %v2211, %v2291
  %v2308 = vsel %vm2244, %v2213, %v2292
  %v2309 = vsel %vm2245, %v2215, %v2293
  %v2310 = vsel %vm2246, %v2217, %v2294
  %v2311 = vsel %vm2247, %v2221, %v2295
  %v2312 = vsel %vm2248, %v2223, %v2296
  %v2313 = vsel %vm2249, %v2225, %v2297
  %v2314 = vsel %vm2250, %v2227, %v2298
  %v2315 = vsel %vm2251, %v2231, %v2299
  %v2316 = vsel %vm2252, %v2233, %v2300
  %v2317 = vsel %vm2253, %v2235, %v2301
  %v2318 = vsel %vm2254, %v2237, %v2302
  %v2319 = vmul.f32 %v2303, %v2303
  %v2320 = vmul.f32 %v2305, %v2305
  %v2321 = vmul.f32 %v2307, %v2307
  %v2322 = vmul.f32 %v2309, %v2309
  %v2323 = vmul.f32 %v2311, %v2311
  %v2324 = vmul.f32 %v2313, %v2313
  %v2325 = vmul.f32 %v2315, %v2315
  %v2326 = vmul.f32 %v2317, %v2317
  %2327 = vadd.xlane.f32.xlu0 %v2303
  %v2328 = vpop.xlane.xlu0 %2327
  %2329 = vadd.xlane.f32.xlu0 %v2305
  %v2330 = vpop.xlane.xlu0 %2329
  %2331 = vadd.xlane.f32.xlu0 %v2307
  %v2332 = vpop.xlane.xlu0 %2331
  %2333 = vadd.xlane.f32.xlu0 %v2309
  %v2334 = vpop.xlane.xlu0 %2333
  %2335 = vadd.xlane.f32.xlu0 %v2311
  %v2336 = vpop.xlane.xlu0 %2335
  %2337 = vadd.xlane.f32.xlu0 %v2313
  %v2338 = vpop.xlane.xlu0 %2337
  %2339 = vadd.xlane.f32.xlu0 %v2315
  %v2340 = vpop.xlane.xlu0 %2339
  %2341 = vadd.xlane.f32.xlu0 %v2317
  %v2342 = vpop.xlane.xlu0 %2341
  %2343 = vadd.xlane.f32.xlu0 %v2319
  %v2344 = vpop.xlane.xlu0 %2343
  %2345 = vadd.xlane.f32.xlu0 %v2320
  %v2346 = vpop.xlane.xlu0 %2345
  %2347 = vadd.xlane.f32.xlu0 %v2321
  %v2348 = vpop.xlane.xlu0 %2347
  %2349 = vadd.xlane.f32.xlu0 %v2322
  %v2350 = vpop.xlane.xlu0 %2349
  %2351 = vadd.xlane.f32.xlu0 %v2323
  %v2352 = vpop.xlane.xlu0 %2351
  %2353 = vadd.xlane.f32.xlu0 %v2324
  %v2354 = vpop.xlane.xlu0 %2353
  %2355 = vadd.xlane.f32.xlu0 %v2325
  %v2356 = vpop.xlane.xlu0 %2355
  %2357 = vadd.xlane.f32.xlu0 %v2326
  %v2358 = vpop.xlane.xlu0 %2357
  %v2359 = vadd.f32 %v2328, %v2330
  %v2360 = vadd.f32 %v2359, %v2332
  %v2361 = vadd.f32 %v2360, %v2334
  %v2362 = vadd.f32 %v2361, %v2336
  %v2363 = vadd.f32 %v2362, %v2338
  %v2364 = vadd.f32 %v2363, %v2340
  %v2365 = vadd.f32 %v2364, %v2342
  %v2366 = vrot.slane %v2365, 4
  %v2367 = vadd.f32 %v2365, %v2366
  %v2368 = vrot.slane %v2367, 2
  %v2369 = vadd.f32 %v2367, %v2368
  %v2370 = vrot.slane %v2369, 1
  %v2371 = vadd.f32 %v2369, %v2370
  %v2372 = vmul.f32 %v2371, 0.00012207031
  %v2373 = vadd.f32 %v2344, %v2346
  %v2374 = vadd.f32 %v2373, %v2348
  %v2375 = vadd.f32 %v2374, %v2350
  %v2376 = vadd.f32 %v2375, %v2352
  %v2377 = vadd.f32 %v2376, %v2354
  %v2378 = vadd.f32 %v2377, %v2356
  %v2379 = vadd.f32 %v2378, %v2358
  %v2380 = vrot.slane %v2379, 4
  %v2381 = vadd.f32 %v2379, %v2380
  %v2382 = vrot.slane %v2381, 2
  %v2383 = vadd.f32 %v2381, %v2382
  %v2384 = vrot.slane %v2383, 1
  %v2385 = vadd.f32 %v2383, %v2384
  %v2386 = vmul.f32 %v2385, 0.00012207031
  %v2387 = vmul.f32 %v2372, %v2372
  %v2388 = vsub.f32 %v2386, %v2387
  %v2389 = vmax.f32 %v2388, 0.0
  %v2390 = vadd.f32 %v2389, 1e-08
  %v2391 = vrsqrt.pop %v2390
  %v2392 = vmul.f32 %v2075, %v2391
  %v2393 = vmul.f32 %v2076, %v2391
  %v2394 = vmul.f32 %v2077, %v2391
  %v2395 = vmul.f32 %v2078, %v2391
  %v2396 = vmul.f32 %v2079, %v2391
  %v2397 = vmul.f32 %v2080, %v2391
  %v2398 = vmul.f32 %v2081, %v2391
  %v2399 = vmul.f32 %v2082, %v2391
  %v2400 = vmul.f32 %v2372, %v2392
  %v2401 = vmul.f32 %v2372, %v2393
  %v2402 = vmul.f32 %v2372, %v2394
  %v2403 = vmul.f32 %v2372, %v2395
  %v2404 = vmul.f32 %v2372, %v2396
  %v2405 = vmul.f32 %v2372, %v2397
  %v2406 = vmul.f32 %v2372, %v2398
  %v2407 = vmul.f32 %v2372, %v2399
  %2416 = vrot.lane.b32.xlu0 %v2400, 1
  %v2417 = vpop.permute.xlu0 %2416
  %2418 = vrot.lane.b32.xlu0 %v2401, 1
  %v2419 = vpop.permute.xlu0 %2418
  %2420 = vrot.lane.b32.xlu0 %v2402, 1
  %v2421 = vpop.permute.xlu0 %2420
  %2422 = vrot.lane.b32.xlu0 %v2403, 1
  %v2423 = vpop.permute.xlu0 %2422
  %2424 = vrot.lane.b32.xlu0 %v2404, 1
  %v2425 = vpop.permute.xlu0 %2424
  %2426 = vrot.lane.b32.xlu0 %v2405, 1
  %v2427 = vpop.permute.xlu0 %2426
  %2428 = vrot.lane.b32.xlu0 %v2406, 1
  %v2429 = vpop.permute.xlu0 %2428
  %2430 = vrot.lane.b32.xlu0 %v2407, 1
  %v2431 = vpop.permute.xlu0 %2430
  %v2440 = vsub.f32 %v2075, %v2417
  %v2441 = vsub.f32 %v2076, %v2419
  %v2442 = vsub.f32 %v2077, %v2421
  %v2443 = vsub.f32 %v2078, %v2423
  %v2444 = vsub.f32 %v2079, %v2425
  %v2445 = vsub.f32 %v2080, %v2427
  %v2446 = vsub.f32 %v2081, %v2429
  %v2447 = vsub.f32 %v2082, %v2431
  %2449 = vset.pattern.permute.xlu0 1
  %2450 = vperm.xlu0 %2449, %v2392
  %v2451 = vpop.permute.xlu0 %2450
  %2454 = vset.pattern.permute.xlu0 1
  %2455 = vperm.xlu0 %2454, %v2393
  %v2456 = vpop.permute.xlu0 %2455
  %2459 = vset.pattern.permute.xlu0 1
  %2460 = vperm.xlu0 %2459, %v2394
  %v2461 = vpop.permute.xlu0 %2460
  %2464 = vset.pattern.permute.xlu0 1
  %2465 = vperm.xlu0 %2464, %v2395
  %v2466 = vpop.permute.xlu0 %2465
  %2469 = vset.pattern.permute.xlu0 1
  %2470 = vperm.xlu0 %2469, %v2396
  %v2471 = vpop.permute.xlu0 %2470
  %2474 = vset.pattern.permute.xlu0 1
  %2475 = vperm.xlu0 %2474, %v2397
  %v2476 = vpop.permute.xlu0 %2475
  %2479 = vset.pattern.permute.xlu0 1
  %2480 = vperm.xlu0 %2479, %v2398
  %v2481 = vpop.permute.xlu0 %2480
  %2484 = vset.pattern.permute.xlu0 1
  %2485 = vperm.xlu0 %2484, %v2399
  %v2486 = vpop.permute.xlu0 %2485
  %v2488 = vmul.f32 %v2303, %v2451
  %v2489 = vmul.f32 %v2305, %v2456
  %v2490 = vmul.f32 %v2307, %v2461
  %v2491 = vmul.f32 %v2309, %v2466
  %v2492 = vmul.f32 %v2311, %v2471
  %v2493 = vmul.f32 %v2313, %v2476
  %v2494 = vmul.f32 %v2315, %v2481
  %v2495 = vmul.f32 %v2317, %v2486
  %2497 = vset.pattern.permute.xlu0 2
  %2498 = vperm.xlu0 %2497, %v2440
  %v2499 = vpop.permute.xlu0 %2498
  %2502 = vset.pattern.permute.xlu0 2
  %2503 = vperm.xlu0 %2502, %v2441
  %v2504 = vpop.permute.xlu0 %2503
  %2507 = vset.pattern.permute.xlu0 2
  %2508 = vperm.xlu0 %2507, %v2442
  %v2509 = vpop.permute.xlu0 %2508
  %2512 = vset.pattern.permute.xlu0 2
  %2513 = vperm.xlu0 %2512, %v2443
  %v2514 = vpop.permute.xlu0 %2513
  %2517 = vset.pattern.permute.xlu0 2
  %2518 = vperm.xlu0 %2517, %v2444
  %v2519 = vpop.permute.xlu0 %2518
  %2522 = vset.pattern.permute.xlu0 2
  %2523 = vperm.xlu0 %2522, %v2445
  %v2524 = vpop.permute.xlu0 %2523
  %2527 = vset.pattern.permute.xlu0 2
  %2528 = vperm.xlu0 %2527, %v2446
  %v2529 = vpop.permute.xlu0 %2528
  %2532 = vset.pattern.permute.xlu0 2
  %2533 = vperm.xlu0 %2532, %v2447
  %v2534 = vpop.permute.xlu0 %2533
  %v2536 = vadd.f32 %v2488, %v2499
  %v2537 = vadd.f32 %v2489, %v2504
  %v2538 = vadd.f32 %v2490, %v2509
  %v2539 = vadd.f32 %v2491, %v2514
  %v2540 = vadd.f32 %v2492, %v2519
  %v2541 = vadd.f32 %v2493, %v2524
  %v2542 = vadd.f32 %v2494, %v2529
  %v2543 = vadd.f32 %v2495, %v2534
  %v2544 = vmul.f32 %v2304, %v2304
  %v2545 = vmul.f32 %v2306, %v2306
  %v2546 = vmul.f32 %v2308, %v2308
  %v2547 = vmul.f32 %v2310, %v2310
  %v2548 = vmul.f32 %v2312, %v2312
  %v2549 = vmul.f32 %v2314, %v2314
  %v2550 = vmul.f32 %v2316, %v2316
  %v2551 = vmul.f32 %v2318, %v2318
  %2552 = vadd.xlane.f32.xlu0 %v2304
  %v2553 = vpop.xlane.xlu0 %2552
  %2554 = vadd.xlane.f32.xlu0 %v2306
  %v2555 = vpop.xlane.xlu0 %2554
  %2556 = vadd.xlane.f32.xlu0 %v2308
  %v2557 = vpop.xlane.xlu0 %2556
  %2558 = vadd.xlane.f32.xlu0 %v2310
  %v2559 = vpop.xlane.xlu0 %2558
  %2560 = vadd.xlane.f32.xlu0 %v2312
  %v2561 = vpop.xlane.xlu0 %2560
  %2562 = vadd.xlane.f32.xlu0 %v2314
  %v2563 = vpop.xlane.xlu0 %2562
  %2564 = vadd.xlane.f32.xlu0 %v2316
  %v2565 = vpop.xlane.xlu0 %2564
  %2566 = vadd.xlane.f32.xlu0 %v2318
  %v2567 = vpop.xlane.xlu0 %2566
  %2568 = vadd.xlane.f32.xlu0 %v2544
  %v2569 = vpop.xlane.xlu0 %2568
  %2570 = vadd.xlane.f32.xlu0 %v2545
  %v2571 = vpop.xlane.xlu0 %2570
  %2572 = vadd.xlane.f32.xlu0 %v2546
  %v2573 = vpop.xlane.xlu0 %2572
  %2574 = vadd.xlane.f32.xlu0 %v2547
  %v2575 = vpop.xlane.xlu0 %2574
  %2576 = vadd.xlane.f32.xlu0 %v2548
  %v2577 = vpop.xlane.xlu0 %2576
  %2578 = vadd.xlane.f32.xlu0 %v2549
  %v2579 = vpop.xlane.xlu0 %2578
  %2580 = vadd.xlane.f32.xlu0 %v2550
  %v2581 = vpop.xlane.xlu0 %2580
  %2582 = vadd.xlane.f32.xlu0 %v2551
  %v2583 = vpop.xlane.xlu0 %2582
  %v2584 = vadd.f32 %v2553, %v2555
  %v2585 = vadd.f32 %v2584, %v2557
  %v2586 = vadd.f32 %v2585, %v2559
  %v2587 = vadd.f32 %v2586, %v2561
  %v2588 = vadd.f32 %v2587, %v2563
  %v2589 = vadd.f32 %v2588, %v2565
  %v2590 = vadd.f32 %v2589, %v2567
  %v2591 = vrot.slane %v2590, 4
  %v2592 = vadd.f32 %v2590, %v2591
  %v2593 = vrot.slane %v2592, 2
  %v2594 = vadd.f32 %v2592, %v2593
  %v2595 = vrot.slane %v2594, 1
  %v2596 = vadd.f32 %v2594, %v2595
  %v2597 = vmul.f32 %v2596, 0.00012207031
  %v2598 = vadd.f32 %v2569, %v2571
  %v2599 = vadd.f32 %v2598, %v2573
  %v2600 = vadd.f32 %v2599, %v2575
  %v2601 = vadd.f32 %v2600, %v2577
  %v2602 = vadd.f32 %v2601, %v2579
  %v2603 = vadd.f32 %v2602, %v2581
  %v2604 = vadd.f32 %v2603, %v2583
  %v2605 = vrot.slane %v2604, 4
  %v2606 = vadd.f32 %v2604, %v2605
  %v2607 = vrot.slane %v2606, 2
  %v2608 = vadd.f32 %v2606, %v2607
  %v2609 = vrot.slane %v2608, 1
  %v2610 = vadd.f32 %v2608, %v2609
  %v2611 = vmul.f32 %v2610, 0.00012207031
  %v2612 = vmul.f32 %v2597, %v2597
  %v2613 = vsub.f32 %v2611, %v2612
  %v2614 = vmax.f32 %v2613, 0.0
  %v2615 = vadd.f32 %v2614, 1e-08
  %v2616 = vrsqrt.pop %v2615
  %v2617 = vmul.f32 %v2075, %v2616
  %v2618 = vmul.f32 %v2076, %v2616
  %v2619 = vmul.f32 %v2077, %v2616
  %v2620 = vmul.f32 %v2078, %v2616
  %v2621 = vmul.f32 %v2079, %v2616
  %v2622 = vmul.f32 %v2080, %v2616
  %v2623 = vmul.f32 %v2081, %v2616
  %v2624 = vmul.f32 %v2082, %v2616
  %v2625 = vmul.f32 %v2597, %v2617
  %v2626 = vmul.f32 %v2597, %v2618
  %v2627 = vmul.f32 %v2597, %v2619
  %v2628 = vmul.f32 %v2597, %v2620
  %v2629 = vmul.f32 %v2597, %v2621
  %v2630 = vmul.f32 %v2597, %v2622
  %v2631 = vmul.f32 %v2597, %v2623
  %v2632 = vmul.f32 %v2597, %v2624
  %2641 = vrot.lane.b32.xlu0 %v2625, 1
  %v2642 = vpop.permute.xlu0 %2641
  %2643 = vrot.lane.b32.xlu0 %v2626, 1
  %v2644 = vpop.permute.xlu0 %2643
  %2645 = vrot.lane.b32.xlu0 %v2627, 1
  %v2646 = vpop.permute.xlu0 %2645
  %2647 = vrot.lane.b32.xlu0 %v2628, 1
  %v2648 = vpop.permute.xlu0 %2647
  %2649 = vrot.lane.b32.xlu0 %v2629, 1
  %v2650 = vpop.permute.xlu0 %2649
  %2651 = vrot.lane.b32.xlu0 %v2630, 1
  %v2652 = vpop.permute.xlu0 %2651
  %2653 = vrot.lane.b32.xlu0 %v2631, 1
  %v2654 = vpop.permute.xlu0 %2653
  %2655 = vrot.lane.b32.xlu0 %v2632, 1
  %v2656 = vpop.permute.xlu0 %2655
  %v2665 = vsub.f32 %v2075, %v2642
  %v2666 = vsub.f32 %v2076, %v2644
  %v2667 = vsub.f32 %v2077, %v2646
  %v2668 = vsub.f32 %v2078, %v2648
  %v2669 = vsub.f32 %v2079, %v2650
  %v2670 = vsub.f32 %v2080, %v2652
  %v2671 = vsub.f32 %v2081, %v2654
  %v2672 = vsub.f32 %v2082, %v2656
  %2674 = vset.pattern.permute.xlu0 1
  %2675 = vperm.xlu0 %2674, %v2617
  %v2676 = vpop.permute.xlu0 %2675
  %2679 = vset.pattern.permute.xlu0 1
  %2680 = vperm.xlu0 %2679, %v2618
  %v2681 = vpop.permute.xlu0 %2680
  %2684 = vset.pattern.permute.xlu0 1
  %2685 = vperm.xlu0 %2684, %v2619
  %v2686 = vpop.permute.xlu0 %2685
  %2689 = vset.pattern.permute.xlu0 1
  %2690 = vperm.xlu0 %2689, %v2620
  %v2691 = vpop.permute.xlu0 %2690
  %2694 = vset.pattern.permute.xlu0 1
  %2695 = vperm.xlu0 %2694, %v2621
  %v2696 = vpop.permute.xlu0 %2695
  %2699 = vset.pattern.permute.xlu0 1
  %2700 = vperm.xlu0 %2699, %v2622
  %v2701 = vpop.permute.xlu0 %2700
  %2704 = vset.pattern.permute.xlu0 1
  %2705 = vperm.xlu0 %2704, %v2623
  %v2706 = vpop.permute.xlu0 %2705
  %2709 = vset.pattern.permute.xlu0 1
  %2710 = vperm.xlu0 %2709, %v2624
  %v2711 = vpop.permute.xlu0 %2710
  %v2713 = vmul.f32 %v2304, %v2676
  %v2714 = vmul.f32 %v2306, %v2681
  %v2715 = vmul.f32 %v2308, %v2686
  %v2716 = vmul.f32 %v2310, %v2691
  %v2717 = vmul.f32 %v2312, %v2696
  %v2718 = vmul.f32 %v2314, %v2701
  %v2719 = vmul.f32 %v2316, %v2706
  %v2720 = vmul.f32 %v2318, %v2711
  %2722 = vset.pattern.permute.xlu0 2
  %2723 = vperm.xlu0 %2722, %v2665
  %v2724 = vpop.permute.xlu0 %2723
  %2727 = vset.pattern.permute.xlu0 2
  %2728 = vperm.xlu0 %2727, %v2666
  %v2729 = vpop.permute.xlu0 %2728
  %2732 = vset.pattern.permute.xlu0 2
  %2733 = vperm.xlu0 %2732, %v2667
  %v2734 = vpop.permute.xlu0 %2733
  %2737 = vset.pattern.permute.xlu0 2
  %2738 = vperm.xlu0 %2737, %v2668
  %v2739 = vpop.permute.xlu0 %2738
  %2742 = vset.pattern.permute.xlu0 2
  %2743 = vperm.xlu0 %2742, %v2669
  %v2744 = vpop.permute.xlu0 %2743
  %2747 = vset.pattern.permute.xlu0 2
  %2748 = vperm.xlu0 %2747, %v2670
  %v2749 = vpop.permute.xlu0 %2748
  %2752 = vset.pattern.permute.xlu0 2
  %2753 = vperm.xlu0 %2752, %v2671
  %v2754 = vpop.permute.xlu0 %2753
  %2757 = vset.pattern.permute.xlu0 2
  %2758 = vperm.xlu0 %2757, %v2672
  %v2759 = vpop.permute.xlu0 %2758
  %v2761 = vadd.f32 %v2713, %v2724
  %v2762 = vadd.f32 %v2714, %v2729
  %v2763 = vadd.f32 %v2715, %v2734
  %v2764 = vadd.f32 %v2716, %v2739
  %v2765 = vadd.f32 %v2717, %v2744
  %v2766 = vadd.f32 %v2718, %v2749
  %v2767 = vadd.f32 %v2719, %v2754
  %v2768 = vadd.f32 %v2720, %v2759
  %2777 = vrot.lane.b32.xlu0 %v2536, 2
  %v2778 = vpop.permute.xlu0 %2777
  %2779 = vrot.lane.b32.xlu0 %v2537, 2
  %v2780 = vpop.permute.xlu0 %2779
  %2781 = vrot.lane.b32.xlu0 %v2538, 2
  %v2782 = vpop.permute.xlu0 %2781
  %2783 = vrot.lane.b32.xlu0 %v2539, 2
  %v2784 = vpop.permute.xlu0 %2783
  %2785 = vrot.lane.b32.xlu0 %v2540, 2
  %v2786 = vpop.permute.xlu0 %2785
  %2787 = vrot.lane.b32.xlu0 %v2541, 2
  %v2788 = vpop.permute.xlu0 %2787
  %2789 = vrot.lane.b32.xlu0 %v2542, 2
  %v2790 = vpop.permute.xlu0 %2789
  %2791 = vrot.lane.b32.xlu0 %v2543, 2
  %v2792 = vpop.permute.xlu0 %2791
  %2809 = vrot.lane.b32.xlu0 %v2761, 2
  %v2810 = vpop.permute.xlu0 %2809
  %2811 = vrot.lane.b32.xlu0 %v2762, 2
  %v2812 = vpop.permute.xlu0 %2811
  %2813 = vrot.lane.b32.xlu0 %v2763, 2
  %v2814 = vpop.permute.xlu0 %2813
  %2815 = vrot.lane.b32.xlu0 %v2764, 2
  %v2816 = vpop.permute.xlu0 %2815
  %2817 = vrot.lane.b32.xlu0 %v2765, 2
  %v2818 = vpop.permute.xlu0 %2817
  %2819 = vrot.lane.b32.xlu0 %v2766, 2
  %v2820 = vpop.permute.xlu0 %2819
  %2821 = vrot.lane.b32.xlu0 %v2767, 2
  %v2822 = vpop.permute.xlu0 %2821
  %2823 = vrot.lane.b32.xlu0 %v2768, 2
  %v2824 = vpop.permute.xlu0 %2823
  %vm2833 = vcmask 15360
  %v2834 = vsel %vm2833, 0.0, %v2778
  %v2835 = vsel %vm2833, 0.0, %v2780
  %v2836 = vsel %vm2833, 0.0, %v2782
  %v2837 = vsel %vm2833, 0.0, %v2784
  %v2838 = vsel %vm2833, 0.0, %v2786
  %v2839 = vsel %vm2833, 0.0, %v2788
  %v2840 = vsel %vm2833, 0.0, %v2790
  %v2841 = vsel %vm2833, 0.0, %v2792
  %v2842 = vsel %vm2833, 0.0, %v2810
  %v2843 = vsel %vm2833, 0.0, %v2812
  %v2844 = vsel %vm2833, 0.0, %v2814
  %v2845 = vsel %vm2833, 0.0, %v2816
  %v2846 = vsel %vm2833, 0.0, %v2818
  %v2847 = vsel %vm2833, 0.0, %v2820
  %v2848 = vsel %vm2833, 0.0, %v2822
  %v2849 = vsel %vm2833, 0.0, %v2824
  %2850 = vrot.lane.b32.xlu0 %v2536, 126
  %v2851 = vpop.permute.xlu0 %2850
  %2852 = vrot.lane.b32.xlu0 %v2537, 126
  %v2853 = vpop.permute.xlu0 %2852
  %2854 = vrot.lane.b32.xlu0 %v2538, 126
  %v2855 = vpop.permute.xlu0 %2854
  %2856 = vrot.lane.b32.xlu0 %v2539, 126
  %v2857 = vpop.permute.xlu0 %2856
  %2858 = vrot.lane.b32.xlu0 %v2540, 126
  %v2859 = vpop.permute.xlu0 %2858
  %2860 = vrot.lane.b32.xlu0 %v2541, 126
  %v2861 = vpop.permute.xlu0 %2860
  %2862 = vrot.lane.b32.xlu0 %v2542, 126
  %v2863 = vpop.permute.xlu0 %2862
  %2864 = vrot.lane.b32.xlu0 %v2543, 126
  %v2865 = vpop.permute.xlu0 %2864
  %2874 = vrot.lane.b32.xlu0 %v2761, 126
  %v2875 = vpop.permute.xlu0 %2874
  %2876 = vrot.lane.b32.xlu0 %v2762, 126
  %v2877 = vpop.permute.xlu0 %2876
  %2878 = vrot.lane.b32.xlu0 %v2763, 126
  %v2879 = vpop.permute.xlu0 %2878
  %2880 = vrot.lane.b32.xlu0 %v2764, 126
  %v2881 = vpop.permute.xlu0 %2880
  %2882 = vrot.lane.b32.xlu0 %v2765, 126
  %v2883 = vpop.permute.xlu0 %2882
  %2884 = vrot.lane.b32.xlu0 %v2766, 126
  %v2885 = vpop.permute.xlu0 %2884
  %2886 = vrot.lane.b32.xlu0 %v2767, 126
  %v2887 = vpop.permute.xlu0 %2886
  %2888 = vrot.lane.b32.xlu0 %v2768, 126
  %v2889 = vpop.permute.xlu0 %2888
  %vm2898 = vcmask 1031168
  %v2899 = vsel %vm2898, %v2851, 0.0
  %v2900 = vsel %vm2898, %v2853, 0.0
  %v2901 = vsel %vm2898, %v2855, 0.0
  %v2902 = vsel %vm2898, %v2857, 0.0
  %v2903 = vsel %vm2898, %v2859, 0.0
  %v2904 = vsel %vm2898, %v2861, 0.0
  %v2905 = vsel %vm2898, %v2863, 0.0
  %v2906 = vsel %vm2898, %v2865, 0.0
  %v2907 = vsel %vm2898, %v2875, 0.0
  %v2908 = vsel %vm2898, %v2877, 0.0
  %v2909 = vsel %vm2898, %v2879, 0.0
  %v2910 = vsel %vm2898, %v2881, 0.0
  %v2911 = vsel %vm2898, %v2883, 0.0
  %v2912 = vsel %vm2898, %v2885, 0.0
  %v2913 = vsel %vm2898, %v2887, 0.0
  %v2914 = vsel %vm2898, %v2889, 0.0
  %2915 = vset.pattern.permute.xlu0 4
  %2916 = vperm.xlu0 %2915, %v2075
  %v2917 = vpop.permute.xlu0 %2916
  %2919 = vset.pattern.permute.xlu0 4
  %2920 = vperm.xlu0 %2919, %v2076
  %v2921 = vpop.permute.xlu0 %2920
  %2923 = vset.pattern.permute.xlu0 4
  %2924 = vperm.xlu0 %2923, %v2077
  %v2925 = vpop.permute.xlu0 %2924
  %2927 = vset.pattern.permute.xlu0 4
  %2928 = vperm.xlu0 %2927, %v2078
  %v2929 = vpop.permute.xlu0 %2928
  %2931 = vset.pattern.permute.xlu0 4
  %2932 = vperm.xlu0 %2931, %v2079
  %v2933 = vpop.permute.xlu0 %2932
  %2935 = vset.pattern.permute.xlu0 4
  %2936 = vperm.xlu0 %2935, %v2080
  %v2937 = vpop.permute.xlu0 %2936
  %2939 = vset.pattern.permute.xlu0 4
  %2940 = vperm.xlu0 %2939, %v2081
  %v2941 = vpop.permute.xlu0 %2940
  %2943 = vset.pattern.permute.xlu0 4
  %2944 = vperm.xlu0 %2943, %v2082
  %v2945 = vpop.permute.xlu0 %2944
  %v2947 = vmul.f32 %v2536, %v2917
  %v2948 = vmul.f32 %v2761, %v2917
  %v2949 = vmul.f32 %v2537, %v2921
  %v2950 = vmul.f32 %v2762, %v2921
  %v2951 = vmul.f32 %v2538, %v2925
  %v2952 = vmul.f32 %v2763, %v2925
  %v2953 = vmul.f32 %v2539, %v2929
  %v2954 = vmul.f32 %v2764, %v2929
  %v2955 = vmul.f32 %v2540, %v2933
  %v2956 = vmul.f32 %v2765, %v2933
  %v2957 = vmul.f32 %v2541, %v2937
  %v2958 = vmul.f32 %v2766, %v2937
  %v2959 = vmul.f32 %v2542, %v2941
  %v2960 = vmul.f32 %v2767, %v2941
  %v2961 = vmul.f32 %v2543, %v2945
  %v2962 = vmul.f32 %v2768, %v2945
  %2963 = vset.pattern.permute.xlu0 6
  %2964 = vperm.xlu0 %2963, %v2075
  %v2965 = vpop.permute.xlu0 %2964
  %2967 = vset.pattern.permute.xlu0 6
  %2968 = vperm.xlu0 %2967, %v2076
  %v2969 = vpop.permute.xlu0 %2968
  %2971 = vset.pattern.permute.xlu0 6
  %2972 = vperm.xlu0 %2971, %v2077
  %v2973 = vpop.permute.xlu0 %2972
  %2975 = vset.pattern.permute.xlu0 6
  %2976 = vperm.xlu0 %2975, %v2078
  %v2977 = vpop.permute.xlu0 %2976
  %2979 = vset.pattern.permute.xlu0 6
  %2980 = vperm.xlu0 %2979, %v2079
  %v2981 = vpop.permute.xlu0 %2980
  %2983 = vset.pattern.permute.xlu0 6
  %2984 = vperm.xlu0 %2983, %v2080
  %v2985 = vpop.permute.xlu0 %2984
  %2987 = vset.pattern.permute.xlu0 6
  %2988 = vperm.xlu0 %2987, %v2081
  %v2989 = vpop.permute.xlu0 %2988
  %2991 = vset.pattern.permute.xlu0 6
  %2992 = vperm.xlu0 %2991, %v2082
  %v2993 = vpop.permute.xlu0 %2992
  %v2995 = vadd.f32 %v2947, %v2965
  %v2996 = vadd.f32 %v2948, %v2965
  %v2997 = vadd.f32 %v2949, %v2969
  %v2998 = vadd.f32 %v2950, %v2969
  %v2999 = vadd.f32 %v2951, %v2973
  %v3000 = vadd.f32 %v2952, %v2973
  %v3001 = vadd.f32 %v2953, %v2977
  %v3002 = vadd.f32 %v2954, %v2977
  %v3003 = vadd.f32 %v2955, %v2981
  %v3004 = vadd.f32 %v2956, %v2981
  %v3005 = vadd.f32 %v2957, %v2985
  %v3006 = vadd.f32 %v2958, %v2985
  %v3007 = vadd.f32 %v2959, %v2989
  %v3008 = vadd.f32 %v2960, %v2989
  %v3009 = vadd.f32 %v2961, %v2993
  %v3010 = vadd.f32 %v2962, %v2993
  %3011 = vset.pattern.permute.xlu0 3
  %3012 = vperm.xlu0 %3011, %v2075
  %v3013 = vpop.permute.xlu0 %3012
  %3015 = vset.pattern.permute.xlu0 3
  %3016 = vperm.xlu0 %3015, %v2076
  %v3017 = vpop.permute.xlu0 %3016
  %3019 = vset.pattern.permute.xlu0 3
  %3020 = vperm.xlu0 %3019, %v2077
  %v3021 = vpop.permute.xlu0 %3020
  %3023 = vset.pattern.permute.xlu0 3
  %3024 = vperm.xlu0 %3023, %v2078
  %v3025 = vpop.permute.xlu0 %3024
  %3027 = vset.pattern.permute.xlu0 3
  %3028 = vperm.xlu0 %3027, %v2079
  %v3029 = vpop.permute.xlu0 %3028
  %3031 = vset.pattern.permute.xlu0 3
  %3032 = vperm.xlu0 %3031, %v2080
  %v3033 = vpop.permute.xlu0 %3032
  %3035 = vset.pattern.permute.xlu0 3
  %3036 = vperm.xlu0 %3035, %v2081
  %v3037 = vpop.permute.xlu0 %3036
  %3039 = vset.pattern.permute.xlu0 3
  %3040 = vperm.xlu0 %3039, %v2082
  %v3041 = vpop.permute.xlu0 %3040
  %v3043 = vmul.f32 %v2834, %v3013
  %v3044 = vmul.f32 %v2842, %v3013
  %v3045 = vmul.f32 %v2835, %v3017
  %v3046 = vmul.f32 %v2843, %v3017
  %v3047 = vmul.f32 %v2836, %v3021
  %v3048 = vmul.f32 %v2844, %v3021
  %v3049 = vmul.f32 %v2837, %v3025
  %v3050 = vmul.f32 %v2845, %v3025
  %v3051 = vmul.f32 %v2838, %v3029
  %v3052 = vmul.f32 %v2846, %v3029
  %v3053 = vmul.f32 %v2839, %v3033
  %v3054 = vmul.f32 %v2847, %v3033
  %v3055 = vmul.f32 %v2840, %v3037
  %v3056 = vmul.f32 %v2848, %v3037
  %v3057 = vmul.f32 %v2841, %v3041
  %v3058 = vmul.f32 %v2849, %v3041
  %v3059 = vadd.f32 %v2995, %v3043
  %v3060 = vadd.f32 %v2996, %v3044
  %v3061 = vadd.f32 %v2997, %v3045
  %v3062 = vadd.f32 %v2998, %v3046
  %v3063 = vadd.f32 %v2999, %v3047
  %v3064 = vadd.f32 %v3000, %v3048
  %v3065 = vadd.f32 %v3001, %v3049
  %v3066 = vadd.f32 %v3002, %v3050
  %v3067 = vadd.f32 %v3003, %v3051
  %v3068 = vadd.f32 %v3004, %v3052
  %v3069 = vadd.f32 %v3005, %v3053
  %v3070 = vadd.f32 %v3006, %v3054
  %v3071 = vadd.f32 %v3007, %v3055
  %v3072 = vadd.f32 %v3008, %v3056
  %v3073 = vadd.f32 %v3009, %v3057
  %v3074 = vadd.f32 %v3010, %v3058
  %3075 = vset.pattern.permute.xlu0 5
  %3076 = vperm.xlu0 %3075, %v2075
  %v3077 = vpop.permute.xlu0 %3076
  %3079 = vset.pattern.permute.xlu0 5
  %3080 = vperm.xlu0 %3079, %v2076
  %v3081 = vpop.permute.xlu0 %3080
  %3083 = vset.pattern.permute.xlu0 5
  %3084 = vperm.xlu0 %3083, %v2077
  %v3085 = vpop.permute.xlu0 %3084
  %3087 = vset.pattern.permute.xlu0 5
  %3088 = vperm.xlu0 %3087, %v2078
  %v3089 = vpop.permute.xlu0 %3088
  %3091 = vset.pattern.permute.xlu0 5
  %3092 = vperm.xlu0 %3091, %v2079
  %v3093 = vpop.permute.xlu0 %3092
  %3095 = vset.pattern.permute.xlu0 5
  %3096 = vperm.xlu0 %3095, %v2080
  %v3097 = vpop.permute.xlu0 %3096
  %3099 = vset.pattern.permute.xlu0 5
  %3100 = vperm.xlu0 %3099, %v2081
  %v3101 = vpop.permute.xlu0 %3100
  %3103 = vset.pattern.permute.xlu0 5
  %3104 = vperm.xlu0 %3103, %v2082
  %v3105 = vpop.permute.xlu0 %3104
  %v3107 = vmul.f32 %v2899, %v3077
  %v3108 = vmul.f32 %v2907, %v3077
  %v3109 = vmul.f32 %v2900, %v3081
  %v3110 = vmul.f32 %v2908, %v3081
  %v3111 = vmul.f32 %v2901, %v3085
  %v3112 = vmul.f32 %v2909, %v3085
  %v3113 = vmul.f32 %v2902, %v3089
  %v3114 = vmul.f32 %v2910, %v3089
  %v3115 = vmul.f32 %v2903, %v3093
  %v3116 = vmul.f32 %v2911, %v3093
  %v3117 = vmul.f32 %v2904, %v3097
  %v3118 = vmul.f32 %v2912, %v3097
  %v3119 = vmul.f32 %v2905, %v3101
  %v3120 = vmul.f32 %v2913, %v3101
  %v3121 = vmul.f32 %v2906, %v3105
  %v3122 = vmul.f32 %v2914, %v3105
  %v3123 = vadd.f32 %v3059, %v3107
  %v3124 = vadd.f32 %v3060, %v3108
  %v3125 = vadd.f32 %v3061, %v3109
  %v3126 = vadd.f32 %v3062, %v3110
  %v3127 = vadd.f32 %v3063, %v3111
  %v3128 = vadd.f32 %v3064, %v3112
  %v3129 = vadd.f32 %v3065, %v3113
  %v3130 = vadd.f32 %v3066, %v3114
  %v3131 = vadd.f32 %v3067, %v3115
  %v3132 = vadd.f32 %v3068, %v3116
  %v3133 = vadd.f32 %v3069, %v3117
  %v3134 = vadd.f32 %v3070, %v3118
  %v3135 = vadd.f32 %v3071, %v3119
  %v3136 = vadd.f32 %v3072, %v3120
  %v3137 = vadd.f32 %v3073, %v3121
  %v3138 = vadd.f32 %v3074, %v3122
  %vm3139 = vcmp.gt.f32.partialorder %v3123, 0.0
  %vm3140 = vcmp.gt.f32.partialorder %v3124, 0.0
  %vm3141 = vcmp.gt.f32.partialorder %v3125, 0.0
  %vm3142 = vcmp.gt.f32.partialorder %v3126, 0.0
  %vm3143 = vcmp.gt.f32.partialorder %v3127, 0.0
  %vm3144 = vcmp.gt.f32.partialorder %v3128, 0.0
  %vm3145 = vcmp.gt.f32.partialorder %v3129, 0.0
  %vm3146 = vcmp.gt.f32.partialorder %v3130, 0.0
  %vm3147 = vcmp.gt.f32.partialorder %v3131, 0.0
  %vm3148 = vcmp.gt.f32.partialorder %v3132, 0.0
  %vm3149 = vcmp.gt.f32.partialorder %v3133, 0.0
  %vm3150 = vcmp.gt.f32.partialorder %v3134, 0.0
  %vm3151 = vcmp.gt.f32.partialorder %v3135, 0.0
  %vm3152 = vcmp.gt.f32.partialorder %v3136, 0.0
  %vm3153 = vcmp.gt.f32.partialorder %v3137, 0.0
  %vm3154 = vcmp.gt.f32.partialorder %v3138, 0.0
  %3155 = vset.pattern.permute.xlu0 10
  %3156 = vperm.xlu0 %3155, %v2075
  %v3157 = vpop.permute.xlu0 %3156
  %3159 = vset.pattern.permute.xlu0 10
  %3160 = vperm.xlu0 %3159, %v2076
  %v3161 = vpop.permute.xlu0 %3160
  %3163 = vset.pattern.permute.xlu0 10
  %3164 = vperm.xlu0 %3163, %v2077
  %v3165 = vpop.permute.xlu0 %3164
  %3167 = vset.pattern.permute.xlu0 10
  %3168 = vperm.xlu0 %3167, %v2078
  %v3169 = vpop.permute.xlu0 %3168
  %3171 = vset.pattern.permute.xlu0 10
  %3172 = vperm.xlu0 %3171, %v2079
  %v3173 = vpop.permute.xlu0 %3172
  %3175 = vset.pattern.permute.xlu0 10
  %3176 = vperm.xlu0 %3175, %v2080
  %v3177 = vpop.permute.xlu0 %3176
  %3179 = vset.pattern.permute.xlu0 10
  %3180 = vperm.xlu0 %3179, %v2081
  %v3181 = vpop.permute.xlu0 %3180
  %3183 = vset.pattern.permute.xlu0 10
  %3184 = vperm.xlu0 %3183, %v2082
  %v3185 = vpop.permute.xlu0 %3184
  %v3187 = vmul.f32 %v3157, %v3123
  %v3188 = vmul.f32 %v3157, %v3124
  %v3189 = vmul.f32 %v3161, %v3125
  %v3190 = vmul.f32 %v3161, %v3126
  %v3191 = vmul.f32 %v3165, %v3127
  %v3192 = vmul.f32 %v3165, %v3128
  %v3193 = vmul.f32 %v3169, %v3129
  %v3194 = vmul.f32 %v3169, %v3130
  %v3195 = vmul.f32 %v3173, %v3131
  %v3196 = vmul.f32 %v3173, %v3132
  %v3197 = vmul.f32 %v3177, %v3133
  %v3198 = vmul.f32 %v3177, %v3134
  %v3199 = vmul.f32 %v3181, %v3135
  %v3200 = vmul.f32 %v3181, %v3136
  %v3201 = vmul.f32 %v3185, %v3137
  %v3202 = vmul.f32 %v3185, %v3138
  %v3203 = vsel %vm3139, %v3123, %v3187
  %v3204 = vsel %vm3140, %v3124, %v3188
  %v3205 = vsel %vm3141, %v3125, %v3189
  %v3206 = vsel %vm3142, %v3126, %v3190
  %v3207 = vsel %vm3143, %v3127, %v3191
  %v3208 = vsel %vm3144, %v3128, %v3192
  %v3209 = vsel %vm3145, %v3129, %v3193
  %v3210 = vsel %vm3146, %v3130, %v3194
  %v3211 = vsel %vm3147, %v3131, %v3195
  %v3212 = vsel %vm3148, %v3132, %v3196
  %v3213 = vsel %vm3149, %v3133, %v3197
  %v3214 = vsel %vm3150, %v3134, %v3198
  %v3215 = vsel %vm3151, %v3135, %v3199
  %v3216 = vsel %vm3152, %v3136, %v3200
  %v3217 = vsel %vm3153, %v3137, %v3201
  %v3218 = vsel %vm3154, %v3138, %v3202
  %v3219 = vmul.f32 %v3203, %v3203
  %v3220 = vmul.f32 %v3205, %v3205
  %v3221 = vmul.f32 %v3207, %v3207
  %v3222 = vmul.f32 %v3209, %v3209
  %v3223 = vmul.f32 %v3211, %v3211
  %v3224 = vmul.f32 %v3213, %v3213
  %v3225 = vmul.f32 %v3215, %v3215
  %v3226 = vmul.f32 %v3217, %v3217
  %3227 = vadd.xlane.f32.xlu0 %v3203
  %v3228 = vpop.xlane.xlu0 %3227
  %3229 = vadd.xlane.f32.xlu0 %v3205
  %v3230 = vpop.xlane.xlu0 %3229
  %3231 = vadd.xlane.f32.xlu0 %v3207
  %v3232 = vpop.xlane.xlu0 %3231
  %3233 = vadd.xlane.f32.xlu0 %v3209
  %v3234 = vpop.xlane.xlu0 %3233
  %3235 = vadd.xlane.f32.xlu0 %v3211
  %v3236 = vpop.xlane.xlu0 %3235
  %3237 = vadd.xlane.f32.xlu0 %v3213
  %v3238 = vpop.xlane.xlu0 %3237
  %3239 = vadd.xlane.f32.xlu0 %v3215
  %v3240 = vpop.xlane.xlu0 %3239
  %3241 = vadd.xlane.f32.xlu0 %v3217
  %v3242 = vpop.xlane.xlu0 %3241
  %3243 = vadd.xlane.f32.xlu0 %v3219
  %v3244 = vpop.xlane.xlu0 %3243
  %3245 = vadd.xlane.f32.xlu0 %v3220
  %v3246 = vpop.xlane.xlu0 %3245
  %3247 = vadd.xlane.f32.xlu0 %v3221
  %v3248 = vpop.xlane.xlu0 %3247
  %3249 = vadd.xlane.f32.xlu0 %v3222
  %v3250 = vpop.xlane.xlu0 %3249
  %3251 = vadd.xlane.f32.xlu0 %v3223
  %v3252 = vpop.xlane.xlu0 %3251
  %3253 = vadd.xlane.f32.xlu0 %v3224
  %v3254 = vpop.xlane.xlu0 %3253
  %3255 = vadd.xlane.f32.xlu0 %v3225
  %v3256 = vpop.xlane.xlu0 %3255
  %3257 = vadd.xlane.f32.xlu0 %v3226
  %v3258 = vpop.xlane.xlu0 %3257
  %v3259 = vadd.f32 %v3228, %v3230
  %v3260 = vadd.f32 %v3259, %v3232
  %v3261 = vadd.f32 %v3260, %v3234
  %v3262 = vadd.f32 %v3261, %v3236
  %v3263 = vadd.f32 %v3262, %v3238
  %v3264 = vadd.f32 %v3263, %v3240
  %v3265 = vadd.f32 %v3264, %v3242
  %v3266 = vrot.slane %v3265, 4
  %v3267 = vadd.f32 %v3265, %v3266
  %v3268 = vrot.slane %v3267, 2
  %v3269 = vadd.f32 %v3267, %v3268
  %v3270 = vrot.slane %v3269, 1
  %v3271 = vadd.f32 %v3269, %v3270
  %v3272 = vmul.f32 %v3271, 0.00012207031
  %v3273 = vadd.f32 %v3244, %v3246
  %v3274 = vadd.f32 %v3273, %v3248
  %v3275 = vadd.f32 %v3274, %v3250
  %v3276 = vadd.f32 %v3275, %v3252
  %v3277 = vadd.f32 %v3276, %v3254
  %v3278 = vadd.f32 %v3277, %v3256
  %v3279 = vadd.f32 %v3278, %v3258
  %v3280 = vrot.slane %v3279, 4
  %v3281 = vadd.f32 %v3279, %v3280
  %v3282 = vrot.slane %v3281, 2
  %v3283 = vadd.f32 %v3281, %v3282
  %v3284 = vrot.slane %v3283, 1
  %v3285 = vadd.f32 %v3283, %v3284
  %v3286 = vmul.f32 %v3285, 0.00012207031
  %v3287 = vmul.f32 %v3272, %v3272
  %v3288 = vsub.f32 %v3286, %v3287
  %v3289 = vmax.f32 %v3288, 0.0
  %v3290 = vadd.f32 %v3289, 1e-08
  %v3291 = vrsqrt.pop %v3290
  %v3292 = vmul.f32 %v2075, %v3291
  %v3293 = vmul.f32 %v2076, %v3291
  %v3294 = vmul.f32 %v2077, %v3291
  %v3295 = vmul.f32 %v2078, %v3291
  %v3296 = vmul.f32 %v2079, %v3291
  %v3297 = vmul.f32 %v2080, %v3291
  %v3298 = vmul.f32 %v2081, %v3291
  %v3299 = vmul.f32 %v2082, %v3291
  %v3300 = vmul.f32 %v3272, %v3292
  %v3301 = vmul.f32 %v3272, %v3293
  %v3302 = vmul.f32 %v3272, %v3294
  %v3303 = vmul.f32 %v3272, %v3295
  %v3304 = vmul.f32 %v3272, %v3296
  %v3305 = vmul.f32 %v3272, %v3297
  %v3306 = vmul.f32 %v3272, %v3298
  %v3307 = vmul.f32 %v3272, %v3299
  %3316 = vrot.lane.b32.xlu0 %v3300, 1
  %v3317 = vpop.permute.xlu0 %3316
  %3318 = vrot.lane.b32.xlu0 %v3301, 1
  %v3319 = vpop.permute.xlu0 %3318
  %3320 = vrot.lane.b32.xlu0 %v3302, 1
  %v3321 = vpop.permute.xlu0 %3320
  %3322 = vrot.lane.b32.xlu0 %v3303, 1
  %v3323 = vpop.permute.xlu0 %3322
  %3324 = vrot.lane.b32.xlu0 %v3304, 1
  %v3325 = vpop.permute.xlu0 %3324
  %3326 = vrot.lane.b32.xlu0 %v3305, 1
  %v3327 = vpop.permute.xlu0 %3326
  %3328 = vrot.lane.b32.xlu0 %v3306, 1
  %v3329 = vpop.permute.xlu0 %3328
  %3330 = vrot.lane.b32.xlu0 %v3307, 1
  %v3331 = vpop.permute.xlu0 %3330
  %v3340 = vsub.f32 %v2075, %v3317
  %v3341 = vsub.f32 %v2076, %v3319
  %v3342 = vsub.f32 %v2077, %v3321
  %v3343 = vsub.f32 %v2078, %v3323
  %v3344 = vsub.f32 %v2079, %v3325
  %v3345 = vsub.f32 %v2080, %v3327
  %v3346 = vsub.f32 %v2081, %v3329
  %v3347 = vsub.f32 %v2082, %v3331
  %3349 = vset.pattern.permute.xlu0 7
  %3350 = vperm.xlu0 %3349, %v3292
  %v3351 = vpop.permute.xlu0 %3350
  %3354 = vset.pattern.permute.xlu0 7
  %3355 = vperm.xlu0 %3354, %v3293
  %v3356 = vpop.permute.xlu0 %3355
  %3359 = vset.pattern.permute.xlu0 7
  %3360 = vperm.xlu0 %3359, %v3294
  %v3361 = vpop.permute.xlu0 %3360
  %3364 = vset.pattern.permute.xlu0 7
  %3365 = vperm.xlu0 %3364, %v3295
  %v3366 = vpop.permute.xlu0 %3365
  %3369 = vset.pattern.permute.xlu0 7
  %3370 = vperm.xlu0 %3369, %v3296
  %v3371 = vpop.permute.xlu0 %3370
  %3374 = vset.pattern.permute.xlu0 7
  %3375 = vperm.xlu0 %3374, %v3297
  %v3376 = vpop.permute.xlu0 %3375
  %3379 = vset.pattern.permute.xlu0 7
  %3380 = vperm.xlu0 %3379, %v3298
  %v3381 = vpop.permute.xlu0 %3380
  %3384 = vset.pattern.permute.xlu0 7
  %3385 = vperm.xlu0 %3384, %v3299
  %v3386 = vpop.permute.xlu0 %3385
  %v3388 = vmul.f32 %v3203, %v3351
  %v3389 = vmul.f32 %v3205, %v3356
  %v3390 = vmul.f32 %v3207, %v3361
  %v3391 = vmul.f32 %v3209, %v3366
  %v3392 = vmul.f32 %v3211, %v3371
  %v3393 = vmul.f32 %v3213, %v3376
  %v3394 = vmul.f32 %v3215, %v3381
  %v3395 = vmul.f32 %v3217, %v3386
  %3397 = vset.pattern.permute.xlu0 8
  %3398 = vperm.xlu0 %3397, %v3340
  %v3399 = vpop.permute.xlu0 %3398
  %3402 = vset.pattern.permute.xlu0 8
  %3403 = vperm.xlu0 %3402, %v3341
  %v3404 = vpop.permute.xlu0 %3403
  %3407 = vset.pattern.permute.xlu0 8
  %3408 = vperm.xlu0 %3407, %v3342
  %v3409 = vpop.permute.xlu0 %3408
  %3412 = vset.pattern.permute.xlu0 8
  %3413 = vperm.xlu0 %3412, %v3343
  %v3414 = vpop.permute.xlu0 %3413
  %3417 = vset.pattern.permute.xlu0 8
  %3418 = vperm.xlu0 %3417, %v3344
  %v3419 = vpop.permute.xlu0 %3418
  %3422 = vset.pattern.permute.xlu0 8
  %3423 = vperm.xlu0 %3422, %v3345
  %v3424 = vpop.permute.xlu0 %3423
  %3427 = vset.pattern.permute.xlu0 8
  %3428 = vperm.xlu0 %3427, %v3346
  %v3429 = vpop.permute.xlu0 %3428
  %3432 = vset.pattern.permute.xlu0 8
  %3433 = vperm.xlu0 %3432, %v3347
  %v3434 = vpop.permute.xlu0 %3433
  %v3436 = vadd.f32 %v3388, %v3399
  %v3437 = vadd.f32 %v3389, %v3404
  %v3438 = vadd.f32 %v3390, %v3409
  %v3439 = vadd.f32 %v3391, %v3414
  %v3440 = vadd.f32 %v3392, %v3419
  %v3441 = vadd.f32 %v3393, %v3424
  %v3442 = vadd.f32 %v3394, %v3429
  %v3443 = vadd.f32 %v3395, %v3434
  %v3444 = vmul.f32 %v3204, %v3204
  %v3445 = vmul.f32 %v3206, %v3206
  %v3446 = vmul.f32 %v3208, %v3208
  %v3447 = vmul.f32 %v3210, %v3210
  %v3448 = vmul.f32 %v3212, %v3212
  %v3449 = vmul.f32 %v3214, %v3214
  %v3450 = vmul.f32 %v3216, %v3216
  %v3451 = vmul.f32 %v3218, %v3218
  %3452 = vadd.xlane.f32.xlu0 %v3204
  %v3453 = vpop.xlane.xlu0 %3452
  %3454 = vadd.xlane.f32.xlu0 %v3206
  %v3455 = vpop.xlane.xlu0 %3454
  %3456 = vadd.xlane.f32.xlu0 %v3208
  %v3457 = vpop.xlane.xlu0 %3456
  %3458 = vadd.xlane.f32.xlu0 %v3210
  %v3459 = vpop.xlane.xlu0 %3458
  %3460 = vadd.xlane.f32.xlu0 %v3212
  %v3461 = vpop.xlane.xlu0 %3460
  %3462 = vadd.xlane.f32.xlu0 %v3214
  %v3463 = vpop.xlane.xlu0 %3462
  %3464 = vadd.xlane.f32.xlu0 %v3216
  %v3465 = vpop.xlane.xlu0 %3464
  %3466 = vadd.xlane.f32.xlu0 %v3218
  %v3467 = vpop.xlane.xlu0 %3466
  %3468 = vadd.xlane.f32.xlu0 %v3444
  %v3469 = vpop.xlane.xlu0 %3468
  %3470 = vadd.xlane.f32.xlu0 %v3445
  %v3471 = vpop.xlane.xlu0 %3470
  %3472 = vadd.xlane.f32.xlu0 %v3446
  %v3473 = vpop.xlane.xlu0 %3472
  %3474 = vadd.xlane.f32.xlu0 %v3447
  %v3475 = vpop.xlane.xlu0 %3474
  %3476 = vadd.xlane.f32.xlu0 %v3448
  %v3477 = vpop.xlane.xlu0 %3476
  %3478 = vadd.xlane.f32.xlu0 %v3449
  %v3479 = vpop.xlane.xlu0 %3478
  %3480 = vadd.xlane.f32.xlu0 %v3450
  %v3481 = vpop.xlane.xlu0 %3480
  %3482 = vadd.xlane.f32.xlu0 %v3451
  %v3483 = vpop.xlane.xlu0 %3482
  %v3484 = vadd.f32 %v3453, %v3455
  %v3485 = vadd.f32 %v3484, %v3457
  %v3486 = vadd.f32 %v3485, %v3459
  %v3487 = vadd.f32 %v3486, %v3461
  %v3488 = vadd.f32 %v3487, %v3463
  %v3489 = vadd.f32 %v3488, %v3465
  %v3490 = vadd.f32 %v3489, %v3467
  %v3491 = vrot.slane %v3490, 4
  %v3492 = vadd.f32 %v3490, %v3491
  %v3493 = vrot.slane %v3492, 2
  %v3494 = vadd.f32 %v3492, %v3493
  %v3495 = vrot.slane %v3494, 1
  %v3496 = vadd.f32 %v3494, %v3495
  %v3497 = vmul.f32 %v3496, 0.00012207031
  %v3498 = vadd.f32 %v3469, %v3471
  %v3499 = vadd.f32 %v3498, %v3473
  %v3500 = vadd.f32 %v3499, %v3475
  %v3501 = vadd.f32 %v3500, %v3477
  %v3502 = vadd.f32 %v3501, %v3479
  %v3503 = vadd.f32 %v3502, %v3481
  %v3504 = vadd.f32 %v3503, %v3483
  %v3505 = vrot.slane %v3504, 4
  %v3506 = vadd.f32 %v3504, %v3505
  %v3507 = vrot.slane %v3506, 2
  %v3508 = vadd.f32 %v3506, %v3507
  %v3509 = vrot.slane %v3508, 1
  %v3510 = vadd.f32 %v3508, %v3509
  %v3511 = vmul.f32 %v3510, 0.00012207031
  %v3512 = vmul.f32 %v3497, %v3497
  %v3513 = vsub.f32 %v3511, %v3512
  %v3514 = vmax.f32 %v3513, 0.0
  %v3515 = vadd.f32 %v3514, 1e-08
  %v3516 = vrsqrt.pop %v3515
  %v3517 = vmul.f32 %v2075, %v3516
  %v3518 = vmul.f32 %v2076, %v3516
  %v3519 = vmul.f32 %v2077, %v3516
  %v3520 = vmul.f32 %v2078, %v3516
  %v3521 = vmul.f32 %v2079, %v3516
  %v3522 = vmul.f32 %v2080, %v3516
  %v3523 = vmul.f32 %v2081, %v3516
  %v3524 = vmul.f32 %v2082, %v3516
  %v3525 = vmul.f32 %v3497, %v3517
  %v3526 = vmul.f32 %v3497, %v3518
  %v3527 = vmul.f32 %v3497, %v3519
  %v3528 = vmul.f32 %v3497, %v3520
  %v3529 = vmul.f32 %v3497, %v3521
  %v3530 = vmul.f32 %v3497, %v3522
  %v3531 = vmul.f32 %v3497, %v3523
  %v3532 = vmul.f32 %v3497, %v3524
  %3541 = vrot.lane.b32.xlu0 %v3525, 1
  %v3542 = vpop.permute.xlu0 %3541
  %3543 = vrot.lane.b32.xlu0 %v3526, 1
  %v3544 = vpop.permute.xlu0 %3543
  %3545 = vrot.lane.b32.xlu0 %v3527, 1
  %v3546 = vpop.permute.xlu0 %3545
  %3547 = vrot.lane.b32.xlu0 %v3528, 1
  %v3548 = vpop.permute.xlu0 %3547
  %3549 = vrot.lane.b32.xlu0 %v3529, 1
  %v3550 = vpop.permute.xlu0 %3549
  %3551 = vrot.lane.b32.xlu0 %v3530, 1
  %v3552 = vpop.permute.xlu0 %3551
  %3553 = vrot.lane.b32.xlu0 %v3531, 1
  %v3554 = vpop.permute.xlu0 %3553
  %3555 = vrot.lane.b32.xlu0 %v3532, 1
  %v3556 = vpop.permute.xlu0 %3555
  %v3565 = vsub.f32 %v2075, %v3542
  %v3566 = vsub.f32 %v2076, %v3544
  %v3567 = vsub.f32 %v2077, %v3546
  %v3568 = vsub.f32 %v2078, %v3548
  %v3569 = vsub.f32 %v2079, %v3550
  %v3570 = vsub.f32 %v2080, %v3552
  %v3571 = vsub.f32 %v2081, %v3554
  %v3572 = vsub.f32 %v2082, %v3556
  %3574 = vset.pattern.permute.xlu0 7
  %3575 = vperm.xlu0 %3574, %v3517
  %v3576 = vpop.permute.xlu0 %3575
  %3579 = vset.pattern.permute.xlu0 7
  %3580 = vperm.xlu0 %3579, %v3518
  %v3581 = vpop.permute.xlu0 %3580
  %3584 = vset.pattern.permute.xlu0 7
  %3585 = vperm.xlu0 %3584, %v3519
  %v3586 = vpop.permute.xlu0 %3585
  %3589 = vset.pattern.permute.xlu0 7
  %3590 = vperm.xlu0 %3589, %v3520
  %v3591 = vpop.permute.xlu0 %3590
  %3594 = vset.pattern.permute.xlu0 7
  %3595 = vperm.xlu0 %3594, %v3521
  %v3596 = vpop.permute.xlu0 %3595
  %3599 = vset.pattern.permute.xlu0 7
  %3600 = vperm.xlu0 %3599, %v3522
  %v3601 = vpop.permute.xlu0 %3600
  %3604 = vset.pattern.permute.xlu0 7
  %3605 = vperm.xlu0 %3604, %v3523
  %v3606 = vpop.permute.xlu0 %3605
  %3609 = vset.pattern.permute.xlu0 7
  %3610 = vperm.xlu0 %3609, %v3524
  %v3611 = vpop.permute.xlu0 %3610
  %v3613 = vmul.f32 %v3204, %v3576
  %v3614 = vmul.f32 %v3206, %v3581
  %v3615 = vmul.f32 %v3208, %v3586
  %v3616 = vmul.f32 %v3210, %v3591
  %v3617 = vmul.f32 %v3212, %v3596
  %v3618 = vmul.f32 %v3214, %v3601
  %v3619 = vmul.f32 %v3216, %v3606
  %v3620 = vmul.f32 %v3218, %v3611
  %3622 = vset.pattern.permute.xlu0 8
  %3623 = vperm.xlu0 %3622, %v3565
  %v3624 = vpop.permute.xlu0 %3623
  %3627 = vset.pattern.permute.xlu0 8
  %3628 = vperm.xlu0 %3627, %v3566
  %v3629 = vpop.permute.xlu0 %3628
  %3632 = vset.pattern.permute.xlu0 8
  %3633 = vperm.xlu0 %3632, %v3567
  %v3634 = vpop.permute.xlu0 %3633
  %3637 = vset.pattern.permute.xlu0 8
  %3638 = vperm.xlu0 %3637, %v3568
  %v3639 = vpop.permute.xlu0 %3638
  %3642 = vset.pattern.permute.xlu0 8
  %3643 = vperm.xlu0 %3642, %v3569
  %v3644 = vpop.permute.xlu0 %3643
  %3647 = vset.pattern.permute.xlu0 8
  %3648 = vperm.xlu0 %3647, %v3570
  %v3649 = vpop.permute.xlu0 %3648
  %3652 = vset.pattern.permute.xlu0 8
  %3653 = vperm.xlu0 %3652, %v3571
  %v3654 = vpop.permute.xlu0 %3653
  %3657 = vset.pattern.permute.xlu0 8
  %3658 = vperm.xlu0 %3657, %v3572
  %v3659 = vpop.permute.xlu0 %3658
  %v3661 = vadd.f32 %v3613, %v3624
  %v3662 = vadd.f32 %v3614, %v3629
  %v3663 = vadd.f32 %v3615, %v3634
  %v3664 = vadd.f32 %v3616, %v3639
  %v3665 = vadd.f32 %v3617, %v3644
  %v3666 = vadd.f32 %v3618, %v3649
  %v3667 = vadd.f32 %v3619, %v3654
  %v3668 = vadd.f32 %v3620, %v3659
  %s3669 = scalar_lea.vmem %s6, 16
  %v3670 = vld [vmem:[%s3669] sm:$0xf]
  %v3671 = vld [vmem:[%s3669 + $0x4] sm:$0xf]
  %v3672 = vld [vmem:[%s3669 + $0x8] sm:$0xf]
  %v3673 = vld [vmem:[%s3669 + $0xc] sm:$0xf]
  %v3674 = vpack.c.bf16 %v3437, %v3436
  %v3675 = vpack.c.bf16 %v3662, %v3661
  %v3676 = vpack.c.bf16 %v3439, %v3438
  %v3677 = vpack.c.bf16 %v3664, %v3663
  %v3678 = vpack.c.bf16 %v3441, %v3440
  %v3679 = vpack.c.bf16 %v3666, %v3665
  %v3680 = vpack.c.bf16 %v3443, %v3442
  %v3681 = vpack.c.bf16 %v3668, %v3667
  %s3682 = scalar_lea.vmem %s7, 32
  %v3683 = vld [vmem:[%s3682] sm:$0xff]
  %v3684 = vld [vmem:[%s3682 + $0x8] sm:$0xff]
  %v3685 = vld [vmem:[%s3682 + $0x10] sm:$0xff]
  %v3686 = vld [vmem:[%s3682 + $0x18] sm:$0xff]
  %3688 = vset.pattern.permute.xlu0 0
  %3689 = vperm.xlu0 %3688, %v3683
  %v3690 = vpop.permute.xlu0 %3689
  %3693 = vset.pattern.permute.xlu0 0
  %3694 = vperm.xlu0 %3693, %v3684
  %v3695 = vpop.permute.xlu0 %3694
  %3698 = vset.pattern.permute.xlu0 0
  %3699 = vperm.xlu0 %3698, %v3685
  %v3700 = vpop.permute.xlu0 %3699
  %3703 = vset.pattern.permute.xlu0 0
  %3704 = vperm.xlu0 %3703, %v3686
  %v3705 = vpop.permute.xlu0 %3704
  %v3711 = vunpack.c.l.b16 %v3670
  %v3712 = vunpack.c.l.b16 %v3671
  %v3713 = vunpack.c.l.b16 %v3672
  %v3714 = vunpack.c.l.b16 %v3673
  %v3715 = vpack.c.b16 %v3712, %v3711
  %v3716 = vpack.c.b16 %v3714, %v3713
  %v3718 = vsel %vm2006, %v3715, 0
  %v3721 = vsel %vm2006, %v3716, 0
  %3723 = vmatprep.subr.bf16.mxu0 0
  %3724 = vmatpush1.bf16.msra.mxu0 0
  %3725 = vmatprep.subr.bf16.mxu0 0
  %3726 = vmatpush1.bf16.msra.mxu0 0
  %3727 = vmatprep.subr.bf16.mxu0 0
  %3728 = vmatpush1.bf16.msra.mxu0 0
  %3729 = vmatprep.subr.bf16.mxu0 0
  %3730 = vmatpush1.bf16.msra.mxu0 0
  %3731 = vmatprep.subr.bf16.mxu0 %v3681
  %3732 = vmatpush1.bf16.msra.mxu0 %v3680
  %3733 = vmatprep.subr.bf16.mxu0 %v3679
  %3734 = vmatpush1.bf16.msra.mxu0 %v3678
  %3735 = vmatprep.subr.bf16.mxu0 %v3677
  %3736 = vmatpush1.bf16.msra.mxu0 %v3676
  %3737 = vmatprep.subr.bf16.mxu0 %v3675
  %3738 = vmatpush1.bf16.msra.mxu0 %v3674
  %3739 = vmatprep.subr.bf16.mxu0 0
  %3740 = vmatpush2.bf16.msra.mxu0 0
  %3741 = vmatprep.subr.bf16.mxu0 0
  %3742 = vmatpush2.bf16.msra.mxu0 0
  %3743 = vmatprep.subr.bf16.mxu0 0
  %3744 = vmatpush2.bf16.msra.mxu0 0
  %3745 = vmatprep.subr.bf16.mxu0 0
  %3746 = vmatpush2.bf16.msra.mxu0 0
  %3747 = vmatprep.subr.bf16.mxu0 0
  %3748 = vmatpush2.bf16.msra.mxu0 0
  %3749 = vmatprep.subr.bf16.mxu0 0
  %3750 = vmatpush2.bf16.msra.mxu0 0
  %3751 = vmatprep.subr.bf16.mxu0 0
  %3752 = vmatpush2.bf16.msra.mxu0 0
  %3753 = vmatprep.subr.bf16.mxu0 0
  %3754 = vmatpush2.bf16.msra.mxu0 0
  %3755 = vmatprep.mubr.bf16.mxu0 0
  %3756 = vmatmul.mubr.bf16.gmra.mxu0 %v3718
  %v3757 = vpop.f32.mrf.mxu0
  %v3758 = vadd.f32 %v3690, %v3757
  %v3759 = vpop.f32.mrf.mxu0
  %v3760 = vadd.f32 %v3690, %v3759
  %v3761 = vpop.f32.mrf.mxu0
  %v3762 = vadd.f32 %v3695, %v3761
  %v3763 = vpop.f32.mrf.mxu0
  %v3764 = vadd.f32 %v3695, %v3763
  %3765 = vmatprep.mubr.bf16.mxu0 0
  %3766 = vmatmul.mubr.bf16.gmra.mxu0 %v3721
  %v3767 = vpop.f32.mrf.mxu0
  %v3768 = vadd.f32 %v3700, %v3767
  %v3769 = vpop.f32.mrf.mxu0
  %v3770 = vadd.f32 %v3700, %v3769
  %v3771 = vpop.f32.mrf.mxu0
  %v3772 = vadd.f32 %v3705, %v3771
  %v3773 = vpop.f32.mrf.mxu0
  %v3774 = vadd.f32 %v3705, %v3773
  %3775 = vdwg.mxu0
  %v3776 = vadd.f32 %v2066, %v3758
  %v3777 = vadd.f32 %v2067, %v3760
  %v3778 = vadd.f32 %v2068, %v3762
  %v3779 = vadd.f32 %v2069, %v3764
  %v3780 = vadd.f32 %v2070, %v3768
  %v3781 = vadd.f32 %v2071, %v3770
  %v3782 = vadd.f32 %v2072, %v3772
  %v3783 = vadd.f32 %v2073, %v3774
  %s3784 = scalar_lea.vmem %s5, 128
  %v3785 = vld [vmem:[%s3784] sm:$0xff]
  %v3786 = vld [vmem:[%s3784 + $0x8] sm:$0xff]
  %v3787 = vld [vmem:[%s3784 + $0x10] sm:$0xff]
  %v3788 = vld [vmem:[%s3784 + $0x18] sm:$0xff]
  %v3789 = vld [vmem:[%s3784 + $0x20] sm:$0xff]
  %v3790 = vld [vmem:[%s3784 + $0x28] sm:$0xff]
  %v3791 = vld [vmem:[%s3784 + $0x30] sm:$0xff]
  %v3792 = vld [vmem:[%s3784 + $0x38] sm:$0xff]
  %s3793 = scalar_lea.vmem %s4, 64
  %v3794 = vld [vmem:[%s3793] sm:$0xf]
  %v3795 = vld [vmem:[%s3793 + $0x4] sm:$0xf]
  %v3796 = vld [vmem:[%s3793 + $0x8] sm:$0xf]
  %v3797 = vld [vmem:[%s3793 + $0xc] sm:$0xf]
  %v3798 = vld [vmem:[%s3793 + $0x10] sm:$0xf]
  %v3799 = vld [vmem:[%s3793 + $0x14] sm:$0xf]
  %v3800 = vld [vmem:[%s3793 + $0x18] sm:$0xf]
  %v3801 = vld [vmem:[%s3793 + $0x1c] sm:$0xf]
  %v3802 = vpack.c.bf16 %v3778, %v3776
  %v3803 = vpack.c.bf16 %v3779, %v3777
  %3805 = vset.pattern.permute.xlu0 0
  %3806 = vperm.xlu0 %3805, %v3785
  %v3807 = vpop.permute.xlu0 %3806
  %3810 = vset.pattern.permute.xlu0 0
  %3811 = vperm.xlu0 %3810, %v3786
  %v3812 = vpop.permute.xlu0 %3811
  %3815 = vset.pattern.permute.xlu0 0
  %3816 = vperm.xlu0 %3815, %v3787
  %v3817 = vpop.permute.xlu0 %3816
  %3820 = vset.pattern.permute.xlu0 0
  %3821 = vperm.xlu0 %3820, %v3788
  %v3822 = vpop.permute.xlu0 %3821
  %3825 = vset.pattern.permute.xlu0 0
  %3826 = vperm.xlu0 %3825, %v3789
  %v3827 = vpop.permute.xlu0 %3826
  %3830 = vset.pattern.permute.xlu0 0
  %3831 = vperm.xlu0 %3830, %v3790
  %v3832 = vpop.permute.xlu0 %3831
  %3835 = vset.pattern.permute.xlu0 0
  %3836 = vperm.xlu0 %3835, %v3791
  %v3837 = vpop.permute.xlu0 %3836
  %3840 = vset.pattern.permute.xlu0 0
  %3841 = vperm.xlu0 %3840, %v3792
  %v3842 = vpop.permute.xlu0 %3841
  %v3852 = vunpack.c.l.b16 %v3794
  %v3853 = vunpack.c.l.b16 %v3795
  %v3854 = vunpack.c.l.b16 %v3796
  %v3855 = vunpack.c.l.b16 %v3797
  %v3856 = vunpack.c.l.b16 %v3798
  %v3857 = vunpack.c.l.b16 %v3799
  %v3858 = vunpack.c.l.b16 %v3800
  %v3859 = vunpack.c.l.b16 %v3801
  %v3860 = vpack.c.b16 %v3853, %v3852
  %v3861 = vpack.c.b16 %v3855, %v3854
  %v3862 = vpack.c.b16 %v3857, %v3856
  %v3863 = vpack.c.b16 %v3859, %v3858
  %v3865 = vsel %vm444, %v3860, 0
  %v3868 = vsel %vm444, %v3861, 0
  %v3871 = vsel %vm444, %v3862, 0
  %v3874 = vsel %vm444, %v3863, 0
  %3876 = vmatprep.subr.bf16.mxu0 0
  %3877 = vmatpush1.bf16.msra.mxu0 0
  %3878 = vmatprep.subr.bf16.mxu0 0
  %3879 = vmatpush1.bf16.msra.mxu0 0
  %3880 = vmatprep.subr.bf16.mxu0 0
  %3881 = vmatpush1.bf16.msra.mxu0 0
  %3882 = vmatprep.subr.bf16.mxu0 0
  %3883 = vmatpush1.bf16.msra.mxu0 0
  %3884 = vmatprep.subr.bf16.mxu0 0
  %3885 = vmatpush1.bf16.msra.mxu0 0
  %3886 = vmatprep.subr.bf16.mxu0 0
  %3887 = vmatpush1.bf16.msra.mxu0 0
  %3888 = vmatprep.subr.bf16.mxu0 0
  %3889 = vmatpush1.bf16.msra.mxu0 0
  %3890 = vmatprep.subr.bf16.mxu0 %v3803
  %3891 = vmatpush1.bf16.msra.mxu0 %v3802
  %3892 = vmatprep.subr.bf16.mxu0 0
  %3893 = vmatpush2.bf16.msra.mxu0 0
  %3894 = vmatprep.subr.bf16.mxu0 0
  %3895 = vmatpush2.bf16.msra.mxu0 0
  %3896 = vmatprep.subr.bf16.mxu0 0
  %3897 = vmatpush2.bf16.msra.mxu0 0
  %3898 = vmatprep.subr.bf16.mxu0 0
  %3899 = vmatpush2.bf16.msra.mxu0 0
  %3900 = vmatprep.subr.bf16.mxu0 0
  %3901 = vmatpush2.bf16.msra.mxu0 0
  %3902 = vmatprep.subr.bf16.mxu0 0
  %3903 = vmatpush2.bf16.msra.mxu0 0
  %3904 = vmatprep.subr.bf16.mxu0 0
  %3905 = vmatpush2.bf16.msra.mxu0 0
  %3906 = vmatprep.subr.bf16.mxu0 0
  %3907 = vmatpush2.bf16.msra.mxu0 0
  %3908 = vmatprep.mubr.bf16.mxu0 0
  %3909 = vmatmul.mubr.bf16.gmra.mxu0 %v3865
  %v3910 = vpop.f32.mrf.mxu0
  %v3911 = vadd.f32 %v3807, %v3910
  %v3912 = vpop.f32.mrf.mxu0
  %v3913 = vadd.f32 %v3807, %v3912
  %v3914 = vpop.f32.mrf.mxu0
  %v3915 = vadd.f32 %v3812, %v3914
  %v3916 = vpop.f32.mrf.mxu0
  %v3917 = vadd.f32 %v3812, %v3916
  %3918 = vmatprep.mubr.bf16.mxu0 0
  %3919 = vmatmul.mubr.bf16.gmra.mxu0 %v3868
  %v3920 = vpop.f32.mrf.mxu0
  %v3921 = vadd.f32 %v3817, %v3920
  %v3922 = vpop.f32.mrf.mxu0
  %v3923 = vadd.f32 %v3817, %v3922
  %v3924 = vpop.f32.mrf.mxu0
  %v3925 = vadd.f32 %v3822, %v3924
  %v3926 = vpop.f32.mrf.mxu0
  %v3927 = vadd.f32 %v3822, %v3926
  %3928 = vmatprep.mubr.bf16.mxu0 0
  %3929 = vmatmul.mubr.bf16.gmra.mxu0 %v3871
  %v3930 = vpop.f32.mrf.mxu0
  %v3931 = vadd.f32 %v3827, %v3930
  %v3932 = vpop.f32.mrf.mxu0
  %v3933 = vadd.f32 %v3827, %v3932
  %v3934 = vpop.f32.mrf.mxu0
  %v3935 = vadd.f32 %v3832, %v3934
  %v3936 = vpop.f32.mrf.mxu0
  %v3937 = vadd.f32 %v3832, %v3936
  %3938 = vmatprep.mubr.bf16.mxu0 0
  %3939 = vmatmul.mubr.bf16.gmra.mxu0 %v3874
  %v3940 = vpop.f32.mrf.mxu0
  %v3941 = vadd.f32 %v3837, %v3940
  %v3942 = vpop.f32.mrf.mxu0
  %v3943 = vadd.f32 %v3837, %v3942
  %v3944 = vpop.f32.mrf.mxu0
  %v3945 = vadd.f32 %v3842, %v3944
  %v3946 = vpop.f32.mrf.mxu0
  %v3947 = vadd.f32 %v3842, %v3946
  %3948 = vdwg.mxu0
  %vm3949 = vcmp.gt.f32.partialorder %v3911, 0.0
  %vm3950 = vcmp.gt.f32.partialorder %v3913, 0.0
  %vm3951 = vcmp.gt.f32.partialorder %v3915, 0.0
  %vm3952 = vcmp.gt.f32.partialorder %v3917, 0.0
  %vm3953 = vcmp.gt.f32.partialorder %v3921, 0.0
  %vm3954 = vcmp.gt.f32.partialorder %v3923, 0.0
  %vm3955 = vcmp.gt.f32.partialorder %v3925, 0.0
  %vm3956 = vcmp.gt.f32.partialorder %v3927, 0.0
  %vm3957 = vcmp.gt.f32.partialorder %v3931, 0.0
  %vm3958 = vcmp.gt.f32.partialorder %v3933, 0.0
  %vm3959 = vcmp.gt.f32.partialorder %v3935, 0.0
  %vm3960 = vcmp.gt.f32.partialorder %v3937, 0.0
  %vm3961 = vcmp.gt.f32.partialorder %v3941, 0.0
  %vm3962 = vcmp.gt.f32.partialorder %v3943, 0.0
  %vm3963 = vcmp.gt.f32.partialorder %v3945, 0.0
  %vm3964 = vcmp.gt.f32.partialorder %v3947, 0.0
  %3965 = vset.pattern.permute.xlu0 9
  %3966 = vperm.xlu0 %3965, %v3785
  %v3967 = vpop.permute.xlu0 %3966
  %3969 = vset.pattern.permute.xlu0 9
  %3970 = vperm.xlu0 %3969, %v3786
  %v3971 = vpop.permute.xlu0 %3970
  %3973 = vset.pattern.permute.xlu0 9
  %3974 = vperm.xlu0 %3973, %v3787
  %v3975 = vpop.permute.xlu0 %3974
  %3977 = vset.pattern.permute.xlu0 9
  %3978 = vperm.xlu0 %3977, %v3788
  %v3979 = vpop.permute.xlu0 %3978
  %3981 = vset.pattern.permute.xlu0 9
  %3982 = vperm.xlu0 %3981, %v3789
  %v3983 = vpop.permute.xlu0 %3982
  %3985 = vset.pattern.permute.xlu0 9
  %3986 = vperm.xlu0 %3985, %v3790
  %v3987 = vpop.permute.xlu0 %3986
  %3989 = vset.pattern.permute.xlu0 9
  %3990 = vperm.xlu0 %3989, %v3791
  %v3991 = vpop.permute.xlu0 %3990
  %3993 = vset.pattern.permute.xlu0 9
  %3994 = vperm.xlu0 %3993, %v3792
  %v3995 = vpop.permute.xlu0 %3994
  %v3997 = vmul.f32 %v3967, %v3911
  %v3998 = vmul.f32 %v3967, %v3913
  %v3999 = vmul.f32 %v3971, %v3915
  %v4000 = vmul.f32 %v3971, %v3917
  %v4001 = vmul.f32 %v3975, %v3921
  %v4002 = vmul.f32 %v3975, %v3923
  %v4003 = vmul.f32 %v3979, %v3925
  %v4004 = vmul.f32 %v3979, %v3927
  %v4005 = vmul.f32 %v3983, %v3931
  %v4006 = vmul.f32 %v3983, %v3933
  %v4007 = vmul.f32 %v3987, %v3935
  %v4008 = vmul.f32 %v3987, %v3937
  %v4009 = vmul.f32 %v3991, %v3941
  %v4010 = vmul.f32 %v3991, %v3943
  %v4011 = vmul.f32 %v3995, %v3945
  %v4012 = vmul.f32 %v3995, %v3947
  %v4013 = vsel %vm3949, %v3911, %v3997
  %v4014 = vsel %vm3950, %v3913, %v3998
  %v4015 = vsel %vm3951, %v3915, %v3999
  %v4016 = vsel %vm3952, %v3917, %v4000
  %v4017 = vsel %vm3953, %v3921, %v4001
  %v4018 = vsel %vm3954, %v3923, %v4002
  %v4019 = vsel %vm3955, %v3925, %v4003
  %v4020 = vsel %vm3956, %v3927, %v4004
  %v4021 = vsel %vm3957, %v3931, %v4005
  %v4022 = vsel %vm3958, %v3933, %v4006
  %v4023 = vsel %vm3959, %v3935, %v4007
  %v4024 = vsel %vm3960, %v3937, %v4008
  %v4025 = vsel %vm3961, %v3941, %v4009
  %v4026 = vsel %vm3962, %v3943, %v4010
  %v4027 = vsel %vm3963, %v3945, %v4011
  %v4028 = vsel %vm3964, %v3947, %v4012
  %v4029 = vmul.f32 %v4013, %v4013
  %v4030 = vmul.f32 %v4015, %v4015
  %v4031 = vmul.f32 %v4017, %v4017
  %v4032 = vmul.f32 %v4019, %v4019
  %v4033 = vmul.f32 %v4021, %v4021
  %v4034 = vmul.f32 %v4023, %v4023
  %v4035 = vmul.f32 %v4025, %v4025
  %v4036 = vmul.f32 %v4027, %v4027
  %4037 = vadd.xlane.f32.xlu0 %v4013
  %v4038 = vpop.xlane.xlu0 %4037
  %4039 = vadd.xlane.f32.xlu0 %v4015
  %v4040 = vpop.xlane.xlu0 %4039
  %4041 = vadd.xlane.f32.xlu0 %v4017
  %v4042 = vpop.xlane.xlu0 %4041
  %4043 = vadd.xlane.f32.xlu0 %v4019
  %v4044 = vpop.xlane.xlu0 %4043
  %4045 = vadd.xlane.f32.xlu0 %v4021
  %v4046 = vpop.xlane.xlu0 %4045
  %4047 = vadd.xlane.f32.xlu0 %v4023
  %v4048 = vpop.xlane.xlu0 %4047
  %4049 = vadd.xlane.f32.xlu0 %v4025
  %v4050 = vpop.xlane.xlu0 %4049
  %4051 = vadd.xlane.f32.xlu0 %v4027
  %v4052 = vpop.xlane.xlu0 %4051
  %4053 = vadd.xlane.f32.xlu0 %v4029
  %v4054 = vpop.xlane.xlu0 %4053
  %4055 = vadd.xlane.f32.xlu0 %v4030
  %v4056 = vpop.xlane.xlu0 %4055
  %4057 = vadd.xlane.f32.xlu0 %v4031
  %v4058 = vpop.xlane.xlu0 %4057
  %4059 = vadd.xlane.f32.xlu0 %v4032
  %v4060 = vpop.xlane.xlu0 %4059
  %4061 = vadd.xlane.f32.xlu0 %v4033
  %v4062 = vpop.xlane.xlu0 %4061
  %4063 = vadd.xlane.f32.xlu0 %v4034
  %v4064 = vpop.xlane.xlu0 %4063
  %4065 = vadd.xlane.f32.xlu0 %v4035
  %v4066 = vpop.xlane.xlu0 %4065
  %4067 = vadd.xlane.f32.xlu0 %v4036
  %v4068 = vpop.xlane.xlu0 %4067
  %v4069 = vadd.f32 %v4038, %v4040
  %v4070 = vadd.f32 %v4069, %v4042
  %v4071 = vadd.f32 %v4070, %v4044
  %v4072 = vadd.f32 %v4071, %v4046
  %v4073 = vadd.f32 %v4072, %v4048
  %v4074 = vadd.f32 %v4073, %v4050
  %v4075 = vadd.f32 %v4074, %v4052
  %v4076 = vrot.slane %v4075, 4
  %v4077 = vadd.f32 %v4075, %v4076
  %v4078 = vrot.slane %v4077, 2
  %v4079 = vadd.f32 %v4077, %v4078
  %v4080 = vrot.slane %v4079, 1
  %v4081 = vadd.f32 %v4079, %v4080
  %v4082 = vmul.f32 %v4081, 0.00012207031
  %v4083 = vadd.f32 %v4054, %v4056
  %v4084 = vadd.f32 %v4083, %v4058
  %v4085 = vadd.f32 %v4084, %v4060
  %v4086 = vadd.f32 %v4085, %v4062
  %v4087 = vadd.f32 %v4086, %v4064
  %v4088 = vadd.f32 %v4087, %v4066
  %v4089 = vadd.f32 %v4088, %v4068
  %v4090 = vrot.slane %v4089, 4
  %v4091 = vadd.f32 %v4089, %v4090
  %v4092 = vrot.slane %v4091, 2
  %v4093 = vadd.f32 %v4091, %v4092
  %v4094 = vrot.slane %v4093, 1
  %v4095 = vadd.f32 %v4093, %v4094
  %v4096 = vmul.f32 %v4095, 0.00012207031
  %v4097 = vmul.f32 %v4082, %v4082
  %v4098 = vsub.f32 %v4096, %v4097
  %v4099 = vmax.f32 %v4098, 0.0
  %v4100 = vadd.f32 %v4099, 1e-08
  %v4101 = vrsqrt.pop %v4100
  %v4102 = vmul.f32 %v3785, %v4101
  %v4103 = vmul.f32 %v3786, %v4101
  %v4104 = vmul.f32 %v3787, %v4101
  %v4105 = vmul.f32 %v3788, %v4101
  %v4106 = vmul.f32 %v3789, %v4101
  %v4107 = vmul.f32 %v3790, %v4101
  %v4108 = vmul.f32 %v3791, %v4101
  %v4109 = vmul.f32 %v3792, %v4101
  %v4110 = vmul.f32 %v4082, %v4102
  %v4111 = vmul.f32 %v4082, %v4103
  %v4112 = vmul.f32 %v4082, %v4104
  %v4113 = vmul.f32 %v4082, %v4105
  %v4114 = vmul.f32 %v4082, %v4106
  %v4115 = vmul.f32 %v4082, %v4107
  %v4116 = vmul.f32 %v4082, %v4108
  %v4117 = vmul.f32 %v4082, %v4109
  %4126 = vrot.lane.b32.xlu0 %v4110, 1
  %v4127 = vpop.permute.xlu0 %4126
  %4128 = vrot.lane.b32.xlu0 %v4111, 1
  %v4129 = vpop.permute.xlu0 %4128
  %4130 = vrot.lane.b32.xlu0 %v4112, 1
  %v4131 = vpop.permute.xlu0 %4130
  %4132 = vrot.lane.b32.xlu0 %v4113, 1
  %v4133 = vpop.permute.xlu0 %4132
  %4134 = vrot.lane.b32.xlu0 %v4114, 1
  %v4135 = vpop.permute.xlu0 %4134
  %4136 = vrot.lane.b32.xlu0 %v4115, 1
  %v4137 = vpop.permute.xlu0 %4136
  %4138 = vrot.lane.b32.xlu0 %v4116, 1
  %v4139 = vpop.permute.xlu0 %4138
  %4140 = vrot.lane.b32.xlu0 %v4117, 1
  %v4141 = vpop.permute.xlu0 %4140
  %v4150 = vsub.f32 %v3785, %v4127
  %v4151 = vsub.f32 %v3786, %v4129
  %v4152 = vsub.f32 %v3787, %v4131
  %v4153 = vsub.f32 %v3788, %v4133
  %v4154 = vsub.f32 %v3789, %v4135
  %v4155 = vsub.f32 %v3790, %v4137
  %v4156 = vsub.f32 %v3791, %v4139
  %v4157 = vsub.f32 %v3792, %v4141
  %4159 = vset.pattern.permute.xlu0 1
  %4160 = vperm.xlu0 %4159, %v4102
  %v4161 = vpop.permute.xlu0 %4160
  %4164 = vset.pattern.permute.xlu0 1
  %4165 = vperm.xlu0 %4164, %v4103
  %v4166 = vpop.permute.xlu0 %4165
  %4169 = vset.pattern.permute.xlu0 1
  %4170 = vperm.xlu0 %4169, %v4104
  %v4171 = vpop.permute.xlu0 %4170
  %4174 = vset.pattern.permute.xlu0 1
  %4175 = vperm.xlu0 %4174, %v4105
  %v4176 = vpop.permute.xlu0 %4175
  %4179 = vset.pattern.permute.xlu0 1
  %4180 = vperm.xlu0 %4179, %v4106
  %v4181 = vpop.permute.xlu0 %4180
  %4184 = vset.pattern.permute.xlu0 1
  %4185 = vperm.xlu0 %4184, %v4107
  %v4186 = vpop.permute.xlu0 %4185
  %4189 = vset.pattern.permute.xlu0 1
  %4190 = vperm.xlu0 %4189, %v4108
  %v4191 = vpop.permute.xlu0 %4190
  %4194 = vset.pattern.permute.xlu0 1
  %4195 = vperm.xlu0 %4194, %v4109
  %v4196 = vpop.permute.xlu0 %4195
  %v4198 = vmul.f32 %v4013, %v4161
  %v4199 = vmul.f32 %v4015, %v4166
  %v4200 = vmul.f32 %v4017, %v4171
  %v4201 = vmul.f32 %v4019, %v4176
  %v4202 = vmul.f32 %v4021, %v4181
  %v4203 = vmul.f32 %v4023, %v4186
  %v4204 = vmul.f32 %v4025, %v4191
  %v4205 = vmul.f32 %v4027, %v4196
  %4207 = vset.pattern.permute.xlu0 2
  %4208 = vperm.xlu0 %4207, %v4150
  %v4209 = vpop.permute.xlu0 %4208
  %4212 = vset.pattern.permute.xlu0 2
  %4213 = vperm.xlu0 %4212, %v4151
  %v4214 = vpop.permute.xlu0 %4213
  %4217 = vset.pattern.permute.xlu0 2
  %4218 = vperm.xlu0 %4217, %v4152
  %v4219 = vpop.permute.xlu0 %4218
  %4222 = vset.pattern.permute.xlu0 2
  %4223 = vperm.xlu0 %4222, %v4153
  %v4224 = vpop.permute.xlu0 %4223
  %4227 = vset.pattern.permute.xlu0 2
  %4228 = vperm.xlu0 %4227, %v4154
  %v4229 = vpop.permute.xlu0 %4228
  %4232 = vset.pattern.permute.xlu0 2
  %4233 = vperm.xlu0 %4232, %v4155
  %v4234 = vpop.permute.xlu0 %4233
  %4237 = vset.pattern.permute.xlu0 2
  %4238 = vperm.xlu0 %4237, %v4156
  %v4239 = vpop.permute.xlu0 %4238
  %4242 = vset.pattern.permute.xlu0 2
  %4243 = vperm.xlu0 %4242, %v4157
  %v4244 = vpop.permute.xlu0 %4243
  %v4246 = vadd.f32 %v4198, %v4209
  %v4247 = vadd.f32 %v4199, %v4214
  %v4248 = vadd.f32 %v4200, %v4219
  %v4249 = vadd.f32 %v4201, %v4224
  %v4250 = vadd.f32 %v4202, %v4229
  %v4251 = vadd.f32 %v4203, %v4234
  %v4252 = vadd.f32 %v4204, %v4239
  %v4253 = vadd.f32 %v4205, %v4244
  %v4254 = vmul.f32 %v4014, %v4014
  %v4255 = vmul.f32 %v4016, %v4016
  %v4256 = vmul.f32 %v4018, %v4018
  %v4257 = vmul.f32 %v4020, %v4020
  %v4258 = vmul.f32 %v4022, %v4022
  %v4259 = vmul.f32 %v4024, %v4024
  %v4260 = vmul.f32 %v4026, %v4026
  %v4261 = vmul.f32 %v4028, %v4028
  %4262 = vadd.xlane.f32.xlu0 %v4014
  %v4263 = vpop.xlane.xlu0 %4262
  %4264 = vadd.xlane.f32.xlu0 %v4016
  %v4265 = vpop.xlane.xlu0 %4264
  %4266 = vadd.xlane.f32.xlu0 %v4018
  %v4267 = vpop.xlane.xlu0 %4266
  %4268 = vadd.xlane.f32.xlu0 %v4020
  %v4269 = vpop.xlane.xlu0 %4268
  %4270 = vadd.xlane.f32.xlu0 %v4022
  %v4271 = vpop.xlane.xlu0 %4270
  %4272 = vadd.xlane.f32.xlu0 %v4024
  %v4273 = vpop.xlane.xlu0 %4272
  %4274 = vadd.xlane.f32.xlu0 %v4026
  %v4275 = vpop.xlane.xlu0 %4274
  %4276 = vadd.xlane.f32.xlu0 %v4028
  %v4277 = vpop.xlane.xlu0 %4276
  %4278 = vadd.xlane.f32.xlu0 %v4254
  %v4279 = vpop.xlane.xlu0 %4278
  %4280 = vadd.xlane.f32.xlu0 %v4255
  %v4281 = vpop.xlane.xlu0 %4280
  %4282 = vadd.xlane.f32.xlu0 %v4256
  %v4283 = vpop.xlane.xlu0 %4282
  %4284 = vadd.xlane.f32.xlu0 %v4257
  %v4285 = vpop.xlane.xlu0 %4284
  %4286 = vadd.xlane.f32.xlu0 %v4258
  %v4287 = vpop.xlane.xlu0 %4286
  %4288 = vadd.xlane.f32.xlu0 %v4259
  %v4289 = vpop.xlane.xlu0 %4288
  %4290 = vadd.xlane.f32.xlu0 %v4260
  %v4291 = vpop.xlane.xlu0 %4290
  %4292 = vadd.xlane.f32.xlu0 %v4261
  %v4293 = vpop.xlane.xlu0 %4292
  %v4294 = vadd.f32 %v4263, %v4265
  %v4295 = vadd.f32 %v4294, %v4267
  %v4296 = vadd.f32 %v4295, %v4269
  %v4297 = vadd.f32 %v4296, %v4271
  %v4298 = vadd.f32 %v4297, %v4273
  %v4299 = vadd.f32 %v4298, %v4275
  %v4300 = vadd.f32 %v4299, %v4277
  %v4301 = vrot.slane %v4300, 4
  %v4302 = vadd.f32 %v4300, %v4301
  %v4303 = vrot.slane %v4302, 2
  %v4304 = vadd.f32 %v4302, %v4303
  %v4305 = vrot.slane %v4304, 1
  %v4306 = vadd.f32 %v4304, %v4305
  %v4307 = vmul.f32 %v4306, 0.00012207031
  %v4308 = vadd.f32 %v4279, %v4281
  %v4309 = vadd.f32 %v4308, %v4283
  %v4310 = vadd.f32 %v4309, %v4285
  %v4311 = vadd.f32 %v4310, %v4287
  %v4312 = vadd.f32 %v4311, %v4289
  %v4313 = vadd.f32 %v4312, %v4291
  %v4314 = vadd.f32 %v4313, %v4293
  %v4315 = vrot.slane %v4314, 4
  %v4316 = vadd.f32 %v4314, %v4315
  %v4317 = vrot.slane %v4316, 2
  %v4318 = vadd.f32 %v4316, %v4317
  %v4319 = vrot.slane %v4318, 1
  %v4320 = vadd.f32 %v4318, %v4319
  %v4321 = vmul.f32 %v4320, 0.00012207031
  %v4322 = vmul.f32 %v4307, %v4307
  %v4323 = vsub.f32 %v4321, %v4322
  %v4324 = vmax.f32 %v4323, 0.0
  %v4325 = vadd.f32 %v4324, 1e-08
  %v4326 = vrsqrt.pop %v4325
  %v4327 = vmul.f32 %v3785, %v4326
  %v4328 = vmul.f32 %v3786, %v4326
  %v4329 = vmul.f32 %v3787, %v4326
  %v4330 = vmul.f32 %v3788, %v4326
  %v4331 = vmul.f32 %v3789, %v4326
  %v4332 = vmul.f32 %v3790, %v4326
  %v4333 = vmul.f32 %v3791, %v4326
  %v4334 = vmul.f32 %v3792, %v4326
  %v4335 = vmul.f32 %v4307, %v4327
  %v4336 = vmul.f32 %v4307, %v4328
  %v4337 = vmul.f32 %v4307, %v4329
  %v4338 = vmul.f32 %v4307, %v4330
  %v4339 = vmul.f32 %v4307, %v4331
  %v4340 = vmul.f32 %v4307, %v4332
  %v4341 = vmul.f32 %v4307, %v4333
  %v4342 = vmul.f32 %v4307, %v4334
  %4351 = vrot.lane.b32.xlu0 %v4335, 1
  %v4352 = vpop.permute.xlu0 %4351
  %4353 = vrot.lane.b32.xlu0 %v4336, 1
  %v4354 = vpop.permute.xlu0 %4353
  %4355 = vrot.lane.b32.xlu0 %v4337, 1
  %v4356 = vpop.permute.xlu0 %4355
  %4357 = vrot.lane.b32.xlu0 %v4338, 1
  %v4358 = vpop.permute.xlu0 %4357
  %4359 = vrot.lane.b32.xlu0 %v4339, 1
  %v4360 = vpop.permute.xlu0 %4359
  %4361 = vrot.lane.b32.xlu0 %v4340, 1
  %v4362 = vpop.permute.xlu0 %4361
  %4363 = vrot.lane.b32.xlu0 %v4341, 1
  %v4364 = vpop.permute.xlu0 %4363
  %4365 = vrot.lane.b32.xlu0 %v4342, 1
  %v4366 = vpop.permute.xlu0 %4365
  %v4375 = vsub.f32 %v3785, %v4352
  %v4376 = vsub.f32 %v3786, %v4354
  %v4377 = vsub.f32 %v3787, %v4356
  %v4378 = vsub.f32 %v3788, %v4358
  %v4379 = vsub.f32 %v3789, %v4360
  %v4380 = vsub.f32 %v3790, %v4362
  %v4381 = vsub.f32 %v3791, %v4364
  %v4382 = vsub.f32 %v3792, %v4366
  %4384 = vset.pattern.permute.xlu0 1
  %4385 = vperm.xlu0 %4384, %v4327
  %v4386 = vpop.permute.xlu0 %4385
  %4389 = vset.pattern.permute.xlu0 1
  %4390 = vperm.xlu0 %4389, %v4328
  %v4391 = vpop.permute.xlu0 %4390
  %4394 = vset.pattern.permute.xlu0 1
  %4395 = vperm.xlu0 %4394, %v4329
  %v4396 = vpop.permute.xlu0 %4395
  %4399 = vset.pattern.permute.xlu0 1
  %4400 = vperm.xlu0 %4399, %v4330
  %v4401 = vpop.permute.xlu0 %4400
  %4404 = vset.pattern.permute.xlu0 1
  %4405 = vperm.xlu0 %4404, %v4331
  %v4406 = vpop.permute.xlu0 %4405
  %4409 = vset.pattern.permute.xlu0 1
  %4410 = vperm.xlu0 %4409, %v4332
  %v4411 = vpop.permute.xlu0 %4410
  %4414 = vset.pattern.permute.xlu0 1
  %4415 = vperm.xlu0 %4414, %v4333
  %v4416 = vpop.permute.xlu0 %4415
  %4419 = vset.pattern.permute.xlu0 1
  %4420 = vperm.xlu0 %4419, %v4334
  %v4421 = vpop.permute.xlu0 %4420
  %v4423 = vmul.f32 %v4014, %v4386
  %v4424 = vmul.f32 %v4016, %v4391
  %v4425 = vmul.f32 %v4018, %v4396
  %v4426 = vmul.f32 %v4020, %v4401
  %v4427 = vmul.f32 %v4022, %v4406
  %v4428 = vmul.f32 %v4024, %v4411
  %v4429 = vmul.f32 %v4026, %v4416
  %v4430 = vmul.f32 %v4028, %v4421
  %4432 = vset.pattern.permute.xlu0 2
  %4433 = vperm.xlu0 %4432, %v4375
  %v4434 = vpop.permute.xlu0 %4433
  %4437 = vset.pattern.permute.xlu0 2
  %4438 = vperm.xlu0 %4437, %v4376
  %v4439 = vpop.permute.xlu0 %4438
  %4442 = vset.pattern.permute.xlu0 2
  %4443 = vperm.xlu0 %4442, %v4377
  %v4444 = vpop.permute.xlu0 %4443
  %4447 = vset.pattern.permute.xlu0 2
  %4448 = vperm.xlu0 %4447, %v4378
  %v4449 = vpop.permute.xlu0 %4448
  %4452 = vset.pattern.permute.xlu0 2
  %4453 = vperm.xlu0 %4452, %v4379
  %v4454 = vpop.permute.xlu0 %4453
  %4457 = vset.pattern.permute.xlu0 2
  %4458 = vperm.xlu0 %4457, %v4380
  %v4459 = vpop.permute.xlu0 %4458
  %4462 = vset.pattern.permute.xlu0 2
  %4463 = vperm.xlu0 %4462, %v4381
  %v4464 = vpop.permute.xlu0 %4463
  %4467 = vset.pattern.permute.xlu0 2
  %4468 = vperm.xlu0 %4467, %v4382
  %v4469 = vpop.permute.xlu0 %4468
  %v4471 = vadd.f32 %v4423, %v4434
  %v4472 = vadd.f32 %v4424, %v4439
  %v4473 = vadd.f32 %v4425, %v4444
  %v4474 = vadd.f32 %v4426, %v4449
  %v4475 = vadd.f32 %v4427, %v4454
  %v4476 = vadd.f32 %v4428, %v4459
  %v4477 = vadd.f32 %v4429, %v4464
  %v4478 = vadd.f32 %v4430, %v4469
  %4487 = vrot.lane.b32.xlu0 %v4246, 1
  %v4488 = vpop.permute.xlu0 %4487
  %4489 = vrot.lane.b32.xlu0 %v4247, 1
  %v4490 = vpop.permute.xlu0 %4489
  %4491 = vrot.lane.b32.xlu0 %v4248, 1
  %v4492 = vpop.permute.xlu0 %4491
  %4493 = vrot.lane.b32.xlu0 %v4249, 1
  %v4494 = vpop.permute.xlu0 %4493
  %4495 = vrot.lane.b32.xlu0 %v4250, 1
  %v4496 = vpop.permute.xlu0 %4495
  %4497 = vrot.lane.b32.xlu0 %v4251, 1
  %v4498 = vpop.permute.xlu0 %4497
  %4499 = vrot.lane.b32.xlu0 %v4252, 1
  %v4500 = vpop.permute.xlu0 %4499
  %4501 = vrot.lane.b32.xlu0 %v4253, 1
  %v4502 = vpop.permute.xlu0 %4501
  %4519 = vrot.lane.b32.xlu0 %v4471, 1
  %v4520 = vpop.permute.xlu0 %4519
  %4521 = vrot.lane.b32.xlu0 %v4472, 1
  %v4522 = vpop.permute.xlu0 %4521
  %4523 = vrot.lane.b32.xlu0 %v4473, 1
  %v4524 = vpop.permute.xlu0 %4523
  %4525 = vrot.lane.b32.xlu0 %v4474, 1
  %v4526 = vpop.permute.xlu0 %4525
  %4527 = vrot.lane.b32.xlu0 %v4475, 1
  %v4528 = vpop.permute.xlu0 %4527
  %4529 = vrot.lane.b32.xlu0 %v4476, 1
  %v4530 = vpop.permute.xlu0 %4529
  %4531 = vrot.lane.b32.xlu0 %v4477, 1
  %v4532 = vpop.permute.xlu0 %4531
  %4533 = vrot.lane.b32.xlu0 %v4478, 1
  %v4534 = vpop.permute.xlu0 %4533
  %v4543 = vsel %vm1124, 0.0, %v4488
  %v4544 = vsel %vm1124, 0.0, %v4490
  %v4545 = vsel %vm1124, 0.0, %v4492
  %v4546 = vsel %vm1124, 0.0, %v4494
  %v4547 = vsel %vm1124, 0.0, %v4496
  %v4548 = vsel %vm1124, 0.0, %v4498
  %v4549 = vsel %vm1124, 0.0, %v4500
  %v4550 = vsel %vm1124, 0.0, %v4502
  %v4551 = vsel %vm1124, 0.0, %v4520
  %v4552 = vsel %vm1124, 0.0, %v4522
  %v4553 = vsel %vm1124, 0.0, %v4524
  %v4554 = vsel %vm1124, 0.0, %v4526
  %v4555 = vsel %vm1124, 0.0, %v4528
  %v4556 = vsel %vm1124, 0.0, %v4530
  %v4557 = vsel %vm1124, 0.0, %v4532
  %v4558 = vsel %vm1124, 0.0, %v4534
  %4559 = vrot.lane.b32.xlu0 %v4246, 127
  %v4560 = vpop.permute.xlu0 %4559
  %4561 = vrot.lane.b32.xlu0 %v4247, 127
  %v4562 = vpop.permute.xlu0 %4561
  %4563 = vrot.lane.b32.xlu0 %v4248, 127
  %v4564 = vpop.permute.xlu0 %4563
  %4565 = vrot.lane.b32.xlu0 %v4249, 127
  %v4566 = vpop.permute.xlu0 %4565
  %4567 = vrot.lane.b32.xlu0 %v4250, 127
  %v4568 = vpop.permute.xlu0 %4567
  %4569 = vrot.lane.b32.xlu0 %v4251, 127
  %v4570 = vpop.permute.xlu0 %4569
  %4571 = vrot.lane.b32.xlu0 %v4252, 127
  %v4572 = vpop.permute.xlu0 %4571
  %4573 = vrot.lane.b32.xlu0 %v4253, 127
  %v4574 = vpop.permute.xlu0 %4573
  %4583 = vrot.lane.b32.xlu0 %v4471, 127
  %v4584 = vpop.permute.xlu0 %4583
  %4585 = vrot.lane.b32.xlu0 %v4472, 127
  %v4586 = vpop.permute.xlu0 %4585
  %4587 = vrot.lane.b32.xlu0 %v4473, 127
  %v4588 = vpop.permute.xlu0 %4587
  %4589 = vrot.lane.b32.xlu0 %v4474, 127
  %v4590 = vpop.permute.xlu0 %4589
  %4591 = vrot.lane.b32.xlu0 %v4475, 127
  %v4592 = vpop.permute.xlu0 %4591
  %4593 = vrot.lane.b32.xlu0 %v4476, 127
  %v4594 = vpop.permute.xlu0 %4593
  %4595 = vrot.lane.b32.xlu0 %v4477, 127
  %v4596 = vpop.permute.xlu0 %4595
  %4597 = vrot.lane.b32.xlu0 %v4478, 127
  %v4598 = vpop.permute.xlu0 %4597
  %v4607 = vsel %vm1189, %v4560, 0.0
  %v4608 = vsel %vm1189, %v4562, 0.0
  %v4609 = vsel %vm1189, %v4564, 0.0
  %v4610 = vsel %vm1189, %v4566, 0.0
  %v4611 = vsel %vm1189, %v4568, 0.0
  %v4612 = vsel %vm1189, %v4570, 0.0
  %v4613 = vsel %vm1189, %v4572, 0.0
  %v4614 = vsel %vm1189, %v4574, 0.0
  %v4615 = vsel %vm1189, %v4584, 0.0
  %v4616 = vsel %vm1189, %v4586, 0.0
  %v4617 = vsel %vm1189, %v4588, 0.0
  %v4618 = vsel %vm1189, %v4590, 0.0
  %v4619 = vsel %vm1189, %v4592, 0.0
  %v4620 = vsel %vm1189, %v4594, 0.0
  %v4621 = vsel %vm1189, %v4596, 0.0
  %v4622 = vsel %vm1189, %v4598, 0.0
  %4623 = vset.pattern.permute.xlu0 4
  %4624 = vperm.xlu0 %4623, %v3785
  %v4625 = vpop.permute.xlu0 %4624
  %4627 = vset.pattern.permute.xlu0 4
  %4628 = vperm.xlu0 %4627, %v3786
  %v4629 = vpop.permute.xlu0 %4628
  %4631 = vset.pattern.permute.xlu0 4
  %4632 = vperm.xlu0 %4631, %v3787
  %v4633 = vpop.permute.xlu0 %4632
  %4635 = vset.pattern.permute.xlu0 4
  %4636 = vperm.xlu0 %4635, %v3788
  %v4637 = vpop.permute.xlu0 %4636
  %4639 = vset.pattern.permute.xlu0 4
  %4640 = vperm.xlu0 %4639, %v3789
  %v4641 = vpop.permute.xlu0 %4640
  %4643 = vset.pattern.permute.xlu0 4
  %4644 = vperm.xlu0 %4643, %v3790
  %v4645 = vpop.permute.xlu0 %4644
  %4647 = vset.pattern.permute.xlu0 4
  %4648 = vperm.xlu0 %4647, %v3791
  %v4649 = vpop.permute.xlu0 %4648
  %4651 = vset.pattern.permute.xlu0 4
  %4652 = vperm.xlu0 %4651, %v3792
  %v4653 = vpop.permute.xlu0 %4652
  %v4655 = vmul.f32 %v4246, %v4625
  %v4656 = vmul.f32 %v4471, %v4625
  %v4657 = vmul.f32 %v4247, %v4629
  %v4658 = vmul.f32 %v4472, %v4629
  %v4659 = vmul.f32 %v4248, %v4633
  %v4660 = vmul.f32 %v4473, %v4633
  %v4661 = vmul.f32 %v4249, %v4637
  %v4662 = vmul.f32 %v4474, %v4637
  %v4663 = vmul.f32 %v4250, %v4641
  %v4664 = vmul.f32 %v4475, %v4641
  %v4665 = vmul.f32 %v4251, %v4645
  %v4666 = vmul.f32 %v4476, %v4645
  %v4667 = vmul.f32 %v4252, %v4649
  %v4668 = vmul.f32 %v4477, %v4649
  %v4669 = vmul.f32 %v4253, %v4653
  %v4670 = vmul.f32 %v4478, %v4653
  %4671 = vset.pattern.permute.xlu0 6
  %4672 = vperm.xlu0 %4671, %v3785
  %v4673 = vpop.permute.xlu0 %4672
  %4675 = vset.pattern.permute.xlu0 6
  %4676 = vperm.xlu0 %4675, %v3786
  %v4677 = vpop.permute.xlu0 %4676
  %4679 = vset.pattern.permute.xlu0 6
  %4680 = vperm.xlu0 %4679, %v3787
  %v4681 = vpop.permute.xlu0 %4680
  %4683 = vset.pattern.permute.xlu0 6
  %4684 = vperm.xlu0 %4683, %v3788
  %v4685 = vpop.permute.xlu0 %4684
  %4687 = vset.pattern.permute.xlu0 6
  %4688 = vperm.xlu0 %4687, %v3789
  %v4689 = vpop.permute.xlu0 %4688
  %4691 = vset.pattern.permute.xlu0 6
  %4692 = vperm.xlu0 %4691, %v3790
  %v4693 = vpop.permute.xlu0 %4692
  %4695 = vset.pattern.permute.xlu0 6
  %4696 = vperm.xlu0 %4695, %v3791
  %v4697 = vpop.permute.xlu0 %4696
  %4699 = vset.pattern.permute.xlu0 6
  %4700 = vperm.xlu0 %4699, %v3792
  %v4701 = vpop.permute.xlu0 %4700
  %v4703 = vadd.f32 %v4655, %v4673
  %v4704 = vadd.f32 %v4656, %v4673
  %v4705 = vadd.f32 %v4657, %v4677
  %v4706 = vadd.f32 %v4658, %v4677
  %v4707 = vadd.f32 %v4659, %v4681
  %v4708 = vadd.f32 %v4660, %v4681
  %v4709 = vadd.f32 %v4661, %v4685
  %v4710 = vadd.f32 %v4662, %v4685
  %v4711 = vadd.f32 %v4663, %v4689
  %v4712 = vadd.f32 %v4664, %v4689
  %v4713 = vadd.f32 %v4665, %v4693
  %v4714 = vadd.f32 %v4666, %v4693
  %v4715 = vadd.f32 %v4667, %v4697
  %v4716 = vadd.f32 %v4668, %v4697
  %v4717 = vadd.f32 %v4669, %v4701
  %v4718 = vadd.f32 %v4670, %v4701
  %4719 = vset.pattern.permute.xlu0 3
  %4720 = vperm.xlu0 %4719, %v3785
  %v4721 = vpop.permute.xlu0 %4720
  %4723 = vset.pattern.permute.xlu0 3
  %4724 = vperm.xlu0 %4723, %v3786
  %v4725 = vpop.permute.xlu0 %4724
  %4727 = vset.pattern.permute.xlu0 3
  %4728 = vperm.xlu0 %4727, %v3787
  %v4729 = vpop.permute.xlu0 %4728
  %4731 = vset.pattern.permute.xlu0 3
  %4732 = vperm.xlu0 %4731, %v3788
  %v4733 = vpop.permute.xlu0 %4732
  %4735 = vset.pattern.permute.xlu0 3
  %4736 = vperm.xlu0 %4735, %v3789
  %v4737 = vpop.permute.xlu0 %4736
  %4739 = vset.pattern.permute.xlu0 3
  %4740 = vperm.xlu0 %4739, %v3790
  %v4741 = vpop.permute.xlu0 %4740
  %4743 = vset.pattern.permute.xlu0 3
  %4744 = vperm.xlu0 %4743, %v3791
  %v4745 = vpop.permute.xlu0 %4744
  %4747 = vset.pattern.permute.xlu0 3
  %4748 = vperm.xlu0 %4747, %v3792
  %v4749 = vpop.permute.xlu0 %4748
  %v4751 = vmul.f32 %v4543, %v4721
  %v4752 = vmul.f32 %v4551, %v4721
  %v4753 = vmul.f32 %v4544, %v4725
  %v4754 = vmul.f32 %v4552, %v4725
  %v4755 = vmul.f32 %v4545, %v4729
  %v4756 = vmul.f32 %v4553, %v4729
  %v4757 = vmul.f32 %v4546, %v4733
  %v4758 = vmul.f32 %v4554, %v4733
  %v4759 = vmul.f32 %v4547, %v4737
  %v4760 = vmul.f32 %v4555, %v4737
  %v4761 = vmul.f32 %v4548, %v4741
  %v4762 = vmul.f32 %v4556, %v4741
  %v4763 = vmul.f32 %v4549, %v4745
  %v4764 = vmul.f32 %v4557, %v4745
  %v4765 = vmul.f32 %v4550, %v4749
  %v4766 = vmul.f32 %v4558, %v4749
  %v4767 = vadd.f32 %v4703, %v4751
  %v4768 = vadd.f32 %v4704, %v4752
  %v4769 = vadd.f32 %v4705, %v4753
  %v4770 = vadd.f32 %v4706, %v4754
  %v4771 = vadd.f32 %v4707, %v4755
  %v4772 = vadd.f32 %v4708, %v4756
  %v4773 = vadd.f32 %v4709, %v4757
  %v4774 = vadd.f32 %v4710, %v4758
  %v4775 = vadd.f32 %v4711, %v4759
  %v4776 = vadd.f32 %v4712, %v4760
  %v4777 = vadd.f32 %v4713, %v4761
  %v4778 = vadd.f32 %v4714, %v4762
  %v4779 = vadd.f32 %v4715, %v4763
  %v4780 = vadd.f32 %v4716, %v4764
  %v4781 = vadd.f32 %v4717, %v4765
  %v4782 = vadd.f32 %v4718, %v4766
  %4783 = vset.pattern.permute.xlu0 5
  %4784 = vperm.xlu0 %4783, %v3785
  %v4785 = vpop.permute.xlu0 %4784
  %4787 = vset.pattern.permute.xlu0 5
  %4788 = vperm.xlu0 %4787, %v3786
  %v4789 = vpop.permute.xlu0 %4788
  %4791 = vset.pattern.permute.xlu0 5
  %4792 = vperm.xlu0 %4791, %v3787
  %v4793 = vpop.permute.xlu0 %4792
  %4795 = vset.pattern.permute.xlu0 5
  %4796 = vperm.xlu0 %4795, %v3788
  %v4797 = vpop.permute.xlu0 %4796
  %4799 = vset.pattern.permute.xlu0 5
  %4800 = vperm.xlu0 %4799, %v3789
  %v4801 = vpop.permute.xlu0 %4800
  %4803 = vset.pattern.permute.xlu0 5
  %4804 = vperm.xlu0 %4803, %v3790
  %v4805 = vpop.permute.xlu0 %4804
  %4807 = vset.pattern.permute.xlu0 5
  %4808 = vperm.xlu0 %4807, %v3791
  %v4809 = vpop.permute.xlu0 %4808
  %4811 = vset.pattern.permute.xlu0 5
  %4812 = vperm.xlu0 %4811, %v3792
  %v4813 = vpop.permute.xlu0 %4812
  %v4815 = vmul.f32 %v4607, %v4785
  %v4816 = vmul.f32 %v4615, %v4785
  %v4817 = vmul.f32 %v4608, %v4789
  %v4818 = vmul.f32 %v4616, %v4789
  %v4819 = vmul.f32 %v4609, %v4793
  %v4820 = vmul.f32 %v4617, %v4793
  %v4821 = vmul.f32 %v4610, %v4797
  %v4822 = vmul.f32 %v4618, %v4797
  %v4823 = vmul.f32 %v4611, %v4801
  %v4824 = vmul.f32 %v4619, %v4801
  %v4825 = vmul.f32 %v4612, %v4805
  %v4826 = vmul.f32 %v4620, %v4805
  %v4827 = vmul.f32 %v4613, %v4809
  %v4828 = vmul.f32 %v4621, %v4809
  %v4829 = vmul.f32 %v4614, %v4813
  %v4830 = vmul.f32 %v4622, %v4813
  %v4831 = vadd.f32 %v4767, %v4815
  %v4832 = vadd.f32 %v4768, %v4816
  %v4833 = vadd.f32 %v4769, %v4817
  %v4834 = vadd.f32 %v4770, %v4818
  %v4835 = vadd.f32 %v4771, %v4819
  %v4836 = vadd.f32 %v4772, %v4820
  %v4837 = vadd.f32 %v4773, %v4821
  %v4838 = vadd.f32 %v4774, %v4822
  %v4839 = vadd.f32 %v4775, %v4823
  %v4840 = vadd.f32 %v4776, %v4824
  %v4841 = vadd.f32 %v4777, %v4825
  %v4842 = vadd.f32 %v4778, %v4826
  %v4843 = vadd.f32 %v4779, %v4827
  %v4844 = vadd.f32 %v4780, %v4828
  %v4845 = vadd.f32 %v4781, %v4829
  %v4846 = vadd.f32 %v4782, %v4830
  %vm4847 = vcmp.gt.f32.partialorder %v4831, 0.0
  %vm4848 = vcmp.gt.f32.partialorder %v4832, 0.0
  %vm4849 = vcmp.gt.f32.partialorder %v4833, 0.0
  %vm4850 = vcmp.gt.f32.partialorder %v4834, 0.0
  %vm4851 = vcmp.gt.f32.partialorder %v4835, 0.0
  %vm4852 = vcmp.gt.f32.partialorder %v4836, 0.0
  %vm4853 = vcmp.gt.f32.partialorder %v4837, 0.0
  %vm4854 = vcmp.gt.f32.partialorder %v4838, 0.0
  %vm4855 = vcmp.gt.f32.partialorder %v4839, 0.0
  %vm4856 = vcmp.gt.f32.partialorder %v4840, 0.0
  %vm4857 = vcmp.gt.f32.partialorder %v4841, 0.0
  %vm4858 = vcmp.gt.f32.partialorder %v4842, 0.0
  %vm4859 = vcmp.gt.f32.partialorder %v4843, 0.0
  %vm4860 = vcmp.gt.f32.partialorder %v4844, 0.0
  %vm4861 = vcmp.gt.f32.partialorder %v4845, 0.0
  %vm4862 = vcmp.gt.f32.partialorder %v4846, 0.0
  %4863 = vset.pattern.permute.xlu0 10
  %4864 = vperm.xlu0 %4863, %v3785
  %v4865 = vpop.permute.xlu0 %4864
  %4867 = vset.pattern.permute.xlu0 10
  %4868 = vperm.xlu0 %4867, %v3786
  %v4869 = vpop.permute.xlu0 %4868
  %4871 = vset.pattern.permute.xlu0 10
  %4872 = vperm.xlu0 %4871, %v3787
  %v4873 = vpop.permute.xlu0 %4872
  %4875 = vset.pattern.permute.xlu0 10
  %4876 = vperm.xlu0 %4875, %v3788
  %v4877 = vpop.permute.xlu0 %4876
  %4879 = vset.pattern.permute.xlu0 10
  %4880 = vperm.xlu0 %4879, %v3789
  %v4881 = vpop.permute.xlu0 %4880
  %4883 = vset.pattern.permute.xlu0 10
  %4884 = vperm.xlu0 %4883, %v3790
  %v4885 = vpop.permute.xlu0 %4884
  %4887 = vset.pattern.permute.xlu0 10
  %4888 = vperm.xlu0 %4887, %v3791
  %v4889 = vpop.permute.xlu0 %4888
  %4891 = vset.pattern.permute.xlu0 10
  %4892 = vperm.xlu0 %4891, %v3792
  %v4893 = vpop.permute.xlu0 %4892
  %v4895 = vmul.f32 %v4865, %v4831
  %v4896 = vmul.f32 %v4865, %v4832
  %v4897 = vmul.f32 %v4869, %v4833
  %v4898 = vmul.f32 %v4869, %v4834
  %v4899 = vmul.f32 %v4873, %v4835
  %v4900 = vmul.f32 %v4873, %v4836
  %v4901 = vmul.f32 %v4877, %v4837
  %v4902 = vmul.f32 %v4877, %v4838
  %v4903 = vmul.f32 %v4881, %v4839
  %v4904 = vmul.f32 %v4881, %v4840
  %v4905 = vmul.f32 %v4885, %v4841
  %v4906 = vmul.f32 %v4885, %v4842
  %v4907 = vmul.f32 %v4889, %v4843
  %v4908 = vmul.f32 %v4889, %v4844
  %v4909 = vmul.f32 %v4893, %v4845
  %v4910 = vmul.f32 %v4893, %v4846
  %v4911 = vsel %vm4847, %v4831, %v4895
  %v4912 = vsel %vm4848, %v4832, %v4896
  %v4913 = vsel %vm4849, %v4833, %v4897
  %v4914 = vsel %vm4850, %v4834, %v4898
  %v4915 = vsel %vm4851, %v4835, %v4899
  %v4916 = vsel %vm4852, %v4836, %v4900
  %v4917 = vsel %vm4853, %v4837, %v4901
  %v4918 = vsel %vm4854, %v4838, %v4902
  %v4919 = vsel %vm4855, %v4839, %v4903
  %v4920 = vsel %vm4856, %v4840, %v4904
  %v4921 = vsel %vm4857, %v4841, %v4905
  %v4922 = vsel %vm4858, %v4842, %v4906
  %v4923 = vsel %vm4859, %v4843, %v4907
  %v4924 = vsel %vm4860, %v4844, %v4908
  %v4925 = vsel %vm4861, %v4845, %v4909
  %v4926 = vsel %vm4862, %v4846, %v4910
  %v4927 = vmul.f32 %v4911, %v4911
  %v4928 = vmul.f32 %v4913, %v4913
  %v4929 = vmul.f32 %v4915, %v4915
  %v4930 = vmul.f32 %v4917, %v4917
  %v4931 = vmul.f32 %v4919, %v4919
  %v4932 = vmul.f32 %v4921, %v4921
  %v4933 = vmul.f32 %v4923, %v4923
  %v4934 = vmul.f32 %v4925, %v4925
  %4935 = vadd.xlane.f32.xlu0 %v4911
  %v4936 = vpop.xlane.xlu0 %4935
  %4937 = vadd.xlane.f32.xlu0 %v4913
  %v4938 = vpop.xlane.xlu0 %4937
  %4939 = vadd.xlane.f32.xlu0 %v4915
  %v4940 = vpop.xlane.xlu0 %4939
  %4941 = vadd.xlane.f32.xlu0 %v4917
  %v4942 = vpop.xlane.xlu0 %4941
  %4943 = vadd.xlane.f32.xlu0 %v4919
  %v4944 = vpop.xlane.xlu0 %4943
  %4945 = vadd.xlane.f32.xlu0 %v4921
  %v4946 = vpop.xlane.xlu0 %4945
  %4947 = vadd.xlane.f32.xlu0 %v4923
  %v4948 = vpop.xlane.xlu0 %4947
  %4949 = vadd.xlane.f32.xlu0 %v4925
  %v4950 = vpop.xlane.xlu0 %4949
  %4951 = vadd.xlane.f32.xlu0 %v4927
  %v4952 = vpop.xlane.xlu0 %4951
  %4953 = vadd.xlane.f32.xlu0 %v4928
  %v4954 = vpop.xlane.xlu0 %4953
  %4955 = vadd.xlane.f32.xlu0 %v4929
  %v4956 = vpop.xlane.xlu0 %4955
  %4957 = vadd.xlane.f32.xlu0 %v4930
  %v4958 = vpop.xlane.xlu0 %4957
  %4959 = vadd.xlane.f32.xlu0 %v4931
  %v4960 = vpop.xlane.xlu0 %4959
  %4961 = vadd.xlane.f32.xlu0 %v4932
  %v4962 = vpop.xlane.xlu0 %4961
  %4963 = vadd.xlane.f32.xlu0 %v4933
  %v4964 = vpop.xlane.xlu0 %4963
  %4965 = vadd.xlane.f32.xlu0 %v4934
  %v4966 = vpop.xlane.xlu0 %4965
  %v4967 = vadd.f32 %v4936, %v4938
  %v4968 = vadd.f32 %v4967, %v4940
  %v4969 = vadd.f32 %v4968, %v4942
  %v4970 = vadd.f32 %v4969, %v4944
  %v4971 = vadd.f32 %v4970, %v4946
  %v4972 = vadd.f32 %v4971, %v4948
  %v4973 = vadd.f32 %v4972, %v4950
  %v4974 = vrot.slane %v4973, 4
  %v4975 = vadd.f32 %v4973, %v4974
  %v4976 = vrot.slane %v4975, 2
  %v4977 = vadd.f32 %v4975, %v4976
  %v4978 = vrot.slane %v4977, 1
  %v4979 = vadd.f32 %v4977, %v4978
  %v4980 = vmul.f32 %v4979, 0.00012207031
  %v4981 = vadd.f32 %v4952, %v4954
  %v4982 = vadd.f32 %v4981, %v4956
  %v4983 = vadd.f32 %v4982, %v4958
  %v4984 = vadd.f32 %v4983, %v4960
  %v4985 = vadd.f32 %v4984, %v4962
  %v4986 = vadd.f32 %v4985, %v4964
  %v4987 = vadd.f32 %v4986, %v4966
  %v4988 = vrot.slane %v4987, 4
  %v4989 = vadd.f32 %v4987, %v4988
  %v4990 = vrot.slane %v4989, 2
  %v4991 = vadd.f32 %v4989, %v4990
  %v4992 = vrot.slane %v4991, 1
  %v4993 = vadd.f32 %v4991, %v4992
  %v4994 = vmul.f32 %v4993, 0.00012207031
  %v4995 = vmul.f32 %v4980, %v4980
  %v4996 = vsub.f32 %v4994, %v4995
  %v4997 = vmax.f32 %v4996, 0.0
  %v4998 = vadd.f32 %v4997, 1e-08
  %v4999 = vrsqrt.pop %v4998
  %v5000 = vmul.f32 %v3785, %v4999
  %v5001 = vmul.f32 %v3786, %v4999
  %v5002 = vmul.f32 %v3787, %v4999
  %v5003 = vmul.f32 %v3788, %v4999
  %v5004 = vmul.f32 %v3789, %v4999
  %v5005 = vmul.f32 %v3790, %v4999
  %v5006 = vmul.f32 %v3791, %v4999
  %v5007 = vmul.f32 %v3792, %v4999
  %v5008 = vmul.f32 %v4980, %v5000
  %v5009 = vmul.f32 %v4980, %v5001
  %v5010 = vmul.f32 %v4980, %v5002
  %v5011 = vmul.f32 %v4980, %v5003
  %v5012 = vmul.f32 %v4980, %v5004
  %v5013 = vmul.f32 %v4980, %v5005
  %v5014 = vmul.f32 %v4980, %v5006
  %v5015 = vmul.f32 %v4980, %v5007
  %5024 = vrot.lane.b32.xlu0 %v5008, 1
  %v5025 = vpop.permute.xlu0 %5024
  %5026 = vrot.lane.b32.xlu0 %v5009, 1
  %v5027 = vpop.permute.xlu0 %5026
  %5028 = vrot.lane.b32.xlu0 %v5010, 1
  %v5029 = vpop.permute.xlu0 %5028
  %5030 = vrot.lane.b32.xlu0 %v5011, 1
  %v5031 = vpop.permute.xlu0 %5030
  %5032 = vrot.lane.b32.xlu0 %v5012, 1
  %v5033 = vpop.permute.xlu0 %5032
  %5034 = vrot.lane.b32.xlu0 %v5013, 1
  %v5035 = vpop.permute.xlu0 %5034
  %5036 = vrot.lane.b32.xlu0 %v5014, 1
  %v5037 = vpop.permute.xlu0 %5036
  %5038 = vrot.lane.b32.xlu0 %v5015, 1
  %v5039 = vpop.permute.xlu0 %5038
  %v5048 = vsub.f32 %v3785, %v5025
  %v5049 = vsub.f32 %v3786, %v5027
  %v5050 = vsub.f32 %v3787, %v5029
  %v5051 = vsub.f32 %v3788, %v5031
  %v5052 = vsub.f32 %v3789, %v5033
  %v5053 = vsub.f32 %v3790, %v5035
  %v5054 = vsub.f32 %v3791, %v5037
  %v5055 = vsub.f32 %v3792, %v5039
  %5057 = vset.pattern.permute.xlu0 7
  %5058 = vperm.xlu0 %5057, %v5000
  %v5059 = vpop.permute.xlu0 %5058
  %5062 = vset.pattern.permute.xlu0 7
  %5063 = vperm.xlu0 %5062, %v5001
  %v5064 = vpop.permute.xlu0 %5063
  %5067 = vset.pattern.permute.xlu0 7
  %5068 = vperm.xlu0 %5067, %v5002
  %v5069 = vpop.permute.xlu0 %5068
  %5072 = vset.pattern.permute.xlu0 7
  %5073 = vperm.xlu0 %5072, %v5003
  %v5074 = vpop.permute.xlu0 %5073
  %5077 = vset.pattern.permute.xlu0 7
  %5078 = vperm.xlu0 %5077, %v5004
  %v5079 = vpop.permute.xlu0 %5078
  %5082 = vset.pattern.permute.xlu0 7
  %5083 = vperm.xlu0 %5082, %v5005
  %v5084 = vpop.permute.xlu0 %5083
  %5087 = vset.pattern.permute.xlu0 7
  %5088 = vperm.xlu0 %5087, %v5006
  %v5089 = vpop.permute.xlu0 %5088
  %5092 = vset.pattern.permute.xlu0 7
  %5093 = vperm.xlu0 %5092, %v5007
  %v5094 = vpop.permute.xlu0 %5093
  %v5096 = vmul.f32 %v4911, %v5059
  %v5097 = vmul.f32 %v4913, %v5064
  %v5098 = vmul.f32 %v4915, %v5069
  %v5099 = vmul.f32 %v4917, %v5074
  %v5100 = vmul.f32 %v4919, %v5079
  %v5101 = vmul.f32 %v4921, %v5084
  %v5102 = vmul.f32 %v4923, %v5089
  %v5103 = vmul.f32 %v4925, %v5094
  %5105 = vset.pattern.permute.xlu0 8
  %5106 = vperm.xlu0 %5105, %v5048
  %v5107 = vpop.permute.xlu0 %5106
  %5110 = vset.pattern.permute.xlu0 8
  %5111 = vperm.xlu0 %5110, %v5049
  %v5112 = vpop.permute.xlu0 %5111
  %5115 = vset.pattern.permute.xlu0 8
  %5116 = vperm.xlu0 %5115, %v5050
  %v5117 = vpop.permute.xlu0 %5116
  %5120 = vset.pattern.permute.xlu0 8
  %5121 = vperm.xlu0 %5120, %v5051
  %v5122 = vpop.permute.xlu0 %5121
  %5125 = vset.pattern.permute.xlu0 8
  %5126 = vperm.xlu0 %5125, %v5052
  %v5127 = vpop.permute.xlu0 %5126
  %5130 = vset.pattern.permute.xlu0 8
  %5131 = vperm.xlu0 %5130, %v5053
  %v5132 = vpop.permute.xlu0 %5131
  %5135 = vset.pattern.permute.xlu0 8
  %5136 = vperm.xlu0 %5135, %v5054
  %v5137 = vpop.permute.xlu0 %5136
  %5140 = vset.pattern.permute.xlu0 8
  %5141 = vperm.xlu0 %5140, %v5055
  %v5142 = vpop.permute.xlu0 %5141
  %v5144 = vadd.f32 %v5096, %v5107
  %v5145 = vadd.f32 %v5097, %v5112
  %v5146 = vadd.f32 %v5098, %v5117
  %v5147 = vadd.f32 %v5099, %v5122
  %v5148 = vadd.f32 %v5100, %v5127
  %v5149 = vadd.f32 %v5101, %v5132
  %v5150 = vadd.f32 %v5102, %v5137
  %v5151 = vadd.f32 %v5103, %v5142
  %v5152 = vmul.f32 %v4912, %v4912
  %v5153 = vmul.f32 %v4914, %v4914
  %v5154 = vmul.f32 %v4916, %v4916
  %v5155 = vmul.f32 %v4918, %v4918
  %v5156 = vmul.f32 %v4920, %v4920
  %v5157 = vmul.f32 %v4922, %v4922
  %v5158 = vmul.f32 %v4924, %v4924
  %v5159 = vmul.f32 %v4926, %v4926
  %5160 = vadd.xlane.f32.xlu0 %v4912
  %v5161 = vpop.xlane.xlu0 %5160
  %5162 = vadd.xlane.f32.xlu0 %v4914
  %v5163 = vpop.xlane.xlu0 %5162
  %5164 = vadd.xlane.f32.xlu0 %v4916
  %v5165 = vpop.xlane.xlu0 %5164
  %5166 = vadd.xlane.f32.xlu0 %v4918
  %v5167 = vpop.xlane.xlu0 %5166
  %5168 = vadd.xlane.f32.xlu0 %v4920
  %v5169 = vpop.xlane.xlu0 %5168
  %5170 = vadd.xlane.f32.xlu0 %v4922
  %v5171 = vpop.xlane.xlu0 %5170
  %5172 = vadd.xlane.f32.xlu0 %v4924
  %v5173 = vpop.xlane.xlu0 %5172
  %5174 = vadd.xlane.f32.xlu0 %v4926
  %v5175 = vpop.xlane.xlu0 %5174
  %5176 = vadd.xlane.f32.xlu0 %v5152
  %v5177 = vpop.xlane.xlu0 %5176
  %5178 = vadd.xlane.f32.xlu0 %v5153
  %v5179 = vpop.xlane.xlu0 %5178
  %5180 = vadd.xlane.f32.xlu0 %v5154
  %v5181 = vpop.xlane.xlu0 %5180
  %5182 = vadd.xlane.f32.xlu0 %v5155
  %v5183 = vpop.xlane.xlu0 %5182
  %5184 = vadd.xlane.f32.xlu0 %v5156
  %v5185 = vpop.xlane.xlu0 %5184
  %5186 = vadd.xlane.f32.xlu0 %v5157
  %v5187 = vpop.xlane.xlu0 %5186
  %5188 = vadd.xlane.f32.xlu0 %v5158
  %v5189 = vpop.xlane.xlu0 %5188
  %5190 = vadd.xlane.f32.xlu0 %v5159
  %v5191 = vpop.xlane.xlu0 %5190
  %v5192 = vadd.f32 %v5161, %v5163
  %v5193 = vadd.f32 %v5192, %v5165
  %v5194 = vadd.f32 %v5193, %v5167
  %v5195 = vadd.f32 %v5194, %v5169
  %v5196 = vadd.f32 %v5195, %v5171
  %v5197 = vadd.f32 %v5196, %v5173
  %v5198 = vadd.f32 %v5197, %v5175
  %v5199 = vrot.slane %v5198, 4
  %v5200 = vadd.f32 %v5198, %v5199
  %v5201 = vrot.slane %v5200, 2
  %v5202 = vadd.f32 %v5200, %v5201
  %v5203 = vrot.slane %v5202, 1
  %v5204 = vadd.f32 %v5202, %v5203
  %v5205 = vmul.f32 %v5204, 0.00012207031
  %v5206 = vadd.f32 %v5177, %v5179
  %v5207 = vadd.f32 %v5206, %v5181
  %v5208 = vadd.f32 %v5207, %v5183
  %v5209 = vadd.f32 %v5208, %v5185
  %v5210 = vadd.f32 %v5209, %v5187
  %v5211 = vadd.f32 %v5210, %v5189
  %v5212 = vadd.f32 %v5211, %v5191
  %v5213 = vrot.slane %v5212, 4
  %v5214 = vadd.f32 %v5212, %v5213
  %v5215 = vrot.slane %v5214, 2
  %v5216 = vadd.f32 %v5214, %v5215
  %v5217 = vrot.slane %v5216, 1
  %v5218 = vadd.f32 %v5216, %v5217
  %v5219 = vmul.f32 %v5218, 0.00012207031
  %v5220 = vmul.f32 %v5205, %v5205
  %v5221 = vsub.f32 %v5219, %v5220
  %v5222 = vmax.f32 %v5221, 0.0
  %v5223 = vadd.f32 %v5222, 1e-08
  %v5224 = vrsqrt.pop %v5223
  %v5225 = vmul.f32 %v3785, %v5224
  %v5226 = vmul.f32 %v3786, %v5224
  %v5227 = vmul.f32 %v3787, %v5224
  %v5228 = vmul.f32 %v3788, %v5224
  %v5229 = vmul.f32 %v3789, %v5224
  %v5230 = vmul.f32 %v3790, %v5224
  %v5231 = vmul.f32 %v3791, %v5224
  %v5232 = vmul.f32 %v3792, %v5224
  %v5233 = vmul.f32 %v5205, %v5225
  %v5234 = vmul.f32 %v5205, %v5226
  %v5235 = vmul.f32 %v5205, %v5227
  %v5236 = vmul.f32 %v5205, %v5228
  %v5237 = vmul.f32 %v5205, %v5229
  %v5238 = vmul.f32 %v5205, %v5230
  %v5239 = vmul.f32 %v5205, %v5231
  %v5240 = vmul.f32 %v5205, %v5232
  %5249 = vrot.lane.b32.xlu0 %v5233, 1
  %v5250 = vpop.permute.xlu0 %5249
  %5251 = vrot.lane.b32.xlu0 %v5234, 1
  %v5252 = vpop.permute.xlu0 %5251
  %5253 = vrot.lane.b32.xlu0 %v5235, 1
  %v5254 = vpop.permute.xlu0 %5253
  %5255 = vrot.lane.b32.xlu0 %v5236, 1
  %v5256 = vpop.permute.xlu0 %5255
  %5257 = vrot.lane.b32.xlu0 %v5237, 1
  %v5258 = vpop.permute.xlu0 %5257
  %5259 = vrot.lane.b32.xlu0 %v5238, 1
  %v5260 = vpop.permute.xlu0 %5259
  %5261 = vrot.lane.b32.xlu0 %v5239, 1
  %v5262 = vpop.permute.xlu0 %5261
  %5263 = vrot.lane.b32.xlu0 %v5240, 1
  %v5264 = vpop.permute.xlu0 %5263
  %v5273 = vsub.f32 %v3785, %v5250
  %v5274 = vsub.f32 %v3786, %v5252
  %v5275 = vsub.f32 %v3787, %v5254
  %v5276 = vsub.f32 %v3788, %v5256
  %v5277 = vsub.f32 %v3789, %v5258
  %v5278 = vsub.f32 %v3790, %v5260
  %v5279 = vsub.f32 %v3791, %v5262
  %v5280 = vsub.f32 %v3792, %v5264
  %5282 = vset.pattern.permute.xlu0 7
  %5283 = vperm.xlu0 %5282, %v5225
  %v5284 = vpop.permute.xlu0 %5283
  %5287 = vset.pattern.permute.xlu0 7
  %5288 = vperm.xlu0 %5287, %v5226
  %v5289 = vpop.permute.xlu0 %5288
  %5292 = vset.pattern.permute.xlu0 7
  %5293 = vperm.xlu0 %5292, %v5227
  %v5294 = vpop.permute.xlu0 %5293
  %5297 = vset.pattern.permute.xlu0 7
  %5298 = vperm.xlu0 %5297, %v5228
  %v5299 = vpop.permute.xlu0 %5298
  %5302 = vset.pattern.permute.xlu0 7
  %5303 = vperm.xlu0 %5302, %v5229
  %v5304 = vpop.permute.xlu0 %5303
  %5307 = vset.pattern.permute.xlu0 7
  %5308 = vperm.xlu0 %5307, %v5230
  %v5309 = vpop.permute.xlu0 %5308
  %5312 = vset.pattern.permute.xlu0 7
  %5313 = vperm.xlu0 %5312, %v5231
  %v5314 = vpop.permute.xlu0 %5313
  %5317 = vset.pattern.permute.xlu0 7
  %5318 = vperm.xlu0 %5317, %v5232
  %v5319 = vpop.permute.xlu0 %5318
  %v5321 = vmul.f32 %v4912, %v5284
  %v5322 = vmul.f32 %v4914, %v5289
  %v5323 = vmul.f32 %v4916, %v5294
  %v5324 = vmul.f32 %v4918, %v5299
  %v5325 = vmul.f32 %v4920, %v5304
  %v5326 = vmul.f32 %v4922, %v5309
  %v5327 = vmul.f32 %v4924, %v5314
  %v5328 = vmul.f32 %v4926, %v5319
  %5330 = vset.pattern.permute.xlu0 8
  %5331 = vperm.xlu0 %5330, %v5273
  %v5332 = vpop.permute.xlu0 %5331
  %5335 = vset.pattern.permute.xlu0 8
  %5336 = vperm.xlu0 %5335, %v5274
  %v5337 = vpop.permute.xlu0 %5336
  %5340 = vset.pattern.permute.xlu0 8
  %5341 = vperm.xlu0 %5340, %v5275
  %v5342 = vpop.permute.xlu0 %5341
  %5345 = vset.pattern.permute.xlu0 8
  %5346 = vperm.xlu0 %5345, %v5276
  %v5347 = vpop.permute.xlu0 %5346
  %5350 = vset.pattern.permute.xlu0 8
  %5351 = vperm.xlu0 %5350, %v5277
  %v5352 = vpop.permute.xlu0 %5351
  %5355 = vset.pattern.permute.xlu0 8
  %5356 = vperm.xlu0 %5355, %v5278
  %v5357 = vpop.permute.xlu0 %5356
  %5360 = vset.pattern.permute.xlu0 8
  %5361 = vperm.xlu0 %5360, %v5279
  %v5362 = vpop.permute.xlu0 %5361
  %5365 = vset.pattern.permute.xlu0 8
  %5366 = vperm.xlu0 %5365, %v5280
  %v5367 = vpop.permute.xlu0 %5366
  %v5369 = vadd.f32 %v5321, %v5332
  %v5370 = vadd.f32 %v5322, %v5337
  %v5371 = vadd.f32 %v5323, %v5342
  %v5372 = vadd.f32 %v5324, %v5347
  %v5373 = vadd.f32 %v5325, %v5352
  %v5374 = vadd.f32 %v5326, %v5357
  %v5375 = vadd.f32 %v5327, %v5362
  %v5376 = vadd.f32 %v5328, %v5367
  %s5377 = scalar_lea.vmem %s6, 32
  %v5378 = vld [vmem:[%s5377] sm:$0xf]
  %v5379 = vld [vmem:[%s5377 + $0x4] sm:$0xf]
  %v5380 = vld [vmem:[%s5377 + $0x8] sm:$0xf]
  %v5381 = vld [vmem:[%s5377 + $0xc] sm:$0xf]
  %v5382 = vpack.c.bf16 %v5145, %v5144
  %v5383 = vpack.c.bf16 %v5370, %v5369
  %v5384 = vpack.c.bf16 %v5147, %v5146
  %v5385 = vpack.c.bf16 %v5372, %v5371
  %v5386 = vpack.c.bf16 %v5149, %v5148
  %v5387 = vpack.c.bf16 %v5374, %v5373
  %v5388 = vpack.c.bf16 %v5151, %v5150
  %v5389 = vpack.c.bf16 %v5376, %v5375
  %s5390 = scalar_lea.vmem %s7, 64
  %v5391 = vld [vmem:[%s5390] sm:$0xff]
  %v5392 = vld [vmem:[%s5390 + $0x8] sm:$0xff]
  %v5393 = vld [vmem:[%s5390 + $0x10] sm:$0xff]
  %v5394 = vld [vmem:[%s5390 + $0x18] sm:$0xff]
  %5396 = vset.pattern.permute.xlu0 0
  %5397 = vperm.xlu0 %5396, %v5391
  %v5398 = vpop.permute.xlu0 %5397
  %5401 = vset.pattern.permute.xlu0 0
  %5402 = vperm.xlu0 %5401, %v5392
  %v5403 = vpop.permute.xlu0 %5402
  %5406 = vset.pattern.permute.xlu0 0
  %5407 = vperm.xlu0 %5406, %v5393
  %v5408 = vpop.permute.xlu0 %5407
  %5411 = vset.pattern.permute.xlu0 0
  %5412 = vperm.xlu0 %5411, %v5394
  %v5413 = vpop.permute.xlu0 %5412
  %v5419 = vunpack.c.l.b16 %v5378
  %v5420 = vunpack.c.l.b16 %v5379
  %v5421 = vunpack.c.l.b16 %v5380
  %v5422 = vunpack.c.l.b16 %v5381
  %v5423 = vpack.c.b16 %v5420, %v5419
  %v5424 = vpack.c.b16 %v5422, %v5421
  %v5426 = vsel %vm2006, %v5423, 0
  %v5429 = vsel %vm2006, %v5424, 0
  %5431 = vmatprep.subr.bf16.mxu0 0
  %5432 = vmatpush1.bf16.msra.mxu0 0
  %5433 = vmatprep.subr.bf16.mxu0 0
  %5434 = vmatpush1.bf16.msra.mxu0 0
  %5435 = vmatprep.subr.bf16.mxu0 0
  %5436 = vmatpush1.bf16.msra.mxu0 0
  %5437 = vmatprep.subr.bf16.mxu0 0
  %5438 = vmatpush1.bf16.msra.mxu0 0
  %5439 = vmatprep.subr.bf16.mxu0 %v5389
  %5440 = vmatpush1.bf16.msra.mxu0 %v5388
  %5441 = vmatprep.subr.bf16.mxu0 %v5387
  %5442 = vmatpush1.bf16.msra.mxu0 %v5386
  %5443 = vmatprep.subr.bf16.mxu0 %v5385
  %5444 = vmatpush1.bf16.msra.mxu0 %v5384
  %5445 = vmatprep.subr.bf16.mxu0 %v5383
  %5446 = vmatpush1.bf16.msra.mxu0 %v5382
  %5447 = vmatprep.subr.bf16.mxu0 0
  %5448 = vmatpush2.bf16.msra.mxu0 0
  %5449 = vmatprep.subr.bf16.mxu0 0
  %5450 = vmatpush2.bf16.msra.mxu0 0
  %5451 = vmatprep.subr.bf16.mxu0 0
  %5452 = vmatpush2.bf16.msra.mxu0 0
  %5453 = vmatprep.subr.bf16.mxu0 0
  %5454 = vmatpush2.bf16.msra.mxu0 0
  %5455 = vmatprep.subr.bf16.mxu0 0
  %5456 = vmatpush2.bf16.msra.mxu0 0
  %5457 = vmatprep.subr.bf16.mxu0 0
  %5458 = vmatpush2.bf16.msra.mxu0 0
  %5459 = vmatprep.subr.bf16.mxu0 0
  %5460 = vmatpush2.bf16.msra.mxu0 0
  %5461 = vmatprep.subr.bf16.mxu0 0
  %5462 = vmatpush2.bf16.msra.mxu0 0
  %5463 = vmatprep.mubr.bf16.mxu0 0
  %5464 = vmatmul.mubr.bf16.gmra.mxu0 %v5426
  %v5465 = vpop.f32.mrf.mxu0
  %v5466 = vadd.f32 %v5398, %v5465
  %v5467 = vpop.f32.mrf.mxu0
  %v5468 = vadd.f32 %v5398, %v5467
  %v5469 = vpop.f32.mrf.mxu0
  %v5470 = vadd.f32 %v5403, %v5469
  %v5471 = vpop.f32.mrf.mxu0
  %v5472 = vadd.f32 %v5403, %v5471
  %5473 = vmatprep.mubr.bf16.mxu0 0
  %5474 = vmatmul.mubr.bf16.gmra.mxu0 %v5429
  %v5475 = vpop.f32.mrf.mxu0
  %v5476 = vadd.f32 %v5408, %v5475
  %v5477 = vpop.f32.mrf.mxu0
  %v5478 = vadd.f32 %v5408, %v5477
  %v5479 = vpop.f32.mrf.mxu0
  %v5480 = vadd.f32 %v5413, %v5479
  %v5481 = vpop.f32.mrf.mxu0
  %v5482 = vadd.f32 %v5413, %v5481
  %5483 = vdwg.mxu0
  %v5484 = vadd.f32 %v3776, %v5466
  %v5485 = vadd.f32 %v3777, %v5468
  %v5486 = vadd.f32 %v3778, %v5470
  %v5487 = vadd.f32 %v3779, %v5472
  %v5488 = vadd.f32 %v3780, %v5476
  %v5489 = vadd.f32 %v3781, %v5478
  %v5490 = vadd.f32 %v3782, %v5480
  %v5491 = vadd.f32 %v3783, %v5482
  %s5492 = scalar_lea.vmem %s5, 192
  %v5493 = vld [vmem:[%s5492] sm:$0xff]
  %v5494 = vld [vmem:[%s5492 + $0x8] sm:$0xff]
  %v5495 = vld [vmem:[%s5492 + $0x10] sm:$0xff]
  %v5496 = vld [vmem:[%s5492 + $0x18] sm:$0xff]
  %v5497 = vld [vmem:[%s5492 + $0x20] sm:$0xff]
  %v5498 = vld [vmem:[%s5492 + $0x28] sm:$0xff]
  %v5499 = vld [vmem:[%s5492 + $0x30] sm:$0xff]
  %v5500 = vld [vmem:[%s5492 + $0x38] sm:$0xff]
  %s5501 = scalar_lea.vmem %s4, 96
  %v5502 = vld [vmem:[%s5501] sm:$0xf]
  %v5503 = vld [vmem:[%s5501 + $0x4] sm:$0xf]
  %v5504 = vld [vmem:[%s5501 + $0x8] sm:$0xf]
  %v5505 = vld [vmem:[%s5501 + $0xc] sm:$0xf]
  %v5506 = vld [vmem:[%s5501 + $0x10] sm:$0xf]
  %v5507 = vld [vmem:[%s5501 + $0x14] sm:$0xf]
  %v5508 = vld [vmem:[%s5501 + $0x18] sm:$0xf]
  %v5509 = vld [vmem:[%s5501 + $0x1c] sm:$0xf]
  %v5510 = vpack.c.bf16 %v5486, %v5484
  %v5511 = vpack.c.bf16 %v5487, %v5485
  %5513 = vset.pattern.permute.xlu0 0
  %5514 = vperm.xlu0 %5513, %v5493
  %v5515 = vpop.permute.xlu0 %5514
  %5518 = vset.pattern.permute.xlu0 0
  %5519 = vperm.xlu0 %5518, %v5494
  %v5520 = vpop.permute.xlu0 %5519
  %5523 = vset.pattern.permute.xlu0 0
  %5524 = vperm.xlu0 %5523, %v5495
  %v5525 = vpop.permute.xlu0 %5524
  %5528 = vset.pattern.permute.xlu0 0
  %5529 = vperm.xlu0 %5528, %v5496
  %v5530 = vpop.permute.xlu0 %5529
  %5533 = vset.pattern.permute.xlu0 0
  %5534 = vperm.xlu0 %5533, %v5497
  %v5535 = vpop.permute.xlu0 %5534
  %5538 = vset.pattern.permute.xlu0 0
  %5539 = vperm.xlu0 %5538, %v5498
  %v5540 = vpop.permute.xlu0 %5539
  %5543 = vset.pattern.permute.xlu0 0
  %5544 = vperm.xlu0 %5543, %v5499
  %v5545 = vpop.permute.xlu0 %5544
  %5548 = vset.pattern.permute.xlu0 0
  %5549 = vperm.xlu0 %5548, %v5500
  %v5550 = vpop.permute.xlu0 %5549
  %v5560 = vunpack.c.l.b16 %v5502
  %v5561 = vunpack.c.l.b16 %v5503
  %v5562 = vunpack.c.l.b16 %v5504
  %v5563 = vunpack.c.l.b16 %v5505
  %v5564 = vunpack.c.l.b16 %v5506
  %v5565 = vunpack.c.l.b16 %v5507
  %v5566 = vunpack.c.l.b16 %v5508
  %v5567 = vunpack.c.l.b16 %v5509
  %v5568 = vpack.c.b16 %v5561, %v5560
  %v5569 = vpack.c.b16 %v5563, %v5562
  %v5570 = vpack.c.b16 %v5565, %v5564
  %v5571 = vpack.c.b16 %v5567, %v5566
  %v5573 = vsel %vm444, %v5568, 0
  %v5576 = vsel %vm444, %v5569, 0
  %v5579 = vsel %vm444, %v5570, 0
  %v5582 = vsel %vm444, %v5571, 0
  %5584 = vmatprep.subr.bf16.mxu0 0
  %5585 = vmatpush1.bf16.msra.mxu0 0
  %5586 = vmatprep.subr.bf16.mxu0 0
  %5587 = vmatpush1.bf16.msra.mxu0 0
  %5588 = vmatprep.subr.bf16.mxu0 0
  %5589 = vmatpush1.bf16.msra.mxu0 0
  %5590 = vmatprep.subr.bf16.mxu0 0
  %5591 = vmatpush1.bf16.msra.mxu0 0
  %5592 = vmatprep.subr.bf16.mxu0 0
  %5593 = vmatpush1.bf16.msra.mxu0 0
  %5594 = vmatprep.subr.bf16.mxu0 0
  %5595 = vmatpush1.bf16.msra.mxu0 0
  %5596 = vmatprep.subr.bf16.mxu0 0
  %5597 = vmatpush1.bf16.msra.mxu0 0
  %5598 = vmatprep.subr.bf16.mxu0 %v5511
  %5599 = vmatpush1.bf16.msra.mxu0 %v5510
  %5600 = vmatprep.subr.bf16.mxu0 0
  %5601 = vmatpush2.bf16.msra.mxu0 0
  %5602 = vmatprep.subr.bf16.mxu0 0
  %5603 = vmatpush2.bf16.msra.mxu0 0
  %5604 = vmatprep.subr.bf16.mxu0 0
  %5605 = vmatpush2.bf16.msra.mxu0 0
  %5606 = vmatprep.subr.bf16.mxu0 0
  %5607 = vmatpush2.bf16.msra.mxu0 0
  %5608 = vmatprep.subr.bf16.mxu0 0
  %5609 = vmatpush2.bf16.msra.mxu0 0
  %5610 = vmatprep.subr.bf16.mxu0 0
  %5611 = vmatpush2.bf16.msra.mxu0 0
  %5612 = vmatprep.subr.bf16.mxu0 0
  %5613 = vmatpush2.bf16.msra.mxu0 0
  %5614 = vmatprep.subr.bf16.mxu0 0
  %5615 = vmatpush2.bf16.msra.mxu0 0
  %5616 = vmatprep.mubr.bf16.mxu0 0
  %5617 = vmatmul.mubr.bf16.gmra.mxu0 %v5573
  %v5618 = vpop.f32.mrf.mxu0
  %v5619 = vadd.f32 %v5515, %v5618
  %v5620 = vpop.f32.mrf.mxu0
  %v5621 = vadd.f32 %v5515, %v5620
  %v5622 = vpop.f32.mrf.mxu0
  %v5623 = vadd.f32 %v5520, %v5622
  %v5624 = vpop.f32.mrf.mxu0
  %v5625 = vadd.f32 %v5520, %v5624
  %5626 = vmatprep.mubr.bf16.mxu0 0
  %5627 = vmatmul.mubr.bf16.gmra.mxu0 %v5576
  %v5628 = vpop.f32.mrf.mxu0
  %v5629 = vadd.f32 %v5525, %v5628
  %v5630 = vpop.f32.mrf.mxu0
  %v5631 = vadd.f32 %v5525, %v5630
  %v5632 = vpop.f32.mrf.mxu0
  %v5633 = vadd.f32 %v5530, %v5632
  %v5634 = vpop.f32.mrf.mxu0
  %v5635 = vadd.f32 %v5530, %v5634
  %5636 = vmatprep.mubr.bf16.mxu0 0
  %5637 = vmatmul.mubr.bf16.gmra.mxu0 %v5579
  %v5638 = vpop.f32.mrf.mxu0
  %v5639 = vadd.f32 %v5535, %v5638
  %v5640 = vpop.f32.mrf.mxu0
  %v5641 = vadd.f32 %v5535, %v5640
  %v5642 = vpop.f32.mrf.mxu0
  %v5643 = vadd.f32 %v5540, %v5642
  %v5644 = vpop.f32.mrf.mxu0
  %v5645 = vadd.f32 %v5540, %v5644
  %5646 = vmatprep.mubr.bf16.mxu0 0
  %5647 = vmatmul.mubr.bf16.gmra.mxu0 %v5582
  %v5648 = vpop.f32.mrf.mxu0
  %v5649 = vadd.f32 %v5545, %v5648
  %v5650 = vpop.f32.mrf.mxu0
  %v5651 = vadd.f32 %v5545, %v5650
  %v5652 = vpop.f32.mrf.mxu0
  %v5653 = vadd.f32 %v5550, %v5652
  %v5654 = vpop.f32.mrf.mxu0
  %v5655 = vadd.f32 %v5550, %v5654
  %5656 = vdwg.mxu0
  %vm5657 = vcmp.gt.f32.partialorder %v5619, 0.0
  %vm5658 = vcmp.gt.f32.partialorder %v5621, 0.0
  %vm5659 = vcmp.gt.f32.partialorder %v5623, 0.0
  %vm5660 = vcmp.gt.f32.partialorder %v5625, 0.0
  %vm5661 = vcmp.gt.f32.partialorder %v5629, 0.0
  %vm5662 = vcmp.gt.f32.partialorder %v5631, 0.0
  %vm5663 = vcmp.gt.f32.partialorder %v5633, 0.0
  %vm5664 = vcmp.gt.f32.partialorder %v5635, 0.0
  %vm5665 = vcmp.gt.f32.partialorder %v5639, 0.0
  %vm5666 = vcmp.gt.f32.partialorder %v5641, 0.0
  %vm5667 = vcmp.gt.f32.partialorder %v5643, 0.0
  %vm5668 = vcmp.gt.f32.partialorder %v5645, 0.0
  %vm5669 = vcmp.gt.f32.partialorder %v5649, 0.0
  %vm5670 = vcmp.gt.f32.partialorder %v5651, 0.0
  %vm5671 = vcmp.gt.f32.partialorder %v5653, 0.0
  %vm5672 = vcmp.gt.f32.partialorder %v5655, 0.0
  %5673 = vset.pattern.permute.xlu0 9
  %5674 = vperm.xlu0 %5673, %v5493
  %v5675 = vpop.permute.xlu0 %5674
  %5677 = vset.pattern.permute.xlu0 9
  %5678 = vperm.xlu0 %5677, %v5494
  %v5679 = vpop.permute.xlu0 %5678
  %5681 = vset.pattern.permute.xlu0 9
  %5682 = vperm.xlu0 %5681, %v5495
  %v5683 = vpop.permute.xlu0 %5682
  %5685 = vset.pattern.permute.xlu0 9
  %5686 = vperm.xlu0 %5685, %v5496
  %v5687 = vpop.permute.xlu0 %5686
  %5689 = vset.pattern.permute.xlu0 9
  %5690 = vperm.xlu0 %5689, %v5497
  %v5691 = vpop.permute.xlu0 %5690
  %5693 = vset.pattern.permute.xlu0 9
  %5694 = vperm.xlu0 %5693, %v5498
  %v5695 = vpop.permute.xlu0 %5694
  %5697 = vset.pattern.permute.xlu0 9
  %5698 = vperm.xlu0 %5697, %v5499
  %v5699 = vpop.permute.xlu0 %5698
  %5701 = vset.pattern.permute.xlu0 9
  %5702 = vperm.xlu0 %5701, %v5500
  %v5703 = vpop.permute.xlu0 %5702
  %v5705 = vmul.f32 %v5675, %v5619
  %v5706 = vmul.f32 %v5675, %v5621
  %v5707 = vmul.f32 %v5679, %v5623
  %v5708 = vmul.f32 %v5679, %v5625
  %v5709 = vmul.f32 %v5683, %v5629
  %v5710 = vmul.f32 %v5683, %v5631
  %v5711 = vmul.f32 %v5687, %v5633
  %v5712 = vmul.f32 %v5687, %v5635
  %v5713 = vmul.f32 %v5691, %v5639
  %v5714 = vmul.f32 %v5691, %v5641
  %v5715 = vmul.f32 %v5695, %v5643
  %v5716 = vmul.f32 %v5695, %v5645
  %v5717 = vmul.f32 %v5699, %v5649
  %v5718 = vmul.f32 %v5699, %v5651
  %v5719 = vmul.f32 %v5703, %v5653
  %v5720 = vmul.f32 %v5703, %v5655
  %v5721 = vsel %vm5657, %v5619, %v5705
  %v5722 = vsel %vm5658, %v5621, %v5706
  %v5723 = vsel %vm5659, %v5623, %v5707
  %v5724 = vsel %vm5660, %v5625, %v5708
  %v5725 = vsel %vm5661, %v5629, %v5709
  %v5726 = vsel %vm5662, %v5631, %v5710
  %v5727 = vsel %vm5663, %v5633, %v5711
  %v5728 = vsel %vm5664, %v5635, %v5712
  %v5729 = vsel %vm5665, %v5639, %v5713
  %v5730 = vsel %vm5666, %v5641, %v5714
  %v5731 = vsel %vm5667, %v5643, %v5715
  %v5732 = vsel %vm5668, %v5645, %v5716
  %v5733 = vsel %vm5669, %v5649, %v5717
  %v5734 = vsel %vm5670, %v5651, %v5718
  %v5735 = vsel %vm5671, %v5653, %v5719
  %v5736 = vsel %vm5672, %v5655, %v5720
  %v5737 = vmul.f32 %v5721, %v5721
  %v5738 = vmul.f32 %v5723, %v5723
  %v5739 = vmul.f32 %v5725, %v5725
  %v5740 = vmul.f32 %v5727, %v5727
  %v5741 = vmul.f32 %v5729, %v5729
  %v5742 = vmul.f32 %v5731, %v5731
  %v5743 = vmul.f32 %v5733, %v5733
  %v5744 = vmul.f32 %v5735, %v5735
  %5745 = vadd.xlane.f32.xlu0 %v5721
  %v5746 = vpop.xlane.xlu0 %5745
  %5747 = vadd.xlane.f32.xlu0 %v5723
  %v5748 = vpop.xlane.xlu0 %5747
  %5749 = vadd.xlane.f32.xlu0 %v5725
  %v5750 = vpop.xlane.xlu0 %5749
  %5751 = vadd.xlane.f32.xlu0 %v5727
  %v5752 = vpop.xlane.xlu0 %5751
  %5753 = vadd.xlane.f32.xlu0 %v5729
  %v5754 = vpop.xlane.xlu0 %5753
  %5755 = vadd.xlane.f32.xlu0 %v5731
  %v5756 = vpop.xlane.xlu0 %5755
  %5757 = vadd.xlane.f32.xlu0 %v5733
  %v5758 = vpop.xlane.xlu0 %5757
  %5759 = vadd.xlane.f32.xlu0 %v5735
  %v5760 = vpop.xlane.xlu0 %5759
  %5761 = vadd.xlane.f32.xlu0 %v5737
  %v5762 = vpop.xlane.xlu0 %5761
  %5763 = vadd.xlane.f32.xlu0 %v5738
  %v5764 = vpop.xlane.xlu0 %5763
  %5765 = vadd.xlane.f32.xlu0 %v5739
  %v5766 = vpop.xlane.xlu0 %5765
  %5767 = vadd.xlane.f32.xlu0 %v5740
  %v5768 = vpop.xlane.xlu0 %5767
  %5769 = vadd.xlane.f32.xlu0 %v5741
  %v5770 = vpop.xlane.xlu0 %5769
  %5771 = vadd.xlane.f32.xlu0 %v5742
  %v5772 = vpop.xlane.xlu0 %5771
  %5773 = vadd.xlane.f32.xlu0 %v5743
  %v5774 = vpop.xlane.xlu0 %5773
  %5775 = vadd.xlane.f32.xlu0 %v5744
  %v5776 = vpop.xlane.xlu0 %5775
  %v5777 = vadd.f32 %v5746, %v5748
  %v5778 = vadd.f32 %v5777, %v5750
  %v5779 = vadd.f32 %v5778, %v5752
  %v5780 = vadd.f32 %v5779, %v5754
  %v5781 = vadd.f32 %v5780, %v5756
  %v5782 = vadd.f32 %v5781, %v5758
  %v5783 = vadd.f32 %v5782, %v5760
  %v5784 = vrot.slane %v5783, 4
  %v5785 = vadd.f32 %v5783, %v5784
  %v5786 = vrot.slane %v5785, 2
  %v5787 = vadd.f32 %v5785, %v5786
  %v5788 = vrot.slane %v5787, 1
  %v5789 = vadd.f32 %v5787, %v5788
  %v5790 = vmul.f32 %v5789, 0.00012207031
  %v5791 = vadd.f32 %v5762, %v5764
  %v5792 = vadd.f32 %v5791, %v5766
  %v5793 = vadd.f32 %v5792, %v5768
  %v5794 = vadd.f32 %v5793, %v5770
  %v5795 = vadd.f32 %v5794, %v5772
  %v5796 = vadd.f32 %v5795, %v5774
  %v5797 = vadd.f32 %v5796, %v5776
  %v5798 = vrot.slane %v5797, 4
  %v5799 = vadd.f32 %v5797, %v5798
  %v5800 = vrot.slane %v5799, 2
  %v5801 = vadd.f32 %v5799, %v5800
  %v5802 = vrot.slane %v5801, 1
  %v5803 = vadd.f32 %v5801, %v5802
  %v5804 = vmul.f32 %v5803, 0.00012207031
  %v5805 = vmul.f32 %v5790, %v5790
  %v5806 = vsub.f32 %v5804, %v5805
  %v5807 = vmax.f32 %v5806, 0.0
  %v5808 = vadd.f32 %v5807, 1e-08
  %v5809 = vrsqrt.pop %v5808
  %v5810 = vmul.f32 %v5493, %v5809
  %v5811 = vmul.f32 %v5494, %v5809
  %v5812 = vmul.f32 %v5495, %v5809
  %v5813 = vmul.f32 %v5496, %v5809
  %v5814 = vmul.f32 %v5497, %v5809
  %v5815 = vmul.f32 %v5498, %v5809
  %v5816 = vmul.f32 %v5499, %v5809
  %v5817 = vmul.f32 %v5500, %v5809
  %v5818 = vmul.f32 %v5790, %v5810
  %v5819 = vmul.f32 %v5790, %v5811
  %v5820 = vmul.f32 %v5790, %v5812
  %v5821 = vmul.f32 %v5790, %v5813
  %v5822 = vmul.f32 %v5790, %v5814
  %v5823 = vmul.f32 %v5790, %v5815
  %v5824 = vmul.f32 %v5790, %v5816
  %v5825 = vmul.f32 %v5790, %v5817
  %5834 = vrot.lane.b32.xlu0 %v5818, 1
  %v5835 = vpop.permute.xlu0 %5834
  %5836 = vrot.lane.b32.xlu0 %v5819, 1
  %v5837 = vpop.permute.xlu0 %5836
  %5838 = vrot.lane.b32.xlu0 %v5820, 1
  %v5839 = vpop.permute.xlu0 %5838
  %5840 = vrot.lane.b32.xlu0 %v5821, 1
  %v5841 = vpop.permute.xlu0 %5840
  %5842 = vrot.lane.b32.xlu0 %v5822, 1
  %v5843 = vpop.permute.xlu0 %5842
  %5844 = vrot.lane.b32.xlu0 %v5823, 1
  %v5845 = vpop.permute.xlu0 %5844
  %5846 = vrot.lane.b32.xlu0 %v5824, 1
  %v5847 = vpop.permute.xlu0 %5846
  %5848 = vrot.lane.b32.xlu0 %v5825, 1
  %v5849 = vpop.permute.xlu0 %5848
  %v5858 = vsub.f32 %v5493, %v5835
  %v5859 = vsub.f32 %v5494, %v5837
  %v5860 = vsub.f32 %v5495, %v5839
  %v5861 = vsub.f32 %v5496, %v5841
  %v5862 = vsub.f32 %v5497, %v5843
  %v5863 = vsub.f32 %v5498, %v5845
  %v5864 = vsub.f32 %v5499, %v5847
  %v5865 = vsub.f32 %v5500, %v5849
  %5867 = vset.pattern.permute.xlu0 1
  %5868 = vperm.xlu0 %5867, %v5810
  %v5869 = vpop.permute.xlu0 %5868
  %5872 = vset.pattern.permute.xlu0 1
  %5873 = vperm.xlu0 %5872, %v5811
  %v5874 = vpop.permute.xlu0 %5873
  %5877 = vset.pattern.permute.xlu0 1
  %5878 = vperm.xlu0 %5877, %v5812
  %v5879 = vpop.permute.xlu0 %5878
  %5882 = vset.pattern.permute.xlu0 1
  %5883 = vperm.xlu0 %5882, %v5813
  %v5884 = vpop.permute.xlu0 %5883
  %5887 = vset.pattern.permute.xlu0 1
  %5888 = vperm.xlu0 %5887, %v5814
  %v5889 = vpop.permute.xlu0 %5888
  %5892 = vset.pattern.permute.xlu0 1
  %5893 = vperm.xlu0 %5892, %v5815
  %v5894 = vpop.permute.xlu0 %5893
  %5897 = vset.pattern.permute.xlu0 1
  %5898 = vperm.xlu0 %5897, %v5816
  %v5899 = vpop.permute.xlu0 %5898
  %5902 = vset.pattern.permute.xlu0 1
  %5903 = vperm.xlu0 %5902, %v5817
  %v5904 = vpop.permute.xlu0 %5903
  %v5906 = vmul.f32 %v5721, %v5869
  %v5907 = vmul.f32 %v5723, %v5874
  %v5908 = vmul.f32 %v5725, %v5879
  %v5909 = vmul.f32 %v5727, %v5884
  %v5910 = vmul.f32 %v5729, %v5889
  %v5911 = vmul.f32 %v5731, %v5894
  %v5912 = vmul.f32 %v5733, %v5899
  %v5913 = vmul.f32 %v5735, %v5904
  %5915 = vset.pattern.permute.xlu0 2
  %5916 = vperm.xlu0 %5915, %v5858
  %v5917 = vpop.permute.xlu0 %5916
  %5920 = vset.pattern.permute.xlu0 2
  %5921 = vperm.xlu0 %5920, %v5859
  %v5922 = vpop.permute.xlu0 %5921
  %5925 = vset.pattern.permute.xlu0 2
  %5926 = vperm.xlu0 %5925, %v5860
  %v5927 = vpop.permute.xlu0 %5926
  %5930 = vset.pattern.permute.xlu0 2
  %5931 = vperm.xlu0 %5930, %v5861
  %v5932 = vpop.permute.xlu0 %5931
  %5935 = vset.pattern.permute.xlu0 2
  %5936 = vperm.xlu0 %5935, %v5862
  %v5937 = vpop.permute.xlu0 %5936
  %5940 = vset.pattern.permute.xlu0 2
  %5941 = vperm.xlu0 %5940, %v5863
  %v5942 = vpop.permute.xlu0 %5941
  %5945 = vset.pattern.permute.xlu0 2
  %5946 = vperm.xlu0 %5945, %v5864
  %v5947 = vpop.permute.xlu0 %5946
  %5950 = vset.pattern.permute.xlu0 2
  %5951 = vperm.xlu0 %5950, %v5865
  %v5952 = vpop.permute.xlu0 %5951
  %v5954 = vadd.f32 %v5906, %v5917
  %v5955 = vadd.f32 %v5907, %v5922
  %v5956 = vadd.f32 %v5908, %v5927
  %v5957 = vadd.f32 %v5909, %v5932
  %v5958 = vadd.f32 %v5910, %v5937
  %v5959 = vadd.f32 %v5911, %v5942
  %v5960 = vadd.f32 %v5912, %v5947
  %v5961 = vadd.f32 %v5913, %v5952
  %v5962 = vmul.f32 %v5722, %v5722
  %v5963 = vmul.f32 %v5724, %v5724
  %v5964 = vmul.f32 %v5726, %v5726
  %v5965 = vmul.f32 %v5728, %v5728
  %v5966 = vmul.f32 %v5730, %v5730
  %v5967 = vmul.f32 %v5732, %v5732
  %v5968 = vmul.f32 %v5734, %v5734
  %v5969 = vmul.f32 %v5736, %v5736
  %5970 = vadd.xlane.f32.xlu0 %v5722
  %v5971 = vpop.xlane.xlu0 %5970
  %5972 = vadd.xlane.f32.xlu0 %v5724
  %v5973 = vpop.xlane.xlu0 %5972
  %5974 = vadd.xlane.f32.xlu0 %v5726
  %v5975 = vpop.xlane.xlu0 %5974
  %5976 = vadd.xlane.f32.xlu0 %v5728
  %v5977 = vpop.xlane.xlu0 %5976
  %5978 = vadd.xlane.f32.xlu0 %v5730
  %v5979 = vpop.xlane.xlu0 %5978
  %5980 = vadd.xlane.f32.xlu0 %v5732
  %v5981 = vpop.xlane.xlu0 %5980
  %5982 = vadd.xlane.f32.xlu0 %v5734
  %v5983 = vpop.xlane.xlu0 %5982
  %5984 = vadd.xlane.f32.xlu0 %v5736
  %v5985 = vpop.xlane.xlu0 %5984
  %5986 = vadd.xlane.f32.xlu0 %v5962
  %v5987 = vpop.xlane.xlu0 %5986
  %5988 = vadd.xlane.f32.xlu0 %v5963
  %v5989 = vpop.xlane.xlu0 %5988
  %5990 = vadd.xlane.f32.xlu0 %v5964
  %v5991 = vpop.xlane.xlu0 %5990
  %5992 = vadd.xlane.f32.xlu0 %v5965
  %v5993 = vpop.xlane.xlu0 %5992
  %5994 = vadd.xlane.f32.xlu0 %v5966
  %v5995 = vpop.xlane.xlu0 %5994
  %5996 = vadd.xlane.f32.xlu0 %v5967
  %v5997 = vpop.xlane.xlu0 %5996
  %5998 = vadd.xlane.f32.xlu0 %v5968
  %v5999 = vpop.xlane.xlu0 %5998
  %6000 = vadd.xlane.f32.xlu0 %v5969
  %v6001 = vpop.xlane.xlu0 %6000
  %v6002 = vadd.f32 %v5971, %v5973
  %v6003 = vadd.f32 %v6002, %v5975
  %v6004 = vadd.f32 %v6003, %v5977
  %v6005 = vadd.f32 %v6004, %v5979
  %v6006 = vadd.f32 %v6005, %v5981
  %v6007 = vadd.f32 %v6006, %v5983
  %v6008 = vadd.f32 %v6007, %v5985
  %v6009 = vrot.slane %v6008, 4
  %v6010 = vadd.f32 %v6008, %v6009
  %v6011 = vrot.slane %v6010, 2
  %v6012 = vadd.f32 %v6010, %v6011
  %v6013 = vrot.slane %v6012, 1
  %v6014 = vadd.f32 %v6012, %v6013
  %v6015 = vmul.f32 %v6014, 0.00012207031
  %v6016 = vadd.f32 %v5987, %v5989
  %v6017 = vadd.f32 %v6016, %v5991
  %v6018 = vadd.f32 %v6017, %v5993
  %v6019 = vadd.f32 %v6018, %v5995
  %v6020 = vadd.f32 %v6019, %v5997
  %v6021 = vadd.f32 %v6020, %v5999
  %v6022 = vadd.f32 %v6021, %v6001
  %v6023 = vrot.slane %v6022, 4
  %v6024 = vadd.f32 %v6022, %v6023
  %v6025 = vrot.slane %v6024, 2
  %v6026 = vadd.f32 %v6024, %v6025
  %v6027 = vrot.slane %v6026, 1
  %v6028 = vadd.f32 %v6026, %v6027
  %v6029 = vmul.f32 %v6028, 0.00012207031
  %v6030 = vmul.f32 %v6015, %v6015
  %v6031 = vsub.f32 %v6029, %v6030
  %v6032 = vmax.f32 %v6031, 0.0
  %v6033 = vadd.f32 %v6032, 1e-08
  %v6034 = vrsqrt.pop %v6033
  %v6035 = vmul.f32 %v5493, %v6034
  %v6036 = vmul.f32 %v5494, %v6034
  %v6037 = vmul.f32 %v5495, %v6034
  %v6038 = vmul.f32 %v5496, %v6034
  %v6039 = vmul.f32 %v5497, %v6034
  %v6040 = vmul.f32 %v5498, %v6034
  %v6041 = vmul.f32 %v5499, %v6034
  %v6042 = vmul.f32 %v5500, %v6034
  %v6043 = vmul.f32 %v6015, %v6035
  %v6044 = vmul.f32 %v6015, %v6036
  %v6045 = vmul.f32 %v6015, %v6037
  %v6046 = vmul.f32 %v6015, %v6038
  %v6047 = vmul.f32 %v6015, %v6039
  %v6048 = vmul.f32 %v6015, %v6040
  %v6049 = vmul.f32 %v6015, %v6041
  %v6050 = vmul.f32 %v6015, %v6042
  %6059 = vrot.lane.b32.xlu0 %v6043, 1
  %v6060 = vpop.permute.xlu0 %6059
  %6061 = vrot.lane.b32.xlu0 %v6044, 1
  %v6062 = vpop.permute.xlu0 %6061
  %6063 = vrot.lane.b32.xlu0 %v6045, 1
  %v6064 = vpop.permute.xlu0 %6063
  %6065 = vrot.lane.b32.xlu0 %v6046, 1
  %v6066 = vpop.permute.xlu0 %6065
  %6067 = vrot.lane.b32.xlu0 %v6047, 1
  %v6068 = vpop.permute.xlu0 %6067
  %6069 = vrot.lane.b32.xlu0 %v6048, 1
  %v6070 = vpop.permute.xlu0 %6069
  %6071 = vrot.lane.b32.xlu0 %v6049, 1
  %v6072 = vpop.permute.xlu0 %6071
  %6073 = vrot.lane.b32.xlu0 %v6050, 1
  %v6074 = vpop.permute.xlu0 %6073
  %v6083 = vsub.f32 %v5493, %v6060
  %v6084 = vsub.f32 %v5494, %v6062
  %v6085 = vsub.f32 %v5495, %v6064
  %v6086 = vsub.f32 %v5496, %v6066
  %v6087 = vsub.f32 %v5497, %v6068
  %v6088 = vsub.f32 %v5498, %v6070
  %v6089 = vsub.f32 %v5499, %v6072
  %v6090 = vsub.f32 %v5500, %v6074
  %6092 = vset.pattern.permute.xlu0 1
  %6093 = vperm.xlu0 %6092, %v6035
  %v6094 = vpop.permute.xlu0 %6093
  %6097 = vset.pattern.permute.xlu0 1
  %6098 = vperm.xlu0 %6097, %v6036
  %v6099 = vpop.permute.xlu0 %6098
  %6102 = vset.pattern.permute.xlu0 1
  %6103 = vperm.xlu0 %6102, %v6037
  %v6104 = vpop.permute.xlu0 %6103
  %6107 = vset.pattern.permute.xlu0 1
  %6108 = vperm.xlu0 %6107, %v6038
  %v6109 = vpop.permute.xlu0 %6108
  %6112 = vset.pattern.permute.xlu0 1
  %6113 = vperm.xlu0 %6112, %v6039
  %v6114 = vpop.permute.xlu0 %6113
  %6117 = vset.pattern.permute.xlu0 1
  %6118 = vperm.xlu0 %6117, %v6040
  %v6119 = vpop.permute.xlu0 %6118
  %6122 = vset.pattern.permute.xlu0 1
  %6123 = vperm.xlu0 %6122, %v6041
  %v6124 = vpop.permute.xlu0 %6123
  %6127 = vset.pattern.permute.xlu0 1
  %6128 = vperm.xlu0 %6127, %v6042
  %v6129 = vpop.permute.xlu0 %6128
  %v6131 = vmul.f32 %v5722, %v6094
  %v6132 = vmul.f32 %v5724, %v6099
  %v6133 = vmul.f32 %v5726, %v6104
  %v6134 = vmul.f32 %v5728, %v6109
  %v6135 = vmul.f32 %v5730, %v6114
  %v6136 = vmul.f32 %v5732, %v6119
  %v6137 = vmul.f32 %v5734, %v6124
  %v6138 = vmul.f32 %v5736, %v6129
  %6140 = vset.pattern.permute.xlu0 2
  %6141 = vperm.xlu0 %6140, %v6083
  %v6142 = vpop.permute.xlu0 %6141
  %6145 = vset.pattern.permute.xlu0 2
  %6146 = vperm.xlu0 %6145, %v6084
  %v6147 = vpop.permute.xlu0 %6146
  %6150 = vset.pattern.permute.xlu0 2
  %6151 = vperm.xlu0 %6150, %v6085
  %v6152 = vpop.permute.xlu0 %6151
  %6155 = vset.pattern.permute.xlu0 2
  %6156 = vperm.xlu0 %6155, %v6086
  %v6157 = vpop.permute.xlu0 %6156
  %6160 = vset.pattern.permute.xlu0 2
  %6161 = vperm.xlu0 %6160, %v6087
  %v6162 = vpop.permute.xlu0 %6161
  %6165 = vset.pattern.permute.xlu0 2
  %6166 = vperm.xlu0 %6165, %v6088
  %v6167 = vpop.permute.xlu0 %6166
  %6170 = vset.pattern.permute.xlu0 2
  %6171 = vperm.xlu0 %6170, %v6089
  %v6172 = vpop.permute.xlu0 %6171
  %6175 = vset.pattern.permute.xlu0 2
  %6176 = vperm.xlu0 %6175, %v6090
  %v6177 = vpop.permute.xlu0 %6176
  %v6179 = vadd.f32 %v6131, %v6142
  %v6180 = vadd.f32 %v6132, %v6147
  %v6181 = vadd.f32 %v6133, %v6152
  %v6182 = vadd.f32 %v6134, %v6157
  %v6183 = vadd.f32 %v6135, %v6162
  %v6184 = vadd.f32 %v6136, %v6167
  %v6185 = vadd.f32 %v6137, %v6172
  %v6186 = vadd.f32 %v6138, %v6177
  %6195 = vrot.lane.b32.xlu0 %v5954, 2
  %v6196 = vpop.permute.xlu0 %6195
  %6197 = vrot.lane.b32.xlu0 %v5955, 2
  %v6198 = vpop.permute.xlu0 %6197
  %6199 = vrot.lane.b32.xlu0 %v5956, 2
  %v6200 = vpop.permute.xlu0 %6199
  %6201 = vrot.lane.b32.xlu0 %v5957, 2
  %v6202 = vpop.permute.xlu0 %6201
  %6203 = vrot.lane.b32.xlu0 %v5958, 2
  %v6204 = vpop.permute.xlu0 %6203
  %6205 = vrot.lane.b32.xlu0 %v5959, 2
  %v6206 = vpop.permute.xlu0 %6205
  %6207 = vrot.lane.b32.xlu0 %v5960, 2
  %v6208 = vpop.permute.xlu0 %6207
  %6209 = vrot.lane.b32.xlu0 %v5961, 2
  %v6210 = vpop.permute.xlu0 %6209
  %6227 = vrot.lane.b32.xlu0 %v6179, 2
  %v6228 = vpop.permute.xlu0 %6227
  %6229 = vrot.lane.b32.xlu0 %v6180, 2
  %v6230 = vpop.permute.xlu0 %6229
  %6231 = vrot.lane.b32.xlu0 %v6181, 2
  %v6232 = vpop.permute.xlu0 %6231
  %6233 = vrot.lane.b32.xlu0 %v6182, 2
  %v6234 = vpop.permute.xlu0 %6233
  %6235 = vrot.lane.b32.xlu0 %v6183, 2
  %v6236 = vpop.permute.xlu0 %6235
  %6237 = vrot.lane.b32.xlu0 %v6184, 2
  %v6238 = vpop.permute.xlu0 %6237
  %6239 = vrot.lane.b32.xlu0 %v6185, 2
  %v6240 = vpop.permute.xlu0 %6239
  %6241 = vrot.lane.b32.xlu0 %v6186, 2
  %v6242 = vpop.permute.xlu0 %6241
  %v6251 = vsel %vm2833, 0.0, %v6196
  %v6252 = vsel %vm2833, 0.0, %v6198
  %v6253 = vsel %vm2833, 0.0, %v6200
  %v6254 = vsel %vm2833, 0.0, %v6202
  %v6255 = vsel %vm2833, 0.0, %v6204
  %v6256 = vsel %vm2833, 0.0, %v6206
  %v6257 = vsel %vm2833, 0.0, %v6208
  %v6258 = vsel %vm2833, 0.0, %v6210
  %v6259 = vsel %vm2833, 0.0, %v6228
  %v6260 = vsel %vm2833, 0.0, %v6230
  %v6261 = vsel %vm2833, 0.0, %v6232
  %v6262 = vsel %vm2833, 0.0, %v6234
  %v6263 = vsel %vm2833, 0.0, %v6236
  %v6264 = vsel %vm2833, 0.0, %v6238
  %v6265 = vsel %vm2833, 0.0, %v6240
  %v6266 = vsel %vm2833, 0.0, %v6242
  %6267 = vrot.lane.b32.xlu0 %v5954, 126
  %v6268 = vpop.permute.xlu0 %6267
  %6269 = vrot.lane.b32.xlu0 %v5955, 126
  %v6270 = vpop.permute.xlu0 %6269
  %6271 = vrot.lane.b32.xlu0 %v5956, 126
  %v6272 = vpop.permute.xlu0 %6271
  %6273 = vrot.lane.b32.xlu0 %v5957, 126
  %v6274 = vpop.permute.xlu0 %6273
  %6275 = vrot.lane.b32.xlu0 %v5958, 126
  %v6276 = vpop.permute.xlu0 %6275
  %6277 = vrot.lane.b32.xlu0 %v5959, 126
  %v6278 = vpop.permute.xlu0 %6277
  %6279 = vrot.lane.b32.xlu0 %v5960, 126
  %v6280 = vpop.permute.xlu0 %6279
  %6281 = vrot.lane.b32.xlu0 %v5961, 126
  %v6282 = vpop.permute.xlu0 %6281
  %6291 = vrot.lane.b32.xlu0 %v6179, 126
  %v6292 = vpop.permute.xlu0 %6291
  %6293 = vrot.lane.b32.xlu0 %v6180, 126
  %v6294 = vpop.permute.xlu0 %6293
  %6295 = vrot.lane.b32.xlu0 %v6181, 126
  %v6296 = vpop.permute.xlu0 %6295
  %6297 = vrot.lane.b32.xlu0 %v6182, 126
  %v6298 = vpop.permute.xlu0 %6297
  %6299 = vrot.lane.b32.xlu0 %v6183, 126
  %v6300 = vpop.permute.xlu0 %6299
  %6301 = vrot.lane.b32.xlu0 %v6184, 126
  %v6302 = vpop.permute.xlu0 %6301
  %6303 = vrot.lane.b32.xlu0 %v6185, 126
  %v6304 = vpop.permute.xlu0 %6303
  %6305 = vrot.lane.b32.xlu0 %v6186, 126
  %v6306 = vpop.permute.xlu0 %6305
  %v6315 = vsel %vm2898, %v6268, 0.0
  %v6316 = vsel %vm2898, %v6270, 0.0
  %v6317 = vsel %vm2898, %v6272, 0.0
  %v6318 = vsel %vm2898, %v6274, 0.0
  %v6319 = vsel %vm2898, %v6276, 0.0
  %v6320 = vsel %vm2898, %v6278, 0.0
  %v6321 = vsel %vm2898, %v6280, 0.0
  %v6322 = vsel %vm2898, %v6282, 0.0
  %v6323 = vsel %vm2898, %v6292, 0.0
  %v6324 = vsel %vm2898, %v6294, 0.0
  %v6325 = vsel %vm2898, %v6296, 0.0
  %v6326 = vsel %vm2898, %v6298, 0.0
  %v6327 = vsel %vm2898, %v6300, 0.0
  %v6328 = vsel %vm2898, %v6302, 0.0
  %v6329 = vsel %vm2898, %v6304, 0.0
  %v6330 = vsel %vm2898, %v6306, 0.0
  %6331 = vset.pattern.permute.xlu0 4
  %6332 = vperm.xlu0 %6331, %v5493
  %v6333 = vpop.permute.xlu0 %6332
  %6335 = vset.pattern.permute.xlu0 4
  %6336 = vperm.xlu0 %6335, %v5494
  %v6337 = vpop.permute.xlu0 %6336
  %6339 = vset.pattern.permute.xlu0 4
  %6340 = vperm.xlu0 %6339, %v5495
  %v6341 = vpop.permute.xlu0 %6340
  %6343 = vset.pattern.permute.xlu0 4
  %6344 = vperm.xlu0 %6343, %v5496
  %v6345 = vpop.permute.xlu0 %6344
  %6347 = vset.pattern.permute.xlu0 4
  %6348 = vperm.xlu0 %6347, %v5497
  %v6349 = vpop.permute.xlu0 %6348
  %6351 = vset.pattern.permute.xlu0 4
  %6352 = vperm.xlu0 %6351, %v5498
  %v6353 = vpop.permute.xlu0 %6352
  %6355 = vset.pattern.permute.xlu0 4
  %6356 = vperm.xlu0 %6355, %v5499
  %v6357 = vpop.permute.xlu0 %6356
  %6359 = vset.pattern.permute.xlu0 4
  %6360 = vperm.xlu0 %6359, %v5500
  %v6361 = vpop.permute.xlu0 %6360
  %v6363 = vmul.f32 %v5954, %v6333
  %v6364 = vmul.f32 %v6179, %v6333
  %v6365 = vmul.f32 %v5955, %v6337
  %v6366 = vmul.f32 %v6180, %v6337
  %v6367 = vmul.f32 %v5956, %v6341
  %v6368 = vmul.f32 %v6181, %v6341
  %v6369 = vmul.f32 %v5957, %v6345
  %v6370 = vmul.f32 %v6182, %v6345
  %v6371 = vmul.f32 %v5958, %v6349
  %v6372 = vmul.f32 %v6183, %v6349
  %v6373 = vmul.f32 %v5959, %v6353
  %v6374 = vmul.f32 %v6184, %v6353
  %v6375 = vmul.f32 %v5960, %v6357
  %v6376 = vmul.f32 %v6185, %v6357
  %v6377 = vmul.f32 %v5961, %v6361
  %v6378 = vmul.f32 %v6186, %v6361
  %6379 = vset.pattern.permute.xlu0 6
  %6380 = vperm.xlu0 %6379, %v5493
  %v6381 = vpop.permute.xlu0 %6380
  %6383 = vset.pattern.permute.xlu0 6
  %6384 = vperm.xlu0 %6383, %v5494
  %v6385 = vpop.permute.xlu0 %6384
  %6387 = vset.pattern.permute.xlu0 6
  %6388 = vperm.xlu0 %6387, %v5495
  %v6389 = vpop.permute.xlu0 %6388
  %6391 = vset.pattern.permute.xlu0 6
  %6392 = vperm.xlu0 %6391, %v5496
  %v6393 = vpop.permute.xlu0 %6392
  %6395 = vset.pattern.permute.xlu0 6
  %6396 = vperm.xlu0 %6395, %v5497
  %v6397 = vpop.permute.xlu0 %6396
  %6399 = vset.pattern.permute.xlu0 6
  %6400 = vperm.xlu0 %6399, %v5498
  %v6401 = vpop.permute.xlu0 %6400
  %6403 = vset.pattern.permute.xlu0 6
  %6404 = vperm.xlu0 %6403, %v5499
  %v6405 = vpop.permute.xlu0 %6404
  %6407 = vset.pattern.permute.xlu0 6
  %6408 = vperm.xlu0 %6407, %v5500
  %v6409 = vpop.permute.xlu0 %6408
  %v6411 = vadd.f32 %v6363, %v6381
  %v6412 = vadd.f32 %v6364, %v6381
  %v6413 = vadd.f32 %v6365, %v6385
  %v6414 = vadd.f32 %v6366, %v6385
  %v6415 = vadd.f32 %v6367, %v6389
  %v6416 = vadd.f32 %v6368, %v6389
  %v6417 = vadd.f32 %v6369, %v6393
  %v6418 = vadd.f32 %v6370, %v6393
  %v6419 = vadd.f32 %v6371, %v6397
  %v6420 = vadd.f32 %v6372, %v6397
  %v6421 = vadd.f32 %v6373, %v6401
  %v6422 = vadd.f32 %v6374, %v6401
  %v6423 = vadd.f32 %v6375, %v6405
  %v6424 = vadd.f32 %v6376, %v6405
  %v6425 = vadd.f32 %v6377, %v6409
  %v6426 = vadd.f32 %v6378, %v6409
  %6427 = vset.pattern.permute.xlu0 3
  %6428 = vperm.xlu0 %6427, %v5493
  %v6429 = vpop.permute.xlu0 %6428
  %6431 = vset.pattern.permute.xlu0 3
  %6432 = vperm.xlu0 %6431, %v5494
  %v6433 = vpop.permute.xlu0 %6432
  %6435 = vset.pattern.permute.xlu0 3
  %6436 = vperm.xlu0 %6435, %v5495
  %v6437 = vpop.permute.xlu0 %6436
  %6439 = vset.pattern.permute.xlu0 3
  %6440 = vperm.xlu0 %6439, %v5496
  %v6441 = vpop.permute.xlu0 %6440
  %6443 = vset.pattern.permute.xlu0 3
  %6444 = vperm.xlu0 %6443, %v5497
  %v6445 = vpop.permute.xlu0 %6444
  %6447 = vset.pattern.permute.xlu0 3
  %6448 = vperm.xlu0 %6447, %v5498
  %v6449 = vpop.permute.xlu0 %6448
  %6451 = vset.pattern.permute.xlu0 3
  %6452 = vperm.xlu0 %6451, %v5499
  %v6453 = vpop.permute.xlu0 %6452
  %6455 = vset.pattern.permute.xlu0 3
  %6456 = vperm.xlu0 %6455, %v5500
  %v6457 = vpop.permute.xlu0 %6456
  %v6459 = vmul.f32 %v6251, %v6429
  %v6460 = vmul.f32 %v6259, %v6429
  %v6461 = vmul.f32 %v6252, %v6433
  %v6462 = vmul.f32 %v6260, %v6433
  %v6463 = vmul.f32 %v6253, %v6437
  %v6464 = vmul.f32 %v6261, %v6437
  %v6465 = vmul.f32 %v6254, %v6441
  %v6466 = vmul.f32 %v6262, %v6441
  %v6467 = vmul.f32 %v6255, %v6445
  %v6468 = vmul.f32 %v6263, %v6445
  %v6469 = vmul.f32 %v6256, %v6449
  %v6470 = vmul.f32 %v6264, %v6449
  %v6471 = vmul.f32 %v6257, %v6453
  %v6472 = vmul.f32 %v6265, %v6453
  %v6473 = vmul.f32 %v6258, %v6457
  %v6474 = vmul.f32 %v6266, %v6457
  %v6475 = vadd.f32 %v6411, %v6459
  %v6476 = vadd.f32 %v6412, %v6460
  %v6477 = vadd.f32 %v6413, %v6461
  %v6478 = vadd.f32 %v6414, %v6462
  %v6479 = vadd.f32 %v6415, %v6463
  %v6480 = vadd.f32 %v6416, %v6464
  %v6481 = vadd.f32 %v6417, %v6465
  %v6482 = vadd.f32 %v6418, %v6466
  %v6483 = vadd.f32 %v6419, %v6467
  %v6484 = vadd.f32 %v6420, %v6468
  %v6485 = vadd.f32 %v6421, %v6469
  %v6486 = vadd.f32 %v6422, %v6470
  %v6487 = vadd.f32 %v6423, %v6471
  %v6488 = vadd.f32 %v6424, %v6472
  %v6489 = vadd.f32 %v6425, %v6473
  %v6490 = vadd.f32 %v6426, %v6474
  %6491 = vset.pattern.permute.xlu0 5
  %6492 = vperm.xlu0 %6491, %v5493
  %v6493 = vpop.permute.xlu0 %6492
  %6495 = vset.pattern.permute.xlu0 5
  %6496 = vperm.xlu0 %6495, %v5494
  %v6497 = vpop.permute.xlu0 %6496
  %6499 = vset.pattern.permute.xlu0 5
  %6500 = vperm.xlu0 %6499, %v5495
  %v6501 = vpop.permute.xlu0 %6500
  %6503 = vset.pattern.permute.xlu0 5
  %6504 = vperm.xlu0 %6503, %v5496
  %v6505 = vpop.permute.xlu0 %6504
  %6507 = vset.pattern.permute.xlu0 5
  %6508 = vperm.xlu0 %6507, %v5497
  %v6509 = vpop.permute.xlu0 %6508
  %6511 = vset.pattern.permute.xlu0 5
  %6512 = vperm.xlu0 %6511, %v5498
  %v6513 = vpop.permute.xlu0 %6512
  %6515 = vset.pattern.permute.xlu0 5
  %6516 = vperm.xlu0 %6515, %v5499
  %v6517 = vpop.permute.xlu0 %6516
  %6519 = vset.pattern.permute.xlu0 5
  %6520 = vperm.xlu0 %6519, %v5500
  %v6521 = vpop.permute.xlu0 %6520
  %v6523 = vmul.f32 %v6315, %v6493
  %v6524 = vmul.f32 %v6323, %v6493
  %v6525 = vmul.f32 %v6316, %v6497
  %v6526 = vmul.f32 %v6324, %v6497
  %v6527 = vmul.f32 %v6317, %v6501
  %v6528 = vmul.f32 %v6325, %v6501
  %v6529 = vmul.f32 %v6318, %v6505
  %v6530 = vmul.f32 %v6326, %v6505
  %v6531 = vmul.f32 %v6319, %v6509
  %v6532 = vmul.f32 %v6327, %v6509
  %v6533 = vmul.f32 %v6320, %v6513
  %v6534 = vmul.f32 %v6328, %v6513
  %v6535 = vmul.f32 %v6321, %v6517
  %v6536 = vmul.f32 %v6329, %v6517
  %v6537 = vmul.f32 %v6322, %v6521
  %v6538 = vmul.f32 %v6330, %v6521
  %v6539 = vadd.f32 %v6475, %v6523
  %v6540 = vadd.f32 %v6476, %v6524
  %v6541 = vadd.f32 %v6477, %v6525
  %v6542 = vadd.f32 %v6478, %v6526
  %v6543 = vadd.f32 %v6479, %v6527
  %v6544 = vadd.f32 %v6480, %v6528
  %v6545 = vadd.f32 %v6481, %v6529
  %v6546 = vadd.f32 %v6482, %v6530
  %v6547 = vadd.f32 %v6483, %v6531
  %v6548 = vadd.f32 %v6484, %v6532
  %v6549 = vadd.f32 %v6485, %v6533
  %v6550 = vadd.f32 %v6486, %v6534
  %v6551 = vadd.f32 %v6487, %v6535
  %v6552 = vadd.f32 %v6488, %v6536
  %v6553 = vadd.f32 %v6489, %v6537
  %v6554 = vadd.f32 %v6490, %v6538
  %vm6555 = vcmp.gt.f32.partialorder %v6539, 0.0
  %vm6556 = vcmp.gt.f32.partialorder %v6540, 0.0
  %vm6557 = vcmp.gt.f32.partialorder %v6541, 0.0
  %vm6558 = vcmp.gt.f32.partialorder %v6542, 0.0
  %vm6559 = vcmp.gt.f32.partialorder %v6543, 0.0
  %vm6560 = vcmp.gt.f32.partialorder %v6544, 0.0
  %vm6561 = vcmp.gt.f32.partialorder %v6545, 0.0
  %vm6562 = vcmp.gt.f32.partialorder %v6546, 0.0
  %vm6563 = vcmp.gt.f32.partialorder %v6547, 0.0
  %vm6564 = vcmp.gt.f32.partialorder %v6548, 0.0
  %vm6565 = vcmp.gt.f32.partialorder %v6549, 0.0
  %vm6566 = vcmp.gt.f32.partialorder %v6550, 0.0
  %vm6567 = vcmp.gt.f32.partialorder %v6551, 0.0
  %vm6568 = vcmp.gt.f32.partialorder %v6552, 0.0
  %vm6569 = vcmp.gt.f32.partialorder %v6553, 0.0
  %vm6570 = vcmp.gt.f32.partialorder %v6554, 0.0
  %6571 = vset.pattern.permute.xlu0 10
  %6572 = vperm.xlu0 %6571, %v5493
  %v6573 = vpop.permute.xlu0 %6572
  %6575 = vset.pattern.permute.xlu0 10
  %6576 = vperm.xlu0 %6575, %v5494
  %v6577 = vpop.permute.xlu0 %6576
  %6579 = vset.pattern.permute.xlu0 10
  %6580 = vperm.xlu0 %6579, %v5495
  %v6581 = vpop.permute.xlu0 %6580
  %6583 = vset.pattern.permute.xlu0 10
  %6584 = vperm.xlu0 %6583, %v5496
  %v6585 = vpop.permute.xlu0 %6584
  %6587 = vset.pattern.permute.xlu0 10
  %6588 = vperm.xlu0 %6587, %v5497
  %v6589 = vpop.permute.xlu0 %6588
  %6591 = vset.pattern.permute.xlu0 10
  %6592 = vperm.xlu0 %6591, %v5498
  %v6593 = vpop.permute.xlu0 %6592
  %6595 = vset.pattern.permute.xlu0 10
  %6596 = vperm.xlu0 %6595, %v5499
  %v6597 = vpop.permute.xlu0 %6596
  %6599 = vset.pattern.permute.xlu0 10
  %6600 = vperm.xlu0 %6599, %v5500
  %v6601 = vpop.permute.xlu0 %6600
  %v6603 = vmul.f32 %v6573, %v6539
  %v6604 = vmul.f32 %v6573, %v6540
  %v6605 = vmul.f32 %v6577, %v6541
  %v6606 = vmul.f32 %v6577, %v6542
  %v6607 = vmul.f32 %v6581, %v6543
  %v6608 = vmul.f32 %v6581, %v6544
  %v6609 = vmul.f32 %v6585, %v6545
  %v6610 = vmul.f32 %v6585, %v6546
  %v6611 = vmul.f32 %v6589, %v6547
  %v6612 = vmul.f32 %v6589, %v6548
  %v6613 = vmul.f32 %v6593, %v6549
  %v6614 = vmul.f32 %v6593, %v6550
  %v6615 = vmul.f32 %v6597, %v6551
  %v6616 = vmul.f32 %v6597, %v6552
  %v6617 = vmul.f32 %v6601, %v6553
  %v6618 = vmul.f32 %v6601, %v6554
  %v6619 = vsel %vm6555, %v6539, %v6603
  %v6620 = vsel %vm6556, %v6540, %v6604
  %v6621 = vsel %vm6557, %v6541, %v6605
  %v6622 = vsel %vm6558, %v6542, %v6606
  %v6623 = vsel %vm6559, %v6543, %v6607
  %v6624 = vsel %vm6560, %v6544, %v6608
  %v6625 = vsel %vm6561, %v6545, %v6609
  %v6626 = vsel %vm6562, %v6546, %v6610
  %v6627 = vsel %vm6563, %v6547, %v6611
  %v6628 = vsel %vm6564, %v6548, %v6612
  %v6629 = vsel %vm6565, %v6549, %v6613
  %v6630 = vsel %vm6566, %v6550, %v6614
  %v6631 = vsel %vm6567, %v6551, %v6615
  %v6632 = vsel %vm6568, %v6552, %v6616
  %v6633 = vsel %vm6569, %v6553, %v6617
  %v6634 = vsel %vm6570, %v6554, %v6618
  %v6635 = vmul.f32 %v6619, %v6619
  %v6636 = vmul.f32 %v6621, %v6621
  %v6637 = vmul.f32 %v6623, %v6623
  %v6638 = vmul.f32 %v6625, %v6625
  %v6639 = vmul.f32 %v6627, %v6627
  %v6640 = vmul.f32 %v6629, %v6629
  %v6641 = vmul.f32 %v6631, %v6631
  %v6642 = vmul.f32 %v6633, %v6633
  %6643 = vadd.xlane.f32.xlu0 %v6619
  %v6644 = vpop.xlane.xlu0 %6643
  %6645 = vadd.xlane.f32.xlu0 %v6621
  %v6646 = vpop.xlane.xlu0 %6645
  %6647 = vadd.xlane.f32.xlu0 %v6623
  %v6648 = vpop.xlane.xlu0 %6647
  %6649 = vadd.xlane.f32.xlu0 %v6625
  %v6650 = vpop.xlane.xlu0 %6649
  %6651 = vadd.xlane.f32.xlu0 %v6627
  %v6652 = vpop.xlane.xlu0 %6651
  %6653 = vadd.xlane.f32.xlu0 %v6629
  %v6654 = vpop.xlane.xlu0 %6653
  %6655 = vadd.xlane.f32.xlu0 %v6631
  %v6656 = vpop.xlane.xlu0 %6655
  %6657 = vadd.xlane.f32.xlu0 %v6633
  %v6658 = vpop.xlane.xlu0 %6657
  %6659 = vadd.xlane.f32.xlu0 %v6635
  %v6660 = vpop.xlane.xlu0 %6659
  %6661 = vadd.xlane.f32.xlu0 %v6636
  %v6662 = vpop.xlane.xlu0 %6661
  %6663 = vadd.xlane.f32.xlu0 %v6637
  %v6664 = vpop.xlane.xlu0 %6663
  %6665 = vadd.xlane.f32.xlu0 %v6638
  %v6666 = vpop.xlane.xlu0 %6665
  %6667 = vadd.xlane.f32.xlu0 %v6639
  %v6668 = vpop.xlane.xlu0 %6667
  %6669 = vadd.xlane.f32.xlu0 %v6640
  %v6670 = vpop.xlane.xlu0 %6669
  %6671 = vadd.xlane.f32.xlu0 %v6641
  %v6672 = vpop.xlane.xlu0 %6671
  %6673 = vadd.xlane.f32.xlu0 %v6642
  %v6674 = vpop.xlane.xlu0 %6673
  %v6675 = vadd.f32 %v6644, %v6646
  %v6676 = vadd.f32 %v6675, %v6648
  %v6677 = vadd.f32 %v6676, %v6650
  %v6678 = vadd.f32 %v6677, %v6652
  %v6679 = vadd.f32 %v6678, %v6654
  %v6680 = vadd.f32 %v6679, %v6656
  %v6681 = vadd.f32 %v6680, %v6658
  %v6682 = vrot.slane %v6681, 4
  %v6683 = vadd.f32 %v6681, %v6682
  %v6684 = vrot.slane %v6683, 2
  %v6685 = vadd.f32 %v6683, %v6684
  %v6686 = vrot.slane %v6685, 1
  %v6687 = vadd.f32 %v6685, %v6686
  %v6688 = vmul.f32 %v6687, 0.00012207031
  %v6689 = vadd.f32 %v6660, %v6662
  %v6690 = vadd.f32 %v6689, %v6664
  %v6691 = vadd.f32 %v6690, %v6666
  %v6692 = vadd.f32 %v6691, %v6668
  %v6693 = vadd.f32 %v6692, %v6670
  %v6694 = vadd.f32 %v6693, %v6672
  %v6695 = vadd.f32 %v6694, %v6674
  %v6696 = vrot.slane %v6695, 4
  %v6697 = vadd.f32 %v6695, %v6696
  %v6698 = vrot.slane %v6697, 2
  %v6699 = vadd.f32 %v6697, %v6698
  %v6700 = vrot.slane %v6699, 1
  %v6701 = vadd.f32 %v6699, %v6700
  %v6702 = vmul.f32 %v6701, 0.00012207031
  %v6703 = vmul.f32 %v6688, %v6688
  %v6704 = vsub.f32 %v6702, %v6703
  %v6705 = vmax.f32 %v6704, 0.0
  %v6706 = vadd.f32 %v6705, 1e-08
  %v6707 = vrsqrt.pop %v6706
  %v6708 = vmul.f32 %v5493, %v6707
  %v6709 = vmul.f32 %v5494, %v6707
  %v6710 = vmul.f32 %v5495, %v6707
  %v6711 = vmul.f32 %v5496, %v6707
  %v6712 = vmul.f32 %v5497, %v6707
  %v6713 = vmul.f32 %v5498, %v6707
  %v6714 = vmul.f32 %v5499, %v6707
  %v6715 = vmul.f32 %v5500, %v6707
  %v6716 = vmul.f32 %v6688, %v6708
  %v6717 = vmul.f32 %v6688, %v6709
  %v6718 = vmul.f32 %v6688, %v6710
  %v6719 = vmul.f32 %v6688, %v6711
  %v6720 = vmul.f32 %v6688, %v6712
  %v6721 = vmul.f32 %v6688, %v6713
  %v6722 = vmul.f32 %v6688, %v6714
  %v6723 = vmul.f32 %v6688, %v6715
  %6732 = vrot.lane.b32.xlu0 %v6716, 1
  %v6733 = vpop.permute.xlu0 %6732
  %6734 = vrot.lane.b32.xlu0 %v6717, 1
  %v6735 = vpop.permute.xlu0 %6734
  %6736 = vrot.lane.b32.xlu0 %v6718, 1
  %v6737 = vpop.permute.xlu0 %6736
  %6738 = vrot.lane.b32.xlu0 %v6719, 1
  %v6739 = vpop.permute.xlu0 %6738
  %6740 = vrot.lane.b32.xlu0 %v6720, 1
  %v6741 = vpop.permute.xlu0 %6740
  %6742 = vrot.lane.b32.xlu0 %v6721, 1
  %v6743 = vpop.permute.xlu0 %6742
  %6744 = vrot.lane.b32.xlu0 %v6722, 1
  %v6745 = vpop.permute.xlu0 %6744
  %6746 = vrot.lane.b32.xlu0 %v6723, 1
  %v6747 = vpop.permute.xlu0 %6746
  %v6756 = vsub.f32 %v5493, %v6733
  %v6757 = vsub.f32 %v5494, %v6735
  %v6758 = vsub.f32 %v5495, %v6737
  %v6759 = vsub.f32 %v5496, %v6739
  %v6760 = vsub.f32 %v5497, %v6741
  %v6761 = vsub.f32 %v5498, %v6743
  %v6762 = vsub.f32 %v5499, %v6745
  %v6763 = vsub.f32 %v5500, %v6747
  %6765 = vset.pattern.permute.xlu0 7
  %6766 = vperm.xlu0 %6765, %v6708
  %v6767 = vpop.permute.xlu0 %6766
  %6770 = vset.pattern.permute.xlu0 7
  %6771 = vperm.xlu0 %6770, %v6709
  %v6772 = vpop.permute.xlu0 %6771
  %6775 = vset.pattern.permute.xlu0 7
  %6776 = vperm.xlu0 %6775, %v6710
  %v6777 = vpop.permute.xlu0 %6776
  %6780 = vset.pattern.permute.xlu0 7
  %6781 = vperm.xlu0 %6780, %v6711
  %v6782 = vpop.permute.xlu0 %6781
  %6785 = vset.pattern.permute.xlu0 7
  %6786 = vperm.xlu0 %6785, %v6712
  %v6787 = vpop.permute.xlu0 %6786
  %6790 = vset.pattern.permute.xlu0 7
  %6791 = vperm.xlu0 %6790, %v6713
  %v6792 = vpop.permute.xlu0 %6791
  %6795 = vset.pattern.permute.xlu0 7
  %6796 = vperm.xlu0 %6795, %v6714
  %v6797 = vpop.permute.xlu0 %6796
  %6800 = vset.pattern.permute.xlu0 7
  %6801 = vperm.xlu0 %6800, %v6715
  %v6802 = vpop.permute.xlu0 %6801
  %v6804 = vmul.f32 %v6619, %v6767
  %v6805 = vmul.f32 %v6621, %v6772
  %v6806 = vmul.f32 %v6623, %v6777
  %v6807 = vmul.f32 %v6625, %v6782
  %v6808 = vmul.f32 %v6627, %v6787
  %v6809 = vmul.f32 %v6629, %v6792
  %v6810 = vmul.f32 %v6631, %v6797
  %v6811 = vmul.f32 %v6633, %v6802
  %6813 = vset.pattern.permute.xlu0 8
  %6814 = vperm.xlu0 %6813, %v6756
  %v6815 = vpop.permute.xlu0 %6814
  %6818 = vset.pattern.permute.xlu0 8
  %6819 = vperm.xlu0 %6818, %v6757
  %v6820 = vpop.permute.xlu0 %6819
  %6823 = vset.pattern.permute.xlu0 8
  %6824 = vperm.xlu0 %6823, %v6758
  %v6825 = vpop.permute.xlu0 %6824
  %6828 = vset.pattern.permute.xlu0 8
  %6829 = vperm.xlu0 %6828, %v6759
  %v6830 = vpop.permute.xlu0 %6829
  %6833 = vset.pattern.permute.xlu0 8
  %6834 = vperm.xlu0 %6833, %v6760
  %v6835 = vpop.permute.xlu0 %6834
  %6838 = vset.pattern.permute.xlu0 8
  %6839 = vperm.xlu0 %6838, %v6761
  %v6840 = vpop.permute.xlu0 %6839
  %6843 = vset.pattern.permute.xlu0 8
  %6844 = vperm.xlu0 %6843, %v6762
  %v6845 = vpop.permute.xlu0 %6844
  %6848 = vset.pattern.permute.xlu0 8
  %6849 = vperm.xlu0 %6848, %v6763
  %v6850 = vpop.permute.xlu0 %6849
  %v6852 = vadd.f32 %v6804, %v6815
  %v6853 = vadd.f32 %v6805, %v6820
  %v6854 = vadd.f32 %v6806, %v6825
  %v6855 = vadd.f32 %v6807, %v6830
  %v6856 = vadd.f32 %v6808, %v6835
  %v6857 = vadd.f32 %v6809, %v6840
  %v6858 = vadd.f32 %v6810, %v6845
  %v6859 = vadd.f32 %v6811, %v6850
  %v6860 = vmul.f32 %v6620, %v6620
  %v6861 = vmul.f32 %v6622, %v6622
  %v6862 = vmul.f32 %v6624, %v6624
  %v6863 = vmul.f32 %v6626, %v6626
  %v6864 = vmul.f32 %v6628, %v6628
  %v6865 = vmul.f32 %v6630, %v6630
  %v6866 = vmul.f32 %v6632, %v6632
  %v6867 = vmul.f32 %v6634, %v6634
  %6868 = vadd.xlane.f32.xlu0 %v6620
  %v6869 = vpop.xlane.xlu0 %6868
  %6870 = vadd.xlane.f32.xlu0 %v6622
  %v6871 = vpop.xlane.xlu0 %6870
  %6872 = vadd.xlane.f32.xlu0 %v6624
  %v6873 = vpop.xlane.xlu0 %6872
  %6874 = vadd.xlane.f32.xlu0 %v6626
  %v6875 = vpop.xlane.xlu0 %6874
  %6876 = vadd.xlane.f32.xlu0 %v6628
  %v6877 = vpop.xlane.xlu0 %6876
  %6878 = vadd.xlane.f32.xlu0 %v6630
  %v6879 = vpop.xlane.xlu0 %6878
  %6880 = vadd.xlane.f32.xlu0 %v6632
  %v6881 = vpop.xlane.xlu0 %6880
  %6882 = vadd.xlane.f32.xlu0 %v6634
  %v6883 = vpop.xlane.xlu0 %6882
  %6884 = vadd.xlane.f32.xlu0 %v6860
  %v6885 = vpop.xlane.xlu0 %6884
  %6886 = vadd.xlane.f32.xlu0 %v6861
  %v6887 = vpop.xlane.xlu0 %6886
  %6888 = vadd.xlane.f32.xlu0 %v6862
  %v6889 = vpop.xlane.xlu0 %6888
  %6890 = vadd.xlane.f32.xlu0 %v6863
  %v6891 = vpop.xlane.xlu0 %6890
  %6892 = vadd.xlane.f32.xlu0 %v6864
  %v6893 = vpop.xlane.xlu0 %6892
  %6894 = vadd.xlane.f32.xlu0 %v6865
  %v6895 = vpop.xlane.xlu0 %6894
  %6896 = vadd.xlane.f32.xlu0 %v6866
  %v6897 = vpop.xlane.xlu0 %6896
  %6898 = vadd.xlane.f32.xlu0 %v6867
  %v6899 = vpop.xlane.xlu0 %6898
  %v6900 = vadd.f32 %v6869, %v6871
  %v6901 = vadd.f32 %v6900, %v6873
  %v6902 = vadd.f32 %v6901, %v6875
  %v6903 = vadd.f32 %v6902, %v6877
  %v6904 = vadd.f32 %v6903, %v6879
  %v6905 = vadd.f32 %v6904, %v6881
  %v6906 = vadd.f32 %v6905, %v6883
  %v6907 = vrot.slane %v6906, 4
  %v6908 = vadd.f32 %v6906, %v6907
  %v6909 = vrot.slane %v6908, 2
  %v6910 = vadd.f32 %v6908, %v6909
  %v6911 = vrot.slane %v6910, 1
  %v6912 = vadd.f32 %v6910, %v6911
  %v6913 = vmul.f32 %v6912, 0.00012207031
  %v6914 = vadd.f32 %v6885, %v6887
  %v6915 = vadd.f32 %v6914, %v6889
  %v6916 = vadd.f32 %v6915, %v6891
  %v6917 = vadd.f32 %v6916, %v6893
  %v6918 = vadd.f32 %v6917, %v6895
  %v6919 = vadd.f32 %v6918, %v6897
  %v6920 = vadd.f32 %v6919, %v6899
  %v6921 = vrot.slane %v6920, 4
  %v6922 = vadd.f32 %v6920, %v6921
  %v6923 = vrot.slane %v6922, 2
  %v6924 = vadd.f32 %v6922, %v6923
  %v6925 = vrot.slane %v6924, 1
  %v6926 = vadd.f32 %v6924, %v6925
  %v6927 = vmul.f32 %v6926, 0.00012207031
  %v6928 = vmul.f32 %v6913, %v6913
  %v6929 = vsub.f32 %v6927, %v6928
  %v6930 = vmax.f32 %v6929, 0.0
  %v6931 = vadd.f32 %v6930, 1e-08
  %v6932 = vrsqrt.pop %v6931
  %v6933 = vmul.f32 %v5493, %v6932
  %v6934 = vmul.f32 %v5494, %v6932
  %v6935 = vmul.f32 %v5495, %v6932
  %v6936 = vmul.f32 %v5496, %v6932
  %v6937 = vmul.f32 %v5497, %v6932
  %v6938 = vmul.f32 %v5498, %v6932
  %v6939 = vmul.f32 %v5499, %v6932
  %v6940 = vmul.f32 %v5500, %v6932
  %v6941 = vmul.f32 %v6913, %v6933
  %v6942 = vmul.f32 %v6913, %v6934
  %v6943 = vmul.f32 %v6913, %v6935
  %v6944 = vmul.f32 %v6913, %v6936
  %v6945 = vmul.f32 %v6913, %v6937
  %v6946 = vmul.f32 %v6913, %v6938
  %v6947 = vmul.f32 %v6913, %v6939
  %v6948 = vmul.f32 %v6913, %v6940
  %6957 = vrot.lane.b32.xlu0 %v6941, 1
  %v6958 = vpop.permute.xlu0 %6957
  %6959 = vrot.lane.b32.xlu0 %v6942, 1
  %v6960 = vpop.permute.xlu0 %6959
  %6961 = vrot.lane.b32.xlu0 %v6943, 1
  %v6962 = vpop.permute.xlu0 %6961
  %6963 = vrot.lane.b32.xlu0 %v6944, 1
  %v6964 = vpop.permute.xlu0 %6963
  %6965 = vrot.lane.b32.xlu0 %v6945, 1
  %v6966 = vpop.permute.xlu0 %6965
  %6967 = vrot.lane.b32.xlu0 %v6946, 1
  %v6968 = vpop.permute.xlu0 %6967
  %6969 = vrot.lane.b32.xlu0 %v6947, 1
  %v6970 = vpop.permute.xlu0 %6969
  %6971 = vrot.lane.b32.xlu0 %v6948, 1
  %v6972 = vpop.permute.xlu0 %6971
  %v6981 = vsub.f32 %v5493, %v6958
  %v6982 = vsub.f32 %v5494, %v6960
  %v6983 = vsub.f32 %v5495, %v6962
  %v6984 = vsub.f32 %v5496, %v6964
  %v6985 = vsub.f32 %v5497, %v6966
  %v6986 = vsub.f32 %v5498, %v6968
  %v6987 = vsub.f32 %v5499, %v6970
  %v6988 = vsub.f32 %v5500, %v6972
  %6990 = vset.pattern.permute.xlu0 7
  %6991 = vperm.xlu0 %6990, %v6933
  %v6992 = vpop.permute.xlu0 %6991
  %6995 = vset.pattern.permute.xlu0 7
  %6996 = vperm.xlu0 %6995, %v6934
  %v6997 = vpop.permute.xlu0 %6996
  %7000 = vset.pattern.permute.xlu0 7
  %7001 = vperm.xlu0 %7000, %v6935
  %v7002 = vpop.permute.xlu0 %7001
  %7005 = vset.pattern.permute.xlu0 7
  %7006 = vperm.xlu0 %7005, %v6936
  %v7007 = vpop.permute.xlu0 %7006
  %7010 = vset.pattern.permute.xlu0 7
  %7011 = vperm.xlu0 %7010, %v6937
  %v7012 = vpop.permute.xlu0 %7011
  %7015 = vset.pattern.permute.xlu0 7
  %7016 = vperm.xlu0 %7015, %v6938
  %v7017 = vpop.permute.xlu0 %7016
  %7020 = vset.pattern.permute.xlu0 7
  %7021 = vperm.xlu0 %7020, %v6939
  %v7022 = vpop.permute.xlu0 %7021
  %7025 = vset.pattern.permute.xlu0 7
  %7026 = vperm.xlu0 %7025, %v6940
  %v7027 = vpop.permute.xlu0 %7026
  %v7029 = vmul.f32 %v6620, %v6992
  %v7030 = vmul.f32 %v6622, %v6997
  %v7031 = vmul.f32 %v6624, %v7002
  %v7032 = vmul.f32 %v6626, %v7007
  %v7033 = vmul.f32 %v6628, %v7012
  %v7034 = vmul.f32 %v6630, %v7017
  %v7035 = vmul.f32 %v6632, %v7022
  %v7036 = vmul.f32 %v6634, %v7027
  %7038 = vset.pattern.permute.xlu0 8
  %7039 = vperm.xlu0 %7038, %v6981
  %v7040 = vpop.permute.xlu0 %7039
  %7043 = vset.pattern.permute.xlu0 8
  %7044 = vperm.xlu0 %7043, %v6982
  %v7045 = vpop.permute.xlu0 %7044
  %7048 = vset.pattern.permute.xlu0 8
  %7049 = vperm.xlu0 %7048, %v6983
  %v7050 = vpop.permute.xlu0 %7049
  %7053 = vset.pattern.permute.xlu0 8
  %7054 = vperm.xlu0 %7053, %v6984
  %v7055 = vpop.permute.xlu0 %7054
  %7058 = vset.pattern.permute.xlu0 8
  %7059 = vperm.xlu0 %7058, %v6985
  %v7060 = vpop.permute.xlu0 %7059
  %7063 = vset.pattern.permute.xlu0 8
  %7064 = vperm.xlu0 %7063, %v6986
  %v7065 = vpop.permute.xlu0 %7064
  %7068 = vset.pattern.permute.xlu0 8
  %7069 = vperm.xlu0 %7068, %v6987
  %v7070 = vpop.permute.xlu0 %7069
  %7073 = vset.pattern.permute.xlu0 8
  %7074 = vperm.xlu0 %7073, %v6988
  %v7075 = vpop.permute.xlu0 %7074
  %v7077 = vadd.f32 %v7029, %v7040
  %v7078 = vadd.f32 %v7030, %v7045
  %v7079 = vadd.f32 %v7031, %v7050
  %v7080 = vadd.f32 %v7032, %v7055
  %v7081 = vadd.f32 %v7033, %v7060
  %v7082 = vadd.f32 %v7034, %v7065
  %v7083 = vadd.f32 %v7035, %v7070
  %v7084 = vadd.f32 %v7036, %v7075
  %s7085 = scalar_lea.vmem %s6, 48
  %v7086 = vld [vmem:[%s7085] sm:$0xf]
  %v7087 = vld [vmem:[%s7085 + $0x4] sm:$0xf]
  %v7088 = vld [vmem:[%s7085 + $0x8] sm:$0xf]
  %v7089 = vld [vmem:[%s7085 + $0xc] sm:$0xf]
  %v7090 = vpack.c.bf16 %v6853, %v6852
  %v7091 = vpack.c.bf16 %v7078, %v7077
  %v7092 = vpack.c.bf16 %v6855, %v6854
  %v7093 = vpack.c.bf16 %v7080, %v7079
  %v7094 = vpack.c.bf16 %v6857, %v6856
  %v7095 = vpack.c.bf16 %v7082, %v7081
  %v7096 = vpack.c.bf16 %v6859, %v6858
  %v7097 = vpack.c.bf16 %v7084, %v7083
  %s7098 = scalar_lea.vmem %s7, 96
  %v7099 = vld [vmem:[%s7098] sm:$0xff]
  %v7100 = vld [vmem:[%s7098 + $0x8] sm:$0xff]
  %v7101 = vld [vmem:[%s7098 + $0x10] sm:$0xff]
  %v7102 = vld [vmem:[%s7098 + $0x18] sm:$0xff]
  %7104 = vset.pattern.permute.xlu0 0
  %7105 = vperm.xlu0 %7104, %v7099
  %v7106 = vpop.permute.xlu0 %7105
  %7108 = vset.pattern.permute.xlu0 0
  %7109 = vperm.xlu0 %7108, %v7100
  %v7110 = vpop.permute.xlu0 %7109
  %7112 = vset.pattern.permute.xlu0 0
  %7113 = vperm.xlu0 %7112, %v7101
  %v7114 = vpop.permute.xlu0 %7113
  %7117 = vset.pattern.permute.xlu0 0
  %7118 = vperm.xlu0 %7117, %v7102
  %v7119 = vpop.permute.xlu0 %7118
  %v7125 = vunpack.c.l.b16 %v7086
  %v7126 = vunpack.c.l.b16 %v7087
  %v7127 = vunpack.c.l.b16 %v7088
  %v7128 = vunpack.c.l.b16 %v7089
  %v7129 = vpack.c.b16 %v7126, %v7125
  %v7130 = vpack.c.b16 %v7128, %v7127
  %v7132 = vsel %vm2006, %v7129, 0
  %v7135 = vsel %vm2006, %v7130, 0
  %7137 = vmatprep.subr.bf16.mxu0 0
  %7138 = vmatpush1.bf16.msra.mxu0 0
  %7139 = vmatprep.subr.bf16.mxu0 0
  %7140 = vmatpush1.bf16.msra.mxu0 0
  %7141 = vmatprep.subr.bf16.mxu0 0
  %7142 = vmatpush1.bf16.msra.mxu0 0
  %7143 = vmatprep.subr.bf16.mxu0 0
  %7144 = vmatpush1.bf16.msra.mxu0 0
  %7145 = vmatprep.subr.bf16.mxu0 %v7097
  %7146 = vmatpush1.bf16.msra.mxu0 %v7096
  %7147 = vmatprep.subr.bf16.mxu0 %v7095
  %7148 = vmatpush1.bf16.msra.mxu0 %v7094
  %7149 = vmatprep.subr.bf16.mxu0 %v7093
  %7150 = vmatpush1.bf16.msra.mxu0 %v7092
  %7151 = vmatprep.subr.bf16.mxu0 %v7091
  %7152 = vmatpush1.bf16.msra.mxu0 %v7090
  %7153 = vmatprep.subr.bf16.mxu0 0
  %7154 = vmatpush2.bf16.msra.mxu0 0
  %7155 = vmatprep.subr.bf16.mxu0 0
  %7156 = vmatpush2.bf16.msra.mxu0 0
  %7157 = vmatprep.subr.bf16.mxu0 0
  %7158 = vmatpush2.bf16.msra.mxu0 0
  %7159 = vmatprep.subr.bf16.mxu0 0
  %7160 = vmatpush2.bf16.msra.mxu0 0
  %7161 = vmatprep.subr.bf16.mxu0 0
  %7162 = vmatpush2.bf16.msra.mxu0 0
  %7163 = vmatprep.subr.bf16.mxu0 0
  %7164 = vmatpush2.bf16.msra.mxu0 0
  %7165 = vmatprep.subr.bf16.mxu0 0
  %7166 = vmatpush2.bf16.msra.mxu0 0
  %7167 = vmatprep.subr.bf16.mxu0 0
  %7168 = vmatpush2.bf16.msra.mxu0 0
  %7169 = vmatprep.mubr.bf16.mxu0 0
  %7170 = vmatmul.mubr.bf16.gmra.mxu0 %v7132
  %v7171 = vpop.f32.mrf.mxu0
  %v7172 = vpop.f32.mrf.mxu0
  %v7173 = vpop.f32.mrf.mxu0
  %v7174 = vpop.f32.mrf.mxu0
  %7175 = vmatprep.mubr.bf16.mxu0 0
  %7176 = vmatmul.mubr.bf16.gmra.mxu0 %v7135
  %v7177 = vpop.f32.mrf.mxu0
  %v7178 = vadd.f32 %v7114, %v7177
  %v7179 = vpop.f32.mrf.mxu0
  %v7180 = vadd.f32 %v7114, %v7179
  %v7181 = vpop.f32.mrf.mxu0
  %v7182 = vadd.f32 %v7119, %v7181
  %v7183 = vpop.f32.mrf.mxu0
  %v7184 = vadd.f32 %v7119, %v7183
  %7185 = vdwg.mxu0
  %v7186 = vadd.f32 %v5488, %v7178
  %v7187 = vadd.f32 %v5489, %v7180
  %v7188 = vadd.f32 %v5490, %v7182
  %v7189 = vadd.f32 %v5491, %v7184
  %vm7190 = vcmp.gt.f32.partialorder %v7186, 0.0
  %vm7191 = vcmp.gt.f32.partialorder %v7187, 0.0
  %vm7192 = vcmp.gt.f32.partialorder %v7188, 0.0
  %vm7193 = vcmp.gt.f32.partialorder %v7189, 0.0
  %v7194 = vld [vmem:[%s10] sm:$0xff]
  %v7195 = vld [vmem:[%s10 + $0x8] sm:$0xff]
  %7197 = vset.pattern.permute.xlu0 0
  %7198 = vperm.xlu0 %7197, %v7194
  %v7199 = vpop.permute.xlu0 %7198
  %7202 = vset.pattern.permute.xlu0 0
  %7203 = vperm.xlu0 %7202, %v7195
  %v7204 = vpop.permute.xlu0 %7203
  %v7206 = vmul.f32 %v7199, %v7186
  %v7207 = vmul.f32 %v7199, %v7187
  %v7208 = vmul.f32 %v7204, %v7188
  %v7209 = vmul.f32 %v7204, %v7189
  %v7210 = vsel %vm7190, %v7186, %v7206
  %v7211 = vsel %vm7191, %v7187, %v7207
  %v7212 = vsel %vm7192, %v7188, %v7208
  %v7213 = vsel %vm7193, %v7189, %v7209
  %v7214 = vld [vmem:[%s8] sm:$0xf]
  %v7215 = vld [vmem:[%s8 + $0x4] sm:$0xf]
  %v7216 = vld [vmem:[%s8 + $0x8] sm:$0xf]
  %v7217 = vld [vmem:[%s8 + $0xc] sm:$0xf]
  %v7218 = vpack.c.bf16 %v7212, %v7210
  %v7219 = vpack.c.bf16 %v7213, %v7211
  %v7220 = vld [vmem:[%s9] sm:$0xff]
  %v7221 = vld [vmem:[%s9 + $0x8] sm:$0xff]
  %v7222 = vld [vmem:[%s9 + $0x10] sm:$0xff]
  %v7223 = vld [vmem:[%s9 + $0x18] sm:$0xff]
  %7225 = vset.pattern.permute.xlu0 0
  %7226 = vperm.xlu0 %7225, %v7220
  %v7227 = vpop.permute.xlu0 %7226
  %7230 = vset.pattern.permute.xlu0 0
  %7231 = vperm.xlu0 %7230, %v7221
  %v7232 = vpop.permute.xlu0 %7231
  %7235 = vset.pattern.permute.xlu0 0
  %7236 = vperm.xlu0 %7235, %v7222
  %v7237 = vpop.permute.xlu0 %7236
  %7240 = vset.pattern.permute.xlu0 0
  %7241 = vperm.xlu0 %7240, %v7223
  %v7242 = vpop.permute.xlu0 %7241
  %v7248 = vunpack.c.l.b16 %v7214
  %v7249 = vunpack.c.l.b16 %v7215
  %v7250 = vunpack.c.l.b16 %v7216
  %v7251 = vunpack.c.l.b16 %v7217
  %v7252 = vpack.c.b16 %v7249, %v7248
  %v7253 = vpack.c.b16 %v7251, %v7250
  %v7255 = vsel %vm444, %v7252, 0
  %v7258 = vsel %vm444, %v7253, 0
  %7260 = vmatprep.subr.bf16.mxu0 0
  %7261 = vmatpush1.bf16.msra.mxu0 0
  %7262 = vmatprep.subr.bf16.mxu0 0
  %7263 = vmatpush1.bf16.msra.mxu0 0
  %7264 = vmatprep.subr.bf16.mxu0 0
  %7265 = vmatpush1.bf16.msra.mxu0 0
  %7266 = vmatprep.subr.bf16.mxu0 0
  %7267 = vmatpush1.bf16.msra.mxu0 0
  %7268 = vmatprep.subr.bf16.mxu0 0
  %7269 = vmatpush1.bf16.msra.mxu0 0
  %7270 = vmatprep.subr.bf16.mxu0 0
  %7271 = vmatpush1.bf16.msra.mxu0 0
  %7272 = vmatprep.subr.bf16.mxu0 0
  %7273 = vmatpush1.bf16.msra.mxu0 0
  %7274 = vmatprep.subr.bf16.mxu0 %v7219
  %7275 = vmatpush1.bf16.msra.mxu0 %v7218
  %7276 = vmatprep.subr.bf16.mxu0 0
  %7277 = vmatpush2.bf16.msra.mxu0 0
  %7278 = vmatprep.subr.bf16.mxu0 0
  %7279 = vmatpush2.bf16.msra.mxu0 0
  %7280 = vmatprep.subr.bf16.mxu0 0
  %7281 = vmatpush2.bf16.msra.mxu0 0
  %7282 = vmatprep.subr.bf16.mxu0 0
  %7283 = vmatpush2.bf16.msra.mxu0 0
  %7284 = vmatprep.subr.bf16.mxu0 0
  %7285 = vmatpush2.bf16.msra.mxu0 0
  %7286 = vmatprep.subr.bf16.mxu0 0
  %7287 = vmatpush2.bf16.msra.mxu0 0
  %7288 = vmatprep.subr.bf16.mxu0 0
  %7289 = vmatpush2.bf16.msra.mxu0 0
  %7290 = vmatprep.subr.bf16.mxu0 0
  %7291 = vmatpush2.bf16.msra.mxu0 0
  %7292 = vmatprep.mubr.bf16.mxu0 0
  %7293 = vmatmul.mubr.bf16.gmra.mxu0 %v7255
  %v7294 = vpop.f32.mrf.mxu0
  %v7295 = vadd.f32 %v7227, %v7294
  %v7296 = vpop.f32.mrf.mxu0
  %v7297 = vadd.f32 %v7227, %v7296
  %v7298 = vpop.f32.mrf.mxu0
  %v7299 = vadd.f32 %v7232, %v7298
  %v7300 = vpop.f32.mrf.mxu0
  %v7301 = vadd.f32 %v7232, %v7300
  %7302 = vmatprep.mubr.bf16.mxu0 0
  %7303 = vmatmul.mubr.bf16.gmra.mxu0 %v7258
  %v7304 = vpop.f32.mrf.mxu0
  %v7305 = vadd.f32 %v7237, %v7304
  %v7306 = vpop.f32.mrf.mxu0
  %v7307 = vadd.f32 %v7237, %v7306
  %v7308 = vpop.f32.mrf.mxu0
  %v7309 = vadd.f32 %v7242, %v7308
  %v7310 = vpop.f32.mrf.mxu0
  %v7311 = vadd.f32 %v7242, %v7310
  %7312 = vdwg.mxu0
  %v7313 = vxor.u32 %v7295, 2147483648
  %v7314 = vxor.u32 %v7297, 2147483648
  %v7315 = vxor.u32 %v7299, 2147483648
  %v7316 = vxor.u32 %v7301, 2147483648
  %v7317 = vxor.u32 %v7305, 2147483648
  %v7318 = vxor.u32 %v7307, 2147483648
  %v7319 = vxor.u32 %v7309, 2147483648
  %v7320 = vxor.u32 %v7311, 2147483648
  %v7321 = vmul.f32 %v7313, 1.442695
  %v7322 = vpow.pop %v7321
  %v7323 = vmul.f32 %v7314, 1.442695
  %v7324 = vpow.pop %v7323
  %v7325 = vmul.f32 %v7315, 1.442695
  %v7326 = vpow.pop %v7325
  %v7327 = vmul.f32 %v7316, 1.442695
  %v7328 = vpow.pop %v7327
  %v7329 = vmul.f32 %v7317, 1.442695
  %v7330 = vpow.pop %v7329
  %v7331 = vmul.f32 %v7318, 1.442695
  %v7332 = vpow.pop %v7331
  %v7333 = vmul.f32 %v7319, 1.442695
  %v7334 = vpow.pop %v7333
  %v7335 = vmul.f32 %v7320, 1.442695
  %v7336 = vpow.pop %v7335
  %v7337 = vadd.f32 %v7322, 1.0
  %v7338 = vadd.f32 %v7324, 1.0
  %v7339 = vadd.f32 %v7326, 1.0
  %v7340 = vadd.f32 %v7328, 1.0
  %v7341 = vadd.f32 %v7330, 1.0
  %v7342 = vadd.f32 %v7332, 1.0
  %v7343 = vadd.f32 %v7334, 1.0
  %v7344 = vadd.f32 %v7336, 1.0
  %v7345 = vrcp.pop %v7337
  %v7346 = vmul.f32 1.0, %v7345
  %v7347 = vrcp.pop %v7338
  %v7348 = vmul.f32 1.0, %v7347
  %v7349 = vrcp.pop %v7339
  %v7350 = vmul.f32 1.0, %v7349
  %v7351 = vrcp.pop %v7340
  %v7352 = vmul.f32 1.0, %v7351
  %v7353 = vrcp.pop %v7341
  %v7354 = vmul.f32 1.0, %v7353
  %v7355 = vrcp.pop %v7342
  %v7356 = vmul.f32 1.0, %v7355
  %v7357 = vrcp.pop %v7343
  %v7358 = vmul.f32 1.0, %v7357
  %v7359 = vrcp.pop %v7344
  %v7360 = vmul.f32 1.0, %v7359
  %v7361 = vld [vmem:[%s11] sm:$0x1]
  %v7362 = vmul.f32 %v42, %v7346
  %v7363 = vmul.f32 %v43, %v7348
  %v7364 = vmul.f32 %v44, %v7350
  %v7365 = vmul.f32 %v45, %v7352
  %v7366 = vmul.f32 %v46, %v7354
  %v7367 = vmul.f32 %v47, %v7356
  %v7368 = vmul.f32 %v48, %v7358
  %v7369 = vmul.f32 %v49, %v7360
  %v7370 = vpack.c.bf16 %v7364, %v7362
  %v7371 = vpack.c.bf16 %v7365, %v7363
  %v7372 = vpack.c.bf16 %v7368, %v7366
  %v7373 = vpack.c.bf16 %v7369, %v7367
  %v7375 = vsel %vm319, %v7361, 0
  %7377 = vmatprep.subr.bf16.mxu0 0
  %7378 = vmatpush1.bf16.msra.mxu0 0
  %7379 = vmatprep.subr.bf16.mxu0 0
  %7380 = vmatpush1.bf16.msra.mxu0 0
  %7381 = vmatprep.subr.bf16.mxu0 0
  %7382 = vmatpush1.bf16.msra.mxu0 0
  %7383 = vmatprep.subr.bf16.mxu0 0
  %7384 = vmatpush1.bf16.msra.mxu0 0
  %7385 = vmatprep.subr.bf16.mxu0 0
  %7386 = vmatpush1.bf16.msra.mxu0 0
  %7387 = vmatprep.subr.bf16.mxu0 0
  %7388 = vmatpush1.bf16.msra.mxu0 0
  %7389 = vmatprep.subr.bf16.mxu0 %v7373
  %7390 = vmatpush1.bf16.msra.mxu0 %v7372
  %7391 = vmatprep.subr.bf16.mxu0 %v7371
  %7392 = vmatpush1.bf16.msra.mxu0 %v7370
  %7393 = vmatprep.subr.bf16.mxu0 0
  %7394 = vmatpush2.bf16.msra.mxu0 0
  %7395 = vmatprep.subr.bf16.mxu0 0
  %7396 = vmatpush2.bf16.msra.mxu0 0
  %7397 = vmatprep.subr.bf16.mxu0 0
  %7398 = vmatpush2.bf16.msra.mxu0 0
  %7399 = vmatprep.subr.bf16.mxu0 0
  %7400 = vmatpush2.bf16.msra.mxu0 0
  %7401 = vmatprep.subr.bf16.mxu0 0
  %7402 = vmatpush2.bf16.msra.mxu0 0
  %7403 = vmatprep.subr.bf16.mxu0 0
  %7404 = vmatpush2.bf16.msra.mxu0 0
  %7405 = vmatprep.subr.bf16.mxu0 0
  %7406 = vmatpush2.bf16.msra.mxu0 0
  %7407 = vmatprep.subr.bf16.mxu0 0
  %7408 = vmatpush2.bf16.msra.mxu0 0
  %7409 = vmatprep.mubr.bf16.mxu0 0
  %7410 = vmatmul.mubr.bf16.gmra.mxu0 %v7375
  %v7411 = vpop.f32.mrf.mxu0
  %v7412 = vadd.f32 0.0, %v7411
  %v7413 = vpop.f32.mrf.mxu0
  %v7414 = vadd.f32 0.0, %v7413
  %v7415 = vpop.f32.mrf.mxu0
  %v7416 = vpop.f32.mrf.mxu0
  %7417 = vdwg.mxu0
  %v7418 = vpack.c.bf16 %v44, %v42
  %v7419 = vpack.c.bf16 %v45, %v43
  %v7420 = vpack.c.bf16 %v48, %v46
  %v7421 = vpack.c.bf16 %v49, %v47
  %7422 = vmatprep.subr.bf16.mxu0 0
  %7423 = vmatpush1.bf16.msra.mxu0 0
  %7424 = vmatprep.subr.bf16.mxu0 0
  %7425 = vmatpush1.bf16.msra.mxu0 0
  %7426 = vmatprep.subr.bf16.mxu0 0
  %7427 = vmatpush1.bf16.msra.mxu0 0
  %7428 = vmatprep.subr.bf16.mxu0 0
  %7429 = vmatpush1.bf16.msra.mxu0 0
  %7430 = vmatprep.subr.bf16.mxu0 0
  %7431 = vmatpush1.bf16.msra.mxu0 0
  %7432 = vmatprep.subr.bf16.mxu0 0
  %7433 = vmatpush1.bf16.msra.mxu0 0
  %7434 = vmatprep.subr.bf16.mxu0 %v7421
  %7435 = vmatpush1.bf16.msra.mxu0 %v7420
  %7436 = vmatprep.subr.bf16.mxu0 %v7419
  %7437 = vmatpush1.bf16.msra.mxu0 %v7418
  %7438 = vmatprep.subr.bf16.mxu0 0
  %7439 = vmatpush2.bf16.msra.mxu0 0
  %7440 = vmatprep.subr.bf16.mxu0 0
  %7441 = vmatpush2.bf16.msra.mxu0 0
  %7442 = vmatprep.subr.bf16.mxu0 0
  %7443 = vmatpush2.bf16.msra.mxu0 0
  %7444 = vmatprep.subr.bf16.mxu0 0
  %7445 = vmatpush2.bf16.msra.mxu0 0
  %7446 = vmatprep.subr.bf16.mxu0 0
  %7447 = vmatpush2.bf16.msra.mxu0 0
  %7448 = vmatprep.subr.bf16.mxu0 0
  %7449 = vmatpush2.bf16.msra.mxu0 0
  %7450 = vmatprep.subr.bf16.mxu0 0
  %7451 = vmatpush2.bf16.msra.mxu0 0
  %7452 = vmatprep.subr.bf16.mxu0 0
  %7453 = vmatpush2.bf16.msra.mxu0 0
  %7454 = vmatprep.mubr.bf16.mxu0 0
  %7455 = vmatmul.mubr.bf16.gmra.mxu0 %v7375
  %v7456 = vpop.f32.mrf.mxu0
  %v7457 = vadd.f32 0.0, %v7456
  %v7458 = vpop.f32.mrf.mxu0
  %v7459 = vadd.f32 0.0, %v7458
  %v7460 = vpop.f32.mrf.mxu0
  %v7461 = vpop.f32.mrf.mxu0
  %7462 = vdwg.mxu0
  %v7463 = vsub.f32 %v7457, %v7412
  %v7464 = vsub.f32 %v7459, %v7414
  %7467 = vrot.lane.b32.xlu0 %v7412, 127
  %v7468 = vpop.permute.xlu0 %7467
  %7469 = vrot.lane.b32.xlu0 %v7414, 127
  %v7470 = vpop.permute.xlu0 %7469
  %v7471 = vsel %vm1189, %v7468, %v7470
  %v7474 = vsel %vm1189, %v7470, 0.0
  %v7475 = vrot.slane %v7412, 1
  %v7476 = vrot.slane %v7414, 1
  %v7479 = vadd.f32 %v7471, %v7475
  %v7480 = vadd.f32 %v7474, %v7476
  %7483 = vrot.lane.b32.xlu0 %v7463, 127
  %v7484 = vpop.permute.xlu0 %7483
  %7485 = vrot.lane.b32.xlu0 %v7464, 127
  %v7486 = vpop.permute.xlu0 %7485
  %v7487 = vsel %vm1189, %v7484, %v7486
  %v7490 = vsel %vm1189, %v7486, 0.0
  %v7491 = vrot.slane %v7463, 1
  %v7492 = vrot.slane %v7464, 1
  %v7495 = vadd.f32 %v7487, %v7491
  %v7496 = vadd.f32 %v7490, %v7492
  %v7499 = vrot.slane %v7495, 7
  %v7500 = vrot.slane %v7496, 7
  %vm7503 = vcmask 1040384
  %v7504 = vsel %vm7503, %v7479, %v7499
  %v7505 = vsel %vm7503, %v7480, %v7500
  %v7508 = vcombine.low %v7504, %v7505
  %v7510 = vunpack.c.l.s4 1983009808
  %v7511 = vunpack.c.0.s8 %v7510
  %v7512 = vlaneseq
  %v7513 = vshrl.u32 %v7512, 7
  %v7514 = vsub.s32 %v7511, %v7513
  %v7515 = vrot.slane %v7508, %v7514
  %7517 = vst [vmem:[%s12] sm:$0xf] %v7515
  // Predicated region
  $region50: #{tasnet_forward.1} parent=0 // pred_check
    _
  $region51: #{tasnet_forward.1} parent=0 // pred_check_branch
    %7519 = sbr.rel (0) target = $region53
  $region52: #{tasnet_forward.1} parent=0 // pred_region
    _
  $region53: #{tasnet_forward.1} parent=0 // pred_fallthru
    _
  // Predicated region
  $region54: #{tasnet_forward.1} parent=0 // pred_check
    _
  $region55: #{tasnet_forward.1} parent=0 // pred_check_branch
    %7521 = sbr.rel (0) target = $region57
  $region56: #{tasnet_forward.1} parent=0 // pred_region
    _
  $region57: #{tasnet_forward.1} parent=0 // pred_fallthru
    _

</llo_original>
